<compile_context>
chip_gen: v6e
topology: v6e:2x2x1
jax: 0.10.0
libtpu: 0.0.40
codegen_flags: <defaults>
</compile_context>

<pallas_src>
import functools
import math

import numpy as np
import jax
import jax.numpy as jnp
from jax.experimental import pallas as pl
from jax.experimental.pallas import tpu as pltpu  # noqa: F401  (TPU backend)

# ----------------------------- configuration -------------------------------
NUM_JOINTS = 8
HIDDEN_DIM = 32
NUM_HEADS = 4
HEAD_DIM = HIDDEN_DIM // NUM_HEADS
PATCH_SIZE = 2
ACTION_CTX_LEN = 8          # max_action_context_length
IMU_CTX_LEN = 8             # imu_context_length
JOINT_STATE_CTX_LEN = 8     # joint_state_context_length
TRAJ_LEN = 8                # trajectory_prediction_length
NUM_ENC_LAYERS = 1          # per-modality encoder layers
NUM_DEC_LAYERS = 1          # diffusion decoder layers
NUM_GAME_STATES = 4
FFN_MULT = 4
BATCH = 2

ENC_TOKENS = ACTION_CTX_LEN // PATCH_SIZE            # 4 tokens per sequence encoder
CTX_VALID = 3 * BATCH * ENC_TOKENS + 2 * BATCH       # 28 valid context key rows
CTX_KV_ROWS = ((CTX_VALID + 7) // 8) * 8              # padded to 32 (8-row aligned)
OUT_LANES = 128                                        # lane-dense output slab
SLAB_WIDTH = 128


# --------------------- static masks (host, built once) ----------------------
def _block_mask_np(batch, lq, lk):
    """0 where the query row and key column belong to the same batch element,
    -1e9 otherwise (rows/cols are batch-major blocks of size lq / lk)."""
    rb = np.arange(batch * lq)[:, None] // lq
    cb = np.arange(batch * lk)[None, :] // lk
    return np.where(rb == cb, 0.0, -1e9).astype(np.float32)


def _cross_mask_np(batch):
    """Cross-attention mask for the modality-major context layout
       cols = [act(b0..), imu(b0..), js(b0..), gs(b0..), step(b0..), pad]."""
    T = ENC_TOKENS
    n = batch * T
    rb = np.arange(batch * TRAJ_LEN)[:, None] // TRAJ_LEN
    c = np.arange(CTX_KV_ROWS)[None, :]
    cb = np.where(c < 3 * n, (c % n) // T, (c - 3 * n) % batch)
    ok = (rb == cb) & (c < CTX_VALID)
    return np.where(ok, 0.0, -1e9).astype(np.float32)


# ----------------------- one-time weight slab packing -----------------------
class _SlabBuilder:
    """Packs 2-D (or 1-D) f32 arrays into one (ROWS, 128) slab.  Each item is
    zero-padded to 128 lanes and its row count rounded up to a multiple of 8,
    so every in-kernel slice starts on an (8,128)-tile boundary."""

    def __init__(self, width=SLAB_WIDTH):
        self.width = width
        self.pieces = []
        self.offsets = {}
        self.cur = 0

    def add(self, name, arr):
        a = np.asarray(arr, dtype=np.float32)
        if a.ndim == 1:
            a = a.reshape(1, -1)
        r, c = a.shape
        assert c <= self.width, (name, a.shape)
        rp = ((r + 7) // 8) * 8
        buf = np.zeros((rp, self.width), np.float32)
        buf[:r, :c] = a
        self.pieces.append(buf)
        self.offsets[name] = (self.cur, r, c)
        self.cur += rp

    def build(self):
        slab = np.concatenate(self.pieces, axis=0)
        return jnp.asarray(slab), self.offsets


def pack_model(params, batch):
    """Runs ONCE (outside jit): fuse QKV weights, tile pos-embeddings over the
    batch, pad the output head to 128 lanes, bake the static attention masks,
    and lay everything out in a single VMEM-friendly slab."""
    sb = _SlabBuilder()
    D = HIDDEN_DIM

    def add_attn(prefix, p):
        w_qkv = np.concatenate(
            [np.asarray(p["wq"]), np.asarray(p["wk"]), np.asarray(p["wv"])], axis=1)
        b_qkv = np.concatenate(
            [np.asarray(p["bq"]), np.asarray(p["bk"]), np.asarray(p["bv"])], axis=0)
        sb.add(prefix + "/w_qkv", w_qkv)          # (D, 3D)
        sb.add(prefix + "/b_qkv", b_qkv)          # (1, 3D)
        sb.add(prefix + "/wo", np.asarray(p["wo"]))
        sb.add(prefix + "/bo", np.asarray(p["bo"]))

    def add_ffn_ln(prefix, p, n_ln):
        sb.add(prefix + "/w1", np.asarray(p["w1"]))
        sb.add(prefix + "/b1", np.asarray(p["b1"]))
        sb.add(prefix + "/w2", np.asarray(p["w2"]))
        sb.add(prefix + "/b2", np.asarray(p["b2"]))
        for i in range(1, n_ln + 1):
            sb.add(f"{prefix}/ln{i}_g", np.asarray(p[f"ln{i}_g"]))
            sb.add(f"{prefix}/ln{i}_b", np.asarray(p[f"ln{i}_b"]))

    def add_encoder(prefix, p):
        sb.add(prefix + "/embed_w", np.asarray(p["embed_w"]))
        sb.add(prefix + "/embed_b", np.asarray(p["embed_b"]))
        pos = np.asarray(p["pos"]).reshape(-1, D)
        sb.add(prefix + "/pos", np.tile(pos, (batch, 1)))
        for i, lp in enumerate(p["layers"]):
            add_attn(f"{prefix}/L{i}/attn", lp["attn"])
            add_ffn_ln(f"{prefix}/L{i}", lp, 2)

    add_encoder("act", params["action_history_encoder"])
    add_encoder("imu", params["imu_encoder"])
    add_encoder("js", params["joint_states_encoder"])

    dec = params["decoder"]
    sb.add("dec/embed_w", np.asarray(dec["embed_w"]))
    sb.add("dec/embed_b", np.asarray(dec["embed_b"]))
    sb.add("dec/pos", np.tile(np.asarray(dec["pos"]).reshape(-1, D), (batch, 1)))
    for i, lp in enumerate(dec["layers"]):
        add_attn(f"dec/L{i}/self_attn", lp["self_attn"])
        add_attn(f"dec/L{i}/cross_attn", lp["cross_attn"])
        add_ffn_ln(f"dec/L{i}", lp, 3)

    out_w = np.zeros((D, OUT_LANES), np.float32)
    out_w[:, :NUM_JOINTS] = np.asarray(dec["out_w"])
    out_b = np.zeros((1, OUT_LANES), np.float32)
    out_b[0, :NUM_JOINTS] = np.asarray(dec["out_b"]).reshape(-1)
    sb.add("dec/out_w", out_w)
    sb.add("dec/out_b", out_b)

    sb.add("mask/enc", _block_mask_np(batch, ENC_TOKENS, ENC_TOKENS))
    sb.add("mask/self", _block_mask_np(batch, TRAJ_LEN, TRAJ_LEN))
    sb.add("mask/cross", _cross_mask_np(batch))

    return sb.build()


# ----------------------------- fused kernel --------------------------------
def _fused_forward_kernel(slab_ref, act_ref, imu_ref, js_ref, noisy_ref, extra_ref,
                          out_ref, *, offsets):
    D, H, Dh = HIDDEN_DIM, NUM_HEADS, HEAD_DIM
    scale = 1.0 / math.sqrt(Dh)

    def g(name):                                   # static slice view of the weight slab
        r0, r, c = offsets[name]
        return slab_ref[r0:r0 + r, 0:c]

    def dot(a, b):
        return jnp.dot(a, b, preferred_element_type=jnp.float32)

    def layernorm(x, prefix, idx, eps=1e-5):
        gamma = g(f"{prefix}/ln{idx}_g")
        beta = g(f"{prefix}/ln{idx}_b")
        mu = jnp.mean(x, axis=-1, keepdims=True)
        var = jnp.mean((x - mu) * (x - mu), axis=-1, keepdims=True)
        return (x - mu) * jax.lax.rsqrt(var + eps) * gamma + beta

    def mha(x_q, x_kv, prefix, mask, fused_qkv):
        w_qkv, b_qkv = g(prefix + "/w_qkv"), g(prefix + "/b_qkv")
        wo, bo = g(prefix + "/wo"), g(prefix + "/bo")
        if fused_qkv:                               # self-attention: one (M,32)x(32,96)
            qkv = dot(x_q, w_qkv) + b_qkv
            q, k, v = qkv[:, :D], qkv[:, D:2 * D], qkv[:, 2 * D:]
        else:                                       # cross-attention: Q and fused KV
            q = dot(x_q, w_qkv[:, :D]) + b_qkv[:, :D]
            kv = dot(x_kv, w_qkv[:, D:]) + b_qkv[:, D:]
            k, v = kv[:, :D], kv[:, D:]
        heads = []
        for h in range(H):                          # tiny static unroll, all in vregs
            qh = q[:, h * Dh:(h + 1) * Dh]
            kh = k[:, h * Dh:(h + 1) * Dh]
            vh = v[:, h * Dh:(h + 1) * Dh]
            s = jax.lax.dot_general(qh, kh, (((1,), (1,)), ((), ())),
                                    preferred_element_type=jnp.float32) * scale + mask
            m = jnp.max(s, axis=-1, keepdims=True)
            e = jnp.exp(s - m)
            p = e * pl.reciprocal(jnp.sum(e, axis=-1, keepdims=True), approx=True)
            heads.append(dot(p, vh))
        o = jnp.concatenate(heads, axis=-1)         # (M, D)
        return dot(o, wo) + bo                      # single output projection

    def ffn(x, prefix):
        h = jnp.maximum(dot(x, g(prefix + "/w1")) + g(prefix + "/b1"), 0.0)
        return dot(h, g(prefix + "/w2")) + g(prefix + "/b2")

    enc_mask = g("mask/enc")
    self_mask = g("mask/self")
    cross_mask = g("mask/cross")

    def encoder_layer(x, prefix):
        x = layernorm(x + mha(x, x, prefix + "/attn", enc_mask, True), prefix, 1)
        return layernorm(x + ffn(x, prefix), prefix, 2)

    def decoder_layer(x, ctx, prefix):
        x = layernorm(x + mha(x, x, prefix + "/self_attn", self_mask, True), prefix, 1)
        x = layernorm(x + mha(x, ctx, prefix + "/cross_attn", cross_mask, False), prefix, 2)
        return layernorm(x + ffn(x, prefix), prefix, 3)

    def run_encoder(tok, prefix):
        h = dot(tok, g(prefix + "/embed_w")) + g(prefix + "/embed_b") + g(prefix + "/pos")
        for i in range(NUM_ENC_LAYERS):
            h = encoder_layer(h, f"{prefix}/L{i}")
        return h

    # ---- per-modality encoders (all weights + activations stay in VMEM) ----
    act_h = run_encoder(act_ref[...], "act")        # (B*T, D)
    imu_h = run_encoder(imu_ref[...], "imu")
    js_h = run_encoder(js_ref[...], "js")

    # ---- context K/V: [act | imu | js | (game-state, step, zero-pad)].
    # All pieces are 8-row aligned -> cheap in-register concat, no scratch.
    ctx = jnp.concatenate([act_h, imu_h, js_h, extra_ref[...]], axis=0)   # (32, D)

    # ---- diffusion decoder ----
    x = dot(noisy_ref[...], g("dec/embed_w")) + g("dec/embed_b") + g("dec/pos")
    for i in range(NUM_DEC_LAYERS):
        x = decoder_layer(x, ctx, f"dec/L{i}")

    # ---- lane-dense output head (out_w zero-padded to 128 lanes) ----
    out_ref[...] = (dot(x, g("dec/out_w")) + g("dec/out_b")).astype(out_ref.dtype)


# ----------------------------- forward wrapper ------------------------------
def _step_token(token, step):
    # StepToken: sinusoidal embedding of the diffusion step + learned half-token
    dim = HIDDEN_DIM
    half = dim // 4
    freqs = jnp.exp(jnp.arange(half, dtype=jnp.float32) * (-math.log(10000.0) / (half - 1)))
    emb = step.astype(jnp.float32)[:, None] * freqs[None, :]
    return jnp.concatenate(
        [jnp.sin(emb), jnp.cos(emb),
         jnp.broadcast_to(token, (step.shape[0], dim // 2))], axis=-1)     # (B, D)


def make_forward(offsets, batch):
    kernel = functools.partial(_fused_forward_kernel, offsets=offsets)

    def full_spec(shape):
        zeros = (0,) * len(shape)
        return pl.BlockSpec(shape, lambda i, _z=zeros: _z)

    @jax.jit
    def forward(slab, gs_table, step_token_param, input_data,
                noisy_action_predictions, step):
        B, T = batch, ENC_TOKENS
        # host glue (tiny, no per-call weight repacking): patchify reshapes,
        # game-state embedding gather, sinusoidal step token.
        act = input_data["joint_command_history"].reshape(B * T, PATCH_SIZE * NUM_JOINTS)
        imu = input_data["rotation"].reshape(B * T, PATCH_SIZE * 4)
        js = input_data["joint_state"].reshape(B * T, PATCH_SIZE * NUM_JOINTS)
        noisy = noisy_action_predictions.reshape(B * TRAJ_LEN, NUM_JOINTS)
        gs_emb = jnp.take(gs_table, input_data["game_state"], axis=0)       # (B, D)
        step_tok = _step_token(step_token_param, step)                      # (B, D)
        pad = CTX_KV_ROWS - 3 * B * T - 2 * B
        extra = jnp.concatenate(
            [gs_emb, step_tok, jnp.zeros((pad, HIDDEN_DIM), jnp.float32)], axis=0)

        inputs = [slab, act, imu, js, noisy, extra]
        out = pl.pallas_call(
            kernel,
            out_shape=jax.ShapeDtypeStruct((B * TRAJ_LEN, OUT_LANES), jnp.float32),
            grid=(1,),
            in_specs=[full_spec(a.shape) for a in inputs],
            out_specs=full_spec((B * TRAJ_LEN, OUT_LANES)),
        )(*inputs)
        return out[:, :NUM_JOINTS].reshape(B, TRAJ_LEN, NUM_JOINTS)

    return forward


# ----------------------------- parameter init -------------------------------
def _lin_init(key, din, dout):
    return (jax.random.normal(key, (din, dout), jnp.float32) * 0.02,
            jnp.zeros((dout,), jnp.float32))


def _init_mha(key, dim, heads):
    ks = jax.random.split(key, 4)
    wq, bq = _lin_init(ks[0], dim, dim)
    wk, bk = _lin_init(ks[1], dim, dim)
    wv, bv = _lin_init(ks[2], dim, dim)
    wo, bo = _lin_init(ks[3], dim, dim)
    return dict(num_heads=heads, wq=wq, bq=bq, wk=wk, bk=bk, wv=wv, bv=bv, wo=wo, bo=bo)


def _init_encoder_layer(key, dim, heads):
    k_a, k_1, k_2 = jax.random.split(key, 3)
    w1, b1 = _lin_init(k_1, dim, FFN_MULT * dim)
    w2, b2 = _lin_init(k_2, FFN_MULT * dim, dim)
    return dict(attn=_init_mha(k_a, dim, heads), w1=w1, b1=b1, w2=w2, b2=b2,
                ln1_g=jnp.ones((dim,), jnp.float32), ln1_b=jnp.zeros((dim,), jnp.float32),
                ln2_g=jnp.ones((dim,), jnp.float32), ln2_b=jnp.zeros((dim,), jnp.float32))


def _init_decoder_layer(key, dim, heads):
    k_s, k_c, k_1, k_2 = jax.random.split(key, 4)
    w1, b1 = _lin_init(k_1, dim, FFN_MULT * dim)
    w2, b2 = _lin_init(k_2, FFN_MULT * dim, dim)
    return dict(self_attn=_init_mha(k_s, dim, heads), cross_attn=_init_mha(k_c, dim, heads),
                w1=w1, b1=b1, w2=w2, b2=b2,
                ln1_g=jnp.ones((dim,), jnp.float32), ln1_b=jnp.zeros((dim,), jnp.float32),
                ln2_g=jnp.ones((dim,), jnp.float32), ln2_b=jnp.zeros((dim,), jnp.float32),
                ln3_g=jnp.ones((dim,), jnp.float32), ln3_b=jnp.zeros((dim,), jnp.float32))


def _init_seq_encoder(key, in_dim, patch, seq_len, dim, heads, layers):
    n_tok = seq_len // patch
    keys = jax.random.split(key, 2 + layers)
    ew, eb = _lin_init(keys[0], patch * in_dim, dim)
    return dict(
        patch_size=patch, embed_w=ew, embed_b=eb,
        pos=jax.random.normal(keys[1], (1, n_tok, dim), jnp.float32) * 0.02,
        layers=[_init_encoder_layer(k, dim, heads) for k in keys[2:]],
    )


def init_params(key):
    ks = jax.random.split(key, 8)
    ew, eb = _lin_init(ks[4], NUM_JOINTS, HIDDEN_DIM)
    ow, ob = _lin_init(ks[5], HIDDEN_DIM, NUM_JOINTS)
    dec_keys = jax.random.split(ks[6], NUM_DEC_LAYERS)
    return dict(
        action_history_encoder=_init_seq_encoder(
            ks[0], NUM_JOINTS, PATCH_SIZE, ACTION_CTX_LEN, HIDDEN_DIM, NUM_HEADS, NUM_ENC_LAYERS),
        imu_encoder=_init_seq_encoder(
            ks[1], 4, PATCH_SIZE, IMU_CTX_LEN, HIDDEN_DIM, NUM_HEADS, NUM_ENC_LAYERS),
        joint_states_encoder=_init_seq_encoder(
            ks[2], NUM_JOINTS, PATCH_SIZE, JOINT_STATE_CTX_LEN, HIDDEN_DIM, NUM_HEADS, NUM_ENC_LAYERS),
        game_state_encoder=dict(
            table=jax.random.normal(ks[3], (NUM_GAME_STATES, HIDDEN_DIM), jnp.float32) * 0.02),
        step_encoding=dict(
            token=jax.random.normal(ks[7], (1, HIDDEN_DIM // 2), jnp.float32) * 0.02),
        decoder=dict(
            embed_w=ew, embed_b=eb,
            pos=jax.random.normal(jax.random.fold_in(ks[6], 999),
                                  (1, TRAJ_LEN, HIDDEN_DIM), jnp.float32) * 0.02,
            layers=[_init_decoder_layer(k, HIDDEN_DIM, NUM_HEADS) for k in dec_keys],
            out_w=ow, out_b=ob),
        # registered buffers (unused in forward, kept for fidelity)
        mean=jnp.zeros((NUM_JOINTS,), jnp.float32),
        std=jnp.ones((NUM_JOINTS,), jnp.float32),
    )


# ----------------------------- main ------------------------------------------
if __name__ == "__main__":
    params = init_params(jax.random.PRNGKey(1))

    # one-time packing (outside jit): single weight slab + static offsets
    slab, offsets = pack_model(params, BATCH)
    forward = make_forward(offsets, BATCH)

    key = jax.random.PRNGKey(0)
    k1, k2, k3, k4, k5, k6 = jax.random.split(key, 6)
    input_data = {
        "joint_command_history": jax.random.normal(k1, (BATCH, ACTION_CTX_LEN, NUM_JOINTS), jnp.float32),
        "rotation": jax.random.normal(k2, (BATCH, IMU_CTX_LEN, 4), jnp.float32),
        "joint_state": jax.random.normal(k3, (BATCH, JOINT_STATE_CTX_LEN, NUM_JOINTS), jnp.float32),
        "game_state": jax.random.randint(k4, (BATCH,), 0, NUM_GAME_STATES),
    }
    noisy_action_predictions = jax.random.normal(k5, (BATCH, TRAJ_LEN, NUM_JOINTS), jnp.float32)
    step = jax.random.randint(k6, (BATCH,), 0, 100)

    out = forward(slab, params["game_state_encoder"]["table"],
                  params["step_encoding"]["token"], input_data,
                  noisy_action_predictions, step)
    out = jax.block_until_ready(out)
    assert out.shape == (BATCH, TRAJ_LEN, NUM_JOINTS), out.shape
    assert bool(jnp.all(jnp.isfinite(out)))
    print("KERNEL_OK")
</pallas_src>

<mosaic_0001>
module attributes {stable_mosaic.version = 11 : i64} {
  func.func @_fused_forward_kernel(%arg0: i32, %arg1: memref<1448x128xf32, #tpu.memory_space<vmem>>, %arg2: memref<8x16xf32, #tpu.memory_space<vmem>>, %arg3: memref<8x8xf32, #tpu.memory_space<vmem>>, %arg4: memref<8x16xf32, #tpu.memory_space<vmem>>, %arg5: memref<16x8xf32, #tpu.memory_space<vmem>>, %arg6: memref<8x32xf32, #tpu.memory_space<vmem>>, %arg7: memref<16x128xf32, #tpu.memory_space<vmem>>) attributes {dimension_semantics = [#tpu.dimension_semantics<arbitrary>], iteration_bounds = array<i64: 1>, scalar_prefetch = 0 : i64, scratch_operands = 0 : i64, tpu.core_type = #tpu.core_type<tc>, window_params = [{pipeline_mode = #tpu.pipeline_mode<synchronous>, transform_indices = @transform_0, window_bounds = array<i64: 1448, 128>}, {pipeline_mode = #tpu.pipeline_mode<synchronous>, transform_indices = @transform_1, window_bounds = array<i64: 8, 16>}, {pipeline_mode = #tpu.pipeline_mode<synchronous>, transform_indices = @transform_2, window_bounds = array<i64: 8, 8>}, {pipeline_mode = #tpu.pipeline_mode<synchronous>, transform_indices = @transform_3, window_bounds = array<i64: 8, 16>}, {pipeline_mode = #tpu.pipeline_mode<synchronous>, transform_indices = @transform_4, window_bounds = array<i64: 16, 8>}, {pipeline_mode = #tpu.pipeline_mode<synchronous>, transform_indices = @transform_5, window_bounds = array<i64: 8, 32>}, {pipeline_mode = #tpu.pipeline_mode<synchronous>, transform_indices = @transform_6, window_bounds = array<i64: 16, 128>}]} {
    %c1408 = arith.constant 1408 : index
    %c0 = arith.constant 0 : index
    %0 = vector.load %arg1[%c1408, %c0] : memref<1448x128xf32, #tpu.memory_space<vmem>>, vector<8x8xf32>
    %c1416 = arith.constant 1416 : index
    %c0_0 = arith.constant 0 : index
    %1 = vector.load %arg1[%c1416, %c0_0] : memref<1448x128xf32, #tpu.memory_space<vmem>>, vector<16x16xf32>
    %c1432 = arith.constant 1432 : index
    %c0_1 = arith.constant 0 : index
    %2 = vector.load %arg1[%c1432, %c0_1] : memref<1448x128xf32, #tpu.memory_space<vmem>>, vector<16x32xf32>
    %c0_2 = arith.constant 0 : index
    %c0_3 = arith.constant 0 : index
    %3 = vector.load %arg2[%c0_2, %c0_3] : memref<8x16xf32, #tpu.memory_space<vmem>>, vector<8x16xf32>
    %c0_4 = arith.constant 0 : index
    %c0_5 = arith.constant 0 : index
    %4 = vector.load %arg1[%c0_4, %c0_5] : memref<1448x128xf32, #tpu.memory_space<vmem>>, vector<16x32xf32>
    %cst = arith.constant dense<0.000000e+00> : vector<8x32xf32>
    %5 = tpu.matmul %3, %4, %cst {dimension_numbers = #tpu.dot_dimension_numbers<[1], [0], [0], [1], [0, 0, 1, 1], [], []>} : vector<8x16xf32>, vector<16x32xf32>, vector<8x32xf32> -> vector<8x32xf32>
    %c16 = arith.constant 16 : index
    %c0_6 = arith.constant 0 : index
    %6 = vector.load %arg1[%c16, %c0_6] : memref<1448x128xf32, #tpu.memory_space<vmem>>, vector<1x32xf32>
    %7 = vector.broadcast %6 : vector<1x32xf32> to vector<8x32xf32>
    %8 = arith.addf %5, %7 : vector<8x32xf32>
    %c24 = arith.constant 24 : index
    %c0_7 = arith.constant 0 : index
    %9 = vector.load %arg1[%c24, %c0_7] : memref<1448x128xf32, #tpu.memory_space<vmem>>, vector<8x32xf32>
    %10 = arith.addf %8, %9 : vector<8x32xf32>
    %c32 = arith.constant 32 : index
    %c0_8 = arith.constant 0 : index
    %11 = vector.load %arg1[%c32, %c0_8] : memref<1448x128xf32, #tpu.memory_space<vmem>>, vector<32x96xf32>
    %c64 = arith.constant 64 : index
    %c0_9 = arith.constant 0 : index
    %12 = vector.load %arg1[%c64, %c0_9] : memref<1448x128xf32, #tpu.memory_space<vmem>>, vector<1x96xf32>
    %c72 = arith.constant 72 : index
    %c0_10 = arith.constant 0 : index
    %13 = vector.load %arg1[%c72, %c0_10] : memref<1448x128xf32, #tpu.memory_space<vmem>>, vector<32x32xf32>
    %c104 = arith.constant 104 : index
    %c0_11 = arith.constant 0 : index
    %14 = vector.load %arg1[%c104, %c0_11] : memref<1448x128xf32, #tpu.memory_space<vmem>>, vector<1x32xf32>
    %cst_12 = arith.constant dense<0.000000e+00> : vector<8x96xf32>
    %15 = tpu.matmul %10, %11, %cst_12 {dimension_numbers = #tpu.dot_dimension_numbers<[1], [0], [0], [1], [0, 0, 1, 1], [], []>} : vector<8x32xf32>, vector<32x96xf32>, vector<8x96xf32> -> vector<8x96xf32>
    %16 = vector.broadcast %12 : vector<1x96xf32> to vector<8x96xf32>
    %17 = arith.addf %15, %16 : vector<8x96xf32>
    %18 = vector.extract_strided_slice %17 {offsets = [0, 0], sizes = [8, 32], strides = [1, 1]} : vector<8x96xf32> to vector<8x32xf32>
    %19 = vector.extract_strided_slice %17 {offsets = [0, 32], sizes = [8, 32], strides = [1, 1]} : vector<8x96xf32> to vector<8x32xf32>
    %20 = vector.extract_strided_slice %17 {offsets = [0, 64], sizes = [8, 32], strides = [1, 1]} : vector<8x96xf32> to vector<8x32xf32>
    %21 = vector.extract_strided_slice %18 {offsets = [0, 0], sizes = [8, 8], strides = [1, 1]} : vector<8x32xf32> to vector<8x8xf32>
    %22 = vector.extract_strided_slice %19 {offsets = [0, 0], sizes = [8, 8], strides = [1, 1]} : vector<8x32xf32> to vector<8x8xf32>
    %23 = vector.extract_strided_slice %20 {offsets = [0, 0], sizes = [8, 8], strides = [1, 1]} : vector<8x32xf32> to vector<8x8xf32>
    %cst_13 = arith.constant dense<0.000000e+00> : vector<8x8xf32>
    %24 = tpu.matmul %21, %22, %cst_13 {dimension_numbers = #tpu.dot_dimension_numbers<[1], [1], [0], [0], [0, 0, 1, 0], [], []>} : vector<8x8xf32>, vector<8x8xf32>, vector<8x8xf32> -> vector<8x8xf32>
    %cst_14 = arith.constant 0.353553385 : f32
    %25 = vector.broadcast %cst_14 : f32 to vector<8x8xf32>
    %26 = arith.mulf %24, %25 : vector<8x8xf32>
    %27 = arith.addf %26, %0 : vector<8x8xf32>
    %cst_15 = arith.constant dense<0xFF800000> : vector<8xf32>
    %28 = vector.multi_reduction <maximumf>, %27, %cst_15 [1] : vector<8x8xf32> to vector<8xf32>
    %29 = vector.shape_cast %28 : vector<8xf32> to vector<8x1xf32>
    %30 = vector.broadcast %29 : vector<8x1xf32> to vector<8x8xf32>
    %31 = arith.subf %27, %30 : vector<8x8xf32>
    %32 = math.exp %31 : vector<8x8xf32>
    %cst_16 = arith.constant dense<0.000000e+00> : vector<8xf32>
    %33 = vector.multi_reduction <add>, %32, %cst_16 [1] : vector<8x8xf32> to vector<8xf32>
    %34 = vector.shape_cast %33 : vector<8xf32> to vector<8x1xf32>
    %35 = tpu.reciprocal %34 {approx = true} : vector<8x1xf32> -> vector<8x1xf32>
    %36 = vector.broadcast %35 : vector<8x1xf32> to vector<8x8xf32>
    %37 = arith.mulf %32, %36 : vector<8x8xf32>
    %cst_17 = arith.constant dense<0.000000e+00> : vector<8x8xf32>
    %38 = tpu.matmul %37, %23, %cst_17 {dimension_numbers = #tpu.dot_dimension_numbers<[1], [0], [0], [1], [0, 0, 1, 1], [], []>} : vector<8x8xf32>, vector<8x8xf32>, vector<8x8xf32> -> vector<8x8xf32>
    %39 = vector.extract_strided_slice %18 {offsets = [0, 8], sizes = [8, 8], strides = [1, 1]} : vector<8x32xf32> to vector<8x8xf32>
    %40 = vector.extract_strided_slice %19 {offsets = [0, 8], sizes = [8, 8], strides = [1, 1]} : vector<8x32xf32> to vector<8x8xf32>
    %41 = vector.extract_strided_slice %20 {offsets = [0, 8], sizes = [8, 8], strides = [1, 1]} : vector<8x32xf32> to vector<8x8xf32>
    %cst_18 = arith.constant dense<0.000000e+00> : vector<8x8xf32>
    %42 = tpu.matmul %39, %40, %cst_18 {dimension_numbers = #tpu.dot_dimension_numbers<[1], [1], [0], [0], [0, 0, 1, 0], [], []>} : vector<8x8xf32>, vector<8x8xf32>, vector<8x8xf32> -> vector<8x8xf32>
    %cst_19 = arith.constant 0.353553385 : f32
    %43 = vector.broadcast %cst_19 : f32 to vector<8x8xf32>
    %44 = arith.mulf %42, %43 : vector<8x8xf32>
    %45 = arith.addf %44, %0 : vector<8x8xf32>
    %cst_20 = arith.constant dense<0xFF800000> : vector<8xf32>
    %46 = vector.multi_reduction <maximumf>, %45, %cst_20 [1] : vector<8x8xf32> to vector<8xf32>
    %47 = vector.shape_cast %46 : vector<8xf32> to vector<8x1xf32>
    %48 = vector.broadcast %47 : vector<8x1xf32> to vector<8x8xf32>
    %49 = arith.subf %45, %48 : vector<8x8xf32>
    %50 = math.exp %49 : vector<8x8xf32>
    %cst_21 = arith.constant dense<0.000000e+00> : vector<8xf32>
    %51 = vector.multi_reduction <add>, %50, %cst_21 [1] : vector<8x8xf32> to vector<8xf32>
    %52 = vector.shape_cast %51 : vector<8xf32> to vector<8x1xf32>
    %53 = tpu.reciprocal %52 {approx = true} : vector<8x1xf32> -> vector<8x1xf32>
    %54 = vector.broadcast %53 : vector<8x1xf32> to vector<8x8xf32>
    %55 = arith.mulf %50, %54 : vector<8x8xf32>
    %cst_22 = arith.constant dense<0.000000e+00> : vector<8x8xf32>
    %56 = tpu.matmul %55, %41, %cst_22 {dimension_numbers = #tpu.dot_dimension_numbers<[1], [0], [0], [1], [0, 0, 1, 1], [], []>} : vector<8x8xf32>, vector<8x8xf32>, vector<8x8xf32> -> vector<8x8xf32>
    %57 = vector.extract_strided_slice %18 {offsets = [0, 16], sizes = [8, 8], strides = [1, 1]} : vector<8x32xf32> to vector<8x8xf32>
    %58 = vector.extract_strided_slice %19 {offsets = [0, 16], sizes = [8, 8], strides = [1, 1]} : vector<8x32xf32> to vector<8x8xf32>
    %59 = vector.extract_strided_slice %20 {offsets = [0, 16], sizes = [8, 8], strides = [1, 1]} : vector<8x32xf32> to vector<8x8xf32>
    %cst_23 = arith.constant dense<0.000000e+00> : vector<8x8xf32>
    %60 = tpu.matmul %57, %58, %cst_23 {dimension_numbers = #tpu.dot_dimension_numbers<[1], [1], [0], [0], [0, 0, 1, 0], [], []>} : vector<8x8xf32>, vector<8x8xf32>, vector<8x8xf32> -> vector<8x8xf32>
    %cst_24 = arith.constant 0.353553385 : f32
    %61 = vector.broadcast %cst_24 : f32 to vector<8x8xf32>
    %62 = arith.mulf %60, %61 : vector<8x8xf32>
    %63 = arith.addf %62, %0 : vector<8x8xf32>
    %cst_25 = arith.constant dense<0xFF800000> : vector<8xf32>
    %64 = vector.multi_reduction <maximumf>, %63, %cst_25 [1] : vector<8x8xf32> to vector<8xf32>
    %65 = vector.shape_cast %64 : vector<8xf32> to vector<8x1xf32>
    %66 = vector.broadcast %65 : vector<8x1xf32> to vector<8x8xf32>
    %67 = arith.subf %63, %66 : vector<8x8xf32>
    %68 = math.exp %67 : vector<8x8xf32>
    %cst_26 = arith.constant dense<0.000000e+00> : vector<8xf32>
    %69 = vector.multi_reduction <add>, %68, %cst_26 [1] : vector<8x8xf32> to vector<8xf32>
    %70 = vector.shape_cast %69 : vector<8xf32> to vector<8x1xf32>
    %71 = tpu.reciprocal %70 {approx = true} : vector<8x1xf32> -> vector<8x1xf32>
    %72 = vector.broadcast %71 : vector<8x1xf32> to vector<8x8xf32>
    %73 = arith.mulf %68, %72 : vector<8x8xf32>
    %cst_27 = arith.constant dense<0.000000e+00> : vector<8x8xf32>
    %74 = tpu.matmul %73, %59, %cst_27 {dimension_numbers = #tpu.dot_dimension_numbers<[1], [0], [0], [1], [0, 0, 1, 1], [], []>} : vector<8x8xf32>, vector<8x8xf32>, vector<8x8xf32> -> vector<8x8xf32>
    %75 = vector.extract_strided_slice %18 {offsets = [0, 24], sizes = [8, 8], strides = [1, 1]} : vector<8x32xf32> to vector<8x8xf32>
    %76 = vector.extract_strided_slice %19 {offsets = [0, 24], sizes = [8, 8], strides = [1, 1]} : vector<8x32xf32> to vector<8x8xf32>
    %77 = vector.extract_strided_slice %20 {offsets = [0, 24], sizes = [8, 8], strides = [1, 1]} : vector<8x32xf32> to vector<8x8xf32>
    %cst_28 = arith.constant dense<0.000000e+00> : vector<8x8xf32>
    %78 = tpu.matmul %75, %76, %cst_28 {dimension_numbers = #tpu.dot_dimension_numbers<[1], [1], [0], [0], [0, 0, 1, 0], [], []>} : vector<8x8xf32>, vector<8x8xf32>, vector<8x8xf32> -> vector<8x8xf32>
    %cst_29 = arith.constant 0.353553385 : f32
    %79 = vector.broadcast %cst_29 : f32 to vector<8x8xf32>
    %80 = arith.mulf %78, %79 : vector<8x8xf32>
    %81 = arith.addf %80, %0 : vector<8x8xf32>
    %cst_30 = arith.constant dense<0xFF800000> : vector<8xf32>
    %82 = vector.multi_reduction <maximumf>, %81, %cst_30 [1] : vector<8x8xf32> to vector<8xf32>
    %83 = vector.shape_cast %82 : vector<8xf32> to vector<8x1xf32>
    %84 = vector.broadcast %83 : vector<8x1xf32> to vector<8x8xf32>
    %85 = arith.subf %81, %84 : vector<8x8xf32>
    %86 = math.exp %85 : vector<8x8xf32>
    %cst_31 = arith.constant dense<0.000000e+00> : vector<8xf32>
    %87 = vector.multi_reduction <add>, %86, %cst_31 [1] : vector<8x8xf32> to vector<8xf32>
    %88 = vector.shape_cast %87 : vector<8xf32> to vector<8x1xf32>
    %89 = tpu.reciprocal %88 {approx = true} : vector<8x1xf32> -> vector<8x1xf32>
    %90 = vector.broadcast %89 : vector<8x1xf32> to vector<8x8xf32>
    %91 = arith.mulf %86, %90 : vector<8x8xf32>
    %cst_32 = arith.constant dense<0.000000e+00> : vector<8x8xf32>
    %92 = tpu.matmul %91, %77, %cst_32 {dimension_numbers = #tpu.dot_dimension_numbers<[1], [0], [0], [1], [0, 0, 1, 1], [], []>} : vector<8x8xf32>, vector<8x8xf32>, vector<8x8xf32> -> vector<8x8xf32>
    %93 = tpu.concatenate %38, %56, %74, %92 in 1 : vector<8x8xf32>, vector<8x8xf32>, vector<8x8xf32>, vector<8x8xf32> -> vector<8x32xf32>
    %cst_33 = arith.constant dense<0.000000e+00> : vector<8x32xf32>
    %94 = tpu.matmul %93, %13, %cst_33 {dimension_numbers = #tpu.dot_dimension_numbers<[1], [0], [0], [1], [0, 0, 1, 1], [], []>} : vector<8x32xf32>, vector<32x32xf32>, vector<8x32xf32> -> vector<8x32xf32>
    %95 = vector.broadcast %14 : vector<1x32xf32> to vector<8x32xf32>
    %96 = arith.addf %94, %95 : vector<8x32xf32>
    %97 = arith.addf %10, %96 : vector<8x32xf32>
    %c288 = arith.constant 288 : index
    %c0_34 = arith.constant 0 : index
    %98 = vector.load %arg1[%c288, %c0_34] : memref<1448x128xf32, #tpu.memory_space<vmem>>, vector<1x32xf32>
    %c296 = arith.constant 296 : index
    %c0_35 = arith.constant 0 : index
    %99 = vector.load %arg1[%c296, %c0_35] : memref<1448x128xf32, #tpu.memory_space<vmem>>, vector<1x32xf32>
    %cst_36 = arith.constant dense<0.000000e+00> : vector<8xf32>
    %100 = vector.multi_reduction <add>, %97, %cst_36 [1] : vector<8x32xf32> to vector<8xf32>
    %101 = vector.shape_cast %100 : vector<8xf32> to vector<8x1xf32>
    %cst_37 = arith.constant 3.200000e+01 : f32
    %102 = vector.broadcast %cst_37 : f32 to vector<8x1xf32>
    %103 = arith.divf %101, %102 : vector<8x1xf32>
    %104 = vector.broadcast %103 : vector<8x1xf32> to vector<8x32xf32>
    %105 = arith.subf %97, %104 : vector<8x32xf32>
    %106 = vector.broadcast %103 : vector<8x1xf32> to vector<8x32xf32>
    %107 = arith.subf %97, %106 : vector<8x32xf32>
    %108 = arith.mulf %105, %107 : vector<8x32xf32>
    %cst_38 = arith.constant dense<0.000000e+00> : vector<8xf32>
    %109 = vector.multi_reduction <add>, %108, %cst_38 [1] : vector<8x32xf32> to vector<8xf32>
    %110 = vector.shape_cast %109 : vector<8xf32> to vector<8x1xf32>
    %cst_39 = arith.constant 3.200000e+01 : f32
    %111 = vector.broadcast %cst_39 : f32 to vector<8x1xf32>
    %112 = arith.divf %110, %111 : vector<8x1xf32>
    %113 = vector.broadcast %103 : vector<8x1xf32> to vector<8x32xf32>
    %114 = arith.subf %97, %113 : vector<8x32xf32>
    %cst_40 = arith.constant 9.99999974E-6 : f32
    %115 = vector.broadcast %cst_40 : f32 to vector<8x1xf32>
    %116 = arith.addf %112, %115 : vector<8x1xf32>
    %117 = math.rsqrt %116 : vector<8x1xf32>
    %118 = vector.broadcast %117 : vector<8x1xf32> to vector<8x32xf32>
    %119 = arith.mulf %114, %118 : vector<8x32xf32>
    %120 = vector.broadcast %98 : vector<1x32xf32> to vector<8x32xf32>
    %121 = arith.mulf %119, %120 : vector<8x32xf32>
    %122 = vector.broadcast %99 : vector<1x32xf32> to vector<8x32xf32>
    %123 = arith.addf %121, %122 : vector<8x32xf32>
    %c112 = arith.constant 112 : index
    %c0_41 = arith.constant 0 : index
    %124 = vector.load %arg1[%c112, %c0_41] : memref<1448x128xf32, #tpu.memory_space<vmem>>, vector<32x128xf32>
    %cst_42 = arith.constant dense<0.000000e+00> : vector<8x128xf32>
    %125 = tpu.matmul %123, %124, %cst_42 {dimension_numbers = #tpu.dot_dimension_numbers<[1], [0], [0], [1], [0, 0, 1, 1], [], []>} : vector<8x32xf32>, vector<32x128xf32>, vector<8x128xf32> -> vector<8x128xf32>
    %c144 = arith.constant 144 : index
    %c0_43 = arith.constant 0 : index
    %126 = vector.load %arg1[%c144, %c0_43] : memref<1448x128xf32, #tpu.memory_space<vmem>>, vector<1x128xf32>
    %127 = vector.broadcast %126 : vector<1x128xf32> to vector<8x128xf32>
    %128 = arith.addf %125, %127 : vector<8x128xf32>
    %cst_44 = arith.constant 0.000000e+00 : f32
    %129 = vector.broadcast %cst_44 : f32 to vector<8x128xf32>
    %130 = arith.maximumf %128, %129 : vector<8x128xf32>
    %c152 = arith.constant 152 : index
    %c0_45 = arith.constant 0 : index
    %131 = vector.load %arg1[%c152, %c0_45] : memref<1448x128xf32, #tpu.memory_space<vmem>>, vector<128x32xf32>
    %cst_46 = arith.constant dense<0.000000e+00> : vector<8x32xf32>
    %132 = tpu.matmul %130, %131, %cst_46 {dimension_numbers = #tpu.dot_dimension_numbers<[1], [0], [0], [1], [0, 0, 1, 1], [], []>} : vector<8x128xf32>, vector<128x32xf32>, vector<8x32xf32> -> vector<8x32xf32>
    %c280 = arith.constant 280 : index
    %c0_47 = arith.constant 0 : index
    %133 = vector.load %arg1[%c280, %c0_47] : memref<1448x128xf32, #tpu.memory_space<vmem>>, vector<1x32xf32>
    %134 = vector.broadcast %133 : vector<1x32xf32> to vector<8x32xf32>
    %135 = arith.addf %132, %134 : vector<8x32xf32>
    %136 = arith.addf %123, %135 : vector<8x32xf32>
    %c304 = arith.constant 304 : index
    %c0_48 = arith.constant 0 : index
    %137 = vector.load %arg1[%c304, %c0_48] : memref<1448x128xf32, #tpu.memory_space<vmem>>, vector<1x32xf32>
    %c312 = arith.constant 312 : index
    %c0_49 = arith.constant 0 : index
    %138 = vector.load %arg1[%c312, %c0_49] : memref<1448x128xf32, #tpu.memory_space<vmem>>, vector<1x32xf32>
    %cst_50 = arith.constant dense<0.000000e+00> : vector<8xf32>
    %139 = vector.multi_reduction <add>, %136, %cst_50 [1] : vector<8x32xf32> to vector<8xf32>
    %140 = vector.shape_cast %139 : vector<8xf32> to vector<8x1xf32>
    %cst_51 = arith.constant 3.200000e+01 : f32
    %141 = vector.broadcast %cst_51 : f32 to vector<8x1xf32>
    %142 = arith.divf %140, %141 : vector<8x1xf32>
    %143 = vector.broadcast %142 : vector<8x1xf32> to vector<8x32xf32>
    %144 = arith.subf %136, %143 : vector<8x32xf32>
    %145 = vector.broadcast %142 : vector<8x1xf32> to vector<8x32xf32>
    %146 = arith.subf %136, %145 : vector<8x32xf32>
    %147 = arith.mulf %144, %146 : vector<8x32xf32>
    %cst_52 = arith.constant dense<0.000000e+00> : vector<8xf32>
    %148 = vector.multi_reduction <add>, %147, %cst_52 [1] : vector<8x32xf32> to vector<8xf32>
    %149 = vector.shape_cast %148 : vector<8xf32> to vector<8x1xf32>
    %cst_53 = arith.constant 3.200000e+01 : f32
    %150 = vector.broadcast %cst_53 : f32 to vector<8x1xf32>
    %151 = arith.divf %149, %150 : vector<8x1xf32>
    %152 = vector.broadcast %142 : vector<8x1xf32> to vector<8x32xf32>
    %153 = arith.subf %136, %152 : vector<8x32xf32>
    %cst_54 = arith.constant 9.99999974E-6 : f32
    %154 = vector.broadcast %cst_54 : f32 to vector<8x1xf32>
    %155 = arith.addf %151, %154 : vector<8x1xf32>
    %156 = math.rsqrt %155 : vector<8x1xf32>
    %157 = vector.broadcast %156 : vector<8x1xf32> to vector<8x32xf32>
    %158 = arith.mulf %153, %157 : vector<8x32xf32>
    %159 = vector.broadcast %137 : vector<1x32xf32> to vector<8x32xf32>
    %160 = arith.mulf %158, %159 : vector<8x32xf32>
    %161 = vector.broadcast %138 : vector<1x32xf32> to vector<8x32xf32>
    %162 = arith.addf %160, %161 : vector<8x32xf32>
    %c0_55 = arith.constant 0 : index
    %c0_56 = arith.constant 0 : index
    %163 = vector.load %arg3[%c0_55, %c0_56] : memref<8x8xf32, #tpu.memory_space<vmem>>, vector<8x8xf32>
    %c320 = arith.constant 320 : index
    %c0_57 = arith.constant 0 : index
    %164 = vector.load %arg1[%c320, %c0_57] : memref<1448x128xf32, #tpu.memory_space<vmem>>, vector<8x32xf32>
    %cst_58 = arith.constant dense<0.000000e+00> : vector<8x32xf32>
    %165 = tpu.matmul %163, %164, %cst_58 {dimension_numbers = #tpu.dot_dimension_numbers<[1], [0], [0], [1], [0, 0, 1, 1], [], []>} : vector<8x8xf32>, vector<8x32xf32>, vector<8x32xf32> -> vector<8x32xf32>
    %c328 = arith.constant 328 : index
    %c0_59 = arith.constant 0 : index
    %166 = vector.load %arg1[%c328, %c0_59] : memref<1448x128xf32, #tpu.memory_space<vmem>>, vector<1x32xf32>
    %167 = vector.broadcast %166 : vector<1x32xf32> to vector<8x32xf32>
    %168 = arith.addf %165, %167 : vector<8x32xf32>
    %c336 = arith.constant 336 : index
    %c0_60 = arith.constant 0 : index
    %169 = vector.load %arg1[%c336, %c0_60] : memref<1448x128xf32, #tpu.memory_space<vmem>>, vector<8x32xf32>
    %170 = arith.addf %168, %169 : vector<8x32xf32>
    %c344 = arith.constant 344 : index
    %c0_61 = arith.constant 0 : index
    %171 = vector.load %arg1[%c344, %c0_61] : memref<1448x128xf32, #tpu.memory_space<vmem>>, vector<32x96xf32>
    %c376 = arith.constant 376 : index
    %c0_62 = arith.constant 0 : index
    %172 = vector.load %arg1[%c376, %c0_62] : memref<1448x128xf32, #tpu.memory_space<vmem>>, vector<1x96xf32>
    %c384 = arith.constant 384 : index
    %c0_63 = arith.constant 0 : index
    %173 = vector.load %arg1[%c384, %c0_63] : memref<1448x128xf32, #tpu.memory_space<vmem>>, vector<32x32xf32>
    %c416 = arith.constant 416 : index
    %c0_64 = arith.constant 0 : index
    %174 = vector.load %arg1[%c416, %c0_64] : memref<1448x128xf32, #tpu.memory_space<vmem>>, vector<1x32xf32>
    %cst_65 = arith.constant dense<0.000000e+00> : vector<8x96xf32>
    %175 = tpu.matmul %170, %171, %cst_65 {dimension_numbers = #tpu.dot_dimension_numbers<[1], [0], [0], [1], [0, 0, 1, 1], [], []>} : vector<8x32xf32>, vector<32x96xf32>, vector<8x96xf32> -> vector<8x96xf32>
    %176 = vector.broadcast %172 : vector<1x96xf32> to vector<8x96xf32>
    %177 = arith.addf %175, %176 : vector<8x96xf32>
    %178 = vector.extract_strided_slice %177 {offsets = [0, 0], sizes = [8, 32], strides = [1, 1]} : vector<8x96xf32> to vector<8x32xf32>
    %179 = vector.extract_strided_slice %177 {offsets = [0, 32], sizes = [8, 32], strides = [1, 1]} : vector<8x96xf32> to vector<8x32xf32>
    %180 = vector.extract_strided_slice %177 {offsets = [0, 64], sizes = [8, 32], strides = [1, 1]} : vector<8x96xf32> to vector<8x32xf32>
    %181 = vector.extract_strided_slice %178 {offsets = [0, 0], sizes = [8, 8], strides = [1, 1]} : vector<8x32xf32> to vector<8x8xf32>
    %182 = vector.extract_strided_slice %179 {offsets = [0, 0], sizes = [8, 8], strides = [1, 1]} : vector<8x32xf32> to vector<8x8xf32>
    %183 = vector.extract_strided_slice %180 {offsets = [0, 0], sizes = [8, 8], strides = [1, 1]} : vector<8x32xf32> to vector<8x8xf32>
    %cst_66 = arith.constant dense<0.000000e+00> : vector<8x8xf32>
    %184 = tpu.matmul %181, %182, %cst_66 {dimension_numbers = #tpu.dot_dimension_numbers<[1], [1], [0], [0], [0, 0, 1, 0], [], []>} : vector<8x8xf32>, vector<8x8xf32>, vector<8x8xf32> -> vector<8x8xf32>
    %cst_67 = arith.constant 0.353553385 : f32
    %185 = vector.broadcast %cst_67 : f32 to vector<8x8xf32>
    %186 = arith.mulf %184, %185 : vector<8x8xf32>
    %187 = arith.addf %186, %0 : vector<8x8xf32>
    %cst_68 = arith.constant dense<0xFF800000> : vector<8xf32>
    %188 = vector.multi_reduction <maximumf>, %187, %cst_68 [1] : vector<8x8xf32> to vector<8xf32>
    %189 = vector.shape_cast %188 : vector<8xf32> to vector<8x1xf32>
    %190 = vector.broadcast %189 : vector<8x1xf32> to vector<8x8xf32>
    %191 = arith.subf %187, %190 : vector<8x8xf32>
    %192 = math.exp %191 : vector<8x8xf32>
    %cst_69 = arith.constant dense<0.000000e+00> : vector<8xf32>
    %193 = vector.multi_reduction <add>, %192, %cst_69 [1] : vector<8x8xf32> to vector<8xf32>
    %194 = vector.shape_cast %193 : vector<8xf32> to vector<8x1xf32>
    %195 = tpu.reciprocal %194 {approx = true} : vector<8x1xf32> -> vector<8x1xf32>
    %196 = vector.broadcast %195 : vector<8x1xf32> to vector<8x8xf32>
    %197 = arith.mulf %192, %196 : vector<8x8xf32>
    %cst_70 = arith.constant dense<0.000000e+00> : vector<8x8xf32>
    %198 = tpu.matmul %197, %183, %cst_70 {dimension_numbers = #tpu.dot_dimension_numbers<[1], [0], [0], [1], [0, 0, 1, 1], [], []>} : vector<8x8xf32>, vector<8x8xf32>, vector<8x8xf32> -> vector<8x8xf32>
    %199 = vector.extract_strided_slice %178 {offsets = [0, 8], sizes = [8, 8], strides = [1, 1]} : vector<8x32xf32> to vector<8x8xf32>
    %200 = vector.extract_strided_slice %179 {offsets = [0, 8], sizes = [8, 8], strides = [1, 1]} : vector<8x32xf32> to vector<8x8xf32>
    %201 = vector.extract_strided_slice %180 {offsets = [0, 8], sizes = [8, 8], strides = [1, 1]} : vector<8x32xf32> to vector<8x8xf32>
    %cst_71 = arith.constant dense<0.000000e+00> : vector<8x8xf32>
    %202 = tpu.matmul %199, %200, %cst_71 {dimension_numbers = #tpu.dot_dimension_numbers<[1], [1], [0], [0], [0, 0, 1, 0], [], []>} : vector<8x8xf32>, vector<8x8xf32>, vector<8x8xf32> -> vector<8x8xf32>
    %cst_72 = arith.constant 0.353553385 : f32
    %203 = vector.broadcast %cst_72 : f32 to vector<8x8xf32>
    %204 = arith.mulf %202, %203 : vector<8x8xf32>
    %205 = arith.addf %204, %0 : vector<8x8xf32>
    %cst_73 = arith.constant dense<0xFF800000> : vector<8xf32>
    %206 = vector.multi_reduction <maximumf>, %205, %cst_73 [1] : vector<8x8xf32> to vector<8xf32>
    %207 = vector.shape_cast %206 : vector<8xf32> to vector<8x1xf32>
    %208 = vector.broadcast %207 : vector<8x1xf32> to vector<8x8xf32>
    %209 = arith.subf %205, %208 : vector<8x8xf32>
    %210 = math.exp %209 : vector<8x8xf32>
    %cst_74 = arith.constant dense<0.000000e+00> : vector<8xf32>
    %211 = vector.multi_reduction <add>, %210, %cst_74 [1] : vector<8x8xf32> to vector<8xf32>
    %212 = vector.shape_cast %211 : vector<8xf32> to vector<8x1xf32>
    %213 = tpu.reciprocal %212 {approx = true} : vector<8x1xf32> -> vector<8x1xf32>
    %214 = vector.broadcast %213 : vector<8x1xf32> to vector<8x8xf32>
    %215 = arith.mulf %210, %214 : vector<8x8xf32>
    %cst_75 = arith.constant dense<0.000000e+00> : vector<8x8xf32>
    %216 = tpu.matmul %215, %201, %cst_75 {dimension_numbers = #tpu.dot_dimension_numbers<[1], [0], [0], [1], [0, 0, 1, 1], [], []>} : vector<8x8xf32>, vector<8x8xf32>, vector<8x8xf32> -> vector<8x8xf32>
    %217 = vector.extract_strided_slice %178 {offsets = [0, 16], sizes = [8, 8], strides = [1, 1]} : vector<8x32xf32> to vector<8x8xf32>
    %218 = vector.extract_strided_slice %179 {offsets = [0, 16], sizes = [8, 8], strides = [1, 1]} : vector<8x32xf32> to vector<8x8xf32>
    %219 = vector.extract_strided_slice %180 {offsets = [0, 16], sizes = [8, 8], strides = [1, 1]} : vector<8x32xf32> to vector<8x8xf32>
    %cst_76 = arith.constant dense<0.000000e+00> : vector<8x8xf32>
    %220 = tpu.matmul %217, %218, %cst_76 {dimension_numbers = #tpu.dot_dimension_numbers<[1], [1], [0], [0], [0, 0, 1, 0], [], []>} : vector<8x8xf32>, vector<8x8xf32>, vector<8x8xf32> -> vector<8x8xf32>
    %cst_77 = arith.constant 0.353553385 : f32
    %221 = vector.broadcast %cst_77 : f32 to vector<8x8xf32>
    %222 = arith.mulf %220, %221 : vector<8x8xf32>
    %223 = arith.addf %222, %0 : vector<8x8xf32>
    %cst_78 = arith.constant dense<0xFF800000> : vector<8xf32>
    %224 = vector.multi_reduction <maximumf>, %223, %cst_78 [1] : vector<8x8xf32> to vector<8xf32>
    %225 = vector.shape_cast %224 : vector<8xf32> to vector<8x1xf32>
    %226 = vector.broadcast %225 : vector<8x1xf32> to vector<8x8xf32>
    %227 = arith.subf %223, %226 : vector<8x8xf32>
    %228 = math.exp %227 : vector<8x8xf32>
    %cst_79 = arith.constant dense<0.000000e+00> : vector<8xf32>
    %229 = vector.multi_reduction <add>, %228, %cst_79 [1] : vector<8x8xf32> to vector<8xf32>
    %230 = vector.shape_cast %229 : vector<8xf32> to vector<8x1xf32>
    %231 = tpu.reciprocal %230 {approx = true} : vector<8x1xf32> -> vector<8x1xf32>
    %232 = vector.broadcast %231 : vector<8x1xf32> to vector<8x8xf32>
    %233 = arith.mulf %228, %232 : vector<8x8xf32>
    %cst_80 = arith.constant dense<0.000000e+00> : vector<8x8xf32>
    %234 = tpu.matmul %233, %219, %cst_80 {dimension_numbers = #tpu.dot_dimension_numbers<[1], [0], [0], [1], [0, 0, 1, 1], [], []>} : vector<8x8xf32>, vector<8x8xf32>, vector<8x8xf32> -> vector<8x8xf32>
    %235 = vector.extract_strided_slice %178 {offsets = [0, 24], sizes = [8, 8], strides = [1, 1]} : vector<8x32xf32> to vector<8x8xf32>
    %236 = vector.extract_strided_slice %179 {offsets = [0, 24], sizes = [8, 8], strides = [1, 1]} : vector<8x32xf32> to vector<8x8xf32>
    %237 = vector.extract_strided_slice %180 {offsets = [0, 24], sizes = [8, 8], strides = [1, 1]} : vector<8x32xf32> to vector<8x8xf32>
    %cst_81 = arith.constant dense<0.000000e+00> : vector<8x8xf32>
    %238 = tpu.matmul %235, %236, %cst_81 {dimension_numbers = #tpu.dot_dimension_numbers<[1], [1], [0], [0], [0, 0, 1, 0], [], []>} : vector<8x8xf32>, vector<8x8xf32>, vector<8x8xf32> -> vector<8x8xf32>
    %cst_82 = arith.constant 0.353553385 : f32
    %239 = vector.broadcast %cst_82 : f32 to vector<8x8xf32>
    %240 = arith.mulf %238, %239 : vector<8x8xf32>
    %241 = arith.addf %240, %0 : vector<8x8xf32>
    %cst_83 = arith.constant dense<0xFF800000> : vector<8xf32>
    %242 = vector.multi_reduction <maximumf>, %241, %cst_83 [1] : vector<8x8xf32> to vector<8xf32>
    %243 = vector.shape_cast %242 : vector<8xf32> to vector<8x1xf32>
    %244 = vector.broadcast %243 : vector<8x1xf32> to vector<8x8xf32>
    %245 = arith.subf %241, %244 : vector<8x8xf32>
    %246 = math.exp %245 : vector<8x8xf32>
    %cst_84 = arith.constant dense<0.000000e+00> : vector<8xf32>
    %247 = vector.multi_reduction <add>, %246, %cst_84 [1] : vector<8x8xf32> to vector<8xf32>
    %248 = vector.shape_cast %247 : vector<8xf32> to vector<8x1xf32>
    %249 = tpu.reciprocal %248 {approx = true} : vector<8x1xf32> -> vector<8x1xf32>
    %250 = vector.broadcast %249 : vector<8x1xf32> to vector<8x8xf32>
    %251 = arith.mulf %246, %250 : vector<8x8xf32>
    %cst_85 = arith.constant dense<0.000000e+00> : vector<8x8xf32>
    %252 = tpu.matmul %251, %237, %cst_85 {dimension_numbers = #tpu.dot_dimension_numbers<[1], [0], [0], [1], [0, 0, 1, 1], [], []>} : vector<8x8xf32>, vector<8x8xf32>, vector<8x8xf32> -> vector<8x8xf32>
    %253 = tpu.concatenate %198, %216, %234, %252 in 1 : vector<8x8xf32>, vector<8x8xf32>, vector<8x8xf32>, vector<8x8xf32> -> vector<8x32xf32>
    %cst_86 = arith.constant dense<0.000000e+00> : vector<8x32xf32>
    %254 = tpu.matmul %253, %173, %cst_86 {dimension_numbers = #tpu.dot_dimension_numbers<[1], [0], [0], [1], [0, 0, 1, 1], [], []>} : vector<8x32xf32>, vector<32x32xf32>, vector<8x32xf32> -> vector<8x32xf32>
    %255 = vector.broadcast %174 : vector<1x32xf32> to vector<8x32xf32>
    %256 = arith.addf %254, %255 : vector<8x32xf32>
    %257 = arith.addf %170, %256 : vector<8x32xf32>
    %c600 = arith.constant 600 : index
    %c0_87 = arith.constant 0 : index
    %258 = vector.load %arg1[%c600, %c0_87] : memref<1448x128xf32, #tpu.memory_space<vmem>>, vector<1x32xf32>
    %c608 = arith.constant 608 : index
    %c0_88 = arith.constant 0 : index
    %259 = vector.load %arg1[%c608, %c0_88] : memref<1448x128xf32, #tpu.memory_space<vmem>>, vector<1x32xf32>
    %cst_89 = arith.constant dense<0.000000e+00> : vector<8xf32>
    %260 = vector.multi_reduction <add>, %257, %cst_89 [1] : vector<8x32xf32> to vector<8xf32>
    %261 = vector.shape_cast %260 : vector<8xf32> to vector<8x1xf32>
    %cst_90 = arith.constant 3.200000e+01 : f32
    %262 = vector.broadcast %cst_90 : f32 to vector<8x1xf32>
    %263 = arith.divf %261, %262 : vector<8x1xf32>
    %264 = vector.broadcast %263 : vector<8x1xf32> to vector<8x32xf32>
    %265 = arith.subf %257, %264 : vector<8x32xf32>
    %266 = vector.broadcast %263 : vector<8x1xf32> to vector<8x32xf32>
    %267 = arith.subf %257, %266 : vector<8x32xf32>
    %268 = arith.mulf %265, %267 : vector<8x32xf32>
    %cst_91 = arith.constant dense<0.000000e+00> : vector<8xf32>
    %269 = vector.multi_reduction <add>, %268, %cst_91 [1] : vector<8x32xf32> to vector<8xf32>
    %270 = vector.shape_cast %269 : vector<8xf32> to vector<8x1xf32>
    %cst_92 = arith.constant 3.200000e+01 : f32
    %271 = vector.broadcast %cst_92 : f32 to vector<8x1xf32>
    %272 = arith.divf %270, %271 : vector<8x1xf32>
    %273 = vector.broadcast %263 : vector<8x1xf32> to vector<8x32xf32>
    %274 = arith.subf %257, %273 : vector<8x32xf32>
    %cst_93 = arith.constant 9.99999974E-6 : f32
    %275 = vector.broadcast %cst_93 : f32 to vector<8x1xf32>
    %276 = arith.addf %272, %275 : vector<8x1xf32>
    %277 = math.rsqrt %276 : vector<8x1xf32>
    %278 = vector.broadcast %277 : vector<8x1xf32> to vector<8x32xf32>
    %279 = arith.mulf %274, %278 : vector<8x32xf32>
    %280 = vector.broadcast %258 : vector<1x32xf32> to vector<8x32xf32>
    %281 = arith.mulf %279, %280 : vector<8x32xf32>
    %282 = vector.broadcast %259 : vector<1x32xf32> to vector<8x32xf32>
    %283 = arith.addf %281, %282 : vector<8x32xf32>
    %c424 = arith.constant 424 : index
    %c0_94 = arith.constant 0 : index
    %284 = vector.load %arg1[%c424, %c0_94] : memref<1448x128xf32, #tpu.memory_space<vmem>>, vector<32x128xf32>
    %cst_95 = arith.constant dense<0.000000e+00> : vector<8x128xf32>
    %285 = tpu.matmul %283, %284, %cst_95 {dimension_numbers = #tpu.dot_dimension_numbers<[1], [0], [0], [1], [0, 0, 1, 1], [], []>} : vector<8x32xf32>, vector<32x128xf32>, vector<8x128xf32> -> vector<8x128xf32>
    %c456 = arith.constant 456 : index
    %c0_96 = arith.constant 0 : index
    %286 = vector.load %arg1[%c456, %c0_96] : memref<1448x128xf32, #tpu.memory_space<vmem>>, vector<1x128xf32>
    %287 = vector.broadcast %286 : vector<1x128xf32> to vector<8x128xf32>
    %288 = arith.addf %285, %287 : vector<8x128xf32>
    %cst_97 = arith.constant 0.000000e+00 : f32
    %289 = vector.broadcast %cst_97 : f32 to vector<8x128xf32>
    %290 = arith.maximumf %288, %289 : vector<8x128xf32>
    %c464 = arith.constant 464 : index
    %c0_98 = arith.constant 0 : index
    %291 = vector.load %arg1[%c464, %c0_98] : memref<1448x128xf32, #tpu.memory_space<vmem>>, vector<128x32xf32>
    %cst_99 = arith.constant dense<0.000000e+00> : vector<8x32xf32>
    %292 = tpu.matmul %290, %291, %cst_99 {dimension_numbers = #tpu.dot_dimension_numbers<[1], [0], [0], [1], [0, 0, 1, 1], [], []>} : vector<8x128xf32>, vector<128x32xf32>, vector<8x32xf32> -> vector<8x32xf32>
    %c592 = arith.constant 592 : index
    %c0_100 = arith.constant 0 : index
    %293 = vector.load %arg1[%c592, %c0_100] : memref<1448x128xf32, #tpu.memory_space<vmem>>, vector<1x32xf32>
    %294 = vector.broadcast %293 : vector<1x32xf32> to vector<8x32xf32>
    %295 = arith.addf %292, %294 : vector<8x32xf32>
    %296 = arith.addf %283, %295 : vector<8x32xf32>
    %c616 = arith.constant 616 : index
    %c0_101 = arith.constant 0 : index
    %297 = vector.load %arg1[%c616, %c0_101] : memref<1448x128xf32, #tpu.memory_space<vmem>>, vector<1x32xf32>
    %c624 = arith.constant 624 : index
    %c0_102 = arith.constant 0 : index
    %298 = vector.load %arg1[%c624, %c0_102] : memref<1448x128xf32, #tpu.memory_space<vmem>>, vector<1x32xf32>
    %cst_103 = arith.constant dense<0.000000e+00> : vector<8xf32>
    %299 = vector.multi_reduction <add>, %296, %cst_103 [1] : vector<8x32xf32> to vector<8xf32>
    %300 = vector.shape_cast %299 : vector<8xf32> to vector<8x1xf32>
    %cst_104 = arith.constant 3.200000e+01 : f32
    %301 = vector.broadcast %cst_104 : f32 to vector<8x1xf32>
    %302 = arith.divf %300, %301 : vector<8x1xf32>
    %303 = vector.broadcast %302 : vector<8x1xf32> to vector<8x32xf32>
    %304 = arith.subf %296, %303 : vector<8x32xf32>
    %305 = vector.broadcast %302 : vector<8x1xf32> to vector<8x32xf32>
    %306 = arith.subf %296, %305 : vector<8x32xf32>
    %307 = arith.mulf %304, %306 : vector<8x32xf32>
    %cst_105 = arith.constant dense<0.000000e+00> : vector<8xf32>
    %308 = vector.multi_reduction <add>, %307, %cst_105 [1] : vector<8x32xf32> to vector<8xf32>
    %309 = vector.shape_cast %308 : vector<8xf32> to vector<8x1xf32>
    %cst_106 = arith.constant 3.200000e+01 : f32
    %310 = vector.broadcast %cst_106 : f32 to vector<8x1xf32>
    %311 = arith.divf %309, %310 : vector<8x1xf32>
    %312 = vector.broadcast %302 : vector<8x1xf32> to vector<8x32xf32>
    %313 = arith.subf %296, %312 : vector<8x32xf32>
    %cst_107 = arith.constant 9.99999974E-6 : f32
    %314 = vector.broadcast %cst_107 : f32 to vector<8x1xf32>
    %315 = arith.addf %311, %314 : vector<8x1xf32>
    %316 = math.rsqrt %315 : vector<8x1xf32>
    %317 = vector.broadcast %316 : vector<8x1xf32> to vector<8x32xf32>
    %318 = arith.mulf %313, %317 : vector<8x32xf32>
    %319 = vector.broadcast %297 : vector<1x32xf32> to vector<8x32xf32>
    %320 = arith.mulf %318, %319 : vector<8x32xf32>
    %321 = vector.broadcast %298 : vector<1x32xf32> to vector<8x32xf32>
    %322 = arith.addf %320, %321 : vector<8x32xf32>
    %c0_108 = arith.constant 0 : index
    %c0_109 = arith.constant 0 : index
    %323 = vector.load %arg4[%c0_108, %c0_109] : memref<8x16xf32, #tpu.memory_space<vmem>>, vector<8x16xf32>
    %c632 = arith.constant 632 : index
    %c0_110 = arith.constant 0 : index
    %324 = vector.load %arg1[%c632, %c0_110] : memref<1448x128xf32, #tpu.memory_space<vmem>>, vector<16x32xf32>
    %cst_111 = arith.constant dense<0.000000e+00> : vector<8x32xf32>
    %325 = tpu.matmul %323, %324, %cst_111 {dimension_numbers = #tpu.dot_dimension_numbers<[1], [0], [0], [1], [0, 0, 1, 1], [], []>} : vector<8x16xf32>, vector<16x32xf32>, vector<8x32xf32> -> vector<8x32xf32>
    %c648 = arith.constant 648 : index
    %c0_112 = arith.constant 0 : index
    %326 = vector.load %arg1[%c648, %c0_112] : memref<1448x128xf32, #tpu.memory_space<vmem>>, vector<1x32xf32>
    %327 = vector.broadcast %326 : vector<1x32xf32> to vector<8x32xf32>
    %328 = arith.addf %325, %327 : vector<8x32xf32>
    %c656 = arith.constant 656 : index
    %c0_113 = arith.constant 0 : index
    %329 = vector.load %arg1[%c656, %c0_113] : memref<1448x128xf32, #tpu.memory_space<vmem>>, vector<8x32xf32>
    %330 = arith.addf %328, %329 : vector<8x32xf32>
    %c664 = arith.constant 664 : index
    %c0_114 = arith.constant 0 : index
    %331 = vector.load %arg1[%c664, %c0_114] : memref<1448x128xf32, #tpu.memory_space<vmem>>, vector<32x96xf32>
    %c696 = arith.constant 696 : index
    %c0_115 = arith.constant 0 : index
    %332 = vector.load %arg1[%c696, %c0_115] : memref<1448x128xf32, #tpu.memory_space<vmem>>, vector<1x96xf32>
    %c704 = arith.constant 704 : index
    %c0_116 = arith.constant 0 : index
    %333 = vector.load %arg1[%c704, %c0_116] : memref<1448x128xf32, #tpu.memory_space<vmem>>, vector<32x32xf32>
    %c736 = arith.constant 736 : index
    %c0_117 = arith.constant 0 : index
    %334 = vector.load %arg1[%c736, %c0_117] : memref<1448x128xf32, #tpu.memory_space<vmem>>, vector<1x32xf32>
    %cst_118 = arith.constant dense<0.000000e+00> : vector<8x96xf32>
    %335 = tpu.matmul %330, %331, %cst_118 {dimension_numbers = #tpu.dot_dimension_numbers<[1], [0], [0], [1], [0, 0, 1, 1], [], []>} : vector<8x32xf32>, vector<32x96xf32>, vector<8x96xf32> -> vector<8x96xf32>
    %336 = vector.broadcast %332 : vector<1x96xf32> to vector<8x96xf32>
    %337 = arith.addf %335, %336 : vector<8x96xf32>
    %338 = vector.extract_strided_slice %337 {offsets = [0, 0], sizes = [8, 32], strides = [1, 1]} : vector<8x96xf32> to vector<8x32xf32>
    %339 = vector.extract_strided_slice %337 {offsets = [0, 32], sizes = [8, 32], strides = [1, 1]} : vector<8x96xf32> to vector<8x32xf32>
    %340 = vector.extract_strided_slice %337 {offsets = [0, 64], sizes = [8, 32], strides = [1, 1]} : vector<8x96xf32> to vector<8x32xf32>
    %341 = vector.extract_strided_slice %338 {offsets = [0, 0], sizes = [8, 8], strides = [1, 1]} : vector<8x32xf32> to vector<8x8xf32>
    %342 = vector.extract_strided_slice %339 {offsets = [0, 0], sizes = [8, 8], strides = [1, 1]} : vector<8x32xf32> to vector<8x8xf32>
    %343 = vector.extract_strided_slice %340 {offsets = [0, 0], sizes = [8, 8], strides = [1, 1]} : vector<8x32xf32> to vector<8x8xf32>
    %cst_119 = arith.constant dense<0.000000e+00> : vector<8x8xf32>
    %344 = tpu.matmul %341, %342, %cst_119 {dimension_numbers = #tpu.dot_dimension_numbers<[1], [1], [0], [0], [0, 0, 1, 0], [], []>} : vector<8x8xf32>, vector<8x8xf32>, vector<8x8xf32> -> vector<8x8xf32>
    %cst_120 = arith.constant 0.353553385 : f32
    %345 = vector.broadcast %cst_120 : f32 to vector<8x8xf32>
    %346 = arith.mulf %344, %345 : vector<8x8xf32>
    %347 = arith.addf %346, %0 : vector<8x8xf32>
    %cst_121 = arith.constant dense<0xFF800000> : vector<8xf32>
    %348 = vector.multi_reduction <maximumf>, %347, %cst_121 [1] : vector<8x8xf32> to vector<8xf32>
    %349 = vector.shape_cast %348 : vector<8xf32> to vector<8x1xf32>
    %350 = vector.broadcast %349 : vector<8x1xf32> to vector<8x8xf32>
    %351 = arith.subf %347, %350 : vector<8x8xf32>
    %352 = math.exp %351 : vector<8x8xf32>
    %cst_122 = arith.constant dense<0.000000e+00> : vector<8xf32>
    %353 = vector.multi_reduction <add>, %352, %cst_122 [1] : vector<8x8xf32> to vector<8xf32>
    %354 = vector.shape_cast %353 : vector<8xf32> to vector<8x1xf32>
    %355 = tpu.reciprocal %354 {approx = true} : vector<8x1xf32> -> vector<8x1xf32>
    %356 = vector.broadcast %355 : vector<8x1xf32> to vector<8x8xf32>
    %357 = arith.mulf %352, %356 : vector<8x8xf32>
    %cst_123 = arith.constant dense<0.000000e+00> : vector<8x8xf32>
    %358 = tpu.matmul %357, %343, %cst_123 {dimension_numbers = #tpu.dot_dimension_numbers<[1], [0], [0], [1], [0, 0, 1, 1], [], []>} : vector<8x8xf32>, vector<8x8xf32>, vector<8x8xf32> -> vector<8x8xf32>
    %359 = vector.extract_strided_slice %338 {offsets = [0, 8], sizes = [8, 8], strides = [1, 1]} : vector<8x32xf32> to vector<8x8xf32>
    %360 = vector.extract_strided_slice %339 {offsets = [0, 8], sizes = [8, 8], strides = [1, 1]} : vector<8x32xf32> to vector<8x8xf32>
    %361 = vector.extract_strided_slice %340 {offsets = [0, 8], sizes = [8, 8], strides = [1, 1]} : vector<8x32xf32> to vector<8x8xf32>
    %cst_124 = arith.constant dense<0.000000e+00> : vector<8x8xf32>
    %362 = tpu.matmul %359, %360, %cst_124 {dimension_numbers = #tpu.dot_dimension_numbers<[1], [1], [0], [0], [0, 0, 1, 0], [], []>} : vector<8x8xf32>, vector<8x8xf32>, vector<8x8xf32> -> vector<8x8xf32>
    %cst_125 = arith.constant 0.353553385 : f32
    %363 = vector.broadcast %cst_125 : f32 to vector<8x8xf32>
    %364 = arith.mulf %362, %363 : vector<8x8xf32>
    %365 = arith.addf %364, %0 : vector<8x8xf32>
    %cst_126 = arith.constant dense<0xFF800000> : vector<8xf32>
    %366 = vector.multi_reduction <maximumf>, %365, %cst_126 [1] : vector<8x8xf32> to vector<8xf32>
    %367 = vector.shape_cast %366 : vector<8xf32> to vector<8x1xf32>
    %368 = vector.broadcast %367 : vector<8x1xf32> to vector<8x8xf32>
    %369 = arith.subf %365, %368 : vector<8x8xf32>
    %370 = math.exp %369 : vector<8x8xf32>
    %cst_127 = arith.constant dense<0.000000e+00> : vector<8xf32>
    %371 = vector.multi_reduction <add>, %370, %cst_127 [1] : vector<8x8xf32> to vector<8xf32>
    %372 = vector.shape_cast %371 : vector<8xf32> to vector<8x1xf32>
    %373 = tpu.reciprocal %372 {approx = true} : vector<8x1xf32> -> vector<8x1xf32>
    %374 = vector.broadcast %373 : vector<8x1xf32> to vector<8x8xf32>
    %375 = arith.mulf %370, %374 : vector<8x8xf32>
    %cst_128 = arith.constant dense<0.000000e+00> : vector<8x8xf32>
    %376 = tpu.matmul %375, %361, %cst_128 {dimension_numbers = #tpu.dot_dimension_numbers<[1], [0], [0], [1], [0, 0, 1, 1], [], []>} : vector<8x8xf32>, vector<8x8xf32>, vector<8x8xf32> -> vector<8x8xf32>
    %377 = vector.extract_strided_slice %338 {offsets = [0, 16], sizes = [8, 8], strides = [1, 1]} : vector<8x32xf32> to vector<8x8xf32>
    %378 = vector.extract_strided_slice %339 {offsets = [0, 16], sizes = [8, 8], strides = [1, 1]} : vector<8x32xf32> to vector<8x8xf32>
    %379 = vector.extract_strided_slice %340 {offsets = [0, 16], sizes = [8, 8], strides = [1, 1]} : vector<8x32xf32> to vector<8x8xf32>
    %cst_129 = arith.constant dense<0.000000e+00> : vector<8x8xf32>
    %380 = tpu.matmul %377, %378, %cst_129 {dimension_numbers = #tpu.dot_dimension_numbers<[1], [1], [0], [0], [0, 0, 1, 0], [], []>} : vector<8x8xf32>, vector<8x8xf32>, vector<8x8xf32> -> vector<8x8xf32>
    %cst_130 = arith.constant 0.353553385 : f32
    %381 = vector.broadcast %cst_130 : f32 to vector<8x8xf32>
    %382 = arith.mulf %380, %381 : vector<8x8xf32>
    %383 = arith.addf %382, %0 : vector<8x8xf32>
    %cst_131 = arith.constant dense<0xFF800000> : vector<8xf32>
    %384 = vector.multi_reduction <maximumf>, %383, %cst_131 [1] : vector<8x8xf32> to vector<8xf32>
    %385 = vector.shape_cast %384 : vector<8xf32> to vector<8x1xf32>
    %386 = vector.broadcast %385 : vector<8x1xf32> to vector<8x8xf32>
    %387 = arith.subf %383, %386 : vector<8x8xf32>
    %388 = math.exp %387 : vector<8x8xf32>
    %cst_132 = arith.constant dense<0.000000e+00> : vector<8xf32>
    %389 = vector.multi_reduction <add>, %388, %cst_132 [1] : vector<8x8xf32> to vector<8xf32>
    %390 = vector.shape_cast %389 : vector<8xf32> to vector<8x1xf32>
    %391 = tpu.reciprocal %390 {approx = true} : vector<8x1xf32> -> vector<8x1xf32>
    %392 = vector.broadcast %391 : vector<8x1xf32> to vector<8x8xf32>
    %393 = arith.mulf %388, %392 : vector<8x8xf32>
    %cst_133 = arith.constant dense<0.000000e+00> : vector<8x8xf32>
    %394 = tpu.matmul %393, %379, %cst_133 {dimension_numbers = #tpu.dot_dimension_numbers<[1], [0], [0], [1], [0, 0, 1, 1], [], []>} : vector<8x8xf32>, vector<8x8xf32>, vector<8x8xf32> -> vector<8x8xf32>
    %395 = vector.extract_strided_slice %338 {offsets = [0, 24], sizes = [8, 8], strides = [1, 1]} : vector<8x32xf32> to vector<8x8xf32>
    %396 = vector.extract_strided_slice %339 {offsets = [0, 24], sizes = [8, 8], strides = [1, 1]} : vector<8x32xf32> to vector<8x8xf32>
    %397 = vector.extract_strided_slice %340 {offsets = [0, 24], sizes = [8, 8], strides = [1, 1]} : vector<8x32xf32> to vector<8x8xf32>
    %cst_134 = arith.constant dense<0.000000e+00> : vector<8x8xf32>
    %398 = tpu.matmul %395, %396, %cst_134 {dimension_numbers = #tpu.dot_dimension_numbers<[1], [1], [0], [0], [0, 0, 1, 0], [], []>} : vector<8x8xf32>, vector<8x8xf32>, vector<8x8xf32> -> vector<8x8xf32>
    %cst_135 = arith.constant 0.353553385 : f32
    %399 = vector.broadcast %cst_135 : f32 to vector<8x8xf32>
    %400 = arith.mulf %398, %399 : vector<8x8xf32>
    %401 = arith.addf %400, %0 : vector<8x8xf32>
    %cst_136 = arith.constant dense<0xFF800000> : vector<8xf32>
    %402 = vector.multi_reduction <maximumf>, %401, %cst_136 [1] : vector<8x8xf32> to vector<8xf32>
    %403 = vector.shape_cast %402 : vector<8xf32> to vector<8x1xf32>
    %404 = vector.broadcast %403 : vector<8x1xf32> to vector<8x8xf32>
    %405 = arith.subf %401, %404 : vector<8x8xf32>
    %406 = math.exp %405 : vector<8x8xf32>
    %cst_137 = arith.constant dense<0.000000e+00> : vector<8xf32>
    %407 = vector.multi_reduction <add>, %406, %cst_137 [1] : vector<8x8xf32> to vector<8xf32>
    %408 = vector.shape_cast %407 : vector<8xf32> to vector<8x1xf32>
    %409 = tpu.reciprocal %408 {approx = true} : vector<8x1xf32> -> vector<8x1xf32>
    %410 = vector.broadcast %409 : vector<8x1xf32> to vector<8x8xf32>
    %411 = arith.mulf %406, %410 : vector<8x8xf32>
    %cst_138 = arith.constant dense<0.000000e+00> : vector<8x8xf32>
    %412 = tpu.matmul %411, %397, %cst_138 {dimension_numbers = #tpu.dot_dimension_numbers<[1], [0], [0], [1], [0, 0, 1, 1], [], []>} : vector<8x8xf32>, vector<8x8xf32>, vector<8x8xf32> -> vector<8x8xf32>
    %413 = tpu.concatenate %358, %376, %394, %412 in 1 : vector<8x8xf32>, vector<8x8xf32>, vector<8x8xf32>, vector<8x8xf32> -> vector<8x32xf32>
    %cst_139 = arith.constant dense<0.000000e+00> : vector<8x32xf32>
    %414 = tpu.matmul %413, %333, %cst_139 {dimension_numbers = #tpu.dot_dimension_numbers<[1], [0], [0], [1], [0, 0, 1, 1], [], []>} : vector<8x32xf32>, vector<32x32xf32>, vector<8x32xf32> -> vector<8x32xf32>
    %415 = vector.broadcast %334 : vector<1x32xf32> to vector<8x32xf32>
    %416 = arith.addf %414, %415 : vector<8x32xf32>
    %417 = arith.addf %330, %416 : vector<8x32xf32>
    %c920 = arith.constant 920 : index
    %c0_140 = arith.constant 0 : index
    %418 = vector.load %arg1[%c920, %c0_140] : memref<1448x128xf32, #tpu.memory_space<vmem>>, vector<1x32xf32>
    %c928 = arith.constant 928 : index
    %c0_141 = arith.constant 0 : index
    %419 = vector.load %arg1[%c928, %c0_141] : memref<1448x128xf32, #tpu.memory_space<vmem>>, vector<1x32xf32>
    %cst_142 = arith.constant dense<0.000000e+00> : vector<8xf32>
    %420 = vector.multi_reduction <add>, %417, %cst_142 [1] : vector<8x32xf32> to vector<8xf32>
    %421 = vector.shape_cast %420 : vector<8xf32> to vector<8x1xf32>
    %cst_143 = arith.constant 3.200000e+01 : f32
    %422 = vector.broadcast %cst_143 : f32 to vector<8x1xf32>
    %423 = arith.divf %421, %422 : vector<8x1xf32>
    %424 = vector.broadcast %423 : vector<8x1xf32> to vector<8x32xf32>
    %425 = arith.subf %417, %424 : vector<8x32xf32>
    %426 = vector.broadcast %423 : vector<8x1xf32> to vector<8x32xf32>
    %427 = arith.subf %417, %426 : vector<8x32xf32>
    %428 = arith.mulf %425, %427 : vector<8x32xf32>
    %cst_144 = arith.constant dense<0.000000e+00> : vector<8xf32>
    %429 = vector.multi_reduction <add>, %428, %cst_144 [1] : vector<8x32xf32> to vector<8xf32>
    %430 = vector.shape_cast %429 : vector<8xf32> to vector<8x1xf32>
    %cst_145 = arith.constant 3.200000e+01 : f32
    %431 = vector.broadcast %cst_145 : f32 to vector<8x1xf32>
    %432 = arith.divf %430, %431 : vector<8x1xf32>
    %433 = vector.broadcast %423 : vector<8x1xf32> to vector<8x32xf32>
    %434 = arith.subf %417, %433 : vector<8x32xf32>
    %cst_146 = arith.constant 9.99999974E-6 : f32
    %435 = vector.broadcast %cst_146 : f32 to vector<8x1xf32>
    %436 = arith.addf %432, %435 : vector<8x1xf32>
    %437 = math.rsqrt %436 : vector<8x1xf32>
    %438 = vector.broadcast %437 : vector<8x1xf32> to vector<8x32xf32>
    %439 = arith.mulf %434, %438 : vector<8x32xf32>
    %440 = vector.broadcast %418 : vector<1x32xf32> to vector<8x32xf32>
    %441 = arith.mulf %439, %440 : vector<8x32xf32>
    %442 = vector.broadcast %419 : vector<1x32xf32> to vector<8x32xf32>
    %443 = arith.addf %441, %442 : vector<8x32xf32>
    %c744 = arith.constant 744 : index
    %c0_147 = arith.constant 0 : index
    %444 = vector.load %arg1[%c744, %c0_147] : memref<1448x128xf32, #tpu.memory_space<vmem>>, vector<32x128xf32>
    %cst_148 = arith.constant dense<0.000000e+00> : vector<8x128xf32>
    %445 = tpu.matmul %443, %444, %cst_148 {dimension_numbers = #tpu.dot_dimension_numbers<[1], [0], [0], [1], [0, 0, 1, 1], [], []>} : vector<8x32xf32>, vector<32x128xf32>, vector<8x128xf32> -> vector<8x128xf32>
    %c776 = arith.constant 776 : index
    %c0_149 = arith.constant 0 : index
    %446 = vector.load %arg1[%c776, %c0_149] : memref<1448x128xf32, #tpu.memory_space<vmem>>, vector<1x128xf32>
    %447 = vector.broadcast %446 : vector<1x128xf32> to vector<8x128xf32>
    %448 = arith.addf %445, %447 : vector<8x128xf32>
    %cst_150 = arith.constant 0.000000e+00 : f32
    %449 = vector.broadcast %cst_150 : f32 to vector<8x128xf32>
    %450 = arith.maximumf %448, %449 : vector<8x128xf32>
    %c784 = arith.constant 784 : index
    %c0_151 = arith.constant 0 : index
    %451 = vector.load %arg1[%c784, %c0_151] : memref<1448x128xf32, #tpu.memory_space<vmem>>, vector<128x32xf32>
    %cst_152 = arith.constant dense<0.000000e+00> : vector<8x32xf32>
    %452 = tpu.matmul %450, %451, %cst_152 {dimension_numbers = #tpu.dot_dimension_numbers<[1], [0], [0], [1], [0, 0, 1, 1], [], []>} : vector<8x128xf32>, vector<128x32xf32>, vector<8x32xf32> -> vector<8x32xf32>
    %c912 = arith.constant 912 : index
    %c0_153 = arith.constant 0 : index
    %453 = vector.load %arg1[%c912, %c0_153] : memref<1448x128xf32, #tpu.memory_space<vmem>>, vector<1x32xf32>
    %454 = vector.broadcast %453 : vector<1x32xf32> to vector<8x32xf32>
    %455 = arith.addf %452, %454 : vector<8x32xf32>
    %456 = arith.addf %443, %455 : vector<8x32xf32>
    %c936 = arith.constant 936 : index
    %c0_154 = arith.constant 0 : index
    %457 = vector.load %arg1[%c936, %c0_154] : memref<1448x128xf32, #tpu.memory_space<vmem>>, vector<1x32xf32>
    %c944 = arith.constant 944 : index
    %c0_155 = arith.constant 0 : index
    %458 = vector.load %arg1[%c944, %c0_155] : memref<1448x128xf32, #tpu.memory_space<vmem>>, vector<1x32xf32>
    %cst_156 = arith.constant dense<0.000000e+00> : vector<8xf32>
    %459 = vector.multi_reduction <add>, %456, %cst_156 [1] : vector<8x32xf32> to vector<8xf32>
    %460 = vector.shape_cast %459 : vector<8xf32> to vector<8x1xf32>
    %cst_157 = arith.constant 3.200000e+01 : f32
    %461 = vector.broadcast %cst_157 : f32 to vector<8x1xf32>
    %462 = arith.divf %460, %461 : vector<8x1xf32>
    %463 = vector.broadcast %462 : vector<8x1xf32> to vector<8x32xf32>
    %464 = arith.subf %456, %463 : vector<8x32xf32>
    %465 = vector.broadcast %462 : vector<8x1xf32> to vector<8x32xf32>
    %466 = arith.subf %456, %465 : vector<8x32xf32>
    %467 = arith.mulf %464, %466 : vector<8x32xf32>
    %cst_158 = arith.constant dense<0.000000e+00> : vector<8xf32>
    %468 = vector.multi_reduction <add>, %467, %cst_158 [1] : vector<8x32xf32> to vector<8xf32>
    %469 = vector.shape_cast %468 : vector<8xf32> to vector<8x1xf32>
    %cst_159 = arith.constant 3.200000e+01 : f32
    %470 = vector.broadcast %cst_159 : f32 to vector<8x1xf32>
    %471 = arith.divf %469, %470 : vector<8x1xf32>
    %472 = vector.broadcast %462 : vector<8x1xf32> to vector<8x32xf32>
    %473 = arith.subf %456, %472 : vector<8x32xf32>
    %cst_160 = arith.constant 9.99999974E-6 : f32
    %474 = vector.broadcast %cst_160 : f32 to vector<8x1xf32>
    %475 = arith.addf %471, %474 : vector<8x1xf32>
    %476 = math.rsqrt %475 : vector<8x1xf32>
    %477 = vector.broadcast %476 : vector<8x1xf32> to vector<8x32xf32>
    %478 = arith.mulf %473, %477 : vector<8x32xf32>
    %479 = vector.broadcast %457 : vector<1x32xf32> to vector<8x32xf32>
    %480 = arith.mulf %478, %479 : vector<8x32xf32>
    %481 = vector.broadcast %458 : vector<1x32xf32> to vector<8x32xf32>
    %482 = arith.addf %480, %481 : vector<8x32xf32>
    %c0_161 = arith.constant 0 : index
    %c0_162 = arith.constant 0 : index
    %483 = vector.load %arg6[%c0_161, %c0_162] : memref<8x32xf32, #tpu.memory_space<vmem>>, vector<8x32xf32>
    %484 = tpu.concatenate %162, %322, %482, %483 in 0 : vector<8x32xf32>, vector<8x32xf32>, vector<8x32xf32>, vector<8x32xf32> -> vector<32x32xf32>
    %c0_163 = arith.constant 0 : index
    %c0_164 = arith.constant 0 : index
    %485 = vector.load %arg5[%c0_163, %c0_164] : memref<16x8xf32, #tpu.memory_space<vmem>>, vector<16x8xf32>
    %c952 = arith.constant 952 : index
    %c0_165 = arith.constant 0 : index
    %486 = vector.load %arg1[%c952, %c0_165] : memref<1448x128xf32, #tpu.memory_space<vmem>>, vector<8x32xf32>
    %cst_166 = arith.constant dense<0.000000e+00> : vector<16x32xf32>
    %487 = tpu.matmul %485, %486, %cst_166 {dimension_numbers = #tpu.dot_dimension_numbers<[1], [0], [0], [1], [0, 0, 1, 1], [], []>} : vector<16x8xf32>, vector<8x32xf32>, vector<16x32xf32> -> vector<16x32xf32>
    %c960 = arith.constant 960 : index
    %c0_167 = arith.constant 0 : index
    %488 = vector.load %arg1[%c960, %c0_167] : memref<1448x128xf32, #tpu.memory_space<vmem>>, vector<1x32xf32>
    %489 = vector.broadcast %488 : vector<1x32xf32> to vector<16x32xf32>
    %490 = arith.addf %487, %489 : vector<16x32xf32>
    %c968 = arith.constant 968 : index
    %c0_168 = arith.constant 0 : index
    %491 = vector.load %arg1[%c968, %c0_168] : memref<1448x128xf32, #tpu.memory_space<vmem>>, vector<16x32xf32>
    %492 = arith.addf %490, %491 : vector<16x32xf32>
    %c984 = arith.constant 984 : index
    %c0_169 = arith.constant 0 : index
    %493 = vector.load %arg1[%c984, %c0_169] : memref<1448x128xf32, #tpu.memory_space<vmem>>, vector<32x96xf32>
    %c1016 = arith.constant 1016 : index
    %c0_170 = arith.constant 0 : index
    %494 = vector.load %arg1[%c1016, %c0_170] : memref<1448x128xf32, #tpu.memory_space<vmem>>, vector<1x96xf32>
    %c1024 = arith.constant 1024 : index
    %c0_171 = arith.constant 0 : index
    %495 = vector.load %arg1[%c1024, %c0_171] : memref<1448x128xf32, #tpu.memory_space<vmem>>, vector<32x32xf32>
    %c1056 = arith.constant 1056 : index
    %c0_172 = arith.constant 0 : index
    %496 = vector.load %arg1[%c1056, %c0_172] : memref<1448x128xf32, #tpu.memory_space<vmem>>, vector<1x32xf32>
    %cst_173 = arith.constant dense<0.000000e+00> : vector<16x96xf32>
    %497 = tpu.matmul %492, %493, %cst_173 {dimension_numbers = #tpu.dot_dimension_numbers<[1], [0], [0], [1], [0, 0, 1, 1], [], []>} : vector<16x32xf32>, vector<32x96xf32>, vector<16x96xf32> -> vector<16x96xf32>
    %498 = vector.broadcast %494 : vector<1x96xf32> to vector<16x96xf32>
    %499 = arith.addf %497, %498 : vector<16x96xf32>
    %500 = vector.extract_strided_slice %499 {offsets = [0, 0], sizes = [16, 32], strides = [1, 1]} : vector<16x96xf32> to vector<16x32xf32>
    %501 = vector.extract_strided_slice %499 {offsets = [0, 32], sizes = [16, 32], strides = [1, 1]} : vector<16x96xf32> to vector<16x32xf32>
    %502 = vector.extract_strided_slice %499 {offsets = [0, 64], sizes = [16, 32], strides = [1, 1]} : vector<16x96xf32> to vector<16x32xf32>
    %503 = vector.extract_strided_slice %500 {offsets = [0, 0], sizes = [16, 8], strides = [1, 1]} : vector<16x32xf32> to vector<16x8xf32>
    %504 = vector.extract_strided_slice %501 {offsets = [0, 0], sizes = [16, 8], strides = [1, 1]} : vector<16x32xf32> to vector<16x8xf32>
    %505 = vector.extract_strided_slice %502 {offsets = [0, 0], sizes = [16, 8], strides = [1, 1]} : vector<16x32xf32> to vector<16x8xf32>
    %cst_174 = arith.constant dense<0.000000e+00> : vector<16x16xf32>
    %506 = tpu.matmul %503, %504, %cst_174 {dimension_numbers = #tpu.dot_dimension_numbers<[1], [1], [0], [0], [0, 0, 1, 0], [], []>} : vector<16x8xf32>, vector<16x8xf32>, vector<16x16xf32> -> vector<16x16xf32>
    %cst_175 = arith.constant 0.353553385 : f32
    %507 = vector.broadcast %cst_175 : f32 to vector<16x16xf32>
    %508 = arith.mulf %506, %507 : vector<16x16xf32>
    %509 = arith.addf %508, %1 : vector<16x16xf32>
    %cst_176 = arith.constant dense<0xFF800000> : vector<16xf32>
    %510 = vector.multi_reduction <maximumf>, %509, %cst_176 [1] : vector<16x16xf32> to vector<16xf32>
    %511 = vector.shape_cast %510 : vector<16xf32> to vector<16x1xf32>
    %512 = vector.broadcast %511 : vector<16x1xf32> to vector<16x16xf32>
    %513 = arith.subf %509, %512 : vector<16x16xf32>
    %514 = math.exp %513 : vector<16x16xf32>
    %cst_177 = arith.constant dense<0.000000e+00> : vector<16xf32>
    %515 = vector.multi_reduction <add>, %514, %cst_177 [1] : vector<16x16xf32> to vector<16xf32>
    %516 = vector.shape_cast %515 : vector<16xf32> to vector<16x1xf32>
    %517 = tpu.reciprocal %516 {approx = true} : vector<16x1xf32> -> vector<16x1xf32>
    %518 = vector.broadcast %517 : vector<16x1xf32> to vector<16x16xf32>
    %519 = arith.mulf %514, %518 : vector<16x16xf32>
    %cst_178 = arith.constant dense<0.000000e+00> : vector<16x8xf32>
    %520 = tpu.matmul %519, %505, %cst_178 {dimension_numbers = #tpu.dot_dimension_numbers<[1], [0], [0], [1], [0, 0, 1, 1], [], []>} : vector<16x16xf32>, vector<16x8xf32>, vector<16x8xf32> -> vector<16x8xf32>
    %521 = vector.extract_strided_slice %500 {offsets = [0, 8], sizes = [16, 8], strides = [1, 1]} : vector<16x32xf32> to vector<16x8xf32>
    %522 = vector.extract_strided_slice %501 {offsets = [0, 8], sizes = [16, 8], strides = [1, 1]} : vector<16x32xf32> to vector<16x8xf32>
    %523 = vector.extract_strided_slice %502 {offsets = [0, 8], sizes = [16, 8], strides = [1, 1]} : vector<16x32xf32> to vector<16x8xf32>
    %cst_179 = arith.constant dense<0.000000e+00> : vector<16x16xf32>
    %524 = tpu.matmul %521, %522, %cst_179 {dimension_numbers = #tpu.dot_dimension_numbers<[1], [1], [0], [0], [0, 0, 1, 0], [], []>} : vector<16x8xf32>, vector<16x8xf32>, vector<16x16xf32> -> vector<16x16xf32>
    %cst_180 = arith.constant 0.353553385 : f32
    %525 = vector.broadcast %cst_180 : f32 to vector<16x16xf32>
    %526 = arith.mulf %524, %525 : vector<16x16xf32>
    %527 = arith.addf %526, %1 : vector<16x16xf32>
    %cst_181 = arith.constant dense<0xFF800000> : vector<16xf32>
    %528 = vector.multi_reduction <maximumf>, %527, %cst_181 [1] : vector<16x16xf32> to vector<16xf32>
    %529 = vector.shape_cast %528 : vector<16xf32> to vector<16x1xf32>
    %530 = vector.broadcast %529 : vector<16x1xf32> to vector<16x16xf32>
    %531 = arith.subf %527, %530 : vector<16x16xf32>
    %532 = math.exp %531 : vector<16x16xf32>
    %cst_182 = arith.constant dense<0.000000e+00> : vector<16xf32>
    %533 = vector.multi_reduction <add>, %532, %cst_182 [1] : vector<16x16xf32> to vector<16xf32>
    %534 = vector.shape_cast %533 : vector<16xf32> to vector<16x1xf32>
    %535 = tpu.reciprocal %534 {approx = true} : vector<16x1xf32> -> vector<16x1xf32>
    %536 = vector.broadcast %535 : vector<16x1xf32> to vector<16x16xf32>
    %537 = arith.mulf %532, %536 : vector<16x16xf32>
    %cst_183 = arith.constant dense<0.000000e+00> : vector<16x8xf32>
    %538 = tpu.matmul %537, %523, %cst_183 {dimension_numbers = #tpu.dot_dimension_numbers<[1], [0], [0], [1], [0, 0, 1, 1], [], []>} : vector<16x16xf32>, vector<16x8xf32>, vector<16x8xf32> -> vector<16x8xf32>
    %539 = vector.extract_strided_slice %500 {offsets = [0, 16], sizes = [16, 8], strides = [1, 1]} : vector<16x32xf32> to vector<16x8xf32>
    %540 = vector.extract_strided_slice %501 {offsets = [0, 16], sizes = [16, 8], strides = [1, 1]} : vector<16x32xf32> to vector<16x8xf32>
    %541 = vector.extract_strided_slice %502 {offsets = [0, 16], sizes = [16, 8], strides = [1, 1]} : vector<16x32xf32> to vector<16x8xf32>
    %cst_184 = arith.constant dense<0.000000e+00> : vector<16x16xf32>
    %542 = tpu.matmul %539, %540, %cst_184 {dimension_numbers = #tpu.dot_dimension_numbers<[1], [1], [0], [0], [0, 0, 1, 0], [], []>} : vector<16x8xf32>, vector<16x8xf32>, vector<16x16xf32> -> vector<16x16xf32>
    %cst_185 = arith.constant 0.353553385 : f32
    %543 = vector.broadcast %cst_185 : f32 to vector<16x16xf32>
    %544 = arith.mulf %542, %543 : vector<16x16xf32>
    %545 = arith.addf %544, %1 : vector<16x16xf32>
    %cst_186 = arith.constant dense<0xFF800000> : vector<16xf32>
    %546 = vector.multi_reduction <maximumf>, %545, %cst_186 [1] : vector<16x16xf32> to vector<16xf32>
    %547 = vector.shape_cast %546 : vector<16xf32> to vector<16x1xf32>
    %548 = vector.broadcast %547 : vector<16x1xf32> to vector<16x16xf32>
    %549 = arith.subf %545, %548 : vector<16x16xf32>
    %550 = math.exp %549 : vector<16x16xf32>
    %cst_187 = arith.constant dense<0.000000e+00> : vector<16xf32>
    %551 = vector.multi_reduction <add>, %550, %cst_187 [1] : vector<16x16xf32> to vector<16xf32>
    %552 = vector.shape_cast %551 : vector<16xf32> to vector<16x1xf32>
    %553 = tpu.reciprocal %552 {approx = true} : vector<16x1xf32> -> vector<16x1xf32>
    %554 = vector.broadcast %553 : vector<16x1xf32> to vector<16x16xf32>
    %555 = arith.mulf %550, %554 : vector<16x16xf32>
    %cst_188 = arith.constant dense<0.000000e+00> : vector<16x8xf32>
    %556 = tpu.matmul %555, %541, %cst_188 {dimension_numbers = #tpu.dot_dimension_numbers<[1], [0], [0], [1], [0, 0, 1, 1], [], []>} : vector<16x16xf32>, vector<16x8xf32>, vector<16x8xf32> -> vector<16x8xf32>
    %557 = vector.extract_strided_slice %500 {offsets = [0, 24], sizes = [16, 8], strides = [1, 1]} : vector<16x32xf32> to vector<16x8xf32>
    %558 = vector.extract_strided_slice %501 {offsets = [0, 24], sizes = [16, 8], strides = [1, 1]} : vector<16x32xf32> to vector<16x8xf32>
    %559 = vector.extract_strided_slice %502 {offsets = [0, 24], sizes = [16, 8], strides = [1, 1]} : vector<16x32xf32> to vector<16x8xf32>
    %cst_189 = arith.constant dense<0.000000e+00> : vector<16x16xf32>
    %560 = tpu.matmul %557, %558, %cst_189 {dimension_numbers = #tpu.dot_dimension_numbers<[1], [1], [0], [0], [0, 0, 1, 0], [], []>} : vector<16x8xf32>, vector<16x8xf32>, vector<16x16xf32> -> vector<16x16xf32>
    %cst_190 = arith.constant 0.353553385 : f32
    %561 = vector.broadcast %cst_190 : f32 to vector<16x16xf32>
    %562 = arith.mulf %560, %561 : vector<16x16xf32>
    %563 = arith.addf %562, %1 : vector<16x16xf32>
    %cst_191 = arith.constant dense<0xFF800000> : vector<16xf32>
    %564 = vector.multi_reduction <maximumf>, %563, %cst_191 [1] : vector<16x16xf32> to vector<16xf32>
    %565 = vector.shape_cast %564 : vector<16xf32> to vector<16x1xf32>
    %566 = vector.broadcast %565 : vector<16x1xf32> to vector<16x16xf32>
    %567 = arith.subf %563, %566 : vector<16x16xf32>
    %568 = math.exp %567 : vector<16x16xf32>
    %cst_192 = arith.constant dense<0.000000e+00> : vector<16xf32>
    %569 = vector.multi_reduction <add>, %568, %cst_192 [1] : vector<16x16xf32> to vector<16xf32>
    %570 = vector.shape_cast %569 : vector<16xf32> to vector<16x1xf32>
    %571 = tpu.reciprocal %570 {approx = true} : vector<16x1xf32> -> vector<16x1xf32>
    %572 = vector.broadcast %571 : vector<16x1xf32> to vector<16x16xf32>
    %573 = arith.mulf %568, %572 : vector<16x16xf32>
    %cst_193 = arith.constant dense<0.000000e+00> : vector<16x8xf32>
    %574 = tpu.matmul %573, %559, %cst_193 {dimension_numbers = #tpu.dot_dimension_numbers<[1], [0], [0], [1], [0, 0, 1, 1], [], []>} : vector<16x16xf32>, vector<16x8xf32>, vector<16x8xf32> -> vector<16x8xf32>
    %575 = tpu.concatenate %520, %538, %556, %574 in 1 : vector<16x8xf32>, vector<16x8xf32>, vector<16x8xf32>, vector<16x8xf32> -> vector<16x32xf32>
    %cst_194 = arith.constant dense<0.000000e+00> : vector<16x32xf32>
    %576 = tpu.matmul %575, %495, %cst_194 {dimension_numbers = #tpu.dot_dimension_numbers<[1], [0], [0], [1], [0, 0, 1, 1], [], []>} : vector<16x32xf32>, vector<32x32xf32>, vector<16x32xf32> -> vector<16x32xf32>
    %577 = vector.broadcast %496 : vector<1x32xf32> to vector<16x32xf32>
    %578 = arith.addf %576, %577 : vector<16x32xf32>
    %579 = arith.addf %492, %578 : vector<16x32xf32>
    %c1320 = arith.constant 1320 : index
    %c0_195 = arith.constant 0 : index
    %580 = vector.load %arg1[%c1320, %c0_195] : memref<1448x128xf32, #tpu.memory_space<vmem>>, vector<1x32xf32>
    %c1328 = arith.constant 1328 : index
    %c0_196 = arith.constant 0 : index
    %581 = vector.load %arg1[%c1328, %c0_196] : memref<1448x128xf32, #tpu.memory_space<vmem>>, vector<1x32xf32>
    %cst_197 = arith.constant dense<0.000000e+00> : vector<16xf32>
    %582 = vector.multi_reduction <add>, %579, %cst_197 [1] : vector<16x32xf32> to vector<16xf32>
    %583 = vector.shape_cast %582 : vector<16xf32> to vector<16x1xf32>
    %cst_198 = arith.constant 3.200000e+01 : f32
    %584 = vector.broadcast %cst_198 : f32 to vector<16x1xf32>
    %585 = arith.divf %583, %584 : vector<16x1xf32>
    %586 = vector.broadcast %585 : vector<16x1xf32> to vector<16x32xf32>
    %587 = arith.subf %579, %586 : vector<16x32xf32>
    %588 = vector.broadcast %585 : vector<16x1xf32> to vector<16x32xf32>
    %589 = arith.subf %579, %588 : vector<16x32xf32>
    %590 = arith.mulf %587, %589 : vector<16x32xf32>
    %cst_199 = arith.constant dense<0.000000e+00> : vector<16xf32>
    %591 = vector.multi_reduction <add>, %590, %cst_199 [1] : vector<16x32xf32> to vector<16xf32>
    %592 = vector.shape_cast %591 : vector<16xf32> to vector<16x1xf32>
    %cst_200 = arith.constant 3.200000e+01 : f32
    %593 = vector.broadcast %cst_200 : f32 to vector<16x1xf32>
    %594 = arith.divf %592, %593 : vector<16x1xf32>
    %595 = vector.broadcast %585 : vector<16x1xf32> to vector<16x32xf32>
    %596 = arith.subf %579, %595 : vector<16x32xf32>
    %cst_201 = arith.constant 9.99999974E-6 : f32
    %597 = vector.broadcast %cst_201 : f32 to vector<16x1xf32>
    %598 = arith.addf %594, %597 : vector<16x1xf32>
    %599 = math.rsqrt %598 : vector<16x1xf32>
    %600 = vector.broadcast %599 : vector<16x1xf32> to vector<16x32xf32>
    %601 = arith.mulf %596, %600 : vector<16x32xf32>
    %602 = vector.broadcast %580 : vector<1x32xf32> to vector<16x32xf32>
    %603 = arith.mulf %601, %602 : vector<16x32xf32>
    %604 = vector.broadcast %581 : vector<1x32xf32> to vector<16x32xf32>
    %605 = arith.addf %603, %604 : vector<16x32xf32>
    %c1064 = arith.constant 1064 : index
    %c0_202 = arith.constant 0 : index
    %606 = vector.load %arg1[%c1064, %c0_202] : memref<1448x128xf32, #tpu.memory_space<vmem>>, vector<32x96xf32>
    %c1096 = arith.constant 1096 : index
    %c0_203 = arith.constant 0 : index
    %607 = vector.load %arg1[%c1096, %c0_203] : memref<1448x128xf32, #tpu.memory_space<vmem>>, vector<1x96xf32>
    %c1104 = arith.constant 1104 : index
    %c0_204 = arith.constant 0 : index
    %608 = vector.load %arg1[%c1104, %c0_204] : memref<1448x128xf32, #tpu.memory_space<vmem>>, vector<32x32xf32>
    %c1136 = arith.constant 1136 : index
    %c0_205 = arith.constant 0 : index
    %609 = vector.load %arg1[%c1136, %c0_205] : memref<1448x128xf32, #tpu.memory_space<vmem>>, vector<1x32xf32>
    %610 = vector.extract_strided_slice %606 {offsets = [0, 0], sizes = [32, 32], strides = [1, 1]} : vector<32x96xf32> to vector<32x32xf32>
    %cst_206 = arith.constant dense<0.000000e+00> : vector<16x32xf32>
    %611 = tpu.matmul %605, %610, %cst_206 {dimension_numbers = #tpu.dot_dimension_numbers<[1], [0], [0], [1], [0, 0, 1, 1], [], []>} : vector<16x32xf32>, vector<32x32xf32>, vector<16x32xf32> -> vector<16x32xf32>
    %612 = vector.extract_strided_slice %607 {offsets = [0, 0], sizes = [1, 32], strides = [1, 1]} : vector<1x96xf32> to vector<1x32xf32>
    %613 = vector.broadcast %612 : vector<1x32xf32> to vector<16x32xf32>
    %614 = arith.addf %611, %613 : vector<16x32xf32>
    %615 = vector.extract_strided_slice %606 {offsets = [0, 32], sizes = [32, 64], strides = [1, 1]} : vector<32x96xf32> to vector<32x64xf32>
    %cst_207 = arith.constant dense<0.000000e+00> : vector<32x64xf32>
    %616 = tpu.matmul %484, %615, %cst_207 {dimension_numbers = #tpu.dot_dimension_numbers<[1], [0], [0], [1], [0, 0, 1, 1], [], []>} : vector<32x32xf32>, vector<32x64xf32>, vector<32x64xf32> -> vector<32x64xf32>
    %617 = vector.extract_strided_slice %607 {offsets = [0, 32], sizes = [1, 64], strides = [1, 1]} : vector<1x96xf32> to vector<1x64xf32>
    %618 = vector.broadcast %617 : vector<1x64xf32> to vector<32x64xf32>
    %619 = arith.addf %616, %618 : vector<32x64xf32>
    %620 = vector.extract_strided_slice %619 {offsets = [0, 0], sizes = [32, 32], strides = [1, 1]} : vector<32x64xf32> to vector<32x32xf32>
    %621 = vector.extract_strided_slice %619 {offsets = [0, 32], sizes = [32, 32], strides = [1, 1]} : vector<32x64xf32> to vector<32x32xf32>
    %622 = vector.extract_strided_slice %614 {offsets = [0, 0], sizes = [16, 8], strides = [1, 1]} : vector<16x32xf32> to vector<16x8xf32>
    %623 = vector.extract_strided_slice %620 {offsets = [0, 0], sizes = [32, 8], strides = [1, 1]} : vector<32x32xf32> to vector<32x8xf32>
    %624 = vector.extract_strided_slice %621 {offsets = [0, 0], sizes = [32, 8], strides = [1, 1]} : vector<32x32xf32> to vector<32x8xf32>
    %cst_208 = arith.constant dense<0.000000e+00> : vector<16x32xf32>
    %625 = tpu.matmul %622, %623, %cst_208 {dimension_numbers = #tpu.dot_dimension_numbers<[1], [1], [0], [0], [0, 0, 1, 0], [], []>} : vector<16x8xf32>, vector<32x8xf32>, vector<16x32xf32> -> vector<16x32xf32>
    %cst_209 = arith.constant 0.353553385 : f32
    %626 = vector.broadcast %cst_209 : f32 to vector<16x32xf32>
    %627 = arith.mulf %625, %626 : vector<16x32xf32>
    %628 = arith.addf %627, %2 : vector<16x32xf32>
    %cst_210 = arith.constant dense<0xFF800000> : vector<16xf32>
    %629 = vector.multi_reduction <maximumf>, %628, %cst_210 [1] : vector<16x32xf32> to vector<16xf32>
    %630 = vector.shape_cast %629 : vector<16xf32> to vector<16x1xf32>
    %631 = vector.broadcast %630 : vector<16x1xf32> to vector<16x32xf32>
    %632 = arith.subf %628, %631 : vector<16x32xf32>
    %633 = math.exp %632 : vector<16x32xf32>
    %cst_211 = arith.constant dense<0.000000e+00> : vector<16xf32>
    %634 = vector.multi_reduction <add>, %633, %cst_211 [1] : vector<16x32xf32> to vector<16xf32>
    %635 = vector.shape_cast %634 : vector<16xf32> to vector<16x1xf32>
    %636 = tpu.reciprocal %635 {approx = true} : vector<16x1xf32> -> vector<16x1xf32>
    %637 = vector.broadcast %636 : vector<16x1xf32> to vector<16x32xf32>
    %638 = arith.mulf %633, %637 : vector<16x32xf32>
    %cst_212 = arith.constant dense<0.000000e+00> : vector<16x8xf32>
    %639 = tpu.matmul %638, %624, %cst_212 {dimension_numbers = #tpu.dot_dimension_numbers<[1], [0], [0], [1], [0, 0, 1, 1], [], []>} : vector<16x32xf32>, vector<32x8xf32>, vector<16x8xf32> -> vector<16x8xf32>
    %640 = vector.extract_strided_slice %614 {offsets = [0, 8], sizes = [16, 8], strides = [1, 1]} : vector<16x32xf32> to vector<16x8xf32>
    %641 = vector.extract_strided_slice %620 {offsets = [0, 8], sizes = [32, 8], strides = [1, 1]} : vector<32x32xf32> to vector<32x8xf32>
    %642 = vector.extract_strided_slice %621 {offsets = [0, 8], sizes = [32, 8], strides = [1, 1]} : vector<32x32xf32> to vector<32x8xf32>
    %cst_213 = arith.constant dense<0.000000e+00> : vector<16x32xf32>
    %643 = tpu.matmul %640, %641, %cst_213 {dimension_numbers = #tpu.dot_dimension_numbers<[1], [1], [0], [0], [0, 0, 1, 0], [], []>} : vector<16x8xf32>, vector<32x8xf32>, vector<16x32xf32> -> vector<16x32xf32>
    %cst_214 = arith.constant 0.353553385 : f32
    %644 = vector.broadcast %cst_214 : f32 to vector<16x32xf32>
    %645 = arith.mulf %643, %644 : vector<16x32xf32>
    %646 = arith.addf %645, %2 : vector<16x32xf32>
    %cst_215 = arith.constant dense<0xFF800000> : vector<16xf32>
    %647 = vector.multi_reduction <maximumf>, %646, %cst_215 [1] : vector<16x32xf32> to vector<16xf32>
    %648 = vector.shape_cast %647 : vector<16xf32> to vector<16x1xf32>
    %649 = vector.broadcast %648 : vector<16x1xf32> to vector<16x32xf32>
    %650 = arith.subf %646, %649 : vector<16x32xf32>
    %651 = math.exp %650 : vector<16x32xf32>
    %cst_216 = arith.constant dense<0.000000e+00> : vector<16xf32>
    %652 = vector.multi_reduction <add>, %651, %cst_216 [1] : vector<16x32xf32> to vector<16xf32>
    %653 = vector.shape_cast %652 : vector<16xf32> to vector<16x1xf32>
    %654 = tpu.reciprocal %653 {approx = true} : vector<16x1xf32> -> vector<16x1xf32>
    %655 = vector.broadcast %654 : vector<16x1xf32> to vector<16x32xf32>
    %656 = arith.mulf %651, %655 : vector<16x32xf32>
    %cst_217 = arith.constant dense<0.000000e+00> : vector<16x8xf32>
    %657 = tpu.matmul %656, %642, %cst_217 {dimension_numbers = #tpu.dot_dimension_numbers<[1], [0], [0], [1], [0, 0, 1, 1], [], []>} : vector<16x32xf32>, vector<32x8xf32>, vector<16x8xf32> -> vector<16x8xf32>
    %658 = vector.extract_strided_slice %614 {offsets = [0, 16], sizes = [16, 8], strides = [1, 1]} : vector<16x32xf32> to vector<16x8xf32>
    %659 = vector.extract_strided_slice %620 {offsets = [0, 16], sizes = [32, 8], strides = [1, 1]} : vector<32x32xf32> to vector<32x8xf32>
    %660 = vector.extract_strided_slice %621 {offsets = [0, 16], sizes = [32, 8], strides = [1, 1]} : vector<32x32xf32> to vector<32x8xf32>
    %cst_218 = arith.constant dense<0.000000e+00> : vector<16x32xf32>
    %661 = tpu.matmul %658, %659, %cst_218 {dimension_numbers = #tpu.dot_dimension_numbers<[1], [1], [0], [0], [0, 0, 1, 0], [], []>} : vector<16x8xf32>, vector<32x8xf32>, vector<16x32xf32> -> vector<16x32xf32>
    %cst_219 = arith.constant 0.353553385 : f32
    %662 = vector.broadcast %cst_219 : f32 to vector<16x32xf32>
    %663 = arith.mulf %661, %662 : vector<16x32xf32>
    %664 = arith.addf %663, %2 : vector<16x32xf32>
    %cst_220 = arith.constant dense<0xFF800000> : vector<16xf32>
    %665 = vector.multi_reduction <maximumf>, %664, %cst_220 [1] : vector<16x32xf32> to vector<16xf32>
    %666 = vector.shape_cast %665 : vector<16xf32> to vector<16x1xf32>
    %667 = vector.broadcast %666 : vector<16x1xf32> to vector<16x32xf32>
    %668 = arith.subf %664, %667 : vector<16x32xf32>
    %669 = math.exp %668 : vector<16x32xf32>
    %cst_221 = arith.constant dense<0.000000e+00> : vector<16xf32>
    %670 = vector.multi_reduction <add>, %669, %cst_221 [1] : vector<16x32xf32> to vector<16xf32>
    %671 = vector.shape_cast %670 : vector<16xf32> to vector<16x1xf32>
    %672 = tpu.reciprocal %671 {approx = true} : vector<16x1xf32> -> vector<16x1xf32>
    %673 = vector.broadcast %672 : vector<16x1xf32> to vector<16x32xf32>
    %674 = arith.mulf %669, %673 : vector<16x32xf32>
    %cst_222 = arith.constant dense<0.000000e+00> : vector<16x8xf32>
    %675 = tpu.matmul %674, %660, %cst_222 {dimension_numbers = #tpu.dot_dimension_numbers<[1], [0], [0], [1], [0, 0, 1, 1], [], []>} : vector<16x32xf32>, vector<32x8xf32>, vector<16x8xf32> -> vector<16x8xf32>
    %676 = vector.extract_strided_slice %614 {offsets = [0, 24], sizes = [16, 8], strides = [1, 1]} : vector<16x32xf32> to vector<16x8xf32>
    %677 = vector.extract_strided_slice %620 {offsets = [0, 24], sizes = [32, 8], strides = [1, 1]} : vector<32x32xf32> to vector<32x8xf32>
    %678 = vector.extract_strided_slice %621 {offsets = [0, 24], sizes = [32, 8], strides = [1, 1]} : vector<32x32xf32> to vector<32x8xf32>
    %cst_223 = arith.constant dense<0.000000e+00> : vector<16x32xf32>
    %679 = tpu.matmul %676, %677, %cst_223 {dimension_numbers = #tpu.dot_dimension_numbers<[1], [1], [0], [0], [0, 0, 1, 0], [], []>} : vector<16x8xf32>, vector<32x8xf32>, vector<16x32xf32> -> vector<16x32xf32>
    %cst_224 = arith.constant 0.353553385 : f32
    %680 = vector.broadcast %cst_224 : f32 to vector<16x32xf32>
    %681 = arith.mulf %679, %680 : vector<16x32xf32>
    %682 = arith.addf %681, %2 : vector<16x32xf32>
    %cst_225 = arith.constant dense<0xFF800000> : vector<16xf32>
    %683 = vector.multi_reduction <maximumf>, %682, %cst_225 [1] : vector<16x32xf32> to vector<16xf32>
    %684 = vector.shape_cast %683 : vector<16xf32> to vector<16x1xf32>
    %685 = vector.broadcast %684 : vector<16x1xf32> to vector<16x32xf32>
    %686 = arith.subf %682, %685 : vector<16x32xf32>
    %687 = math.exp %686 : vector<16x32xf32>
    %cst_226 = arith.constant dense<0.000000e+00> : vector<16xf32>
    %688 = vector.multi_reduction <add>, %687, %cst_226 [1] : vector<16x32xf32> to vector<16xf32>
    %689 = vector.shape_cast %688 : vector<16xf32> to vector<16x1xf32>
    %690 = tpu.reciprocal %689 {approx = true} : vector<16x1xf32> -> vector<16x1xf32>
    %691 = vector.broadcast %690 : vector<16x1xf32> to vector<16x32xf32>
    %692 = arith.mulf %687, %691 : vector<16x32xf32>
    %cst_227 = arith.constant dense<0.000000e+00> : vector<16x8xf32>
    %693 = tpu.matmul %692, %678, %cst_227 {dimension_numbers = #tpu.dot_dimension_numbers<[1], [0], [0], [1], [0, 0, 1, 1], [], []>} : vector<16x32xf32>, vector<32x8xf32>, vector<16x8xf32> -> vector<16x8xf32>
    %694 = tpu.concatenate %639, %657, %675, %693 in 1 : vector<16x8xf32>, vector<16x8xf32>, vector<16x8xf32>, vector<16x8xf32> -> vector<16x32xf32>
    %cst_228 = arith.constant dense<0.000000e+00> : vector<16x32xf32>
    %695 = tpu.matmul %694, %608, %cst_228 {dimension_numbers = #tpu.dot_dimension_numbers<[1], [0], [0], [1], [0, 0, 1, 1], [], []>} : vector<16x32xf32>, vector<32x32xf32>, vector<16x32xf32> -> vector<16x32xf32>
    %696 = vector.broadcast %609 : vector<1x32xf32> to vector<16x32xf32>
    %697 = arith.addf %695, %696 : vector<16x32xf32>
    %698 = arith.addf %605, %697 : vector<16x32xf32>
    %c1336 = arith.constant 1336 : index
    %c0_229 = arith.constant 0 : index
    %699 = vector.load %arg1[%c1336, %c0_229] : memref<1448x128xf32, #tpu.memory_space<vmem>>, vector<1x32xf32>
    %c1344 = arith.constant 1344 : index
    %c0_230 = arith.constant 0 : index
    %700 = vector.load %arg1[%c1344, %c0_230] : memref<1448x128xf32, #tpu.memory_space<vmem>>, vector<1x32xf32>
    %cst_231 = arith.constant dense<0.000000e+00> : vector<16xf32>
    %701 = vector.multi_reduction <add>, %698, %cst_231 [1] : vector<16x32xf32> to vector<16xf32>
    %702 = vector.shape_cast %701 : vector<16xf32> to vector<16x1xf32>
    %cst_232 = arith.constant 3.200000e+01 : f32
    %703 = vector.broadcast %cst_232 : f32 to vector<16x1xf32>
    %704 = arith.divf %702, %703 : vector<16x1xf32>
    %705 = vector.broadcast %704 : vector<16x1xf32> to vector<16x32xf32>
    %706 = arith.subf %698, %705 : vector<16x32xf32>
    %707 = vector.broadcast %704 : vector<16x1xf32> to vector<16x32xf32>
    %708 = arith.subf %698, %707 : vector<16x32xf32>
    %709 = arith.mulf %706, %708 : vector<16x32xf32>
    %cst_233 = arith.constant dense<0.000000e+00> : vector<16xf32>
    %710 = vector.multi_reduction <add>, %709, %cst_233 [1] : vector<16x32xf32> to vector<16xf32>
    %711 = vector.shape_cast %710 : vector<16xf32> to vector<16x1xf32>
    %cst_234 = arith.constant 3.200000e+01 : f32
    %712 = vector.broadcast %cst_234 : f32 to vector<16x1xf32>
    %713 = arith.divf %711, %712 : vector<16x1xf32>
    %714 = vector.broadcast %704 : vector<16x1xf32> to vector<16x32xf32>
    %715 = arith.subf %698, %714 : vector<16x32xf32>
    %cst_235 = arith.constant 9.99999974E-6 : f32
    %716 = vector.broadcast %cst_235 : f32 to vector<16x1xf32>
    %717 = arith.addf %713, %716 : vector<16x1xf32>
    %718 = math.rsqrt %717 : vector<16x1xf32>
    %719 = vector.broadcast %718 : vector<16x1xf32> to vector<16x32xf32>
    %720 = arith.mulf %715, %719 : vector<16x32xf32>
    %721 = vector.broadcast %699 : vector<1x32xf32> to vector<16x32xf32>
    %722 = arith.mulf %720, %721 : vector<16x32xf32>
    %723 = vector.broadcast %700 : vector<1x32xf32> to vector<16x32xf32>
    %724 = arith.addf %722, %723 : vector<16x32xf32>
    %c1144 = arith.constant 1144 : index
    %c0_236 = arith.constant 0 : index
    %725 = vector.load %arg1[%c1144, %c0_236] : memref<1448x128xf32, #tpu.memory_space<vmem>>, vector<32x128xf32>
    %cst_237 = arith.constant dense<0.000000e+00> : vector<16x128xf32>
    %726 = tpu.matmul %724, %725, %cst_237 {dimension_numbers = #tpu.dot_dimension_numbers<[1], [0], [0], [1], [0, 0, 1, 1], [], []>} : vector<16x32xf32>, vector<32x128xf32>, vector<16x128xf32> -> vector<16x128xf32>
    %c1176 = arith.constant 1176 : index
    %c0_238 = arith.constant 0 : index
    %727 = vector.load %arg1[%c1176, %c0_238] : memref<1448x128xf32, #tpu.memory_space<vmem>>, vector<1x128xf32>
    %728 = vector.broadcast %727 : vector<1x128xf32> to vector<16x128xf32>
    %729 = arith.addf %726, %728 : vector<16x128xf32>
    %cst_239 = arith.constant 0.000000e+00 : f32
    %730 = vector.broadcast %cst_239 : f32 to vector<16x128xf32>
    %731 = arith.maximumf %729, %730 : vector<16x128xf32>
    %c1184 = arith.constant 1184 : index
    %c0_240 = arith.constant 0 : index
    %732 = vector.load %arg1[%c1184, %c0_240] : memref<1448x128xf32, #tpu.memory_space<vmem>>, vector<128x32xf32>
    %cst_241 = arith.constant dense<0.000000e+00> : vector<16x32xf32>
    %733 = tpu.matmul %731, %732, %cst_241 {dimension_numbers = #tpu.dot_dimension_numbers<[1], [0], [0], [1], [0, 0, 1, 1], [], []>} : vector<16x128xf32>, vector<128x32xf32>, vector<16x32xf32> -> vector<16x32xf32>
    %c1312 = arith.constant 1312 : index
    %c0_242 = arith.constant 0 : index
    %734 = vector.load %arg1[%c1312, %c0_242] : memref<1448x128xf32, #tpu.memory_space<vmem>>, vector<1x32xf32>
    %735 = vector.broadcast %734 : vector<1x32xf32> to vector<16x32xf32>
    %736 = arith.addf %733, %735 : vector<16x32xf32>
    %737 = arith.addf %724, %736 : vector<16x32xf32>
    %c1352 = arith.constant 1352 : index
    %c0_243 = arith.constant 0 : index
    %738 = vector.load %arg1[%c1352, %c0_243] : memref<1448x128xf32, #tpu.memory_space<vmem>>, vector<1x32xf32>
    %c1360 = arith.constant 1360 : index
    %c0_244 = arith.constant 0 : index
    %739 = vector.load %arg1[%c1360, %c0_244] : memref<1448x128xf32, #tpu.memory_space<vmem>>, vector<1x32xf32>
    %cst_245 = arith.constant dense<0.000000e+00> : vector<16xf32>
    %740 = vector.multi_reduction <add>, %737, %cst_245 [1] : vector<16x32xf32> to vector<16xf32>
    %741 = vector.shape_cast %740 : vector<16xf32> to vector<16x1xf32>
    %cst_246 = arith.constant 3.200000e+01 : f32
    %742 = vector.broadcast %cst_246 : f32 to vector<16x1xf32>
    %743 = arith.divf %741, %742 : vector<16x1xf32>
    %744 = vector.broadcast %743 : vector<16x1xf32> to vector<16x32xf32>
    %745 = arith.subf %737, %744 : vector<16x32xf32>
    %746 = vector.broadcast %743 : vector<16x1xf32> to vector<16x32xf32>
    %747 = arith.subf %737, %746 : vector<16x32xf32>
    %748 = arith.mulf %745, %747 : vector<16x32xf32>
    %cst_247 = arith.constant dense<0.000000e+00> : vector<16xf32>
    %749 = vector.multi_reduction <add>, %748, %cst_247 [1] : vector<16x32xf32> to vector<16xf32>
    %750 = vector.shape_cast %749 : vector<16xf32> to vector<16x1xf32>
    %cst_248 = arith.constant 3.200000e+01 : f32
    %751 = vector.broadcast %cst_248 : f32 to vector<16x1xf32>
    %752 = arith.divf %750, %751 : vector<16x1xf32>
    %753 = vector.broadcast %743 : vector<16x1xf32> to vector<16x32xf32>
    %754 = arith.subf %737, %753 : vector<16x32xf32>
    %cst_249 = arith.constant 9.99999974E-6 : f32
    %755 = vector.broadcast %cst_249 : f32 to vector<16x1xf32>
    %756 = arith.addf %752, %755 : vector<16x1xf32>
    %757 = math.rsqrt %756 : vector<16x1xf32>
    %758 = vector.broadcast %757 : vector<16x1xf32> to vector<16x32xf32>
    %759 = arith.mulf %754, %758 : vector<16x32xf32>
    %760 = vector.broadcast %738 : vector<1x32xf32> to vector<16x32xf32>
    %761 = arith.mulf %759, %760 : vector<16x32xf32>
    %762 = vector.broadcast %739 : vector<1x32xf32> to vector<16x32xf32>
    %763 = arith.addf %761, %762 : vector<16x32xf32>
    %c1368 = arith.constant 1368 : index
    %c0_250 = arith.constant 0 : index
    %764 = vector.load %arg1[%c1368, %c0_250] : memref<1448x128xf32, #tpu.memory_space<vmem>>, vector<32x128xf32>
    %cst_251 = arith.constant dense<0.000000e+00> : vector<16x128xf32>
    %765 = tpu.matmul %763, %764, %cst_251 {dimension_numbers = #tpu.dot_dimension_numbers<[1], [0], [0], [1], [0, 0, 1, 1], [], []>} : vector<16x32xf32>, vector<32x128xf32>, vector<16x128xf32> -> vector<16x128xf32>
    %c1400 = arith.constant 1400 : index
    %c0_252 = arith.constant 0 : index
    %766 = vector.load %arg1[%c1400, %c0_252] : memref<1448x128xf32, #tpu.memory_space<vmem>>, vector<1x128xf32>
    %767 = vector.broadcast %766 : vector<1x128xf32> to vector<16x128xf32>
    %768 = arith.addf %765, %767 : vector<16x128xf32>
    %c0_253 = arith.constant 0 : index
    %c0_254 = arith.constant 0 : index
    %769 = vector.load %arg7[%c0_253, %c0_254] : memref<16x128xf32, #tpu.memory_space<vmem>>, vector<16x128xf32>
    tpu.vector_store %arg7[%c0_253, %c0_254], %768 {strides = array<i32>} : memref<16x128xf32, #tpu.memory_space<vmem>>, vector<16x128xf32>,
    return
  }
  func.func @transform_0(%arg0: i32) -> (i32, i32) {
    %c0_i32 = arith.constant 0 : i32
    %c0_i32_0 = arith.constant 0 : i32
    %c0_i32_1 = arith.constant 0 : i32
    return %c0_i32, %c0_i32_0 : i32, i32
  }
  func.func @transform_1(%arg0: i32) -> (i32, i32) {
    %c0_i32 = arith.constant 0 : i32
    %c0_i32_0 = arith.constant 0 : i32
    %c0_i32_1 = arith.constant 0 : i32
    return %c0_i32, %c0_i32_0 : i32, i32
  }
  func.func @transform_2(%arg0: i32) -> (i32, i32) {
    %c0_i32 = arith.constant 0 : i32
    %c0_i32_0 = arith.constant 0 : i32
    %c0_i32_1 = arith.constant 0 : i32
    return %c0_i32, %c0_i32_0 : i32, i32
  }
  func.func @transform_3(%arg0: i32) -> (i32, i32) {
    %c0_i32 = arith.constant 0 : i32
    %c0_i32_0 = arith.constant 0 : i32
    %c0_i32_1 = arith.constant 0 : i32
    return %c0_i32, %c0_i32_0 : i32, i32
  }
  func.func @transform_4(%arg0: i32) -> (i32, i32) {
    %c0_i32 = arith.constant 0 : i32
    %c0_i32_0 = arith.constant 0 : i32
    %c0_i32_1 = arith.constant 0 : i32
    return %c0_i32, %c0_i32_0 : i32, i32
  }
  func.func @transform_5(%arg0: i32) -> (i32, i32) {
    %c0_i32 = arith.constant 0 : i32
    %c0_i32_0 = arith.constant 0 : i32
    %c0_i32_1 = arith.constant 0 : i32
    return %c0_i32, %c0_i32_0 : i32, i32
  }
  func.func @transform_6(%arg0: i32) -> (i32, i32) {
    %c0_i32 = arith.constant 0 : i32
    %c0_i32_0 = arith.constant 0 : i32
    %c0_i32_1 = arith.constant 0 : i32
    return %c0_i32, %c0_i32_0 : i32, i32
  }
}

</mosaic_0001>

<llo_original>
// kernel: forward.1
$region0: #{forward.1}
  #allocation0 [shape = 'u32[]', space=smem, size = 0x4, offset = 0x4, fixed_abs, tag = 'smem constant byte address 0x4 - core index']
  #allocation1 [shape = 'u32[144,128]{1,0:T(1,128)}', space=vmem, size = 0x12000, scoped, tag = 'internal scratch']
  %s0 = inlined_call_operand.hbm [shape: f32[1448,128], index: 0, kind: input, shape index: {}]
  %s1 = inlined_call_operand.vmem [shape: f32[8,16], index: 1, kind: input, shape index: {}]
  %s2 = inlined_call_operand.vmem [shape: f32[8,8], index: 2, kind: input, shape index: {}]
  %s3 = inlined_call_operand.vmem [shape: f32[8,16], index: 3, kind: input, shape index: {}]
  %s4 = inlined_call_operand.vmem [shape: f32[16,8], index: 4, kind: input, shape index: {}]
  %s5 = inlined_call_operand.vmem [shape: f32[8,32], index: 5, kind: input, shape index: {}]
  %s6 = inlined_call_operand.vmem [shape: f32[16,128], index: 6, kind: output, shape index: {}]
  %s7 = sld [smem:[#allocation0]]
  $region38: #{forward.1} parent=0
    _
  %s9 = ssub.s32 1, %s7
  %s10 = scalar_select 0, %s9, %s7
  $region1: #{forward.1} parent=0
    #allocation2 [shape = 'u8[741376]{0}', space=vmem, size = 0xb5000, scoped, tag = 'input window, operand 0, single buffered']
    #allocation3 [shape = 's32[1]{0}', space=sflag, size = 0x4, scoped, tag = 'scoped memory for forward.1']
    %11 = vsyncpa [#allocation3], 0
    // Predicated region
    $region2: #{forward.1} parent=1 // pred_check
      _
    $region3: #{forward.1} parent=1 // pred_check_branch
      %13 = sbr.rel (0) target = $region5
    $region4: #{forward.1} parent=1 // pred_region
      %s15 = ssub.s32 23168, 23168
      %16 = vsyncadd [#allocation3], %s15
      %s17 = sshll.u32 [#allocation2], 4
      %s18 = int_to_ptr.vmem [resolvable:$true] %s17
      %23 = dma.hbm_to_vmem [thread:$0]  %s0, 23168, %s18, [#allocation3], 128, 128, 8
    $region5: #{forward.1} parent=1 // pred_fallthru
      _
    // Predicated region
    $region6: #{forward.1} parent=1 // pred_check
      _
    $region7: #{forward.1} parent=1 // pred_check_branch
      %25 = sbr.rel (0) target = $region9
    $region8: #{forward.1} parent=1 // pred_region
      _
    $region9: #{forward.1} parent=1 // pred_fallthru
      _
    // Predicated region
    $region10: #{forward.1} parent=1 // pred_check
      _
    $region11: #{forward.1} parent=1 // pred_check_branch
      %27 = sbr.rel (0) target = $region13
    $region12: #{forward.1} parent=1 // pred_region
      _
    $region13: #{forward.1} parent=1 // pred_fallthru
      _
    // Predicated region
    $region14: #{forward.1} parent=1 // pred_check
      _
    $region15: #{forward.1} parent=1 // pred_check_branch
      %29 = sbr.rel (0) target = $region17
    $region16: #{forward.1} parent=1 // pred_region
      _
    $region17: #{forward.1} parent=1 // pred_fallthru
      _
    // Predicated region
    $region18: #{forward.1} parent=1 // pred_check
      _
    $region19: #{forward.1} parent=1 // pred_check_branch
      %31 = sbr.rel (0) target = $region21
    $region20: #{forward.1} parent=1 // pred_region
      _
    $region21: #{forward.1} parent=1 // pred_fallthru
      _
    // Predicated region
    $region22: #{forward.1} parent=1 // pred_check
      _
    $region23: #{forward.1} parent=1 // pred_check_branch
      %33 = sbr.rel (0) target = $region25
    $region24: #{forward.1} parent=1 // pred_region
      _
    $region25: #{forward.1} parent=1 // pred_fallthru
      _
    // Predicated region
    $region26: #{forward.1} parent=1 // pred_check
      _
    $region27: #{forward.1} parent=1 // pred_check_branch
      %35 = sbr.rel (0) target = $region29
    $region28: #{forward.1} parent=1 // pred_region
      %36 = dma.done [#allocation3], 23168
    $region29: #{forward.1} parent=1 // pred_fallthru
      _
    %v37 = vld [vmem:[#allocation2 + $0x580] sm:$0xff]
    %v38 = vld [vmem:[#allocation2 + $0x588] sm:$0xff]
    %v39 = vld [vmem:[#allocation2 + $0x590] sm:$0xff]
    %v40 = vld [vmem:[#allocation2 + $0x598] sm:$0xff]
    %v41 = vld [vmem:[#allocation2 + $0x5a0] sm:$0xff]
    %v42 = vld [vmem:[%s1] sm:$0xff]
    %v43 = vld [vmem:[#allocation2] sm:$0xff]
    %v44 = vld [vmem:[#allocation2 + $0x8] sm:$0xff]
    %v45 = vld [vmem:[#allocation2 + $0x10] sm:$0x1]
    %v46 = vlaneseq
    %v47 = vshrl.u32 %v46, 7
    %v48 = vsub.s32 0, %v47
    %v49 = vrot.slane %v45, %v48
    %vm50 = vcmask 130048
    %v52 = vsel %vm50, %v42, 0
    %54 = vmatprep.subr.mxu0 0.0
    %55 = vmatpush1.msra.mxu0 0.0
    %56 = vmatprep.subr.mxu0 0.0
    %57 = vmatpush1.msra.mxu0 0.0
    %58 = vmatprep.subr.mxu0 0.0
    %59 = vmatpush1.msra.mxu0 0.0
    %60 = vmatprep.subr.mxu0 0.0
    %61 = vmatpush1.msra.mxu0 0.0
    %62 = vmatprep.subr.mxu0 0.0
    %63 = vmatpush1.msra.mxu0 0.0
    %64 = vmatprep.subr.mxu0 0.0
    %65 = vmatpush1.msra.mxu0 0.0
    %66 = vmatprep.subr.mxu0 0.0
    %67 = vmatpush1.msra.mxu0 0.0
    %68 = vmatprep.subr.mxu0 0.0
    %69 = vmatpush1.msra.mxu0 0.0
    %70 = vmatprep.subr.mxu0 0.0
    %71 = vmatpush1.msra.mxu0 0.0
    %72 = vmatprep.subr.mxu0 0.0
    %73 = vmatpush1.msra.mxu0 0.0
    %74 = vmatprep.subr.mxu0 0.0
    %75 = vmatpush1.msra.mxu0 0.0
    %76 = vmatprep.subr.mxu0 0.0
    %77 = vmatpush1.msra.mxu0 0.0
    %78 = vmatprep.subr.mxu0 0.0
    %79 = vmatpush1.msra.mxu0 0.0
    %80 = vmatprep.subr.mxu0 0.0
    %81 = vmatpush1.msra.mxu0 0.0
    %82 = vmatprep.subr.mxu0 0.0
    %83 = vmatpush1.msra.mxu0 %v44
    %84 = vmatprep.subr.mxu0 0.0
    %85 = vmatpush1.msra.mxu0 %v43
    %86 = vmatprep.subr.mxu0 0.0
    %87 = vmatpush2.msra.mxu0 0.0
    %88 = vmatprep.subr.mxu0 0.0
    %89 = vmatpush2.msra.mxu0 0.0
    %90 = vmatprep.subr.mxu0 0.0
    %91 = vmatpush2.msra.mxu0 0.0
    %92 = vmatprep.subr.mxu0 0.0
    %93 = vmatpush2.msra.mxu0 0.0
    %94 = vmatprep.subr.mxu0 0.0
    %95 = vmatpush2.msra.mxu0 0.0
    %96 = vmatprep.subr.mxu0 0.0
    %97 = vmatpush2.msra.mxu0 0.0
    %98 = vmatprep.subr.mxu0 0.0
    %99 = vmatpush2.msra.mxu0 0.0
    %100 = vmatprep.subr.mxu0 0.0
    %101 = vmatpush2.msra.mxu0 0.0
    %102 = vmatprep.subr.mxu0 0.0
    %103 = vmatpush2.msra.mxu0 0.0
    %104 = vmatprep.subr.mxu0 0.0
    %105 = vmatpush2.msra.mxu0 0.0
    %106 = vmatprep.subr.mxu0 0.0
    %107 = vmatpush2.msra.mxu0 0.0
    %108 = vmatprep.subr.mxu0 0.0
    %109 = vmatpush2.msra.mxu0 0.0
    %110 = vmatprep.subr.mxu0 0.0
    %111 = vmatpush2.msra.mxu0 0.0
    %112 = vmatprep.subr.mxu0 0.0
    %113 = vmatpush2.msra.mxu0 0.0
    %114 = vmatprep.subr.mxu0 0.0
    %115 = vmatpush2.msra.mxu0 0.0
    %116 = vmatprep.subr.mxu0 0.0
    %117 = vmatpush2.msra.mxu0 0.0
    %118 = vmatprep.mubr.f32.mxu0 0.0
    %119 = vmatmul.mubr.f32.gmra.mxu0 %v52
    %v120 = vpop.f32.mrf.mxu0
    %v121 = vadd.f32 %v49, %v120
    %v122 = vpop.f32.mrf.mxu0
    %123 = vdwg.mxu0
    %v124 = vld [vmem:[#allocation2 + $0x18] sm:$0xff]
    %v125 = vadd.f32 %v121, %v124
    %v126 = vld [vmem:[#allocation2 + $0x20] sm:$0xff]
    %v127 = vld [vmem:[#allocation2 + $0x28] sm:$0xff]
    %v128 = vld [vmem:[#allocation2 + $0x30] sm:$0xff]
    %v129 = vld [vmem:[#allocation2 + $0x38] sm:$0xff]
    %v130 = vld [vmem:[#allocation2 + $0x40] sm:$0x1]
    %v131 = vld [vmem:[#allocation2 + $0x48] sm:$0xff]
    %v132 = vld [vmem:[#allocation2 + $0x50] sm:$0xff]
    %v133 = vld [vmem:[#allocation2 + $0x58] sm:$0xff]
    %v134 = vld [vmem:[#allocation2 + $0x60] sm:$0xff]
    %v135 = vld [vmem:[#allocation2 + $0x68] sm:$0x1]
    %v136 = vlaneseq
    %v137 = vshrl.u32 %v136, 7
    %v138 = vsub.s32 0, %v137
    %v139 = vrot.slane %v130, %v138
    %vm140 = vcmask 261120
    %v142 = vsel %vm140, %v125, 0
    %144 = vmatprep.subr.mxu0 0.0
    %145 = vmatpush1.msra.mxu0 0.0
    %146 = vmatprep.subr.mxu0 0.0
    %147 = vmatpush1.msra.mxu0 0.0
    %148 = vmatprep.subr.mxu0 0.0
    %149 = vmatpush1.msra.mxu0 0.0
    %150 = vmatprep.subr.mxu0 0.0
    %151 = vmatpush1.msra.mxu0 0.0
    %152 = vmatprep.subr.mxu0 0.0
    %153 = vmatpush1.msra.mxu0 0.0
    %154 = vmatprep.subr.mxu0 0.0
    %155 = vmatpush1.msra.mxu0 0.0
    %156 = vmatprep.subr.mxu0 0.0
    %157 = vmatpush1.msra.mxu0 0.0
    %158 = vmatprep.subr.mxu0 0.0
    %159 = vmatpush1.msra.mxu0 0.0
    %160 = vmatprep.subr.mxu0 0.0
    %161 = vmatpush1.msra.mxu0 0.0
    %162 = vmatprep.subr.mxu0 0.0
    %163 = vmatpush1.msra.mxu0 0.0
    %164 = vmatprep.subr.mxu0 0.0
    %165 = vmatpush1.msra.mxu0 0.0
    %166 = vmatprep.subr.mxu0 0.0
    %167 = vmatpush1.msra.mxu0 0.0
    %168 = vmatprep.subr.mxu0 0.0
    %169 = vmatpush1.msra.mxu0 %v129
    %170 = vmatprep.subr.mxu0 0.0
    %171 = vmatpush1.msra.mxu0 %v128
    %172 = vmatprep.subr.mxu0 0.0
    %173 = vmatpush1.msra.mxu0 %v127
    %174 = vmatprep.subr.mxu0 0.0
    %175 = vmatpush1.msra.mxu0 %v126
    %176 = vmatprep.subr.mxu0 0.0
    %177 = vmatpush2.msra.mxu0 0.0
    %178 = vmatprep.subr.mxu0 0.0
    %179 = vmatpush2.msra.mxu0 0.0
    %180 = vmatprep.subr.mxu0 0.0
    %181 = vmatpush2.msra.mxu0 0.0
    %182 = vmatprep.subr.mxu0 0.0
    %183 = vmatpush2.msra.mxu0 0.0
    %184 = vmatprep.subr.mxu0 0.0
    %185 = vmatpush2.msra.mxu0 0.0
    %186 = vmatprep.subr.mxu0 0.0
    %187 = vmatpush2.msra.mxu0 0.0
    %188 = vmatprep.subr.mxu0 0.0
    %189 = vmatpush2.msra.mxu0 0.0
    %190 = vmatprep.subr.mxu0 0.0
    %191 = vmatpush2.msra.mxu0 0.0
    %192 = vmatprep.subr.mxu0 0.0
    %193 = vmatpush2.msra.mxu0 0.0
    %194 = vmatprep.subr.mxu0 0.0
    %195 = vmatpush2.msra.mxu0 0.0
    %196 = vmatprep.subr.mxu0 0.0
    %197 = vmatpush2.msra.mxu0 0.0
    %198 = vmatprep.subr.mxu0 0.0
    %199 = vmatpush2.msra.mxu0 0.0
    %200 = vmatprep.subr.mxu0 0.0
    %201 = vmatpush2.msra.mxu0 0.0
    %202 = vmatprep.subr.mxu0 0.0
    %203 = vmatpush2.msra.mxu0 0.0
    %204 = vmatprep.subr.mxu0 0.0
    %205 = vmatpush2.msra.mxu0 0.0
    %206 = vmatprep.subr.mxu0 0.0
    %207 = vmatpush2.msra.mxu0 0.0
    %208 = vmatprep.mubr.f32.mxu0 0.0
    %209 = vmatmul.mubr.f32.gmra.mxu0 %v142
    %v210 = vpop.f32.mrf.mxu0
    %v211 = vadd.f32 %v139, %v210
    %v212 = vpop.f32.mrf.mxu0
    %213 = vdwg.mxu0
    %215 = vrot.lane.b32.xlu0 %v211, 96
    %v216 = vpop.permute.xlu0 %215
    %vm217 = vcmask 64512
    %v218 = vsel %vm217, %v211, 0
    %v220 = vsel %vm217, %v216, 0
    %222 = vmatprep.subr.mxu0 0.0
    %223 = vmatpush1.xpose.msra.mxu0 0.0
    %224 = vmatprep.subr.mxu0 0.0
    %225 = vmatpush1.xpose.msra.mxu0 0.0
    %226 = vmatprep.subr.mxu0 0.0
    %227 = vmatpush1.xpose.msra.mxu0 0.0
    %228 = vmatprep.subr.mxu0 0.0
    %229 = vmatpush1.xpose.msra.mxu0 0.0
    %230 = vmatprep.subr.mxu0 0.0
    %231 = vmatpush1.xpose.msra.mxu0 0.0
    %232 = vmatprep.subr.mxu0 0.0
    %233 = vmatpush1.xpose.msra.mxu0 0.0
    %234 = vmatprep.subr.mxu0 0.0
    %235 = vmatpush1.xpose.msra.mxu0 0.0
    %236 = vmatprep.subr.mxu0 0.0
    %237 = vmatpush1.xpose.msra.mxu0 0.0
    %238 = vmatprep.subr.mxu0 0.0
    %239 = vmatpush1.xpose.msra.mxu0 0.0
    %240 = vmatprep.subr.mxu0 0.0
    %241 = vmatpush1.xpose.msra.mxu0 0.0
    %242 = vmatprep.subr.mxu0 0.0
    %243 = vmatpush1.xpose.msra.mxu0 0.0
    %244 = vmatprep.subr.mxu0 0.0
    %245 = vmatpush1.xpose.msra.mxu0 0.0
    %246 = vmatprep.subr.mxu0 0.0
    %247 = vmatpush1.xpose.msra.mxu0 0.0
    %248 = vmatprep.subr.mxu0 0.0
    %249 = vmatpush1.xpose.msra.mxu0 0.0
    %250 = vmatprep.subr.mxu0 0.0
    %251 = vmatpush1.xpose.msra.mxu0 0.0
    %252 = vmatprep.subr.mxu0 0.0
    %253 = vmatpush1.xpose.msra.mxu0 %v220
    %254 = vmatprep.subr.mxu0 0.0
    %255 = vmatpush2.xpose.msra.mxu0 0.0
    %256 = vmatprep.subr.mxu0 0.0
    %257 = vmatpush2.xpose.msra.mxu0 0.0
    %258 = vmatprep.subr.mxu0 0.0
    %259 = vmatpush2.xpose.msra.mxu0 0.0
    %260 = vmatprep.subr.mxu0 0.0
    %261 = vmatpush2.xpose.msra.mxu0 0.0
    %262 = vmatprep.subr.mxu0 0.0
    %263 = vmatpush2.xpose.msra.mxu0 0.0
    %264 = vmatprep.subr.mxu0 0.0
    %265 = vmatpush2.xpose.msra.mxu0 0.0
    %266 = vmatprep.subr.mxu0 0.0
    %267 = vmatpush2.xpose.msra.mxu0 0.0
    %268 = vmatprep.subr.mxu0 0.0
    %269 = vmatpush2.xpose.msra.mxu0 0.0
    %270 = vmatprep.subr.mxu0 0.0
    %271 = vmatpush2.xpose.msra.mxu0 0.0
    %272 = vmatprep.subr.mxu0 0.0
    %273 = vmatpush2.xpose.msra.mxu0 0.0
    %274 = vmatprep.subr.mxu0 0.0
    %275 = vmatpush2.xpose.msra.mxu0 0.0
    %276 = vmatprep.subr.mxu0 0.0
    %277 = vmatpush2.xpose.msra.mxu0 0.0
    %278 = vmatprep.subr.mxu0 0.0
    %279 = vmatpush2.xpose.msra.mxu0 0.0
    %280 = vmatprep.subr.mxu0 0.0
    %281 = vmatpush2.xpose.msra.mxu0 0.0
    %282 = vmatprep.subr.mxu0 0.0
    %283 = vmatpush2.xpose.msra.mxu0 0.0
    %284 = vmatprep.subr.mxu0 0.0
    %285 = vmatpush2.xpose.msra.mxu0 0.0
    %286 = vmatprep.mubr.f32.mxu0 0.0
    %287 = vmatmul.mubr.f32.gmra.mxu0 %v218
    %v288 = vpop.f32.mrf.mxu0
    %v289 = vadd.f32 0.0, %v288
    %v290 = vpop.f32.mrf.mxu0
    %291 = vdwg.mxu0
    %v292 = vmul.f32 %v289, 0.35355338
    %v293 = vadd.f32 %v292, %v37
    %v294 = vsel %vm217, %v293, -inf
    %295 = vmax.xlane.f32.xlu0 %v294
    %v296 = vpop.xlane.xlu0 %295
    %v297 = vsub.f32 %v293, %v296
    %v298 = vmul.f32 %v297, 1.442695
    %v299 = vpow.pop %v298
    %v300 = vsel %vm217, %v299, 0.0
    %301 = vadd.xlane.f32.xlu0 %v300
    %v302 = vpop.xlane.xlu0 %301
    %v303 = vrcp.pop %v302
    %v304 = vmul.f32 %v299, %v303
    %305 = vrot.lane.b32.xlu0 %v211, 64
    %v306 = vpop.permute.xlu0 %305
    %v309 = vsel %vm217, %v304, 0
    %311 = vmatprep.subr.mxu0 0.0
    %312 = vmatpush1.msra.mxu0 0.0
    %313 = vmatprep.subr.mxu0 0.0
    %314 = vmatpush1.msra.mxu0 0.0
    %315 = vmatprep.subr.mxu0 0.0
    %316 = vmatpush1.msra.mxu0 0.0
    %317 = vmatprep.subr.mxu0 0.0
    %318 = vmatpush1.msra.mxu0 0.0
    %319 = vmatprep.subr.mxu0 0.0
    %320 = vmatpush1.msra.mxu0 0.0
    %321 = vmatprep.subr.mxu0 0.0
    %322 = vmatpush1.msra.mxu0 0.0
    %323 = vmatprep.subr.mxu0 0.0
    %324 = vmatpush1.msra.mxu0 0.0
    %325 = vmatprep.subr.mxu0 0.0
    %326 = vmatpush1.msra.mxu0 0.0
    %327 = vmatprep.subr.mxu0 0.0
    %328 = vmatpush1.msra.mxu0 0.0
    %329 = vmatprep.subr.mxu0 0.0
    %330 = vmatpush1.msra.mxu0 0.0
    %331 = vmatprep.subr.mxu0 0.0
    %332 = vmatpush1.msra.mxu0 0.0
    %333 = vmatprep.subr.mxu0 0.0
    %334 = vmatpush1.msra.mxu0 0.0
    %335 = vmatprep.subr.mxu0 0.0
    %336 = vmatpush1.msra.mxu0 0.0
    %337 = vmatprep.subr.mxu0 0.0
    %338 = vmatpush1.msra.mxu0 0.0
    %339 = vmatprep.subr.mxu0 0.0
    %340 = vmatpush1.msra.mxu0 0.0
    %341 = vmatprep.subr.mxu0 0.0
    %342 = vmatpush1.msra.mxu0 %v306
    %343 = vmatprep.subr.mxu0 0.0
    %344 = vmatpush2.msra.mxu0 0.0
    %345 = vmatprep.subr.mxu0 0.0
    %346 = vmatpush2.msra.mxu0 0.0
    %347 = vmatprep.subr.mxu0 0.0
    %348 = vmatpush2.msra.mxu0 0.0
    %349 = vmatprep.subr.mxu0 0.0
    %350 = vmatpush2.msra.mxu0 0.0
    %351 = vmatprep.subr.mxu0 0.0
    %352 = vmatpush2.msra.mxu0 0.0
    %353 = vmatprep.subr.mxu0 0.0
    %354 = vmatpush2.msra.mxu0 0.0
    %355 = vmatprep.subr.mxu0 0.0
    %356 = vmatpush2.msra.mxu0 0.0
    %357 = vmatprep.subr.mxu0 0.0
    %358 = vmatpush2.msra.mxu0 0.0
    %359 = vmatprep.subr.mxu0 0.0
    %360 = vmatpush2.msra.mxu0 0.0
    %361 = vmatprep.subr.mxu0 0.0
    %362 = vmatpush2.msra.mxu0 0.0
    %363 = vmatprep.subr.mxu0 0.0
    %364 = vmatpush2.msra.mxu0 0.0
    %365 = vmatprep.subr.mxu0 0.0
    %366 = vmatpush2.msra.mxu0 0.0
    %367 = vmatprep.subr.mxu0 0.0
    %368 = vmatpush2.msra.mxu0 0.0
    %369 = vmatprep.subr.mxu0 0.0
    %370 = vmatpush2.msra.mxu0 0.0
    %371 = vmatprep.subr.mxu0 0.0
    %372 = vmatpush2.msra.mxu0 0.0
    %373 = vmatprep.subr.mxu0 0.0
    %374 = vmatpush2.msra.mxu0 0.0
    %375 = vmatprep.mubr.f32.mxu0 0.0
    %376 = vmatmul.mubr.f32.gmra.mxu0 %v309
    %v377 = vpop.f32.mrf.mxu0
    %v378 = vadd.f32 0.0, %v377
    %v379 = vpop.f32.mrf.mxu0
    %380 = vdwg.mxu0
    %381 = vrot.lane.b32.xlu0 %v211, 120
    %v382 = vpop.permute.xlu0 %381
    %383 = vrot.lane.b32.xlu0 %v211, 88
    %v384 = vpop.permute.xlu0 %383
    %v385 = vsel %vm217, %v382, 0
    %v387 = vsel %vm217, %v384, 0
    %389 = vmatprep.subr.mxu0 0.0
    %390 = vmatpush1.xpose.msra.mxu0 0.0
    %391 = vmatprep.subr.mxu0 0.0
    %392 = vmatpush1.xpose.msra.mxu0 0.0
    %393 = vmatprep.subr.mxu0 0.0
    %394 = vmatpush1.xpose.msra.mxu0 0.0
    %395 = vmatprep.subr.mxu0 0.0
    %396 = vmatpush1.xpose.msra.mxu0 0.0
    %397 = vmatprep.subr.mxu0 0.0
    %398 = vmatpush1.xpose.msra.mxu0 0.0
    %399 = vmatprep.subr.mxu0 0.0
    %400 = vmatpush1.xpose.msra.mxu0 0.0
    %401 = vmatprep.subr.mxu0 0.0
    %402 = vmatpush1.xpose.msra.mxu0 0.0
    %403 = vmatprep.subr.mxu0 0.0
    %404 = vmatpush1.xpose.msra.mxu0 0.0
    %405 = vmatprep.subr.mxu0 0.0
    %406 = vmatpush1.xpose.msra.mxu0 0.0
    %407 = vmatprep.subr.mxu0 0.0
    %408 = vmatpush1.xpose.msra.mxu0 0.0
    %409 = vmatprep.subr.mxu0 0.0
    %410 = vmatpush1.xpose.msra.mxu0 0.0
    %411 = vmatprep.subr.mxu0 0.0
    %412 = vmatpush1.xpose.msra.mxu0 0.0
    %413 = vmatprep.subr.mxu0 0.0
    %414 = vmatpush1.xpose.msra.mxu0 0.0
    %415 = vmatprep.subr.mxu0 0.0
    %416 = vmatpush1.xpose.msra.mxu0 0.0
    %417 = vmatprep.subr.mxu0 0.0
    %418 = vmatpush1.xpose.msra.mxu0 0.0
    %419 = vmatprep.subr.mxu0 0.0
    %420 = vmatpush1.xpose.msra.mxu0 %v387
    %421 = vmatprep.subr.mxu0 0.0
    %422 = vmatpush2.xpose.msra.mxu0 0.0
    %423 = vmatprep.subr.mxu0 0.0
    %424 = vmatpush2.xpose.msra.mxu0 0.0
    %425 = vmatprep.subr.mxu0 0.0
    %426 = vmatpush2.xpose.msra.mxu0 0.0
    %427 = vmatprep.subr.mxu0 0.0
    %428 = vmatpush2.xpose.msra.mxu0 0.0
    %429 = vmatprep.subr.mxu0 0.0
    %430 = vmatpush2.xpose.msra.mxu0 0.0
    %431 = vmatprep.subr.mxu0 0.0
    %432 = vmatpush2.xpose.msra.mxu0 0.0
    %433 = vmatprep.subr.mxu0 0.0
    %434 = vmatpush2.xpose.msra.mxu0 0.0
    %435 = vmatprep.subr.mxu0 0.0
    %436 = vmatpush2.xpose.msra.mxu0 0.0
    %437 = vmatprep.subr.mxu0 0.0
    %438 = vmatpush2.xpose.msra.mxu0 0.0
    %439 = vmatprep.subr.mxu0 0.0
    %440 = vmatpush2.xpose.msra.mxu0 0.0
    %441 = vmatprep.subr.mxu0 0.0
    %442 = vmatpush2.xpose.msra.mxu0 0.0
    %443 = vmatprep.subr.mxu0 0.0
    %444 = vmatpush2.xpose.msra.mxu0 0.0
    %445 = vmatprep.subr.mxu0 0.0
    %446 = vmatpush2.xpose.msra.mxu0 0.0
    %447 = vmatprep.subr.mxu0 0.0
    %448 = vmatpush2.xpose.msra.mxu0 0.0
    %449 = vmatprep.subr.mxu0 0.0
    %450 = vmatpush2.xpose.msra.mxu0 0.0
    %451 = vmatprep.subr.mxu0 0.0
    %452 = vmatpush2.xpose.msra.mxu0 0.0
    %453 = vmatprep.mubr.f32.mxu0 0.0
    %454 = vmatmul.mubr.f32.gmra.mxu0 %v385
    %v455 = vpop.f32.mrf.mxu0
    %v456 = vadd.f32 0.0, %v455
    %v457 = vpop.f32.mrf.mxu0
    %458 = vdwg.mxu0
    %v459 = vmul.f32 %v456, 0.35355338
    %v460 = vadd.f32 %v459, %v37
    %v461 = vsel %vm217, %v460, -inf
    %462 = vmax.xlane.f32.xlu0 %v461
    %v463 = vpop.xlane.xlu0 %462
    %v464 = vsub.f32 %v460, %v463
    %v465 = vmul.f32 %v464, 1.442695
    %v466 = vpow.pop %v465
    %v467 = vsel %vm217, %v466, 0.0
    %468 = vadd.xlane.f32.xlu0 %v467
    %v469 = vpop.xlane.xlu0 %468
    %v470 = vrcp.pop %v469
    %v471 = vmul.f32 %v466, %v470
    %472 = vrot.lane.b32.xlu0 %v211, 56
    %v473 = vpop.permute.xlu0 %472
    %v476 = vsel %vm217, %v471, 0
    %478 = vmatprep.subr.mxu0 0.0
    %479 = vmatpush1.msra.mxu0 0.0
    %480 = vmatprep.subr.mxu0 0.0
    %481 = vmatpush1.msra.mxu0 0.0
    %482 = vmatprep.subr.mxu0 0.0
    %483 = vmatpush1.msra.mxu0 0.0
    %484 = vmatprep.subr.mxu0 0.0
    %485 = vmatpush1.msra.mxu0 0.0
    %486 = vmatprep.subr.mxu0 0.0
    %487 = vmatpush1.msra.mxu0 0.0
    %488 = vmatprep.subr.mxu0 0.0
    %489 = vmatpush1.msra.mxu0 0.0
    %490 = vmatprep.subr.mxu0 0.0
    %491 = vmatpush1.msra.mxu0 0.0
    %492 = vmatprep.subr.mxu0 0.0
    %493 = vmatpush1.msra.mxu0 0.0
    %494 = vmatprep.subr.mxu0 0.0
    %495 = vmatpush1.msra.mxu0 0.0
    %496 = vmatprep.subr.mxu0 0.0
    %497 = vmatpush1.msra.mxu0 0.0
    %498 = vmatprep.subr.mxu0 0.0
    %499 = vmatpush1.msra.mxu0 0.0
    %500 = vmatprep.subr.mxu0 0.0
    %501 = vmatpush1.msra.mxu0 0.0
    %502 = vmatprep.subr.mxu0 0.0
    %503 = vmatpush1.msra.mxu0 0.0
    %504 = vmatprep.subr.mxu0 0.0
    %505 = vmatpush1.msra.mxu0 0.0
    %506 = vmatprep.subr.mxu0 0.0
    %507 = vmatpush1.msra.mxu0 0.0
    %508 = vmatprep.subr.mxu0 0.0
    %509 = vmatpush1.msra.mxu0 %v473
    %510 = vmatprep.subr.mxu0 0.0
    %511 = vmatpush2.msra.mxu0 0.0
    %512 = vmatprep.subr.mxu0 0.0
    %513 = vmatpush2.msra.mxu0 0.0
    %514 = vmatprep.subr.mxu0 0.0
    %515 = vmatpush2.msra.mxu0 0.0
    %516 = vmatprep.subr.mxu0 0.0
    %517 = vmatpush2.msra.mxu0 0.0
    %518 = vmatprep.subr.mxu0 0.0
    %519 = vmatpush2.msra.mxu0 0.0
    %520 = vmatprep.subr.mxu0 0.0
    %521 = vmatpush2.msra.mxu0 0.0
    %522 = vmatprep.subr.mxu0 0.0
    %523 = vmatpush2.msra.mxu0 0.0
    %524 = vmatprep.subr.mxu0 0.0
    %525 = vmatpush2.msra.mxu0 0.0
    %526 = vmatprep.subr.mxu0 0.0
    %527 = vmatpush2.msra.mxu0 0.0
    %528 = vmatprep.subr.mxu0 0.0
    %529 = vmatpush2.msra.mxu0 0.0
    %530 = vmatprep.subr.mxu0 0.0
    %531 = vmatpush2.msra.mxu0 0.0
    %532 = vmatprep.subr.mxu0 0.0
    %533 = vmatpush2.msra.mxu0 0.0
    %534 = vmatprep.subr.mxu0 0.0
    %535 = vmatpush2.msra.mxu0 0.0
    %536 = vmatprep.subr.mxu0 0.0
    %537 = vmatpush2.msra.mxu0 0.0
    %538 = vmatprep.subr.mxu0 0.0
    %539 = vmatpush2.msra.mxu0 0.0
    %540 = vmatprep.subr.mxu0 0.0
    %541 = vmatpush2.msra.mxu0 0.0
    %542 = vmatprep.mubr.f32.mxu0 0.0
    %543 = vmatmul.mubr.f32.gmra.mxu0 %v476
    %v544 = vpop.f32.mrf.mxu0
    %v545 = vadd.f32 0.0, %v544
    %v546 = vpop.f32.mrf.mxu0
    %547 = vdwg.mxu0
    %548 = vrot.lane.b32.xlu0 %v211, 112
    %v549 = vpop.permute.xlu0 %548
    %550 = vrot.lane.b32.xlu0 %v211, 80
    %v551 = vpop.permute.xlu0 %550
    %v552 = vsel %vm217, %v549, 0
    %v554 = vsel %vm217, %v551, 0
    %556 = vmatprep.subr.mxu0 0.0
    %557 = vmatpush1.xpose.msra.mxu0 0.0
    %558 = vmatprep.subr.mxu0 0.0
    %559 = vmatpush1.xpose.msra.mxu0 0.0
    %560 = vmatprep.subr.mxu0 0.0
    %561 = vmatpush1.xpose.msra.mxu0 0.0
    %562 = vmatprep.subr.mxu0 0.0
    %563 = vmatpush1.xpose.msra.mxu0 0.0
    %564 = vmatprep.subr.mxu0 0.0
    %565 = vmatpush1.xpose.msra.mxu0 0.0
    %566 = vmatprep.subr.mxu0 0.0
    %567 = vmatpush1.xpose.msra.mxu0 0.0
    %568 = vmatprep.subr.mxu0 0.0
    %569 = vmatpush1.xpose.msra.mxu0 0.0
    %570 = vmatprep.subr.mxu0 0.0
    %571 = vmatpush1.xpose.msra.mxu0 0.0
    %572 = vmatprep.subr.mxu0 0.0
    %573 = vmatpush1.xpose.msra.mxu0 0.0
    %574 = vmatprep.subr.mxu0 0.0
    %575 = vmatpush1.xpose.msra.mxu0 0.0
    %576 = vmatprep.subr.mxu0 0.0
    %577 = vmatpush1.xpose.msra.mxu0 0.0
    %578 = vmatprep.subr.mxu0 0.0
    %579 = vmatpush1.xpose.msra.mxu0 0.0
    %580 = vmatprep.subr.mxu0 0.0
    %581 = vmatpush1.xpose.msra.mxu0 0.0
    %582 = vmatprep.subr.mxu0 0.0
    %583 = vmatpush1.xpose.msra.mxu0 0.0
    %584 = vmatprep.subr.mxu0 0.0
    %585 = vmatpush1.xpose.msra.mxu0 0.0
    %586 = vmatprep.subr.mxu0 0.0
    %587 = vmatpush1.xpose.msra.mxu0 %v554
    %588 = vmatprep.subr.mxu0 0.0
    %589 = vmatpush2.xpose.msra.mxu0 0.0
    %590 = vmatprep.subr.mxu0 0.0
    %591 = vmatpush2.xpose.msra.mxu0 0.0
    %592 = vmatprep.subr.mxu0 0.0
    %593 = vmatpush2.xpose.msra.mxu0 0.0
    %594 = vmatprep.subr.mxu0 0.0
    %595 = vmatpush2.xpose.msra.mxu0 0.0
    %596 = vmatprep.subr.mxu0 0.0
    %597 = vmatpush2.xpose.msra.mxu0 0.0
    %598 = vmatprep.subr.mxu0 0.0
    %599 = vmatpush2.xpose.msra.mxu0 0.0
    %600 = vmatprep.subr.mxu0 0.0
    %601 = vmatpush2.xpose.msra.mxu0 0.0
    %602 = vmatprep.subr.mxu0 0.0
    %603 = vmatpush2.xpose.msra.mxu0 0.0
    %604 = vmatprep.subr.mxu0 0.0
    %605 = vmatpush2.xpose.msra.mxu0 0.0
    %606 = vmatprep.subr.mxu0 0.0
    %607 = vmatpush2.xpose.msra.mxu0 0.0
    %608 = vmatprep.subr.mxu0 0.0
    %609 = vmatpush2.xpose.msra.mxu0 0.0
    %610 = vmatprep.subr.mxu0 0.0
    %611 = vmatpush2.xpose.msra.mxu0 0.0
    %612 = vmatprep.subr.mxu0 0.0
    %613 = vmatpush2.xpose.msra.mxu0 0.0
    %614 = vmatprep.subr.mxu0 0.0
    %615 = vmatpush2.xpose.msra.mxu0 0.0
    %616 = vmatprep.subr.mxu0 0.0
    %617 = vmatpush2.xpose.msra.mxu0 0.0
    %618 = vmatprep.subr.mxu0 0.0
    %619 = vmatpush2.xpose.msra.mxu0 0.0
    %620 = vmatprep.mubr.f32.mxu0 0.0
    %621 = vmatmul.mubr.f32.gmra.mxu0 %v552
    %v622 = vpop.f32.mrf.mxu0
    %v623 = vadd.f32 0.0, %v622
    %v624 = vpop.f32.mrf.mxu0
    %625 = vdwg.mxu0
    %v626 = vmul.f32 %v623, 0.35355338
    %v627 = vadd.f32 %v626, %v37
    %v628 = vsel %vm217, %v627, -inf
    %629 = vmax.xlane.f32.xlu0 %v628
    %v630 = vpop.xlane.xlu0 %629
    %v631 = vsub.f32 %v627, %v630
    %v632 = vmul.f32 %v631, 1.442695
    %v633 = vpow.pop %v632
    %v634 = vsel %vm217, %v633, 0.0
    %635 = vadd.xlane.f32.xlu0 %v634
    %v636 = vpop.xlane.xlu0 %635
    %v637 = vrcp.pop %v636
    %v638 = vmul.f32 %v633, %v637
    %639 = vrot.lane.b32.xlu0 %v211, 48
    %v640 = vpop.permute.xlu0 %639
    %v643 = vsel %vm217, %v638, 0
    %645 = vmatprep.subr.mxu0 0.0
    %646 = vmatpush1.msra.mxu0 0.0
    %647 = vmatprep.subr.mxu0 0.0
    %648 = vmatpush1.msra.mxu0 0.0
    %649 = vmatprep.subr.mxu0 0.0
    %650 = vmatpush1.msra.mxu0 0.0
    %651 = vmatprep.subr.mxu0 0.0
    %652 = vmatpush1.msra.mxu0 0.0
    %653 = vmatprep.subr.mxu0 0.0
    %654 = vmatpush1.msra.mxu0 0.0
    %655 = vmatprep.subr.mxu0 0.0
    %656 = vmatpush1.msra.mxu0 0.0
    %657 = vmatprep.subr.mxu0 0.0
    %658 = vmatpush1.msra.mxu0 0.0
    %659 = vmatprep.subr.mxu0 0.0
    %660 = vmatpush1.msra.mxu0 0.0
    %661 = vmatprep.subr.mxu0 0.0
    %662 = vmatpush1.msra.mxu0 0.0
    %663 = vmatprep.subr.mxu0 0.0
    %664 = vmatpush1.msra.mxu0 0.0
    %665 = vmatprep.subr.mxu0 0.0
    %666 = vmatpush1.msra.mxu0 0.0
    %667 = vmatprep.subr.mxu0 0.0
    %668 = vmatpush1.msra.mxu0 0.0
    %669 = vmatprep.subr.mxu0 0.0
    %670 = vmatpush1.msra.mxu0 0.0
    %671 = vmatprep.subr.mxu0 0.0
    %672 = vmatpush1.msra.mxu0 0.0
    %673 = vmatprep.subr.mxu0 0.0
    %674 = vmatpush1.msra.mxu0 0.0
    %675 = vmatprep.subr.mxu0 0.0
    %676 = vmatpush1.msra.mxu0 %v640
    %677 = vmatprep.subr.mxu0 0.0
    %678 = vmatpush2.msra.mxu0 0.0
    %679 = vmatprep.subr.mxu0 0.0
    %680 = vmatpush2.msra.mxu0 0.0
    %681 = vmatprep.subr.mxu0 0.0
    %682 = vmatpush2.msra.mxu0 0.0
    %683 = vmatprep.subr.mxu0 0.0
    %684 = vmatpush2.msra.mxu0 0.0
    %685 = vmatprep.subr.mxu0 0.0
    %686 = vmatpush2.msra.mxu0 0.0
    %687 = vmatprep.subr.mxu0 0.0
    %688 = vmatpush2.msra.mxu0 0.0
    %689 = vmatprep.subr.mxu0 0.0
    %690 = vmatpush2.msra.mxu0 0.0
    %691 = vmatprep.subr.mxu0 0.0
    %692 = vmatpush2.msra.mxu0 0.0
    %693 = vmatprep.subr.mxu0 0.0
    %694 = vmatpush2.msra.mxu0 0.0
    %695 = vmatprep.subr.mxu0 0.0
    %696 = vmatpush2.msra.mxu0 0.0
    %697 = vmatprep.subr.mxu0 0.0
    %698 = vmatpush2.msra.mxu0 0.0
    %699 = vmatprep.subr.mxu0 0.0
    %700 = vmatpush2.msra.mxu0 0.0
    %701 = vmatprep.subr.mxu0 0.0
    %702 = vmatpush2.msra.mxu0 0.0
    %703 = vmatprep.subr.mxu0 0.0
    %704 = vmatpush2.msra.mxu0 0.0
    %705 = vmatprep.subr.mxu0 0.0
    %706 = vmatpush2.msra.mxu0 0.0
    %707 = vmatprep.subr.mxu0 0.0
    %708 = vmatpush2.msra.mxu0 0.0
    %709 = vmatprep.mubr.f32.mxu0 0.0
    %710 = vmatmul.mubr.f32.gmra.mxu0 %v643
    %v711 = vpop.f32.mrf.mxu0
    %v712 = vadd.f32 0.0, %v711
    %v713 = vpop.f32.mrf.mxu0
    %714 = vdwg.mxu0
    %715 = vrot.lane.b32.xlu0 %v211, 104
    %v716 = vpop.permute.xlu0 %715
    %717 = vrot.lane.b32.xlu0 %v211, 72
    %v718 = vpop.permute.xlu0 %717
    %v719 = vsel %vm217, %v716, 0
    %v721 = vsel %vm217, %v718, 0
    %723 = vmatprep.subr.mxu0 0.0
    %724 = vmatpush1.xpose.msra.mxu0 0.0
    %725 = vmatprep.subr.mxu0 0.0
    %726 = vmatpush1.xpose.msra.mxu0 0.0
    %727 = vmatprep.subr.mxu0 0.0
    %728 = vmatpush1.xpose.msra.mxu0 0.0
    %729 = vmatprep.subr.mxu0 0.0
    %730 = vmatpush1.xpose.msra.mxu0 0.0
    %731 = vmatprep.subr.mxu0 0.0
    %732 = vmatpush1.xpose.msra.mxu0 0.0
    %733 = vmatprep.subr.mxu0 0.0
    %734 = vmatpush1.xpose.msra.mxu0 0.0
    %735 = vmatprep.subr.mxu0 0.0
    %736 = vmatpush1.xpose.msra.mxu0 0.0
    %737 = vmatprep.subr.mxu0 0.0
    %738 = vmatpush1.xpose.msra.mxu0 0.0
    %739 = vmatprep.subr.mxu0 0.0
    %740 = vmatpush1.xpose.msra.mxu0 0.0
    %741 = vmatprep.subr.mxu0 0.0
    %742 = vmatpush1.xpose.msra.mxu0 0.0
    %743 = vmatprep.subr.mxu0 0.0
    %744 = vmatpush1.xpose.msra.mxu0 0.0
    %745 = vmatprep.subr.mxu0 0.0
    %746 = vmatpush1.xpose.msra.mxu0 0.0
    %747 = vmatprep.subr.mxu0 0.0
    %748 = vmatpush1.xpose.msra.mxu0 0.0
    %749 = vmatprep.subr.mxu0 0.0
    %750 = vmatpush1.xpose.msra.mxu0 0.0
    %751 = vmatprep.subr.mxu0 0.0
    %752 = vmatpush1.xpose.msra.mxu0 0.0
    %753 = vmatprep.subr.mxu0 0.0
    %754 = vmatpush1.xpose.msra.mxu0 %v721
    %755 = vmatprep.subr.mxu0 0.0
    %756 = vmatpush2.xpose.msra.mxu0 0.0
    %757 = vmatprep.subr.mxu0 0.0
    %758 = vmatpush2.xpose.msra.mxu0 0.0
    %759 = vmatprep.subr.mxu0 0.0
    %760 = vmatpush2.xpose.msra.mxu0 0.0
    %761 = vmatprep.subr.mxu0 0.0
    %762 = vmatpush2.xpose.msra.mxu0 0.0
    %763 = vmatprep.subr.mxu0 0.0
    %764 = vmatpush2.xpose.msra.mxu0 0.0
    %765 = vmatprep.subr.mxu0 0.0
    %766 = vmatpush2.xpose.msra.mxu0 0.0
    %767 = vmatprep.subr.mxu0 0.0
    %768 = vmatpush2.xpose.msra.mxu0 0.0
    %769 = vmatprep.subr.mxu0 0.0
    %770 = vmatpush2.xpose.msra.mxu0 0.0
    %771 = vmatprep.subr.mxu0 0.0
    %772 = vmatpush2.xpose.msra.mxu0 0.0
    %773 = vmatprep.subr.mxu0 0.0
    %774 = vmatpush2.xpose.msra.mxu0 0.0
    %775 = vmatprep.subr.mxu0 0.0
    %776 = vmatpush2.xpose.msra.mxu0 0.0
    %777 = vmatprep.subr.mxu0 0.0
    %778 = vmatpush2.xpose.msra.mxu0 0.0
    %779 = vmatprep.subr.mxu0 0.0
    %780 = vmatpush2.xpose.msra.mxu0 0.0
    %781 = vmatprep.subr.mxu0 0.0
    %782 = vmatpush2.xpose.msra.mxu0 0.0
    %783 = vmatprep.subr.mxu0 0.0
    %784 = vmatpush2.xpose.msra.mxu0 0.0
    %785 = vmatprep.subr.mxu0 0.0
    %786 = vmatpush2.xpose.msra.mxu0 0.0
    %787 = vmatprep.mubr.f32.mxu0 0.0
    %788 = vmatmul.mubr.f32.gmra.mxu0 %v719
    %v789 = vpop.f32.mrf.mxu0
    %v790 = vadd.f32 0.0, %v789
    %v791 = vpop.f32.mrf.mxu0
    %792 = vdwg.mxu0
    %v793 = vmul.f32 %v790, 0.35355338
    %v794 = vadd.f32 %v793, %v37
    %v795 = vsel %vm217, %v794, -inf
    %796 = vmax.xlane.f32.xlu0 %v795
    %v797 = vpop.xlane.xlu0 %796
    %v798 = vsub.f32 %v794, %v797
    %v799 = vmul.f32 %v798, 1.442695
    %v800 = vpow.pop %v799
    %v801 = vsel %vm217, %v800, 0.0
    %802 = vadd.xlane.f32.xlu0 %v801
    %v803 = vpop.xlane.xlu0 %802
    %v804 = vrcp.pop %v803
    %v805 = vmul.f32 %v800, %v804
    %806 = vrot.lane.b32.xlu0 %v211, 40
    %v807 = vpop.permute.xlu0 %806
    %v810 = vsel %vm217, %v805, 0
    %812 = vmatprep.subr.mxu0 0.0
    %813 = vmatpush1.msra.mxu0 0.0
    %814 = vmatprep.subr.mxu0 0.0
    %815 = vmatpush1.msra.mxu0 0.0
    %816 = vmatprep.subr.mxu0 0.0
    %817 = vmatpush1.msra.mxu0 0.0
    %818 = vmatprep.subr.mxu0 0.0
    %819 = vmatpush1.msra.mxu0 0.0
    %820 = vmatprep.subr.mxu0 0.0
    %821 = vmatpush1.msra.mxu0 0.0
    %822 = vmatprep.subr.mxu0 0.0
    %823 = vmatpush1.msra.mxu0 0.0
    %824 = vmatprep.subr.mxu0 0.0
    %825 = vmatpush1.msra.mxu0 0.0
    %826 = vmatprep.subr.mxu0 0.0
    %827 = vmatpush1.msra.mxu0 0.0
    %828 = vmatprep.subr.mxu0 0.0
    %829 = vmatpush1.msra.mxu0 0.0
    %830 = vmatprep.subr.mxu0 0.0
    %831 = vmatpush1.msra.mxu0 0.0
    %832 = vmatprep.subr.mxu0 0.0
    %833 = vmatpush1.msra.mxu0 0.0
    %834 = vmatprep.subr.mxu0 0.0
    %835 = vmatpush1.msra.mxu0 0.0
    %836 = vmatprep.subr.mxu0 0.0
    %837 = vmatpush1.msra.mxu0 0.0
    %838 = vmatprep.subr.mxu0 0.0
    %839 = vmatpush1.msra.mxu0 0.0
    %840 = vmatprep.subr.mxu0 0.0
    %841 = vmatpush1.msra.mxu0 0.0
    %842 = vmatprep.subr.mxu0 0.0
    %843 = vmatpush1.msra.mxu0 %v807
    %844 = vmatprep.subr.mxu0 0.0
    %845 = vmatpush2.msra.mxu0 0.0
    %846 = vmatprep.subr.mxu0 0.0
    %847 = vmatpush2.msra.mxu0 0.0
    %848 = vmatprep.subr.mxu0 0.0
    %849 = vmatpush2.msra.mxu0 0.0
    %850 = vmatprep.subr.mxu0 0.0
    %851 = vmatpush2.msra.mxu0 0.0
    %852 = vmatprep.subr.mxu0 0.0
    %853 = vmatpush2.msra.mxu0 0.0
    %854 = vmatprep.subr.mxu0 0.0
    %855 = vmatpush2.msra.mxu0 0.0
    %856 = vmatprep.subr.mxu0 0.0
    %857 = vmatpush2.msra.mxu0 0.0
    %858 = vmatprep.subr.mxu0 0.0
    %859 = vmatpush2.msra.mxu0 0.0
    %860 = vmatprep.subr.mxu0 0.0
    %861 = vmatpush2.msra.mxu0 0.0
    %862 = vmatprep.subr.mxu0 0.0
    %863 = vmatpush2.msra.mxu0 0.0
    %864 = vmatprep.subr.mxu0 0.0
    %865 = vmatpush2.msra.mxu0 0.0
    %866 = vmatprep.subr.mxu0 0.0
    %867 = vmatpush2.msra.mxu0 0.0
    %868 = vmatprep.subr.mxu0 0.0
    %869 = vmatpush2.msra.mxu0 0.0
    %870 = vmatprep.subr.mxu0 0.0
    %871 = vmatpush2.msra.mxu0 0.0
    %872 = vmatprep.subr.mxu0 0.0
    %873 = vmatpush2.msra.mxu0 0.0
    %874 = vmatprep.subr.mxu0 0.0
    %875 = vmatpush2.msra.mxu0 0.0
    %876 = vmatprep.mubr.f32.mxu0 0.0
    %877 = vmatmul.mubr.f32.gmra.mxu0 %v810
    %v878 = vpop.f32.mrf.mxu0
    %v879 = vadd.f32 0.0, %v878
    %v880 = vpop.f32.mrf.mxu0
    %881 = vdwg.mxu0
    %883 = vrot.lane.b32.xlu0 %v545, 8
    %v884 = vpop.permute.xlu0 %883
    %887 = vrot.lane.b32.xlu0 %v712, 16
    %v888 = vpop.permute.xlu0 %887
    %891 = vrot.lane.b32.xlu0 %v879, 24
    %v892 = vpop.permute.xlu0 %891
    %v894 = vsel %vm217, %v378, %v884
    %v895 = vsel %vm50, %v894, %v888
    %vm896 = vcmask 195584
    %v897 = vsel %vm896, %v895, %v892
    %v898 = vlaneseq
    %v899 = vshrl.u32 %v898, 7
    %v900 = vsub.s32 0, %v899
    %v901 = vrot.slane %v135, %v900
    %v903 = vsel %vm140, %v897, 0
    %905 = vmatprep.subr.mxu0 0.0
    %906 = vmatpush1.msra.mxu0 0.0
    %907 = vmatprep.subr.mxu0 0.0
    %908 = vmatpush1.msra.mxu0 0.0
    %909 = vmatprep.subr.mxu0 0.0
    %910 = vmatpush1.msra.mxu0 0.0
    %911 = vmatprep.subr.mxu0 0.0
    %912 = vmatpush1.msra.mxu0 0.0
    %913 = vmatprep.subr.mxu0 0.0
    %914 = vmatpush1.msra.mxu0 0.0
    %915 = vmatprep.subr.mxu0 0.0
    %916 = vmatpush1.msra.mxu0 0.0
    %917 = vmatprep.subr.mxu0 0.0
    %918 = vmatpush1.msra.mxu0 0.0
    %919 = vmatprep.subr.mxu0 0.0
    %920 = vmatpush1.msra.mxu0 0.0
    %921 = vmatprep.subr.mxu0 0.0
    %922 = vmatpush1.msra.mxu0 0.0
    %923 = vmatprep.subr.mxu0 0.0
    %924 = vmatpush1.msra.mxu0 0.0
    %925 = vmatprep.subr.mxu0 0.0
    %926 = vmatpush1.msra.mxu0 0.0
    %927 = vmatprep.subr.mxu0 0.0
    %928 = vmatpush1.msra.mxu0 0.0
    %929 = vmatprep.subr.mxu0 0.0
    %930 = vmatpush1.msra.mxu0 %v134
    %931 = vmatprep.subr.mxu0 0.0
    %932 = vmatpush1.msra.mxu0 %v133
    %933 = vmatprep.subr.mxu0 0.0
    %934 = vmatpush1.msra.mxu0 %v132
    %935 = vmatprep.subr.mxu0 0.0
    %936 = vmatpush1.msra.mxu0 %v131
    %937 = vmatprep.subr.mxu0 0.0
    %938 = vmatpush2.msra.mxu0 0.0
    %939 = vmatprep.subr.mxu0 0.0
    %940 = vmatpush2.msra.mxu0 0.0
    %941 = vmatprep.subr.mxu0 0.0
    %942 = vmatpush2.msra.mxu0 0.0
    %943 = vmatprep.subr.mxu0 0.0
    %944 = vmatpush2.msra.mxu0 0.0
    %945 = vmatprep.subr.mxu0 0.0
    %946 = vmatpush2.msra.mxu0 0.0
    %947 = vmatprep.subr.mxu0 0.0
    %948 = vmatpush2.msra.mxu0 0.0
    %949 = vmatprep.subr.mxu0 0.0
    %950 = vmatpush2.msra.mxu0 0.0
    %951 = vmatprep.subr.mxu0 0.0
    %952 = vmatpush2.msra.mxu0 0.0
    %953 = vmatprep.subr.mxu0 0.0
    %954 = vmatpush2.msra.mxu0 0.0
    %955 = vmatprep.subr.mxu0 0.0
    %956 = vmatpush2.msra.mxu0 0.0
    %957 = vmatprep.subr.mxu0 0.0
    %958 = vmatpush2.msra.mxu0 0.0
    %959 = vmatprep.subr.mxu0 0.0
    %960 = vmatpush2.msra.mxu0 0.0
    %961 = vmatprep.subr.mxu0 0.0
    %962 = vmatpush2.msra.mxu0 0.0
    %963 = vmatprep.subr.mxu0 0.0
    %964 = vmatpush2.msra.mxu0 0.0
    %965 = vmatprep.subr.mxu0 0.0
    %966 = vmatpush2.msra.mxu0 0.0
    %967 = vmatprep.subr.mxu0 0.0
    %968 = vmatpush2.msra.mxu0 0.0
    %969 = vmatprep.mubr.f32.mxu0 0.0
    %970 = vmatmul.mubr.f32.gmra.mxu0 %v903
    %v971 = vpop.f32.mrf.mxu0
    %v972 = vadd.f32 %v901, %v971
    %v973 = vpop.f32.mrf.mxu0
    %974 = vdwg.mxu0
    %v975 = vadd.f32 %v125, %v972
    %v976 = vld [vmem:[#allocation2 + $0x120] sm:$0x1]
    %v977 = vld [vmem:[#allocation2 + $0x128] sm:$0x1]
    %v978 = vsel %vm140, %v975, 0.0
    %979 = vadd.xlane.f32.xlu0 %v978
    %v980 = vpop.xlane.xlu0 %979
    %v981 = vrcp.pop 32.0
    %v982 = vmul.f32 %v980, %v981
    %v983 = vsub.f32 %v975, %v982
    %v984 = vmul.f32 %v983, %v983
    %v985 = vsel %vm140, %v984, 0.0
    %986 = vadd.xlane.f32.xlu0 %v985
    %v987 = vpop.xlane.xlu0 %986
    %v988 = vmul.f32 %v987, %v981
    %v989 = vadd.f32 %v988, 1e-05
    %v990 = vrsqrt.pop %v989
    %v991 = vmul.f32 %v983, %v990
    %v992 = vlaneseq
    %v993 = vshrl.u32 %v992, 7
    %v994 = vsub.s32 0, %v993
    %v995 = vrot.slane %v976, %v994
    %v996 = vmul.f32 %v991, %v995
    %v997 = vlaneseq
    %v998 = vshrl.u32 %v997, 7
    %v999 = vsub.s32 0, %v998
    %v1000 = vrot.slane %v977, %v999
    %v1001 = vadd.f32 %v996, %v1000
    %v1002 = vld [vmem:[#allocation2 + $0x70] sm:$0xff]
    %v1003 = vld [vmem:[#allocation2 + $0x78] sm:$0xff]
    %v1004 = vld [vmem:[#allocation2 + $0x80] sm:$0xff]
    %v1005 = vld [vmem:[#allocation2 + $0x88] sm:$0xff]
    %v1006 = vld [vmem:[#allocation2 + $0x90] sm:$0x1]
    %v1007 = vlaneseq
    %v1008 = vshrl.u32 %v1007, 7
    %v1009 = vsub.s32 0, %v1008
    %v1010 = vrot.slane %v1006, %v1009
    %v1012 = vsel %vm140, %v1001, 0
    %1014 = vmatprep.subr.mxu0 0.0
    %1015 = vmatpush1.msra.mxu0 0.0
    %1016 = vmatprep.subr.mxu0 0.0
    %1017 = vmatpush1.msra.mxu0 0.0
    %1018 = vmatprep.subr.mxu0 0.0
    %1019 = vmatpush1.msra.mxu0 0.0
    %1020 = vmatprep.subr.mxu0 0.0
    %1021 = vmatpush1.msra.mxu0 0.0
    %1022 = vmatprep.subr.mxu0 0.0
    %1023 = vmatpush1.msra.mxu0 0.0
    %1024 = vmatprep.subr.mxu0 0.0
    %1025 = vmatpush1.msra.mxu0 0.0
    %1026 = vmatprep.subr.mxu0 0.0
    %1027 = vmatpush1.msra.mxu0 0.0
    %1028 = vmatprep.subr.mxu0 0.0
    %1029 = vmatpush1.msra.mxu0 0.0
    %1030 = vmatprep.subr.mxu0 0.0
    %1031 = vmatpush1.msra.mxu0 0.0
    %1032 = vmatprep.subr.mxu0 0.0
    %1033 = vmatpush1.msra.mxu0 0.0
    %1034 = vmatprep.subr.mxu0 0.0
    %1035 = vmatpush1.msra.mxu0 0.0
    %1036 = vmatprep.subr.mxu0 0.0
    %1037 = vmatpush1.msra.mxu0 0.0
    %1038 = vmatprep.subr.mxu0 0.0
    %1039 = vmatpush1.msra.mxu0 %v1005
    %1040 = vmatprep.subr.mxu0 0.0
    %1041 = vmatpush1.msra.mxu0 %v1004
    %1042 = vmatprep.subr.mxu0 0.0
    %1043 = vmatpush1.msra.mxu0 %v1003
    %1044 = vmatprep.subr.mxu0 0.0
    %1045 = vmatpush1.msra.mxu0 %v1002
    %1046 = vmatprep.subr.mxu0 0.0
    %1047 = vmatpush2.msra.mxu0 0.0
    %1048 = vmatprep.subr.mxu0 0.0
    %1049 = vmatpush2.msra.mxu0 0.0
    %1050 = vmatprep.subr.mxu0 0.0
    %1051 = vmatpush2.msra.mxu0 0.0
    %1052 = vmatprep.subr.mxu0 0.0
    %1053 = vmatpush2.msra.mxu0 0.0
    %1054 = vmatprep.subr.mxu0 0.0
    %1055 = vmatpush2.msra.mxu0 0.0
    %1056 = vmatprep.subr.mxu0 0.0
    %1057 = vmatpush2.msra.mxu0 0.0
    %1058 = vmatprep.subr.mxu0 0.0
    %1059 = vmatpush2.msra.mxu0 0.0
    %1060 = vmatprep.subr.mxu0 0.0
    %1061 = vmatpush2.msra.mxu0 0.0
    %1062 = vmatprep.subr.mxu0 0.0
    %1063 = vmatpush2.msra.mxu0 0.0
    %1064 = vmatprep.subr.mxu0 0.0
    %1065 = vmatpush2.msra.mxu0 0.0
    %1066 = vmatprep.subr.mxu0 0.0
    %1067 = vmatpush2.msra.mxu0 0.0
    %1068 = vmatprep.subr.mxu0 0.0
    %1069 = vmatpush2.msra.mxu0 0.0
    %1070 = vmatprep.subr.mxu0 0.0
    %1071 = vmatpush2.msra.mxu0 0.0
    %1072 = vmatprep.subr.mxu0 0.0
    %1073 = vmatpush2.msra.mxu0 0.0
    %1074 = vmatprep.subr.mxu0 0.0
    %1075 = vmatpush2.msra.mxu0 0.0
    %1076 = vmatprep.subr.mxu0 0.0
    %1077 = vmatpush2.msra.mxu0 0.0
    %1078 = vmatprep.mubr.f32.mxu0 0.0
    %1079 = vmatmul.mubr.f32.gmra.mxu0 %v1012
    %v1080 = vpop.f32.mrf.mxu0
    %v1081 = vadd.f32 %v1010, %v1080
    %v1082 = vpop.f32.mrf.mxu0
    %1083 = vdwg.mxu0
    %v1084 = vmax.f32 %v1081, 0.0
    %v1085 = vld [vmem:[#allocation2 + $0x98] sm:$0xff]
    %v1086 = vld [vmem:[#allocation2 + $0xa0] sm:$0xff]
    %v1087 = vld [vmem:[#allocation2 + $0xa8] sm:$0xff]
    %v1088 = vld [vmem:[#allocation2 + $0xb0] sm:$0xff]
    %v1089 = vld [vmem:[#allocation2 + $0xb8] sm:$0xff]
    %v1090 = vld [vmem:[#allocation2 + $0xc0] sm:$0xff]
    %v1091 = vld [vmem:[#allocation2 + $0xc8] sm:$0xff]
    %v1092 = vld [vmem:[#allocation2 + $0xd0] sm:$0xff]
    %v1093 = vld [vmem:[#allocation2 + $0xd8] sm:$0xff]
    %v1094 = vld [vmem:[#allocation2 + $0xe0] sm:$0xff]
    %v1095 = vld [vmem:[#allocation2 + $0xe8] sm:$0xff]
    %v1096 = vld [vmem:[#allocation2 + $0xf0] sm:$0xff]
    %v1097 = vld [vmem:[#allocation2 + $0xf8] sm:$0xff]
    %v1098 = vld [vmem:[#allocation2 + $0x100] sm:$0xff]
    %v1099 = vld [vmem:[#allocation2 + $0x108] sm:$0xff]
    %v1100 = vld [vmem:[#allocation2 + $0x110] sm:$0xff]
    %v1101 = vld [vmem:[#allocation2 + $0x118] sm:$0x1]
    %v1102 = vlaneseq
    %v1103 = vshrl.u32 %v1102, 7
    %v1104 = vsub.s32 0, %v1103
    %v1105 = vrot.slane %v1101, %v1104
    %1106 = vmatprep.subr.mxu0 0.0
    %1107 = vmatpush1.msra.mxu0 %v1100
    %1108 = vmatprep.subr.mxu0 0.0
    %1109 = vmatpush1.msra.mxu0 %v1099
    %1110 = vmatprep.subr.mxu0 0.0
    %1111 = vmatpush1.msra.mxu0 %v1098
    %1112 = vmatprep.subr.mxu0 0.0
    %1113 = vmatpush1.msra.mxu0 %v1097
    %1114 = vmatprep.subr.mxu0 0.0
    %1115 = vmatpush1.msra.mxu0 %v1096
    %1116 = vmatprep.subr.mxu0 0.0
    %1117 = vmatpush1.msra.mxu0 %v1095
    %1118 = vmatprep.subr.mxu0 0.0
    %1119 = vmatpush1.msra.mxu0 %v1094
    %1120 = vmatprep.subr.mxu0 0.0
    %1121 = vmatpush1.msra.mxu0 %v1093
    %1122 = vmatprep.subr.mxu0 0.0
    %1123 = vmatpush1.msra.mxu0 %v1092
    %1124 = vmatprep.subr.mxu0 0.0
    %1125 = vmatpush1.msra.mxu0 %v1091
    %1126 = vmatprep.subr.mxu0 0.0
    %1127 = vmatpush1.msra.mxu0 %v1090
    %1128 = vmatprep.subr.mxu0 0.0
    %1129 = vmatpush1.msra.mxu0 %v1089
    %1130 = vmatprep.subr.mxu0 0.0
    %1131 = vmatpush1.msra.mxu0 %v1088
    %1132 = vmatprep.subr.mxu0 0.0
    %1133 = vmatpush1.msra.mxu0 %v1087
    %1134 = vmatprep.subr.mxu0 0.0
    %1135 = vmatpush1.msra.mxu0 %v1086
    %1136 = vmatprep.subr.mxu0 0.0
    %1137 = vmatpush1.msra.mxu0 %v1085
    %1138 = vmatprep.subr.mxu0 0.0
    %1139 = vmatpush2.msra.mxu0 0.0
    %1140 = vmatprep.subr.mxu0 0.0
    %1141 = vmatpush2.msra.mxu0 0.0
    %1142 = vmatprep.subr.mxu0 0.0
    %1143 = vmatpush2.msra.mxu0 0.0
    %1144 = vmatprep.subr.mxu0 0.0
    %1145 = vmatpush2.msra.mxu0 0.0
    %1146 = vmatprep.subr.mxu0 0.0
    %1147 = vmatpush2.msra.mxu0 0.0
    %1148 = vmatprep.subr.mxu0 0.0
    %1149 = vmatpush2.msra.mxu0 0.0
    %1150 = vmatprep.subr.mxu0 0.0
    %1151 = vmatpush2.msra.mxu0 0.0
    %1152 = vmatprep.subr.mxu0 0.0
    %1153 = vmatpush2.msra.mxu0 0.0
    %1154 = vmatprep.subr.mxu0 0.0
    %1155 = vmatpush2.msra.mxu0 0.0
    %1156 = vmatprep.subr.mxu0 0.0
    %1157 = vmatpush2.msra.mxu0 0.0
    %1158 = vmatprep.subr.mxu0 0.0
    %1159 = vmatpush2.msra.mxu0 0.0
    %1160 = vmatprep.subr.mxu0 0.0
    %1161 = vmatpush2.msra.mxu0 0.0
    %1162 = vmatprep.subr.mxu0 0.0
    %1163 = vmatpush2.msra.mxu0 0.0
    %1164 = vmatprep.subr.mxu0 0.0
    %1165 = vmatpush2.msra.mxu0 0.0
    %1166 = vmatprep.subr.mxu0 0.0
    %1167 = vmatpush2.msra.mxu0 0.0
    %1168 = vmatprep.subr.mxu0 0.0
    %1169 = vmatpush2.msra.mxu0 0.0
    %1170 = vmatprep.mubr.f32.mxu0 0.0
    %1171 = vmatmul.mubr.f32.gmra.mxu0 %v1084
    %v1172 = vpop.f32.mrf.mxu0
    %v1173 = vadd.f32 %v1105, %v1172
    %v1174 = vpop.f32.mrf.mxu0
    %1175 = vdwg.mxu0
    %v1176 = vadd.f32 %v1001, %v1173
    %v1177 = vld [vmem:[#allocation2 + $0x130] sm:$0x1]
    %v1178 = vld [vmem:[#allocation2 + $0x138] sm:$0x1]
    %v1179 = vsel %vm140, %v1176, 0.0
    %1180 = vadd.xlane.f32.xlu0 %v1179
    %v1181 = vpop.xlane.xlu0 %1180
    %v1182 = vmul.f32 %v1181, %v981
    %v1183 = vsub.f32 %v1176, %v1182
    %v1184 = vmul.f32 %v1183, %v1183
    %v1185 = vsel %vm140, %v1184, 0.0
    %1186 = vadd.xlane.f32.xlu0 %v1185
    %v1187 = vpop.xlane.xlu0 %1186
    %v1188 = vmul.f32 %v1187, %v981
    %v1189 = vadd.f32 %v1188, 1e-05
    %v1190 = vrsqrt.pop %v1189
    %v1191 = vmul.f32 %v1183, %v1190
    %v1192 = vlaneseq
    %v1193 = vshrl.u32 %v1192, 7
    %v1194 = vsub.s32 0, %v1193
    %v1195 = vrot.slane %v1177, %v1194
    %v1196 = vmul.f32 %v1191, %v1195
    %v1197 = vlaneseq
    %v1198 = vshrl.u32 %v1197, 7
    %v1199 = vsub.s32 0, %v1198
    %v1200 = vrot.slane %v1178, %v1199
    %v1201 = vadd.f32 %v1196, %v1200
    %v1202 = vld [vmem:[%s2] sm:$0xff]
    %v1203 = vld [vmem:[#allocation2 + $0x140] sm:$0xff]
    %v1204 = vld [vmem:[#allocation2 + $0x148] sm:$0x1]
    %v1205 = vlaneseq
    %v1206 = vshrl.u32 %v1205, 7
    %v1207 = vsub.s32 0, %v1206
    %v1208 = vrot.slane %v1204, %v1207
    %v1210 = vsel %vm217, %v1202, 0
    %1212 = vmatprep.subr.mxu0 0.0
    %1213 = vmatpush1.msra.mxu0 0.0
    %1214 = vmatprep.subr.mxu0 0.0
    %1215 = vmatpush1.msra.mxu0 0.0
    %1216 = vmatprep.subr.mxu0 0.0
    %1217 = vmatpush1.msra.mxu0 0.0
    %1218 = vmatprep.subr.mxu0 0.0
    %1219 = vmatpush1.msra.mxu0 0.0
    %1220 = vmatprep.subr.mxu0 0.0
    %1221 = vmatpush1.msra.mxu0 0.0
    %1222 = vmatprep.subr.mxu0 0.0
    %1223 = vmatpush1.msra.mxu0 0.0
    %1224 = vmatprep.subr.mxu0 0.0
    %1225 = vmatpush1.msra.mxu0 0.0
    %1226 = vmatprep.subr.mxu0 0.0
    %1227 = vmatpush1.msra.mxu0 0.0
    %1228 = vmatprep.subr.mxu0 0.0
    %1229 = vmatpush1.msra.mxu0 0.0
    %1230 = vmatprep.subr.mxu0 0.0
    %1231 = vmatpush1.msra.mxu0 0.0
    %1232 = vmatprep.subr.mxu0 0.0
    %1233 = vmatpush1.msra.mxu0 0.0
    %1234 = vmatprep.subr.mxu0 0.0
    %1235 = vmatpush1.msra.mxu0 0.0
    %1236 = vmatprep.subr.mxu0 0.0
    %1237 = vmatpush1.msra.mxu0 0.0
    %1238 = vmatprep.subr.mxu0 0.0
    %1239 = vmatpush1.msra.mxu0 0.0
    %1240 = vmatprep.subr.mxu0 0.0
    %1241 = vmatpush1.msra.mxu0 0.0
    %1242 = vmatprep.subr.mxu0 0.0
    %1243 = vmatpush1.msra.mxu0 %v1203
    %1244 = vmatprep.subr.mxu0 0.0
    %1245 = vmatpush2.msra.mxu0 0.0
    %1246 = vmatprep.subr.mxu0 0.0
    %1247 = vmatpush2.msra.mxu0 0.0
    %1248 = vmatprep.subr.mxu0 0.0
    %1249 = vmatpush2.msra.mxu0 0.0
    %1250 = vmatprep.subr.mxu0 0.0
    %1251 = vmatpush2.msra.mxu0 0.0
    %1252 = vmatprep.subr.mxu0 0.0
    %1253 = vmatpush2.msra.mxu0 0.0
    %1254 = vmatprep.subr.mxu0 0.0
    %1255 = vmatpush2.msra.mxu0 0.0
    %1256 = vmatprep.subr.mxu0 0.0
    %1257 = vmatpush2.msra.mxu0 0.0
    %1258 = vmatprep.subr.mxu0 0.0
    %1259 = vmatpush2.msra.mxu0 0.0
    %1260 = vmatprep.subr.mxu0 0.0
    %1261 = vmatpush2.msra.mxu0 0.0
    %1262 = vmatprep.subr.mxu0 0.0
    %1263 = vmatpush2.msra.mxu0 0.0
    %1264 = vmatprep.subr.mxu0 0.0
    %1265 = vmatpush2.msra.mxu0 0.0
    %1266 = vmatprep.subr.mxu0 0.0
    %1267 = vmatpush2.msra.mxu0 0.0
    %1268 = vmatprep.subr.mxu0 0.0
    %1269 = vmatpush2.msra.mxu0 0.0
    %1270 = vmatprep.subr.mxu0 0.0
    %1271 = vmatpush2.msra.mxu0 0.0
    %1272 = vmatprep.subr.mxu0 0.0
    %1273 = vmatpush2.msra.mxu0 0.0
    %1274 = vmatprep.subr.mxu0 0.0
    %1275 = vmatpush2.msra.mxu0 0.0
    %1276 = vmatprep.mubr.f32.mxu0 0.0
    %1277 = vmatmul.mubr.f32.gmra.mxu0 %v1210
    %v1278 = vpop.f32.mrf.mxu0
    %v1279 = vadd.f32 %v1208, %v1278
    %v1280 = vpop.f32.mrf.mxu0
    %1281 = vdwg.mxu0
    %v1282 = vld [vmem:[#allocation2 + $0x150] sm:$0xff]
    %v1283 = vadd.f32 %v1279, %v1282
    %v1284 = vld [vmem:[#allocation2 + $0x158] sm:$0xff]
    %v1285 = vld [vmem:[#allocation2 + $0x160] sm:$0xff]
    %v1286 = vld [vmem:[#allocation2 + $0x168] sm:$0xff]
    %v1287 = vld [vmem:[#allocation2 + $0x170] sm:$0xff]
    %v1288 = vld [vmem:[#allocation2 + $0x178] sm:$0x1]
    %v1289 = vld [vmem:[#allocation2 + $0x180] sm:$0xff]
    %v1290 = vld [vmem:[#allocation2 + $0x188] sm:$0xff]
    %v1291 = vld [vmem:[#allocation2 + $0x190] sm:$0xff]
    %v1292 = vld [vmem:[#allocation2 + $0x198] sm:$0xff]
    %v1293 = vld [vmem:[#allocation2 + $0x1a0] sm:$0x1]
    %v1294 = vlaneseq
    %v1295 = vshrl.u32 %v1294, 7
    %v1296 = vsub.s32 0, %v1295
    %v1297 = vrot.slane %v1288, %v1296
    %v1299 = vsel %vm140, %v1283, 0
    %1301 = vmatprep.subr.mxu0 0.0
    %1302 = vmatpush1.msra.mxu0 0.0
    %1303 = vmatprep.subr.mxu0 0.0
    %1304 = vmatpush1.msra.mxu0 0.0
    %1305 = vmatprep.subr.mxu0 0.0
    %1306 = vmatpush1.msra.mxu0 0.0
    %1307 = vmatprep.subr.mxu0 0.0
    %1308 = vmatpush1.msra.mxu0 0.0
    %1309 = vmatprep.subr.mxu0 0.0
    %1310 = vmatpush1.msra.mxu0 0.0
    %1311 = vmatprep.subr.mxu0 0.0
    %1312 = vmatpush1.msra.mxu0 0.0
    %1313 = vmatprep.subr.mxu0 0.0
    %1314 = vmatpush1.msra.mxu0 0.0
    %1315 = vmatprep.subr.mxu0 0.0
    %1316 = vmatpush1.msra.mxu0 0.0
    %1317 = vmatprep.subr.mxu0 0.0
    %1318 = vmatpush1.msra.mxu0 0.0
    %1319 = vmatprep.subr.mxu0 0.0
    %1320 = vmatpush1.msra.mxu0 0.0
    %1321 = vmatprep.subr.mxu0 0.0
    %1322 = vmatpush1.msra.mxu0 0.0
    %1323 = vmatprep.subr.mxu0 0.0
    %1324 = vmatpush1.msra.mxu0 0.0
    %1325 = vmatprep.subr.mxu0 0.0
    %1326 = vmatpush1.msra.mxu0 %v1287
    %1327 = vmatprep.subr.mxu0 0.0
    %1328 = vmatpush1.msra.mxu0 %v1286
    %1329 = vmatprep.subr.mxu0 0.0
    %1330 = vmatpush1.msra.mxu0 %v1285
    %1331 = vmatprep.subr.mxu0 0.0
    %1332 = vmatpush1.msra.mxu0 %v1284
    %1333 = vmatprep.subr.mxu0 0.0
    %1334 = vmatpush2.msra.mxu0 0.0
    %1335 = vmatprep.subr.mxu0 0.0
    %1336 = vmatpush2.msra.mxu0 0.0
    %1337 = vmatprep.subr.mxu0 0.0
    %1338 = vmatpush2.msra.mxu0 0.0
    %1339 = vmatprep.subr.mxu0 0.0
    %1340 = vmatpush2.msra.mxu0 0.0
    %1341 = vmatprep.subr.mxu0 0.0
    %1342 = vmatpush2.msra.mxu0 0.0
    %1343 = vmatprep.subr.mxu0 0.0
    %1344 = vmatpush2.msra.mxu0 0.0
    %1345 = vmatprep.subr.mxu0 0.0
    %1346 = vmatpush2.msra.mxu0 0.0
    %1347 = vmatprep.subr.mxu0 0.0
    %1348 = vmatpush2.msra.mxu0 0.0
    %1349 = vmatprep.subr.mxu0 0.0
    %1350 = vmatpush2.msra.mxu0 0.0
    %1351 = vmatprep.subr.mxu0 0.0
    %1352 = vmatpush2.msra.mxu0 0.0
    %1353 = vmatprep.subr.mxu0 0.0
    %1354 = vmatpush2.msra.mxu0 0.0
    %1355 = vmatprep.subr.mxu0 0.0
    %1356 = vmatpush2.msra.mxu0 0.0
    %1357 = vmatprep.subr.mxu0 0.0
    %1358 = vmatpush2.msra.mxu0 0.0
    %1359 = vmatprep.subr.mxu0 0.0
    %1360 = vmatpush2.msra.mxu0 0.0
    %1361 = vmatprep.subr.mxu0 0.0
    %1362 = vmatpush2.msra.mxu0 0.0
    %1363 = vmatprep.subr.mxu0 0.0
    %1364 = vmatpush2.msra.mxu0 0.0
    %1365 = vmatprep.mubr.f32.mxu0 0.0
    %1366 = vmatmul.mubr.f32.gmra.mxu0 %v1299
    %v1367 = vpop.f32.mrf.mxu0
    %v1368 = vadd.f32 %v1297, %v1367
    %v1369 = vpop.f32.mrf.mxu0
    %1370 = vdwg.mxu0
    %1372 = vrot.lane.b32.xlu0 %v1368, 96
    %v1373 = vpop.permute.xlu0 %1372
    %v1374 = vsel %vm217, %v1368, 0
    %v1376 = vsel %vm217, %v1373, 0
    %1378 = vmatprep.subr.mxu0 0.0
    %1379 = vmatpush1.xpose.msra.mxu0 0.0
    %1380 = vmatprep.subr.mxu0 0.0
    %1381 = vmatpush1.xpose.msra.mxu0 0.0
    %1382 = vmatprep.subr.mxu0 0.0
    %1383 = vmatpush1.xpose.msra.mxu0 0.0
    %1384 = vmatprep.subr.mxu0 0.0
    %1385 = vmatpush1.xpose.msra.mxu0 0.0
    %1386 = vmatprep.subr.mxu0 0.0
    %1387 = vmatpush1.xpose.msra.mxu0 0.0
    %1388 = vmatprep.subr.mxu0 0.0
    %1389 = vmatpush1.xpose.msra.mxu0 0.0
    %1390 = vmatprep.subr.mxu0 0.0
    %1391 = vmatpush1.xpose.msra.mxu0 0.0
    %1392 = vmatprep.subr.mxu0 0.0
    %1393 = vmatpush1.xpose.msra.mxu0 0.0
    %1394 = vmatprep.subr.mxu0 0.0
    %1395 = vmatpush1.xpose.msra.mxu0 0.0
    %1396 = vmatprep.subr.mxu0 0.0
    %1397 = vmatpush1.xpose.msra.mxu0 0.0
    %1398 = vmatprep.subr.mxu0 0.0
    %1399 = vmatpush1.xpose.msra.mxu0 0.0
    %1400 = vmatprep.subr.mxu0 0.0
    %1401 = vmatpush1.xpose.msra.mxu0 0.0
    %1402 = vmatprep.subr.mxu0 0.0
    %1403 = vmatpush1.xpose.msra.mxu0 0.0
    %1404 = vmatprep.subr.mxu0 0.0
    %1405 = vmatpush1.xpose.msra.mxu0 0.0
    %1406 = vmatprep.subr.mxu0 0.0
    %1407 = vmatpush1.xpose.msra.mxu0 0.0
    %1408 = vmatprep.subr.mxu0 0.0
    %1409 = vmatpush1.xpose.msra.mxu0 %v1376
    %1410 = vmatprep.subr.mxu0 0.0
    %1411 = vmatpush2.xpose.msra.mxu0 0.0
    %1412 = vmatprep.subr.mxu0 0.0
    %1413 = vmatpush2.xpose.msra.mxu0 0.0
    %1414 = vmatprep.subr.mxu0 0.0
    %1415 = vmatpush2.xpose.msra.mxu0 0.0
    %1416 = vmatprep.subr.mxu0 0.0
    %1417 = vmatpush2.xpose.msra.mxu0 0.0
    %1418 = vmatprep.subr.mxu0 0.0
    %1419 = vmatpush2.xpose.msra.mxu0 0.0
    %1420 = vmatprep.subr.mxu0 0.0
    %1421 = vmatpush2.xpose.msra.mxu0 0.0
    %1422 = vmatprep.subr.mxu0 0.0
    %1423 = vmatpush2.xpose.msra.mxu0 0.0
    %1424 = vmatprep.subr.mxu0 0.0
    %1425 = vmatpush2.xpose.msra.mxu0 0.0
    %1426 = vmatprep.subr.mxu0 0.0
    %1427 = vmatpush2.xpose.msra.mxu0 0.0
    %1428 = vmatprep.subr.mxu0 0.0
    %1429 = vmatpush2.xpose.msra.mxu0 0.0
    %1430 = vmatprep.subr.mxu0 0.0
    %1431 = vmatpush2.xpose.msra.mxu0 0.0
    %1432 = vmatprep.subr.mxu0 0.0
    %1433 = vmatpush2.xpose.msra.mxu0 0.0
    %1434 = vmatprep.subr.mxu0 0.0
    %1435 = vmatpush2.xpose.msra.mxu0 0.0
    %1436 = vmatprep.subr.mxu0 0.0
    %1437 = vmatpush2.xpose.msra.mxu0 0.0
    %1438 = vmatprep.subr.mxu0 0.0
    %1439 = vmatpush2.xpose.msra.mxu0 0.0
    %1440 = vmatprep.subr.mxu0 0.0
    %1441 = vmatpush2.xpose.msra.mxu0 0.0
    %1442 = vmatprep.mubr.f32.mxu0 0.0
    %1443 = vmatmul.mubr.f32.gmra.mxu0 %v1374
    %v1444 = vpop.f32.mrf.mxu0
    %v1445 = vadd.f32 0.0, %v1444
    %v1446 = vpop.f32.mrf.mxu0
    %1447 = vdwg.mxu0
    %v1448 = vmul.f32 %v1445, 0.35355338
    %v1449 = vadd.f32 %v1448, %v37
    %v1450 = vsel %vm217, %v1449, -inf
    %1451 = vmax.xlane.f32.xlu0 %v1450
    %v1452 = vpop.xlane.xlu0 %1451
    %v1453 = vsub.f32 %v1449, %v1452
    %v1454 = vmul.f32 %v1453, 1.442695
    %v1455 = vpow.pop %v1454
    %v1456 = vsel %vm217, %v1455, 0.0
    %1457 = vadd.xlane.f32.xlu0 %v1456
    %v1458 = vpop.xlane.xlu0 %1457
    %v1459 = vrcp.pop %v1458
    %v1460 = vmul.f32 %v1455, %v1459
    %1461 = vrot.lane.b32.xlu0 %v1368, 64
    %v1462 = vpop.permute.xlu0 %1461
    %v1465 = vsel %vm217, %v1460, 0
    %1467 = vmatprep.subr.mxu0 0.0
    %1468 = vmatpush1.msra.mxu0 0.0
    %1469 = vmatprep.subr.mxu0 0.0
    %1470 = vmatpush1.msra.mxu0 0.0
    %1471 = vmatprep.subr.mxu0 0.0
    %1472 = vmatpush1.msra.mxu0 0.0
    %1473 = vmatprep.subr.mxu0 0.0
    %1474 = vmatpush1.msra.mxu0 0.0
    %1475 = vmatprep.subr.mxu0 0.0
    %1476 = vmatpush1.msra.mxu0 0.0
    %1477 = vmatprep.subr.mxu0 0.0
    %1478 = vmatpush1.msra.mxu0 0.0
    %1479 = vmatprep.subr.mxu0 0.0
    %1480 = vmatpush1.msra.mxu0 0.0
    %1481 = vmatprep.subr.mxu0 0.0
    %1482 = vmatpush1.msra.mxu0 0.0
    %1483 = vmatprep.subr.mxu0 0.0
    %1484 = vmatpush1.msra.mxu0 0.0
    %1485 = vmatprep.subr.mxu0 0.0
    %1486 = vmatpush1.msra.mxu0 0.0
    %1487 = vmatprep.subr.mxu0 0.0
    %1488 = vmatpush1.msra.mxu0 0.0
    %1489 = vmatprep.subr.mxu0 0.0
    %1490 = vmatpush1.msra.mxu0 0.0
    %1491 = vmatprep.subr.mxu0 0.0
    %1492 = vmatpush1.msra.mxu0 0.0
    %1493 = vmatprep.subr.mxu0 0.0
    %1494 = vmatpush1.msra.mxu0 0.0
    %1495 = vmatprep.subr.mxu0 0.0
    %1496 = vmatpush1.msra.mxu0 0.0
    %1497 = vmatprep.subr.mxu0 0.0
    %1498 = vmatpush1.msra.mxu0 %v1462
    %1499 = vmatprep.subr.mxu0 0.0
    %1500 = vmatpush2.msra.mxu0 0.0
    %1501 = vmatprep.subr.mxu0 0.0
    %1502 = vmatpush2.msra.mxu0 0.0
    %1503 = vmatprep.subr.mxu0 0.0
    %1504 = vmatpush2.msra.mxu0 0.0
    %1505 = vmatprep.subr.mxu0 0.0
    %1506 = vmatpush2.msra.mxu0 0.0
    %1507 = vmatprep.subr.mxu0 0.0
    %1508 = vmatpush2.msra.mxu0 0.0
    %1509 = vmatprep.subr.mxu0 0.0
    %1510 = vmatpush2.msra.mxu0 0.0
    %1511 = vmatprep.subr.mxu0 0.0
    %1512 = vmatpush2.msra.mxu0 0.0
    %1513 = vmatprep.subr.mxu0 0.0
    %1514 = vmatpush2.msra.mxu0 0.0
    %1515 = vmatprep.subr.mxu0 0.0
    %1516 = vmatpush2.msra.mxu0 0.0
    %1517 = vmatprep.subr.mxu0 0.0
    %1518 = vmatpush2.msra.mxu0 0.0
    %1519 = vmatprep.subr.mxu0 0.0
    %1520 = vmatpush2.msra.mxu0 0.0
    %1521 = vmatprep.subr.mxu0 0.0
    %1522 = vmatpush2.msra.mxu0 0.0
    %1523 = vmatprep.subr.mxu0 0.0
    %1524 = vmatpush2.msra.mxu0 0.0
    %1525 = vmatprep.subr.mxu0 0.0
    %1526 = vmatpush2.msra.mxu0 0.0
    %1527 = vmatprep.subr.mxu0 0.0
    %1528 = vmatpush2.msra.mxu0 0.0
    %1529 = vmatprep.subr.mxu0 0.0
    %1530 = vmatpush2.msra.mxu0 0.0
    %1531 = vmatprep.mubr.f32.mxu0 0.0
    %1532 = vmatmul.mubr.f32.gmra.mxu0 %v1465
    %v1533 = vpop.f32.mrf.mxu0
    %v1534 = vadd.f32 0.0, %v1533
    %v1535 = vpop.f32.mrf.mxu0
    %1536 = vdwg.mxu0
    %1537 = vrot.lane.b32.xlu0 %v1368, 120
    %v1538 = vpop.permute.xlu0 %1537
    %1539 = vrot.lane.b32.xlu0 %v1368, 88
    %v1540 = vpop.permute.xlu0 %1539
    %v1541 = vsel %vm217, %v1538, 0
    %v1543 = vsel %vm217, %v1540, 0
    %1545 = vmatprep.subr.mxu0 0.0
    %1546 = vmatpush1.xpose.msra.mxu0 0.0
    %1547 = vmatprep.subr.mxu0 0.0
    %1548 = vmatpush1.xpose.msra.mxu0 0.0
    %1549 = vmatprep.subr.mxu0 0.0
    %1550 = vmatpush1.xpose.msra.mxu0 0.0
    %1551 = vmatprep.subr.mxu0 0.0
    %1552 = vmatpush1.xpose.msra.mxu0 0.0
    %1553 = vmatprep.subr.mxu0 0.0
    %1554 = vmatpush1.xpose.msra.mxu0 0.0
    %1555 = vmatprep.subr.mxu0 0.0
    %1556 = vmatpush1.xpose.msra.mxu0 0.0
    %1557 = vmatprep.subr.mxu0 0.0
    %1558 = vmatpush1.xpose.msra.mxu0 0.0
    %1559 = vmatprep.subr.mxu0 0.0
    %1560 = vmatpush1.xpose.msra.mxu0 0.0
    %1561 = vmatprep.subr.mxu0 0.0
    %1562 = vmatpush1.xpose.msra.mxu0 0.0
    %1563 = vmatprep.subr.mxu0 0.0
    %1564 = vmatpush1.xpose.msra.mxu0 0.0
    %1565 = vmatprep.subr.mxu0 0.0
    %1566 = vmatpush1.xpose.msra.mxu0 0.0
    %1567 = vmatprep.subr.mxu0 0.0
    %1568 = vmatpush1.xpose.msra.mxu0 0.0
    %1569 = vmatprep.subr.mxu0 0.0
    %1570 = vmatpush1.xpose.msra.mxu0 0.0
    %1571 = vmatprep.subr.mxu0 0.0
    %1572 = vmatpush1.xpose.msra.mxu0 0.0
    %1573 = vmatprep.subr.mxu0 0.0
    %1574 = vmatpush1.xpose.msra.mxu0 0.0
    %1575 = vmatprep.subr.mxu0 0.0
    %1576 = vmatpush1.xpose.msra.mxu0 %v1543
    %1577 = vmatprep.subr.mxu0 0.0
    %1578 = vmatpush2.xpose.msra.mxu0 0.0
    %1579 = vmatprep.subr.mxu0 0.0
    %1580 = vmatpush2.xpose.msra.mxu0 0.0
    %1581 = vmatprep.subr.mxu0 0.0
    %1582 = vmatpush2.xpose.msra.mxu0 0.0
    %1583 = vmatprep.subr.mxu0 0.0
    %1584 = vmatpush2.xpose.msra.mxu0 0.0
    %1585 = vmatprep.subr.mxu0 0.0
    %1586 = vmatpush2.xpose.msra.mxu0 0.0
    %1587 = vmatprep.subr.mxu0 0.0
    %1588 = vmatpush2.xpose.msra.mxu0 0.0
    %1589 = vmatprep.subr.mxu0 0.0
    %1590 = vmatpush2.xpose.msra.mxu0 0.0
    %1591 = vmatprep.subr.mxu0 0.0
    %1592 = vmatpush2.xpose.msra.mxu0 0.0
    %1593 = vmatprep.subr.mxu0 0.0
    %1594 = vmatpush2.xpose.msra.mxu0 0.0
    %1595 = vmatprep.subr.mxu0 0.0
    %1596 = vmatpush2.xpose.msra.mxu0 0.0
    %1597 = vmatprep.subr.mxu0 0.0
    %1598 = vmatpush2.xpose.msra.mxu0 0.0
    %1599 = vmatprep.subr.mxu0 0.0
    %1600 = vmatpush2.xpose.msra.mxu0 0.0
    %1601 = vmatprep.subr.mxu0 0.0
    %1602 = vmatpush2.xpose.msra.mxu0 0.0
    %1603 = vmatprep.subr.mxu0 0.0
    %1604 = vmatpush2.xpose.msra.mxu0 0.0
    %1605 = vmatprep.subr.mxu0 0.0
    %1606 = vmatpush2.xpose.msra.mxu0 0.0
    %1607 = vmatprep.subr.mxu0 0.0
    %1608 = vmatpush2.xpose.msra.mxu0 0.0
    %1609 = vmatprep.mubr.f32.mxu0 0.0
    %1610 = vmatmul.mubr.f32.gmra.mxu0 %v1541
    %v1611 = vpop.f32.mrf.mxu0
    %v1612 = vadd.f32 0.0, %v1611
    %v1613 = vpop.f32.mrf.mxu0
    %1614 = vdwg.mxu0
    %v1615 = vmul.f32 %v1612, 0.35355338
    %v1616 = vadd.f32 %v1615, %v37
    %v1617 = vsel %vm217, %v1616, -inf
    %1618 = vmax.xlane.f32.xlu0 %v1617
    %v1619 = vpop.xlane.xlu0 %1618
    %v1620 = vsub.f32 %v1616, %v1619
    %v1621 = vmul.f32 %v1620, 1.442695
    %v1622 = vpow.pop %v1621
    %v1623 = vsel %vm217, %v1622, 0.0
    %1624 = vadd.xlane.f32.xlu0 %v1623
    %v1625 = vpop.xlane.xlu0 %1624
    %v1626 = vrcp.pop %v1625
    %v1627 = vmul.f32 %v1622, %v1626
    %1628 = vrot.lane.b32.xlu0 %v1368, 56
    %v1629 = vpop.permute.xlu0 %1628
    %v1632 = vsel %vm217, %v1627, 0
    %1634 = vmatprep.subr.mxu0 0.0
    %1635 = vmatpush1.msra.mxu0 0.0
    %1636 = vmatprep.subr.mxu0 0.0
    %1637 = vmatpush1.msra.mxu0 0.0
    %1638 = vmatprep.subr.mxu0 0.0
    %1639 = vmatpush1.msra.mxu0 0.0
    %1640 = vmatprep.subr.mxu0 0.0
    %1641 = vmatpush1.msra.mxu0 0.0
    %1642 = vmatprep.subr.mxu0 0.0
    %1643 = vmatpush1.msra.mxu0 0.0
    %1644 = vmatprep.subr.mxu0 0.0
    %1645 = vmatpush1.msra.mxu0 0.0
    %1646 = vmatprep.subr.mxu0 0.0
    %1647 = vmatpush1.msra.mxu0 0.0
    %1648 = vmatprep.subr.mxu0 0.0
    %1649 = vmatpush1.msra.mxu0 0.0
    %1650 = vmatprep.subr.mxu0 0.0
    %1651 = vmatpush1.msra.mxu0 0.0
    %1652 = vmatprep.subr.mxu0 0.0
    %1653 = vmatpush1.msra.mxu0 0.0
    %1654 = vmatprep.subr.mxu0 0.0
    %1655 = vmatpush1.msra.mxu0 0.0
    %1656 = vmatprep.subr.mxu0 0.0
    %1657 = vmatpush1.msra.mxu0 0.0
    %1658 = vmatprep.subr.mxu0 0.0
    %1659 = vmatpush1.msra.mxu0 0.0
    %1660 = vmatprep.subr.mxu0 0.0
    %1661 = vmatpush1.msra.mxu0 0.0
    %1662 = vmatprep.subr.mxu0 0.0
    %1663 = vmatpush1.msra.mxu0 0.0
    %1664 = vmatprep.subr.mxu0 0.0
    %1665 = vmatpush1.msra.mxu0 %v1629
    %1666 = vmatprep.subr.mxu0 0.0
    %1667 = vmatpush2.msra.mxu0 0.0
    %1668 = vmatprep.subr.mxu0 0.0
    %1669 = vmatpush2.msra.mxu0 0.0
    %1670 = vmatprep.subr.mxu0 0.0
    %1671 = vmatpush2.msra.mxu0 0.0
    %1672 = vmatprep.subr.mxu0 0.0
    %1673 = vmatpush2.msra.mxu0 0.0
    %1674 = vmatprep.subr.mxu0 0.0
    %1675 = vmatpush2.msra.mxu0 0.0
    %1676 = vmatprep.subr.mxu0 0.0
    %1677 = vmatpush2.msra.mxu0 0.0
    %1678 = vmatprep.subr.mxu0 0.0
    %1679 = vmatpush2.msra.mxu0 0.0
    %1680 = vmatprep.subr.mxu0 0.0
    %1681 = vmatpush2.msra.mxu0 0.0
    %1682 = vmatprep.subr.mxu0 0.0
    %1683 = vmatpush2.msra.mxu0 0.0
    %1684 = vmatprep.subr.mxu0 0.0
    %1685 = vmatpush2.msra.mxu0 0.0
    %1686 = vmatprep.subr.mxu0 0.0
    %1687 = vmatpush2.msra.mxu0 0.0
    %1688 = vmatprep.subr.mxu0 0.0
    %1689 = vmatpush2.msra.mxu0 0.0
    %1690 = vmatprep.subr.mxu0 0.0
    %1691 = vmatpush2.msra.mxu0 0.0
    %1692 = vmatprep.subr.mxu0 0.0
    %1693 = vmatpush2.msra.mxu0 0.0
    %1694 = vmatprep.subr.mxu0 0.0
    %1695 = vmatpush2.msra.mxu0 0.0
    %1696 = vmatprep.subr.mxu0 0.0
    %1697 = vmatpush2.msra.mxu0 0.0
    %1698 = vmatprep.mubr.f32.mxu0 0.0
    %1699 = vmatmul.mubr.f32.gmra.mxu0 %v1632
    %v1700 = vpop.f32.mrf.mxu0
    %v1701 = vadd.f32 0.0, %v1700
    %v1702 = vpop.f32.mrf.mxu0
    %1703 = vdwg.mxu0
    %1704 = vrot.lane.b32.xlu0 %v1368, 112
    %v1705 = vpop.permute.xlu0 %1704
    %1706 = vrot.lane.b32.xlu0 %v1368, 80
    %v1707 = vpop.permute.xlu0 %1706
    %v1708 = vsel %vm217, %v1705, 0
    %v1710 = vsel %vm217, %v1707, 0
    %1712 = vmatprep.subr.mxu0 0.0
    %1713 = vmatpush1.xpose.msra.mxu0 0.0
    %1714 = vmatprep.subr.mxu0 0.0
    %1715 = vmatpush1.xpose.msra.mxu0 0.0
    %1716 = vmatprep.subr.mxu0 0.0
    %1717 = vmatpush1.xpose.msra.mxu0 0.0
    %1718 = vmatprep.subr.mxu0 0.0
    %1719 = vmatpush1.xpose.msra.mxu0 0.0
    %1720 = vmatprep.subr.mxu0 0.0
    %1721 = vmatpush1.xpose.msra.mxu0 0.0
    %1722 = vmatprep.subr.mxu0 0.0
    %1723 = vmatpush1.xpose.msra.mxu0 0.0
    %1724 = vmatprep.subr.mxu0 0.0
    %1725 = vmatpush1.xpose.msra.mxu0 0.0
    %1726 = vmatprep.subr.mxu0 0.0
    %1727 = vmatpush1.xpose.msra.mxu0 0.0
    %1728 = vmatprep.subr.mxu0 0.0
    %1729 = vmatpush1.xpose.msra.mxu0 0.0
    %1730 = vmatprep.subr.mxu0 0.0
    %1731 = vmatpush1.xpose.msra.mxu0 0.0
    %1732 = vmatprep.subr.mxu0 0.0
    %1733 = vmatpush1.xpose.msra.mxu0 0.0
    %1734 = vmatprep.subr.mxu0 0.0
    %1735 = vmatpush1.xpose.msra.mxu0 0.0
    %1736 = vmatprep.subr.mxu0 0.0
    %1737 = vmatpush1.xpose.msra.mxu0 0.0
    %1738 = vmatprep.subr.mxu0 0.0
    %1739 = vmatpush1.xpose.msra.mxu0 0.0
    %1740 = vmatprep.subr.mxu0 0.0
    %1741 = vmatpush1.xpose.msra.mxu0 0.0
    %1742 = vmatprep.subr.mxu0 0.0
    %1743 = vmatpush1.xpose.msra.mxu0 %v1710
    %1744 = vmatprep.subr.mxu0 0.0
    %1745 = vmatpush2.xpose.msra.mxu0 0.0
    %1746 = vmatprep.subr.mxu0 0.0
    %1747 = vmatpush2.xpose.msra.mxu0 0.0
    %1748 = vmatprep.subr.mxu0 0.0
    %1749 = vmatpush2.xpose.msra.mxu0 0.0
    %1750 = vmatprep.subr.mxu0 0.0
    %1751 = vmatpush2.xpose.msra.mxu0 0.0
    %1752 = vmatprep.subr.mxu0 0.0
    %1753 = vmatpush2.xpose.msra.mxu0 0.0
    %1754 = vmatprep.subr.mxu0 0.0
    %1755 = vmatpush2.xpose.msra.mxu0 0.0
    %1756 = vmatprep.subr.mxu0 0.0
    %1757 = vmatpush2.xpose.msra.mxu0 0.0
    %1758 = vmatprep.subr.mxu0 0.0
    %1759 = vmatpush2.xpose.msra.mxu0 0.0
    %1760 = vmatprep.subr.mxu0 0.0
    %1761 = vmatpush2.xpose.msra.mxu0 0.0
    %1762 = vmatprep.subr.mxu0 0.0
    %1763 = vmatpush2.xpose.msra.mxu0 0.0
    %1764 = vmatprep.subr.mxu0 0.0
    %1765 = vmatpush2.xpose.msra.mxu0 0.0
    %1766 = vmatprep.subr.mxu0 0.0
    %1767 = vmatpush2.xpose.msra.mxu0 0.0
    %1768 = vmatprep.subr.mxu0 0.0
    %1769 = vmatpush2.xpose.msra.mxu0 0.0
    %1770 = vmatprep.subr.mxu0 0.0
    %1771 = vmatpush2.xpose.msra.mxu0 0.0
    %1772 = vmatprep.subr.mxu0 0.0
    %1773 = vmatpush2.xpose.msra.mxu0 0.0
    %1774 = vmatprep.subr.mxu0 0.0
    %1775 = vmatpush2.xpose.msra.mxu0 0.0
    %1776 = vmatprep.mubr.f32.mxu0 0.0
    %1777 = vmatmul.mubr.f32.gmra.mxu0 %v1708
    %v1778 = vpop.f32.mrf.mxu0
    %v1779 = vadd.f32 0.0, %v1778
    %v1780 = vpop.f32.mrf.mxu0
    %1781 = vdwg.mxu0
    %v1782 = vmul.f32 %v1779, 0.35355338
    %v1783 = vadd.f32 %v1782, %v37
    %v1784 = vsel %vm217, %v1783, -inf
    %1785 = vmax.xlane.f32.xlu0 %v1784
    %v1786 = vpop.xlane.xlu0 %1785
    %v1787 = vsub.f32 %v1783, %v1786
    %v1788 = vmul.f32 %v1787, 1.442695
    %v1789 = vpow.pop %v1788
    %v1790 = vsel %vm217, %v1789, 0.0
    %1791 = vadd.xlane.f32.xlu0 %v1790
    %v1792 = vpop.xlane.xlu0 %1791
    %v1793 = vrcp.pop %v1792
    %v1794 = vmul.f32 %v1789, %v1793
    %1795 = vrot.lane.b32.xlu0 %v1368, 48
    %v1796 = vpop.permute.xlu0 %1795
    %v1799 = vsel %vm217, %v1794, 0
    %1801 = vmatprep.subr.mxu0 0.0
    %1802 = vmatpush1.msra.mxu0 0.0
    %1803 = vmatprep.subr.mxu0 0.0
    %1804 = vmatpush1.msra.mxu0 0.0
    %1805 = vmatprep.subr.mxu0 0.0
    %1806 = vmatpush1.msra.mxu0 0.0
    %1807 = vmatprep.subr.mxu0 0.0
    %1808 = vmatpush1.msra.mxu0 0.0
    %1809 = vmatprep.subr.mxu0 0.0
    %1810 = vmatpush1.msra.mxu0 0.0
    %1811 = vmatprep.subr.mxu0 0.0
    %1812 = vmatpush1.msra.mxu0 0.0
    %1813 = vmatprep.subr.mxu0 0.0
    %1814 = vmatpush1.msra.mxu0 0.0
    %1815 = vmatprep.subr.mxu0 0.0
    %1816 = vmatpush1.msra.mxu0 0.0
    %1817 = vmatprep.subr.mxu0 0.0
    %1818 = vmatpush1.msra.mxu0 0.0
    %1819 = vmatprep.subr.mxu0 0.0
    %1820 = vmatpush1.msra.mxu0 0.0
    %1821 = vmatprep.subr.mxu0 0.0
    %1822 = vmatpush1.msra.mxu0 0.0
    %1823 = vmatprep.subr.mxu0 0.0
    %1824 = vmatpush1.msra.mxu0 0.0
    %1825 = vmatprep.subr.mxu0 0.0
    %1826 = vmatpush1.msra.mxu0 0.0
    %1827 = vmatprep.subr.mxu0 0.0
    %1828 = vmatpush1.msra.mxu0 0.0
    %1829 = vmatprep.subr.mxu0 0.0
    %1830 = vmatpush1.msra.mxu0 0.0
    %1831 = vmatprep.subr.mxu0 0.0
    %1832 = vmatpush1.msra.mxu0 %v1796
    %1833 = vmatprep.subr.mxu0 0.0
    %1834 = vmatpush2.msra.mxu0 0.0
    %1835 = vmatprep.subr.mxu0 0.0
    %1836 = vmatpush2.msra.mxu0 0.0
    %1837 = vmatprep.subr.mxu0 0.0
    %1838 = vmatpush2.msra.mxu0 0.0
    %1839 = vmatprep.subr.mxu0 0.0
    %1840 = vmatpush2.msra.mxu0 0.0
    %1841 = vmatprep.subr.mxu0 0.0
    %1842 = vmatpush2.msra.mxu0 0.0
    %1843 = vmatprep.subr.mxu0 0.0
    %1844 = vmatpush2.msra.mxu0 0.0
    %1845 = vmatprep.subr.mxu0 0.0
    %1846 = vmatpush2.msra.mxu0 0.0
    %1847 = vmatprep.subr.mxu0 0.0
    %1848 = vmatpush2.msra.mxu0 0.0
    %1849 = vmatprep.subr.mxu0 0.0
    %1850 = vmatpush2.msra.mxu0 0.0
    %1851 = vmatprep.subr.mxu0 0.0
    %1852 = vmatpush2.msra.mxu0 0.0
    %1853 = vmatprep.subr.mxu0 0.0
    %1854 = vmatpush2.msra.mxu0 0.0
    %1855 = vmatprep.subr.mxu0 0.0
    %1856 = vmatpush2.msra.mxu0 0.0
    %1857 = vmatprep.subr.mxu0 0.0
    %1858 = vmatpush2.msra.mxu0 0.0
    %1859 = vmatprep.subr.mxu0 0.0
    %1860 = vmatpush2.msra.mxu0 0.0
    %1861 = vmatprep.subr.mxu0 0.0
    %1862 = vmatpush2.msra.mxu0 0.0
    %1863 = vmatprep.subr.mxu0 0.0
    %1864 = vmatpush2.msra.mxu0 0.0
    %1865 = vmatprep.mubr.f32.mxu0 0.0
    %1866 = vmatmul.mubr.f32.gmra.mxu0 %v1799
    %v1867 = vpop.f32.mrf.mxu0
    %v1868 = vadd.f32 0.0, %v1867
    %v1869 = vpop.f32.mrf.mxu0
    %1870 = vdwg.mxu0
    %1871 = vrot.lane.b32.xlu0 %v1368, 104
    %v1872 = vpop.permute.xlu0 %1871
    %1873 = vrot.lane.b32.xlu0 %v1368, 72
    %v1874 = vpop.permute.xlu0 %1873
    %v1875 = vsel %vm217, %v1872, 0
    %v1877 = vsel %vm217, %v1874, 0
    %1879 = vmatprep.subr.mxu0 0.0
    %1880 = vmatpush1.xpose.msra.mxu0 0.0
    %1881 = vmatprep.subr.mxu0 0.0
    %1882 = vmatpush1.xpose.msra.mxu0 0.0
    %1883 = vmatprep.subr.mxu0 0.0
    %1884 = vmatpush1.xpose.msra.mxu0 0.0
    %1885 = vmatprep.subr.mxu0 0.0
    %1886 = vmatpush1.xpose.msra.mxu0 0.0
    %1887 = vmatprep.subr.mxu0 0.0
    %1888 = vmatpush1.xpose.msra.mxu0 0.0
    %1889 = vmatprep.subr.mxu0 0.0
    %1890 = vmatpush1.xpose.msra.mxu0 0.0
    %1891 = vmatprep.subr.mxu0 0.0
    %1892 = vmatpush1.xpose.msra.mxu0 0.0
    %1893 = vmatprep.subr.mxu0 0.0
    %1894 = vmatpush1.xpose.msra.mxu0 0.0
    %1895 = vmatprep.subr.mxu0 0.0
    %1896 = vmatpush1.xpose.msra.mxu0 0.0
    %1897 = vmatprep.subr.mxu0 0.0
    %1898 = vmatpush1.xpose.msra.mxu0 0.0
    %1899 = vmatprep.subr.mxu0 0.0
    %1900 = vmatpush1.xpose.msra.mxu0 0.0
    %1901 = vmatprep.subr.mxu0 0.0
    %1902 = vmatpush1.xpose.msra.mxu0 0.0
    %1903 = vmatprep.subr.mxu0 0.0
    %1904 = vmatpush1.xpose.msra.mxu0 0.0
    %1905 = vmatprep.subr.mxu0 0.0
    %1906 = vmatpush1.xpose.msra.mxu0 0.0
    %1907 = vmatprep.subr.mxu0 0.0
    %1908 = vmatpush1.xpose.msra.mxu0 0.0
    %1909 = vmatprep.subr.mxu0 0.0
    %1910 = vmatpush1.xpose.msra.mxu0 %v1877
    %1911 = vmatprep.subr.mxu0 0.0
    %1912 = vmatpush2.xpose.msra.mxu0 0.0
    %1913 = vmatprep.subr.mxu0 0.0
    %1914 = vmatpush2.xpose.msra.mxu0 0.0
    %1915 = vmatprep.subr.mxu0 0.0
    %1916 = vmatpush2.xpose.msra.mxu0 0.0
    %1917 = vmatprep.subr.mxu0 0.0
    %1918 = vmatpush2.xpose.msra.mxu0 0.0
    %1919 = vmatprep.subr.mxu0 0.0
    %1920 = vmatpush2.xpose.msra.mxu0 0.0
    %1921 = vmatprep.subr.mxu0 0.0
    %1922 = vmatpush2.xpose.msra.mxu0 0.0
    %1923 = vmatprep.subr.mxu0 0.0
    %1924 = vmatpush2.xpose.msra.mxu0 0.0
    %1925 = vmatprep.subr.mxu0 0.0
    %1926 = vmatpush2.xpose.msra.mxu0 0.0
    %1927 = vmatprep.subr.mxu0 0.0
    %1928 = vmatpush2.xpose.msra.mxu0 0.0
    %1929 = vmatprep.subr.mxu0 0.0
    %1930 = vmatpush2.xpose.msra.mxu0 0.0
    %1931 = vmatprep.subr.mxu0 0.0
    %1932 = vmatpush2.xpose.msra.mxu0 0.0
    %1933 = vmatprep.subr.mxu0 0.0
    %1934 = vmatpush2.xpose.msra.mxu0 0.0
    %1935 = vmatprep.subr.mxu0 0.0
    %1936 = vmatpush2.xpose.msra.mxu0 0.0
    %1937 = vmatprep.subr.mxu0 0.0
    %1938 = vmatpush2.xpose.msra.mxu0 0.0
    %1939 = vmatprep.subr.mxu0 0.0
    %1940 = vmatpush2.xpose.msra.mxu0 0.0
    %1941 = vmatprep.subr.mxu0 0.0
    %1942 = vmatpush2.xpose.msra.mxu0 0.0
    %1943 = vmatprep.mubr.f32.mxu0 0.0
    %1944 = vmatmul.mubr.f32.gmra.mxu0 %v1875
    %v1945 = vpop.f32.mrf.mxu0
    %v1946 = vadd.f32 0.0, %v1945
    %v1947 = vpop.f32.mrf.mxu0
    %1948 = vdwg.mxu0
    %v1949 = vmul.f32 %v1946, 0.35355338
    %v1950 = vadd.f32 %v1949, %v37
    %v1951 = vsel %vm217, %v1950, -inf
    %1952 = vmax.xlane.f32.xlu0 %v1951
    %v1953 = vpop.xlane.xlu0 %1952
    %v1954 = vsub.f32 %v1950, %v1953
    %v1955 = vmul.f32 %v1954, 1.442695
    %v1956 = vpow.pop %v1955
    %v1957 = vsel %vm217, %v1956, 0.0
    %1958 = vadd.xlane.f32.xlu0 %v1957
    %v1959 = vpop.xlane.xlu0 %1958
    %v1960 = vrcp.pop %v1959
    %v1961 = vmul.f32 %v1956, %v1960
    %1962 = vrot.lane.b32.xlu0 %v1368, 40
    %v1963 = vpop.permute.xlu0 %1962
    %v1966 = vsel %vm217, %v1961, 0
    %1968 = vmatprep.subr.mxu0 0.0
    %1969 = vmatpush1.msra.mxu0 0.0
    %1970 = vmatprep.subr.mxu0 0.0
    %1971 = vmatpush1.msra.mxu0 0.0
    %1972 = vmatprep.subr.mxu0 0.0
    %1973 = vmatpush1.msra.mxu0 0.0
    %1974 = vmatprep.subr.mxu0 0.0
    %1975 = vmatpush1.msra.mxu0 0.0
    %1976 = vmatprep.subr.mxu0 0.0
    %1977 = vmatpush1.msra.mxu0 0.0
    %1978 = vmatprep.subr.mxu0 0.0
    %1979 = vmatpush1.msra.mxu0 0.0
    %1980 = vmatprep.subr.mxu0 0.0
    %1981 = vmatpush1.msra.mxu0 0.0
    %1982 = vmatprep.subr.mxu0 0.0
    %1983 = vmatpush1.msra.mxu0 0.0
    %1984 = vmatprep.subr.mxu0 0.0
    %1985 = vmatpush1.msra.mxu0 0.0
    %1986 = vmatprep.subr.mxu0 0.0
    %1987 = vmatpush1.msra.mxu0 0.0
    %1988 = vmatprep.subr.mxu0 0.0
    %1989 = vmatpush1.msra.mxu0 0.0
    %1990 = vmatprep.subr.mxu0 0.0
    %1991 = vmatpush1.msra.mxu0 0.0
    %1992 = vmatprep.subr.mxu0 0.0
    %1993 = vmatpush1.msra.mxu0 0.0
    %1994 = vmatprep.subr.mxu0 0.0
    %1995 = vmatpush1.msra.mxu0 0.0
    %1996 = vmatprep.subr.mxu0 0.0
    %1997 = vmatpush1.msra.mxu0 0.0
    %1998 = vmatprep.subr.mxu0 0.0
    %1999 = vmatpush1.msra.mxu0 %v1963
    %2000 = vmatprep.subr.mxu0 0.0
    %2001 = vmatpush2.msra.mxu0 0.0
    %2002 = vmatprep.subr.mxu0 0.0
    %2003 = vmatpush2.msra.mxu0 0.0
    %2004 = vmatprep.subr.mxu0 0.0
    %2005 = vmatpush2.msra.mxu0 0.0
    %2006 = vmatprep.subr.mxu0 0.0
    %2007 = vmatpush2.msra.mxu0 0.0
    %2008 = vmatprep.subr.mxu0 0.0
    %2009 = vmatpush2.msra.mxu0 0.0
    %2010 = vmatprep.subr.mxu0 0.0
    %2011 = vmatpush2.msra.mxu0 0.0
    %2012 = vmatprep.subr.mxu0 0.0
    %2013 = vmatpush2.msra.mxu0 0.0
    %2014 = vmatprep.subr.mxu0 0.0
    %2015 = vmatpush2.msra.mxu0 0.0
    %2016 = vmatprep.subr.mxu0 0.0
    %2017 = vmatpush2.msra.mxu0 0.0
    %2018 = vmatprep.subr.mxu0 0.0
    %2019 = vmatpush2.msra.mxu0 0.0
    %2020 = vmatprep.subr.mxu0 0.0
    %2021 = vmatpush2.msra.mxu0 0.0
    %2022 = vmatprep.subr.mxu0 0.0
    %2023 = vmatpush2.msra.mxu0 0.0
    %2024 = vmatprep.subr.mxu0 0.0
    %2025 = vmatpush2.msra.mxu0 0.0
    %2026 = vmatprep.subr.mxu0 0.0
    %2027 = vmatpush2.msra.mxu0 0.0
    %2028 = vmatprep.subr.mxu0 0.0
    %2029 = vmatpush2.msra.mxu0 0.0
    %2030 = vmatprep.subr.mxu0 0.0
    %2031 = vmatpush2.msra.mxu0 0.0
    %2032 = vmatprep.mubr.f32.mxu0 0.0
    %2033 = vmatmul.mubr.f32.gmra.mxu0 %v1966
    %v2034 = vpop.f32.mrf.mxu0
    %v2035 = vadd.f32 0.0, %v2034
    %v2036 = vpop.f32.mrf.mxu0
    %2037 = vdwg.mxu0
    %2039 = vrot.lane.b32.xlu0 %v1701, 8
    %v2040 = vpop.permute.xlu0 %2039
    %2043 = vrot.lane.b32.xlu0 %v1868, 16
    %v2044 = vpop.permute.xlu0 %2043
    %2047 = vrot.lane.b32.xlu0 %v2035, 24
    %v2048 = vpop.permute.xlu0 %2047
    %v2050 = vsel %vm217, %v1534, %v2040
    %v2051 = vsel %vm50, %v2050, %v2044
    %v2052 = vsel %vm896, %v2051, %v2048
    %v2053 = vlaneseq
    %v2054 = vshrl.u32 %v2053, 7
    %v2055 = vsub.s32 0, %v2054
    %v2056 = vrot.slane %v1293, %v2055
    %v2058 = vsel %vm140, %v2052, 0
    %2060 = vmatprep.subr.mxu0 0.0
    %2061 = vmatpush1.msra.mxu0 0.0
    %2062 = vmatprep.subr.mxu0 0.0
    %2063 = vmatpush1.msra.mxu0 0.0
    %2064 = vmatprep.subr.mxu0 0.0
    %2065 = vmatpush1.msra.mxu0 0.0
    %2066 = vmatprep.subr.mxu0 0.0
    %2067 = vmatpush1.msra.mxu0 0.0
    %2068 = vmatprep.subr.mxu0 0.0
    %2069 = vmatpush1.msra.mxu0 0.0
    %2070 = vmatprep.subr.mxu0 0.0
    %2071 = vmatpush1.msra.mxu0 0.0
    %2072 = vmatprep.subr.mxu0 0.0
    %2073 = vmatpush1.msra.mxu0 0.0
    %2074 = vmatprep.subr.mxu0 0.0
    %2075 = vmatpush1.msra.mxu0 0.0
    %2076 = vmatprep.subr.mxu0 0.0
    %2077 = vmatpush1.msra.mxu0 0.0
    %2078 = vmatprep.subr.mxu0 0.0
    %2079 = vmatpush1.msra.mxu0 0.0
    %2080 = vmatprep.subr.mxu0 0.0
    %2081 = vmatpush1.msra.mxu0 0.0
    %2082 = vmatprep.subr.mxu0 0.0
    %2083 = vmatpush1.msra.mxu0 0.0
    %2084 = vmatprep.subr.mxu0 0.0
    %2085 = vmatpush1.msra.mxu0 %v1292
    %2086 = vmatprep.subr.mxu0 0.0
    %2087 = vmatpush1.msra.mxu0 %v1291
    %2088 = vmatprep.subr.mxu0 0.0
    %2089 = vmatpush1.msra.mxu0 %v1290
    %2090 = vmatprep.subr.mxu0 0.0
    %2091 = vmatpush1.msra.mxu0 %v1289
    %2092 = vmatprep.subr.mxu0 0.0
    %2093 = vmatpush2.msra.mxu0 0.0
    %2094 = vmatprep.subr.mxu0 0.0
    %2095 = vmatpush2.msra.mxu0 0.0
    %2096 = vmatprep.subr.mxu0 0.0
    %2097 = vmatpush2.msra.mxu0 0.0
    %2098 = vmatprep.subr.mxu0 0.0
    %2099 = vmatpush2.msra.mxu0 0.0
    %2100 = vmatprep.subr.mxu0 0.0
    %2101 = vmatpush2.msra.mxu0 0.0
    %2102 = vmatprep.subr.mxu0 0.0
    %2103 = vmatpush2.msra.mxu0 0.0
    %2104 = vmatprep.subr.mxu0 0.0
    %2105 = vmatpush2.msra.mxu0 0.0
    %2106 = vmatprep.subr.mxu0 0.0
    %2107 = vmatpush2.msra.mxu0 0.0
    %2108 = vmatprep.subr.mxu0 0.0
    %2109 = vmatpush2.msra.mxu0 0.0
    %2110 = vmatprep.subr.mxu0 0.0
    %2111 = vmatpush2.msra.mxu0 0.0
    %2112 = vmatprep.subr.mxu0 0.0
    %2113 = vmatpush2.msra.mxu0 0.0
    %2114 = vmatprep.subr.mxu0 0.0
    %2115 = vmatpush2.msra.mxu0 0.0
    %2116 = vmatprep.subr.mxu0 0.0
    %2117 = vmatpush2.msra.mxu0 0.0
    %2118 = vmatprep.subr.mxu0 0.0
    %2119 = vmatpush2.msra.mxu0 0.0
    %2120 = vmatprep.subr.mxu0 0.0
    %2121 = vmatpush2.msra.mxu0 0.0
    %2122 = vmatprep.subr.mxu0 0.0
    %2123 = vmatpush2.msra.mxu0 0.0
    %2124 = vmatprep.mubr.f32.mxu0 0.0
    %2125 = vmatmul.mubr.f32.gmra.mxu0 %v2058
    %v2126 = vpop.f32.mrf.mxu0
    %v2127 = vadd.f32 %v2056, %v2126
    %v2128 = vpop.f32.mrf.mxu0
    %2129 = vdwg.mxu0
    %v2130 = vadd.f32 %v1283, %v2127
    %v2131 = vld [vmem:[#allocation2 + $0x258] sm:$0x1]
    %v2132 = vld [vmem:[#allocation2 + $0x260] sm:$0x1]
    %v2133 = vsel %vm140, %v2130, 0.0
    %2134 = vadd.xlane.f32.xlu0 %v2133
    %v2135 = vpop.xlane.xlu0 %2134
    %v2136 = vmul.f32 %v2135, %v981
    %v2137 = vsub.f32 %v2130, %v2136
    %v2138 = vmul.f32 %v2137, %v2137
    %v2139 = vsel %vm140, %v2138, 0.0
    %2140 = vadd.xlane.f32.xlu0 %v2139
    %v2141 = vpop.xlane.xlu0 %2140
    %v2142 = vmul.f32 %v2141, %v981
    %v2143 = vadd.f32 %v2142, 1e-05
    %v2144 = vrsqrt.pop %v2143
    %v2145 = vmul.f32 %v2137, %v2144
    %v2146 = vlaneseq
    %v2147 = vshrl.u32 %v2146, 7
    %v2148 = vsub.s32 0, %v2147
    %v2149 = vrot.slane %v2131, %v2148
    %v2150 = vmul.f32 %v2145, %v2149
    %v2151 = vlaneseq
    %v2152 = vshrl.u32 %v2151, 7
    %v2153 = vsub.s32 0, %v2152
    %v2154 = vrot.slane %v2132, %v2153
    %v2155 = vadd.f32 %v2150, %v2154
    %v2156 = vld [vmem:[#allocation2 + $0x1a8] sm:$0xff]
    %v2157 = vld [vmem:[#allocation2 + $0x1b0] sm:$0xff]
    %v2158 = vld [vmem:[#allocation2 + $0x1b8] sm:$0xff]
    %v2159 = vld [vmem:[#allocation2 + $0x1c0] sm:$0xff]
    %v2160 = vld [vmem:[#allocation2 + $0x1c8] sm:$0x1]
    %v2161 = vlaneseq
    %v2162 = vshrl.u32 %v2161, 7
    %v2163 = vsub.s32 0, %v2162
    %v2164 = vrot.slane %v2160, %v2163
    %v2166 = vsel %vm140, %v2155, 0
    %2168 = vmatprep.subr.mxu0 0.0
    %2169 = vmatpush1.msra.mxu0 0.0
    %2170 = vmatprep.subr.mxu0 0.0
    %2171 = vmatpush1.msra.mxu0 0.0
    %2172 = vmatprep.subr.mxu0 0.0
    %2173 = vmatpush1.msra.mxu0 0.0
    %2174 = vmatprep.subr.mxu0 0.0
    %2175 = vmatpush1.msra.mxu0 0.0
    %2176 = vmatprep.subr.mxu0 0.0
    %2177 = vmatpush1.msra.mxu0 0.0
    %2178 = vmatprep.subr.mxu0 0.0
    %2179 = vmatpush1.msra.mxu0 0.0
    %2180 = vmatprep.subr.mxu0 0.0
    %2181 = vmatpush1.msra.mxu0 0.0
    %2182 = vmatprep.subr.mxu0 0.0
    %2183 = vmatpush1.msra.mxu0 0.0
    %2184 = vmatprep.subr.mxu0 0.0
    %2185 = vmatpush1.msra.mxu0 0.0
    %2186 = vmatprep.subr.mxu0 0.0
    %2187 = vmatpush1.msra.mxu0 0.0
    %2188 = vmatprep.subr.mxu0 0.0
    %2189 = vmatpush1.msra.mxu0 0.0
    %2190 = vmatprep.subr.mxu0 0.0
    %2191 = vmatpush1.msra.mxu0 0.0
    %2192 = vmatprep.subr.mxu0 0.0
    %2193 = vmatpush1.msra.mxu0 %v2159
    %2194 = vmatprep.subr.mxu0 0.0
    %2195 = vmatpush1.msra.mxu0 %v2158
    %2196 = vmatprep.subr.mxu0 0.0
    %2197 = vmatpush1.msra.mxu0 %v2157
    %2198 = vmatprep.subr.mxu0 0.0
    %2199 = vmatpush1.msra.mxu0 %v2156
    %2200 = vmatprep.subr.mxu0 0.0
    %2201 = vmatpush2.msra.mxu0 0.0
    %2202 = vmatprep.subr.mxu0 0.0
    %2203 = vmatpush2.msra.mxu0 0.0
    %2204 = vmatprep.subr.mxu0 0.0
    %2205 = vmatpush2.msra.mxu0 0.0
    %2206 = vmatprep.subr.mxu0 0.0
    %2207 = vmatpush2.msra.mxu0 0.0
    %2208 = vmatprep.subr.mxu0 0.0
    %2209 = vmatpush2.msra.mxu0 0.0
    %2210 = vmatprep.subr.mxu0 0.0
    %2211 = vmatpush2.msra.mxu0 0.0
    %2212 = vmatprep.subr.mxu0 0.0
    %2213 = vmatpush2.msra.mxu0 0.0
    %2214 = vmatprep.subr.mxu0 0.0
    %2215 = vmatpush2.msra.mxu0 0.0
    %2216 = vmatprep.subr.mxu0 0.0
    %2217 = vmatpush2.msra.mxu0 0.0
    %2218 = vmatprep.subr.mxu0 0.0
    %2219 = vmatpush2.msra.mxu0 0.0
    %2220 = vmatprep.subr.mxu0 0.0
    %2221 = vmatpush2.msra.mxu0 0.0
    %2222 = vmatprep.subr.mxu0 0.0
    %2223 = vmatpush2.msra.mxu0 0.0
    %2224 = vmatprep.subr.mxu0 0.0
    %2225 = vmatpush2.msra.mxu0 0.0
    %2226 = vmatprep.subr.mxu0 0.0
    %2227 = vmatpush2.msra.mxu0 0.0
    %2228 = vmatprep.subr.mxu0 0.0
    %2229 = vmatpush2.msra.mxu0 0.0
    %2230 = vmatprep.subr.mxu0 0.0
    %2231 = vmatpush2.msra.mxu0 0.0
    %2232 = vmatprep.mubr.f32.mxu0 0.0
    %2233 = vmatmul.mubr.f32.gmra.mxu0 %v2166
    %v2234 = vpop.f32.mrf.mxu0
    %v2235 = vadd.f32 %v2164, %v2234
    %v2236 = vpop.f32.mrf.mxu0
    %2237 = vdwg.mxu0
    %v2238 = vmax.f32 %v2235, 0.0
    %v2239 = vld [vmem:[#allocation2 + $0x1d0] sm:$0xff]
    %v2240 = vld [vmem:[#allocation2 + $0x1d8] sm:$0xff]
    %v2241 = vld [vmem:[#allocation2 + $0x1e0] sm:$0xff]
    %v2242 = vld [vmem:[#allocation2 + $0x1e8] sm:$0xff]
    %v2243 = vld [vmem:[#allocation2 + $0x1f0] sm:$0xff]
    %v2244 = vld [vmem:[#allocation2 + $0x1f8] sm:$0xff]
    %v2245 = vld [vmem:[#allocation2 + $0x200] sm:$0xff]
    %v2246 = vld [vmem:[#allocation2 + $0x208] sm:$0xff]
    %v2247 = vld [vmem:[#allocation2 + $0x210] sm:$0xff]
    %v2248 = vld [vmem:[#allocation2 + $0x218] sm:$0xff]
    %v2249 = vld [vmem:[#allocation2 + $0x220] sm:$0xff]
    %v2250 = vld [vmem:[#allocation2 + $0x228] sm:$0xff]
    %v2251 = vld [vmem:[#allocation2 + $0x230] sm:$0xff]
    %v2252 = vld [vmem:[#allocation2 + $0x238] sm:$0xff]
    %v2253 = vld [vmem:[#allocation2 + $0x240] sm:$0xff]
    %v2254 = vld [vmem:[#allocation2 + $0x248] sm:$0xff]
    %v2255 = vld [vmem:[#allocation2 + $0x250] sm:$0x1]
    %v2256 = vlaneseq
    %v2257 = vshrl.u32 %v2256, 7
    %v2258 = vsub.s32 0, %v2257
    %v2259 = vrot.slane %v2255, %v2258
    %2260 = vmatprep.subr.mxu0 0.0
    %2261 = vmatpush1.msra.mxu0 %v2254
    %2262 = vmatprep.subr.mxu0 0.0
    %2263 = vmatpush1.msra.mxu0 %v2253
    %2264 = vmatprep.subr.mxu0 0.0
    %2265 = vmatpush1.msra.mxu0 %v2252
    %2266 = vmatprep.subr.mxu0 0.0
    %2267 = vmatpush1.msra.mxu0 %v2251
    %2268 = vmatprep.subr.mxu0 0.0
    %2269 = vmatpush1.msra.mxu0 %v2250
    %2270 = vmatprep.subr.mxu0 0.0
    %2271 = vmatpush1.msra.mxu0 %v2249
    %2272 = vmatprep.subr.mxu0 0.0
    %2273 = vmatpush1.msra.mxu0 %v2248
    %2274 = vmatprep.subr.mxu0 0.0
    %2275 = vmatpush1.msra.mxu0 %v2247
    %2276 = vmatprep.subr.mxu0 0.0
    %2277 = vmatpush1.msra.mxu0 %v2246
    %2278 = vmatprep.subr.mxu0 0.0
    %2279 = vmatpush1.msra.mxu0 %v2245
    %2280 = vmatprep.subr.mxu0 0.0
    %2281 = vmatpush1.msra.mxu0 %v2244
    %2282 = vmatprep.subr.mxu0 0.0
    %2283 = vmatpush1.msra.mxu0 %v2243
    %2284 = vmatprep.subr.mxu0 0.0
    %2285 = vmatpush1.msra.mxu0 %v2242
    %2286 = vmatprep.subr.mxu0 0.0
    %2287 = vmatpush1.msra.mxu0 %v2241
    %2288 = vmatprep.subr.mxu0 0.0
    %2289 = vmatpush1.msra.mxu0 %v2240
    %2290 = vmatprep.subr.mxu0 0.0
    %2291 = vmatpush1.msra.mxu0 %v2239
    %2292 = vmatprep.subr.mxu0 0.0
    %2293 = vmatpush2.msra.mxu0 0.0
    %2294 = vmatprep.subr.mxu0 0.0
    %2295 = vmatpush2.msra.mxu0 0.0
    %2296 = vmatprep.subr.mxu0 0.0
    %2297 = vmatpush2.msra.mxu0 0.0
    %2298 = vmatprep.subr.mxu0 0.0
    %2299 = vmatpush2.msra.mxu0 0.0
    %2300 = vmatprep.subr.mxu0 0.0
    %2301 = vmatpush2.msra.mxu0 0.0
    %2302 = vmatprep.subr.mxu0 0.0
    %2303 = vmatpush2.msra.mxu0 0.0
    %2304 = vmatprep.subr.mxu0 0.0
    %2305 = vmatpush2.msra.mxu0 0.0
    %2306 = vmatprep.subr.mxu0 0.0
    %2307 = vmatpush2.msra.mxu0 0.0
    %2308 = vmatprep.subr.mxu0 0.0
    %2309 = vmatpush2.msra.mxu0 0.0
    %2310 = vmatprep.subr.mxu0 0.0
    %2311 = vmatpush2.msra.mxu0 0.0
    %2312 = vmatprep.subr.mxu0 0.0
    %2313 = vmatpush2.msra.mxu0 0.0
    %2314 = vmatprep.subr.mxu0 0.0
    %2315 = vmatpush2.msra.mxu0 0.0
    %2316 = vmatprep.subr.mxu0 0.0
    %2317 = vmatpush2.msra.mxu0 0.0
    %2318 = vmatprep.subr.mxu0 0.0
    %2319 = vmatpush2.msra.mxu0 0.0
    %2320 = vmatprep.subr.mxu0 0.0
    %2321 = vmatpush2.msra.mxu0 0.0
    %2322 = vmatprep.subr.mxu0 0.0
    %2323 = vmatpush2.msra.mxu0 0.0
    %2324 = vmatprep.mubr.f32.mxu0 0.0
    %2325 = vmatmul.mubr.f32.gmra.mxu0 %v2238
    %v2326 = vpop.f32.mrf.mxu0
    %v2327 = vadd.f32 %v2259, %v2326
    %v2328 = vpop.f32.mrf.mxu0
    %2329 = vdwg.mxu0
    %v2330 = vadd.f32 %v2155, %v2327
    %v2331 = vld [vmem:[#allocation2 + $0x268] sm:$0x1]
    %v2332 = vld [vmem:[#allocation2 + $0x270] sm:$0x1]
    %v2333 = vsel %vm140, %v2330, 0.0
    %2334 = vadd.xlane.f32.xlu0 %v2333
    %v2335 = vpop.xlane.xlu0 %2334
    %v2336 = vmul.f32 %v2335, %v981
    %v2337 = vsub.f32 %v2330, %v2336
    %v2338 = vmul.f32 %v2337, %v2337
    %v2339 = vsel %vm140, %v2338, 0.0
    %2340 = vadd.xlane.f32.xlu0 %v2339
    %v2341 = vpop.xlane.xlu0 %2340
    %v2342 = vmul.f32 %v2341, %v981
    %v2343 = vadd.f32 %v2342, 1e-05
    %v2344 = vrsqrt.pop %v2343
    %v2345 = vmul.f32 %v2337, %v2344
    %v2346 = vlaneseq
    %v2347 = vshrl.u32 %v2346, 7
    %v2348 = vsub.s32 0, %v2347
    %v2349 = vrot.slane %v2331, %v2348
    %v2350 = vmul.f32 %v2345, %v2349
    %v2351 = vlaneseq
    %v2352 = vshrl.u32 %v2351, 7
    %v2353 = vsub.s32 0, %v2352
    %v2354 = vrot.slane %v2332, %v2353
    %v2355 = vadd.f32 %v2350, %v2354
    %v2356 = vld [vmem:[%s3] sm:$0xff]
    %v2357 = vld [vmem:[#allocation2 + $0x278] sm:$0xff]
    %v2358 = vld [vmem:[#allocation2 + $0x280] sm:$0xff]
    %v2359 = vld [vmem:[#allocation2 + $0x288] sm:$0x1]
    %v2360 = vlaneseq
    %v2361 = vshrl.u32 %v2360, 7
    %v2362 = vsub.s32 0, %v2361
    %v2363 = vrot.slane %v2359, %v2362
    %v2365 = vsel %vm50, %v2356, 0
    %2367 = vmatprep.subr.mxu0 0.0
    %2368 = vmatpush1.msra.mxu0 0.0
    %2369 = vmatprep.subr.mxu0 0.0
    %2370 = vmatpush1.msra.mxu0 0.0
    %2371 = vmatprep.subr.mxu0 0.0
    %2372 = vmatpush1.msra.mxu0 0.0
    %2373 = vmatprep.subr.mxu0 0.0
    %2374 = vmatpush1.msra.mxu0 0.0
    %2375 = vmatprep.subr.mxu0 0.0
    %2376 = vmatpush1.msra.mxu0 0.0
    %2377 = vmatprep.subr.mxu0 0.0
    %2378 = vmatpush1.msra.mxu0 0.0
    %2379 = vmatprep.subr.mxu0 0.0
    %2380 = vmatpush1.msra.mxu0 0.0
    %2381 = vmatprep.subr.mxu0 0.0
    %2382 = vmatpush1.msra.mxu0 0.0
    %2383 = vmatprep.subr.mxu0 0.0
    %2384 = vmatpush1.msra.mxu0 0.0
    %2385 = vmatprep.subr.mxu0 0.0
    %2386 = vmatpush1.msra.mxu0 0.0
    %2387 = vmatprep.subr.mxu0 0.0
    %2388 = vmatpush1.msra.mxu0 0.0
    %2389 = vmatprep.subr.mxu0 0.0
    %2390 = vmatpush1.msra.mxu0 0.0
    %2391 = vmatprep.subr.mxu0 0.0
    %2392 = vmatpush1.msra.mxu0 0.0
    %2393 = vmatprep.subr.mxu0 0.0
    %2394 = vmatpush1.msra.mxu0 0.0
    %2395 = vmatprep.subr.mxu0 0.0
    %2396 = vmatpush1.msra.mxu0 %v2358
    %2397 = vmatprep.subr.mxu0 0.0
    %2398 = vmatpush1.msra.mxu0 %v2357
    %2399 = vmatprep.subr.mxu0 0.0
    %2400 = vmatpush2.msra.mxu0 0.0
    %2401 = vmatprep.subr.mxu0 0.0
    %2402 = vmatpush2.msra.mxu0 0.0
    %2403 = vmatprep.subr.mxu0 0.0
    %2404 = vmatpush2.msra.mxu0 0.0
    %2405 = vmatprep.subr.mxu0 0.0
    %2406 = vmatpush2.msra.mxu0 0.0
    %2407 = vmatprep.subr.mxu0 0.0
    %2408 = vmatpush2.msra.mxu0 0.0
    %2409 = vmatprep.subr.mxu0 0.0
    %2410 = vmatpush2.msra.mxu0 0.0
    %2411 = vmatprep.subr.mxu0 0.0
    %2412 = vmatpush2.msra.mxu0 0.0
    %2413 = vmatprep.subr.mxu0 0.0
    %2414 = vmatpush2.msra.mxu0 0.0
    %2415 = vmatprep.subr.mxu0 0.0
    %2416 = vmatpush2.msra.mxu0 0.0
    %2417 = vmatprep.subr.mxu0 0.0
    %2418 = vmatpush2.msra.mxu0 0.0
    %2419 = vmatprep.subr.mxu0 0.0
    %2420 = vmatpush2.msra.mxu0 0.0
    %2421 = vmatprep.subr.mxu0 0.0
    %2422 = vmatpush2.msra.mxu0 0.0
    %2423 = vmatprep.subr.mxu0 0.0
    %2424 = vmatpush2.msra.mxu0 0.0
    %2425 = vmatprep.subr.mxu0 0.0
    %2426 = vmatpush2.msra.mxu0 0.0
    %2427 = vmatprep.subr.mxu0 0.0
    %2428 = vmatpush2.msra.mxu0 0.0
    %2429 = vmatprep.subr.mxu0 0.0
    %2430 = vmatpush2.msra.mxu0 0.0
    %2431 = vmatprep.mubr.f32.mxu0 0.0
    %2432 = vmatmul.mubr.f32.gmra.mxu0 %v2365
    %v2433 = vpop.f32.mrf.mxu0
    %v2434 = vadd.f32 %v2363, %v2433
    %v2435 = vpop.f32.mrf.mxu0
    %2436 = vdwg.mxu0
    %v2437 = vld [vmem:[#allocation2 + $0x290] sm:$0xff]
    %v2438 = vadd.f32 %v2434, %v2437
    %v2439 = vld [vmem:[#allocation2 + $0x298] sm:$0xff]
    %v2440 = vld [vmem:[#allocation2 + $0x2a0] sm:$0xff]
    %v2441 = vld [vmem:[#allocation2 + $0x2a8] sm:$0xff]
    %v2442 = vld [vmem:[#allocation2 + $0x2b0] sm:$0xff]
    %v2443 = vld [vmem:[#allocation2 + $0x2b8] sm:$0x1]
    %v2444 = vld [vmem:[#allocation2 + $0x2c0] sm:$0xff]
    %v2445 = vld [vmem:[#allocation2 + $0x2c8] sm:$0xff]
    %v2446 = vld [vmem:[#allocation2 + $0x2d0] sm:$0xff]
    %v2447 = vld [vmem:[#allocation2 + $0x2d8] sm:$0xff]
    %v2448 = vld [vmem:[#allocation2 + $0x2e0] sm:$0x1]
    %v2449 = vlaneseq
    %v2450 = vshrl.u32 %v2449, 7
    %v2451 = vsub.s32 0, %v2450
    %v2452 = vrot.slane %v2443, %v2451
    %v2454 = vsel %vm140, %v2438, 0
    %2456 = vmatprep.subr.mxu0 0.0
    %2457 = vmatpush1.msra.mxu0 0.0
    %2458 = vmatprep.subr.mxu0 0.0
    %2459 = vmatpush1.msra.mxu0 0.0
    %2460 = vmatprep.subr.mxu0 0.0
    %2461 = vmatpush1.msra.mxu0 0.0
    %2462 = vmatprep.subr.mxu0 0.0
    %2463 = vmatpush1.msra.mxu0 0.0
    %2464 = vmatprep.subr.mxu0 0.0
    %2465 = vmatpush1.msra.mxu0 0.0
    %2466 = vmatprep.subr.mxu0 0.0
    %2467 = vmatpush1.msra.mxu0 0.0
    %2468 = vmatprep.subr.mxu0 0.0
    %2469 = vmatpush1.msra.mxu0 0.0
    %2470 = vmatprep.subr.mxu0 0.0
    %2471 = vmatpush1.msra.mxu0 0.0
    %2472 = vmatprep.subr.mxu0 0.0
    %2473 = vmatpush1.msra.mxu0 0.0
    %2474 = vmatprep.subr.mxu0 0.0
    %2475 = vmatpush1.msra.mxu0 0.0
    %2476 = vmatprep.subr.mxu0 0.0
    %2477 = vmatpush1.msra.mxu0 0.0
    %2478 = vmatprep.subr.mxu0 0.0
    %2479 = vmatpush1.msra.mxu0 0.0
    %2480 = vmatprep.subr.mxu0 0.0
    %2481 = vmatpush1.msra.mxu0 %v2442
    %2482 = vmatprep.subr.mxu0 0.0
    %2483 = vmatpush1.msra.mxu0 %v2441
    %2484 = vmatprep.subr.mxu0 0.0
    %2485 = vmatpush1.msra.mxu0 %v2440
    %2486 = vmatprep.subr.mxu0 0.0
    %2487 = vmatpush1.msra.mxu0 %v2439
    %2488 = vmatprep.subr.mxu0 0.0
    %2489 = vmatpush2.msra.mxu0 0.0
    %2490 = vmatprep.subr.mxu0 0.0
    %2491 = vmatpush2.msra.mxu0 0.0
    %2492 = vmatprep.subr.mxu0 0.0
    %2493 = vmatpush2.msra.mxu0 0.0
    %2494 = vmatprep.subr.mxu0 0.0
    %2495 = vmatpush2.msra.mxu0 0.0
    %2496 = vmatprep.subr.mxu0 0.0
    %2497 = vmatpush2.msra.mxu0 0.0
    %2498 = vmatprep.subr.mxu0 0.0
    %2499 = vmatpush2.msra.mxu0 0.0
    %2500 = vmatprep.subr.mxu0 0.0
    %2501 = vmatpush2.msra.mxu0 0.0
    %2502 = vmatprep.subr.mxu0 0.0
    %2503 = vmatpush2.msra.mxu0 0.0
    %2504 = vmatprep.subr.mxu0 0.0
    %2505 = vmatpush2.msra.mxu0 0.0
    %2506 = vmatprep.subr.mxu0 0.0
    %2507 = vmatpush2.msra.mxu0 0.0
    %2508 = vmatprep.subr.mxu0 0.0
    %2509 = vmatpush2.msra.mxu0 0.0
    %2510 = vmatprep.subr.mxu0 0.0
    %2511 = vmatpush2.msra.mxu0 0.0
    %2512 = vmatprep.subr.mxu0 0.0
    %2513 = vmatpush2.msra.mxu0 0.0
    %2514 = vmatprep.subr.mxu0 0.0
    %2515 = vmatpush2.msra.mxu0 0.0
    %2516 = vmatprep.subr.mxu0 0.0
    %2517 = vmatpush2.msra.mxu0 0.0
    %2518 = vmatprep.subr.mxu0 0.0
    %2519 = vmatpush2.msra.mxu0 0.0
    %2520 = vmatprep.mubr.f32.mxu0 0.0
    %2521 = vmatmul.mubr.f32.gmra.mxu0 %v2454
    %v2522 = vpop.f32.mrf.mxu0
    %v2523 = vadd.f32 %v2452, %v2522
    %v2524 = vpop.f32.mrf.mxu0
    %2525 = vdwg.mxu0
    %2527 = vrot.lane.b32.xlu0 %v2523, 96
    %v2528 = vpop.permute.xlu0 %2527
    %v2529 = vsel %vm217, %v2523, 0
    %v2531 = vsel %vm217, %v2528, 0
    %2533 = vmatprep.subr.mxu0 0.0
    %2534 = vmatpush1.xpose.msra.mxu0 0.0
    %2535 = vmatprep.subr.mxu0 0.0
    %2536 = vmatpush1.xpose.msra.mxu0 0.0
    %2537 = vmatprep.subr.mxu0 0.0
    %2538 = vmatpush1.xpose.msra.mxu0 0.0
    %2539 = vmatprep.subr.mxu0 0.0
    %2540 = vmatpush1.xpose.msra.mxu0 0.0
    %2541 = vmatprep.subr.mxu0 0.0
    %2542 = vmatpush1.xpose.msra.mxu0 0.0
    %2543 = vmatprep.subr.mxu0 0.0
    %2544 = vmatpush1.xpose.msra.mxu0 0.0
    %2545 = vmatprep.subr.mxu0 0.0
    %2546 = vmatpush1.xpose.msra.mxu0 0.0
    %2547 = vmatprep.subr.mxu0 0.0
    %2548 = vmatpush1.xpose.msra.mxu0 0.0
    %2549 = vmatprep.subr.mxu0 0.0
    %2550 = vmatpush1.xpose.msra.mxu0 0.0
    %2551 = vmatprep.subr.mxu0 0.0
    %2552 = vmatpush1.xpose.msra.mxu0 0.0
    %2553 = vmatprep.subr.mxu0 0.0
    %2554 = vmatpush1.xpose.msra.mxu0 0.0
    %2555 = vmatprep.subr.mxu0 0.0
    %2556 = vmatpush1.xpose.msra.mxu0 0.0
    %2557 = vmatprep.subr.mxu0 0.0
    %2558 = vmatpush1.xpose.msra.mxu0 0.0
    %2559 = vmatprep.subr.mxu0 0.0
    %2560 = vmatpush1.xpose.msra.mxu0 0.0
    %2561 = vmatprep.subr.mxu0 0.0
    %2562 = vmatpush1.xpose.msra.mxu0 0.0
    %2563 = vmatprep.subr.mxu0 0.0
    %2564 = vmatpush1.xpose.msra.mxu0 %v2531
    %2565 = vmatprep.subr.mxu0 0.0
    %2566 = vmatpush2.xpose.msra.mxu0 0.0
    %2567 = vmatprep.subr.mxu0 0.0
    %2568 = vmatpush2.xpose.msra.mxu0 0.0
    %2569 = vmatprep.subr.mxu0 0.0
    %2570 = vmatpush2.xpose.msra.mxu0 0.0
    %2571 = vmatprep.subr.mxu0 0.0
    %2572 = vmatpush2.xpose.msra.mxu0 0.0
    %2573 = vmatprep.subr.mxu0 0.0
    %2574 = vmatpush2.xpose.msra.mxu0 0.0
    %2575 = vmatprep.subr.mxu0 0.0
    %2576 = vmatpush2.xpose.msra.mxu0 0.0
    %2577 = vmatprep.subr.mxu0 0.0
    %2578 = vmatpush2.xpose.msra.mxu0 0.0
    %2579 = vmatprep.subr.mxu0 0.0
    %2580 = vmatpush2.xpose.msra.mxu0 0.0
    %2581 = vmatprep.subr.mxu0 0.0
    %2582 = vmatpush2.xpose.msra.mxu0 0.0
    %2583 = vmatprep.subr.mxu0 0.0
    %2584 = vmatpush2.xpose.msra.mxu0 0.0
    %2585 = vmatprep.subr.mxu0 0.0
    %2586 = vmatpush2.xpose.msra.mxu0 0.0
    %2587 = vmatprep.subr.mxu0 0.0
    %2588 = vmatpush2.xpose.msra.mxu0 0.0
    %2589 = vmatprep.subr.mxu0 0.0
    %2590 = vmatpush2.xpose.msra.mxu0 0.0
    %2591 = vmatprep.subr.mxu0 0.0
    %2592 = vmatpush2.xpose.msra.mxu0 0.0
    %2593 = vmatprep.subr.mxu0 0.0
    %2594 = vmatpush2.xpose.msra.mxu0 0.0
    %2595 = vmatprep.subr.mxu0 0.0
    %2596 = vmatpush2.xpose.msra.mxu0 0.0
    %2597 = vmatprep.mubr.f32.mxu0 0.0
    %2598 = vmatmul.mubr.f32.gmra.mxu0 %v2529
    %v2599 = vpop.f32.mrf.mxu0
    %v2600 = vadd.f32 0.0, %v2599
    %v2601 = vpop.f32.mrf.mxu0
    %2602 = vdwg.mxu0
    %v2603 = vmul.f32 %v2600, 0.35355338
    %v2604 = vadd.f32 %v2603, %v37
    %v2605 = vsel %vm217, %v2604, -inf
    %2606 = vmax.xlane.f32.xlu0 %v2605
    %v2607 = vpop.xlane.xlu0 %2606
    %v2608 = vsub.f32 %v2604, %v2607
    %v2609 = vmul.f32 %v2608, 1.442695
    %v2610 = vpow.pop %v2609
    %v2611 = vsel %vm217, %v2610, 0.0
    %2612 = vadd.xlane.f32.xlu0 %v2611
    %v2613 = vpop.xlane.xlu0 %2612
    %v2614 = vrcp.pop %v2613
    %v2615 = vmul.f32 %v2610, %v2614
    %2616 = vrot.lane.b32.xlu0 %v2523, 64
    %v2617 = vpop.permute.xlu0 %2616
    %v2620 = vsel %vm217, %v2615, 0
    %2622 = vmatprep.subr.mxu0 0.0
    %2623 = vmatpush1.msra.mxu0 0.0
    %2624 = vmatprep.subr.mxu0 0.0
    %2625 = vmatpush1.msra.mxu0 0.0
    %2626 = vmatprep.subr.mxu0 0.0
    %2627 = vmatpush1.msra.mxu0 0.0
    %2628 = vmatprep.subr.mxu0 0.0
    %2629 = vmatpush1.msra.mxu0 0.0
    %2630 = vmatprep.subr.mxu0 0.0
    %2631 = vmatpush1.msra.mxu0 0.0
    %2632 = vmatprep.subr.mxu0 0.0
    %2633 = vmatpush1.msra.mxu0 0.0
    %2634 = vmatprep.subr.mxu0 0.0
    %2635 = vmatpush1.msra.mxu0 0.0
    %2636 = vmatprep.subr.mxu0 0.0
    %2637 = vmatpush1.msra.mxu0 0.0
    %2638 = vmatprep.subr.mxu0 0.0
    %2639 = vmatpush1.msra.mxu0 0.0
    %2640 = vmatprep.subr.mxu0 0.0
    %2641 = vmatpush1.msra.mxu0 0.0
    %2642 = vmatprep.subr.mxu0 0.0
    %2643 = vmatpush1.msra.mxu0 0.0
    %2644 = vmatprep.subr.mxu0 0.0
    %2645 = vmatpush1.msra.mxu0 0.0
    %2646 = vmatprep.subr.mxu0 0.0
    %2647 = vmatpush1.msra.mxu0 0.0
    %2648 = vmatprep.subr.mxu0 0.0
    %2649 = vmatpush1.msra.mxu0 0.0
    %2650 = vmatprep.subr.mxu0 0.0
    %2651 = vmatpush1.msra.mxu0 0.0
    %2652 = vmatprep.subr.mxu0 0.0
    %2653 = vmatpush1.msra.mxu0 %v2617
    %2654 = vmatprep.subr.mxu0 0.0
    %2655 = vmatpush2.msra.mxu0 0.0
    %2656 = vmatprep.subr.mxu0 0.0
    %2657 = vmatpush2.msra.mxu0 0.0
    %2658 = vmatprep.subr.mxu0 0.0
    %2659 = vmatpush2.msra.mxu0 0.0
    %2660 = vmatprep.subr.mxu0 0.0
    %2661 = vmatpush2.msra.mxu0 0.0
    %2662 = vmatprep.subr.mxu0 0.0
    %2663 = vmatpush2.msra.mxu0 0.0
    %2664 = vmatprep.subr.mxu0 0.0
    %2665 = vmatpush2.msra.mxu0 0.0
    %2666 = vmatprep.subr.mxu0 0.0
    %2667 = vmatpush2.msra.mxu0 0.0
    %2668 = vmatprep.subr.mxu0 0.0
    %2669 = vmatpush2.msra.mxu0 0.0
    %2670 = vmatprep.subr.mxu0 0.0
    %2671 = vmatpush2.msra.mxu0 0.0
    %2672 = vmatprep.subr.mxu0 0.0
    %2673 = vmatpush2.msra.mxu0 0.0
    %2674 = vmatprep.subr.mxu0 0.0
    %2675 = vmatpush2.msra.mxu0 0.0
    %2676 = vmatprep.subr.mxu0 0.0
    %2677 = vmatpush2.msra.mxu0 0.0
    %2678 = vmatprep.subr.mxu0 0.0
    %2679 = vmatpush2.msra.mxu0 0.0
    %2680 = vmatprep.subr.mxu0 0.0
    %2681 = vmatpush2.msra.mxu0 0.0
    %2682 = vmatprep.subr.mxu0 0.0
    %2683 = vmatpush2.msra.mxu0 0.0
    %2684 = vmatprep.subr.mxu0 0.0
    %2685 = vmatpush2.msra.mxu0 0.0
    %2686 = vmatprep.mubr.f32.mxu0 0.0
    %2687 = vmatmul.mubr.f32.gmra.mxu0 %v2620
    %v2688 = vpop.f32.mrf.mxu0
    %v2689 = vadd.f32 0.0, %v2688
    %v2690 = vpop.f32.mrf.mxu0
    %2691 = vdwg.mxu0
    %2692 = vrot.lane.b32.xlu0 %v2523, 120
    %v2693 = vpop.permute.xlu0 %2692
    %2694 = vrot.lane.b32.xlu0 %v2523, 88
    %v2695 = vpop.permute.xlu0 %2694
    %v2696 = vsel %vm217, %v2693, 0
    %v2698 = vsel %vm217, %v2695, 0
    %2700 = vmatprep.subr.mxu0 0.0
    %2701 = vmatpush1.xpose.msra.mxu0 0.0
    %2702 = vmatprep.subr.mxu0 0.0
    %2703 = vmatpush1.xpose.msra.mxu0 0.0
    %2704 = vmatprep.subr.mxu0 0.0
    %2705 = vmatpush1.xpose.msra.mxu0 0.0
    %2706 = vmatprep.subr.mxu0 0.0
    %2707 = vmatpush1.xpose.msra.mxu0 0.0
    %2708 = vmatprep.subr.mxu0 0.0
    %2709 = vmatpush1.xpose.msra.mxu0 0.0
    %2710 = vmatprep.subr.mxu0 0.0
    %2711 = vmatpush1.xpose.msra.mxu0 0.0
    %2712 = vmatprep.subr.mxu0 0.0
    %2713 = vmatpush1.xpose.msra.mxu0 0.0
    %2714 = vmatprep.subr.mxu0 0.0
    %2715 = vmatpush1.xpose.msra.mxu0 0.0
    %2716 = vmatprep.subr.mxu0 0.0
    %2717 = vmatpush1.xpose.msra.mxu0 0.0
    %2718 = vmatprep.subr.mxu0 0.0
    %2719 = vmatpush1.xpose.msra.mxu0 0.0
    %2720 = vmatprep.subr.mxu0 0.0
    %2721 = vmatpush1.xpose.msra.mxu0 0.0
    %2722 = vmatprep.subr.mxu0 0.0
    %2723 = vmatpush1.xpose.msra.mxu0 0.0
    %2724 = vmatprep.subr.mxu0 0.0
    %2725 = vmatpush1.xpose.msra.mxu0 0.0
    %2726 = vmatprep.subr.mxu0 0.0
    %2727 = vmatpush1.xpose.msra.mxu0 0.0
    %2728 = vmatprep.subr.mxu0 0.0
    %2729 = vmatpush1.xpose.msra.mxu0 0.0
    %2730 = vmatprep.subr.mxu0 0.0
    %2731 = vmatpush1.xpose.msra.mxu0 %v2698
    %2732 = vmatprep.subr.mxu0 0.0
    %2733 = vmatpush2.xpose.msra.mxu0 0.0
    %2734 = vmatprep.subr.mxu0 0.0
    %2735 = vmatpush2.xpose.msra.mxu0 0.0
    %2736 = vmatprep.subr.mxu0 0.0
    %2737 = vmatpush2.xpose.msra.mxu0 0.0
    %2738 = vmatprep.subr.mxu0 0.0
    %2739 = vmatpush2.xpose.msra.mxu0 0.0
    %2740 = vmatprep.subr.mxu0 0.0
    %2741 = vmatpush2.xpose.msra.mxu0 0.0
    %2742 = vmatprep.subr.mxu0 0.0
    %2743 = vmatpush2.xpose.msra.mxu0 0.0
    %2744 = vmatprep.subr.mxu0 0.0
    %2745 = vmatpush2.xpose.msra.mxu0 0.0
    %2746 = vmatprep.subr.mxu0 0.0
    %2747 = vmatpush2.xpose.msra.mxu0 0.0
    %2748 = vmatprep.subr.mxu0 0.0
    %2749 = vmatpush2.xpose.msra.mxu0 0.0
    %2750 = vmatprep.subr.mxu0 0.0
    %2751 = vmatpush2.xpose.msra.mxu0 0.0
    %2752 = vmatprep.subr.mxu0 0.0
    %2753 = vmatpush2.xpose.msra.mxu0 0.0
    %2754 = vmatprep.subr.mxu0 0.0
    %2755 = vmatpush2.xpose.msra.mxu0 0.0
    %2756 = vmatprep.subr.mxu0 0.0
    %2757 = vmatpush2.xpose.msra.mxu0 0.0
    %2758 = vmatprep.subr.mxu0 0.0
    %2759 = vmatpush2.xpose.msra.mxu0 0.0
    %2760 = vmatprep.subr.mxu0 0.0
    %2761 = vmatpush2.xpose.msra.mxu0 0.0
    %2762 = vmatprep.subr.mxu0 0.0
    %2763 = vmatpush2.xpose.msra.mxu0 0.0
    %2764 = vmatprep.mubr.f32.mxu0 0.0
    %2765 = vmatmul.mubr.f32.gmra.mxu0 %v2696
    %v2766 = vpop.f32.mrf.mxu0
    %v2767 = vadd.f32 0.0, %v2766
    %v2768 = vpop.f32.mrf.mxu0
    %2769 = vdwg.mxu0
    %v2770 = vmul.f32 %v2767, 0.35355338
    %v2771 = vadd.f32 %v2770, %v37
    %v2772 = vsel %vm217, %v2771, -inf
    %2773 = vmax.xlane.f32.xlu0 %v2772
    %v2774 = vpop.xlane.xlu0 %2773
    %v2775 = vsub.f32 %v2771, %v2774
    %v2776 = vmul.f32 %v2775, 1.442695
    %v2777 = vpow.pop %v2776
    %v2778 = vsel %vm217, %v2777, 0.0
    %2779 = vadd.xlane.f32.xlu0 %v2778
    %v2780 = vpop.xlane.xlu0 %2779
    %v2781 = vrcp.pop %v2780
    %v2782 = vmul.f32 %v2777, %v2781
    %2783 = vrot.lane.b32.xlu0 %v2523, 56
    %v2784 = vpop.permute.xlu0 %2783
    %v2787 = vsel %vm217, %v2782, 0
    %2789 = vmatprep.subr.mxu0 0.0
    %2790 = vmatpush1.msra.mxu0 0.0
    %2791 = vmatprep.subr.mxu0 0.0
    %2792 = vmatpush1.msra.mxu0 0.0
    %2793 = vmatprep.subr.mxu0 0.0
    %2794 = vmatpush1.msra.mxu0 0.0
    %2795 = vmatprep.subr.mxu0 0.0
    %2796 = vmatpush1.msra.mxu0 0.0
    %2797 = vmatprep.subr.mxu0 0.0
    %2798 = vmatpush1.msra.mxu0 0.0
    %2799 = vmatprep.subr.mxu0 0.0
    %2800 = vmatpush1.msra.mxu0 0.0
    %2801 = vmatprep.subr.mxu0 0.0
    %2802 = vmatpush1.msra.mxu0 0.0
    %2803 = vmatprep.subr.mxu0 0.0
    %2804 = vmatpush1.msra.mxu0 0.0
    %2805 = vmatprep.subr.mxu0 0.0
    %2806 = vmatpush1.msra.mxu0 0.0
    %2807 = vmatprep.subr.mxu0 0.0
    %2808 = vmatpush1.msra.mxu0 0.0
    %2809 = vmatprep.subr.mxu0 0.0
    %2810 = vmatpush1.msra.mxu0 0.0
    %2811 = vmatprep.subr.mxu0 0.0
    %2812 = vmatpush1.msra.mxu0 0.0
    %2813 = vmatprep.subr.mxu0 0.0
    %2814 = vmatpush1.msra.mxu0 0.0
    %2815 = vmatprep.subr.mxu0 0.0
    %2816 = vmatpush1.msra.mxu0 0.0
    %2817 = vmatprep.subr.mxu0 0.0
    %2818 = vmatpush1.msra.mxu0 0.0
    %2819 = vmatprep.subr.mxu0 0.0
    %2820 = vmatpush1.msra.mxu0 %v2784
    %2821 = vmatprep.subr.mxu0 0.0
    %2822 = vmatpush2.msra.mxu0 0.0
    %2823 = vmatprep.subr.mxu0 0.0
    %2824 = vmatpush2.msra.mxu0 0.0
    %2825 = vmatprep.subr.mxu0 0.0
    %2826 = vmatpush2.msra.mxu0 0.0
    %2827 = vmatprep.subr.mxu0 0.0
    %2828 = vmatpush2.msra.mxu0 0.0
    %2829 = vmatprep.subr.mxu0 0.0
    %2830 = vmatpush2.msra.mxu0 0.0
    %2831 = vmatprep.subr.mxu0 0.0
    %2832 = vmatpush2.msra.mxu0 0.0
    %2833 = vmatprep.subr.mxu0 0.0
    %2834 = vmatpush2.msra.mxu0 0.0
    %2835 = vmatprep.subr.mxu0 0.0
    %2836 = vmatpush2.msra.mxu0 0.0
    %2837 = vmatprep.subr.mxu0 0.0
    %2838 = vmatpush2.msra.mxu0 0.0
    %2839 = vmatprep.subr.mxu0 0.0
    %2840 = vmatpush2.msra.mxu0 0.0
    %2841 = vmatprep.subr.mxu0 0.0
    %2842 = vmatpush2.msra.mxu0 0.0
    %2843 = vmatprep.subr.mxu0 0.0
    %2844 = vmatpush2.msra.mxu0 0.0
    %2845 = vmatprep.subr.mxu0 0.0
    %2846 = vmatpush2.msra.mxu0 0.0
    %2847 = vmatprep.subr.mxu0 0.0
    %2848 = vmatpush2.msra.mxu0 0.0
    %2849 = vmatprep.subr.mxu0 0.0
    %2850 = vmatpush2.msra.mxu0 0.0
    %2851 = vmatprep.subr.mxu0 0.0
    %2852 = vmatpush2.msra.mxu0 0.0
    %2853 = vmatprep.mubr.f32.mxu0 0.0
    %2854 = vmatmul.mubr.f32.gmra.mxu0 %v2787
    %v2855 = vpop.f32.mrf.mxu0
    %v2856 = vadd.f32 0.0, %v2855
    %v2857 = vpop.f32.mrf.mxu0
    %2858 = vdwg.mxu0
    %2859 = vrot.lane.b32.xlu0 %v2523, 112
    %v2860 = vpop.permute.xlu0 %2859
    %2861 = vrot.lane.b32.xlu0 %v2523, 80
    %v2862 = vpop.permute.xlu0 %2861
    %v2863 = vsel %vm217, %v2860, 0
    %v2865 = vsel %vm217, %v2862, 0
    %2867 = vmatprep.subr.mxu0 0.0
    %2868 = vmatpush1.xpose.msra.mxu0 0.0
    %2869 = vmatprep.subr.mxu0 0.0
    %2870 = vmatpush1.xpose.msra.mxu0 0.0
    %2871 = vmatprep.subr.mxu0 0.0
    %2872 = vmatpush1.xpose.msra.mxu0 0.0
    %2873 = vmatprep.subr.mxu0 0.0
    %2874 = vmatpush1.xpose.msra.mxu0 0.0
    %2875 = vmatprep.subr.mxu0 0.0
    %2876 = vmatpush1.xpose.msra.mxu0 0.0
    %2877 = vmatprep.subr.mxu0 0.0
    %2878 = vmatpush1.xpose.msra.mxu0 0.0
    %2879 = vmatprep.subr.mxu0 0.0
    %2880 = vmatpush1.xpose.msra.mxu0 0.0
    %2881 = vmatprep.subr.mxu0 0.0
    %2882 = vmatpush1.xpose.msra.mxu0 0.0
    %2883 = vmatprep.subr.mxu0 0.0
    %2884 = vmatpush1.xpose.msra.mxu0 0.0
    %2885 = vmatprep.subr.mxu0 0.0
    %2886 = vmatpush1.xpose.msra.mxu0 0.0
    %2887 = vmatprep.subr.mxu0 0.0
    %2888 = vmatpush1.xpose.msra.mxu0 0.0
    %2889 = vmatprep.subr.mxu0 0.0
    %2890 = vmatpush1.xpose.msra.mxu0 0.0
    %2891 = vmatprep.subr.mxu0 0.0
    %2892 = vmatpush1.xpose.msra.mxu0 0.0
    %2893 = vmatprep.subr.mxu0 0.0
    %2894 = vmatpush1.xpose.msra.mxu0 0.0
    %2895 = vmatprep.subr.mxu0 0.0
    %2896 = vmatpush1.xpose.msra.mxu0 0.0
    %2897 = vmatprep.subr.mxu0 0.0
    %2898 = vmatpush1.xpose.msra.mxu0 %v2865
    %2899 = vmatprep.subr.mxu0 0.0
    %2900 = vmatpush2.xpose.msra.mxu0 0.0
    %2901 = vmatprep.subr.mxu0 0.0
    %2902 = vmatpush2.xpose.msra.mxu0 0.0
    %2903 = vmatprep.subr.mxu0 0.0
    %2904 = vmatpush2.xpose.msra.mxu0 0.0
    %2905 = vmatprep.subr.mxu0 0.0
    %2906 = vmatpush2.xpose.msra.mxu0 0.0
    %2907 = vmatprep.subr.mxu0 0.0
    %2908 = vmatpush2.xpose.msra.mxu0 0.0
    %2909 = vmatprep.subr.mxu0 0.0
    %2910 = vmatpush2.xpose.msra.mxu0 0.0
    %2911 = vmatprep.subr.mxu0 0.0
    %2912 = vmatpush2.xpose.msra.mxu0 0.0
    %2913 = vmatprep.subr.mxu0 0.0
    %2914 = vmatpush2.xpose.msra.mxu0 0.0
    %2915 = vmatprep.subr.mxu0 0.0
    %2916 = vmatpush2.xpose.msra.mxu0 0.0
    %2917 = vmatprep.subr.mxu0 0.0
    %2918 = vmatpush2.xpose.msra.mxu0 0.0
    %2919 = vmatprep.subr.mxu0 0.0
    %2920 = vmatpush2.xpose.msra.mxu0 0.0
    %2921 = vmatprep.subr.mxu0 0.0
    %2922 = vmatpush2.xpose.msra.mxu0 0.0
    %2923 = vmatprep.subr.mxu0 0.0
    %2924 = vmatpush2.xpose.msra.mxu0 0.0
    %2925 = vmatprep.subr.mxu0 0.0
    %2926 = vmatpush2.xpose.msra.mxu0 0.0
    %2927 = vmatprep.subr.mxu0 0.0
    %2928 = vmatpush2.xpose.msra.mxu0 0.0
    %2929 = vmatprep.subr.mxu0 0.0
    %2930 = vmatpush2.xpose.msra.mxu0 0.0
    %2931 = vmatprep.mubr.f32.mxu0 0.0
    %2932 = vmatmul.mubr.f32.gmra.mxu0 %v2863
    %v2933 = vpop.f32.mrf.mxu0
    %v2934 = vadd.f32 0.0, %v2933
    %v2935 = vpop.f32.mrf.mxu0
    %2936 = vdwg.mxu0
    %v2937 = vmul.f32 %v2934, 0.35355338
    %v2938 = vadd.f32 %v2937, %v37
    %v2939 = vsel %vm217, %v2938, -inf
    %2940 = vmax.xlane.f32.xlu0 %v2939
    %v2941 = vpop.xlane.xlu0 %2940
    %v2942 = vsub.f32 %v2938, %v2941
    %v2943 = vmul.f32 %v2942, 1.442695
    %v2944 = vpow.pop %v2943
    %v2945 = vsel %vm217, %v2944, 0.0
    %2946 = vadd.xlane.f32.xlu0 %v2945
    %v2947 = vpop.xlane.xlu0 %2946
    %v2948 = vrcp.pop %v2947
    %v2949 = vmul.f32 %v2944, %v2948
    %2950 = vrot.lane.b32.xlu0 %v2523, 48
    %v2951 = vpop.permute.xlu0 %2950
    %v2954 = vsel %vm217, %v2949, 0
    %2956 = vmatprep.subr.mxu0 0.0
    %2957 = vmatpush1.msra.mxu0 0.0
    %2958 = vmatprep.subr.mxu0 0.0
    %2959 = vmatpush1.msra.mxu0 0.0
    %2960 = vmatprep.subr.mxu0 0.0
    %2961 = vmatpush1.msra.mxu0 0.0
    %2962 = vmatprep.subr.mxu0 0.0
    %2963 = vmatpush1.msra.mxu0 0.0
    %2964 = vmatprep.subr.mxu0 0.0
    %2965 = vmatpush1.msra.mxu0 0.0
    %2966 = vmatprep.subr.mxu0 0.0
    %2967 = vmatpush1.msra.mxu0 0.0
    %2968 = vmatprep.subr.mxu0 0.0
    %2969 = vmatpush1.msra.mxu0 0.0
    %2970 = vmatprep.subr.mxu0 0.0
    %2971 = vmatpush1.msra.mxu0 0.0
    %2972 = vmatprep.subr.mxu0 0.0
    %2973 = vmatpush1.msra.mxu0 0.0
    %2974 = vmatprep.subr.mxu0 0.0
    %2975 = vmatpush1.msra.mxu0 0.0
    %2976 = vmatprep.subr.mxu0 0.0
    %2977 = vmatpush1.msra.mxu0 0.0
    %2978 = vmatprep.subr.mxu0 0.0
    %2979 = vmatpush1.msra.mxu0 0.0
    %2980 = vmatprep.subr.mxu0 0.0
    %2981 = vmatpush1.msra.mxu0 0.0
    %2982 = vmatprep.subr.mxu0 0.0
    %2983 = vmatpush1.msra.mxu0 0.0
    %2984 = vmatprep.subr.mxu0 0.0
    %2985 = vmatpush1.msra.mxu0 0.0
    %2986 = vmatprep.subr.mxu0 0.0
    %2987 = vmatpush1.msra.mxu0 %v2951
    %2988 = vmatprep.subr.mxu0 0.0
    %2989 = vmatpush2.msra.mxu0 0.0
    %2990 = vmatprep.subr.mxu0 0.0
    %2991 = vmatpush2.msra.mxu0 0.0
    %2992 = vmatprep.subr.mxu0 0.0
    %2993 = vmatpush2.msra.mxu0 0.0
    %2994 = vmatprep.subr.mxu0 0.0
    %2995 = vmatpush2.msra.mxu0 0.0
    %2996 = vmatprep.subr.mxu0 0.0
    %2997 = vmatpush2.msra.mxu0 0.0
    %2998 = vmatprep.subr.mxu0 0.0
    %2999 = vmatpush2.msra.mxu0 0.0
    %3000 = vmatprep.subr.mxu0 0.0
    %3001 = vmatpush2.msra.mxu0 0.0
    %3002 = vmatprep.subr.mxu0 0.0
    %3003 = vmatpush2.msra.mxu0 0.0
    %3004 = vmatprep.subr.mxu0 0.0
    %3005 = vmatpush2.msra.mxu0 0.0
    %3006 = vmatprep.subr.mxu0 0.0
    %3007 = vmatpush2.msra.mxu0 0.0
    %3008 = vmatprep.subr.mxu0 0.0
    %3009 = vmatpush2.msra.mxu0 0.0
    %3010 = vmatprep.subr.mxu0 0.0
    %3011 = vmatpush2.msra.mxu0 0.0
    %3012 = vmatprep.subr.mxu0 0.0
    %3013 = vmatpush2.msra.mxu0 0.0
    %3014 = vmatprep.subr.mxu0 0.0
    %3015 = vmatpush2.msra.mxu0 0.0
    %3016 = vmatprep.subr.mxu0 0.0
    %3017 = vmatpush2.msra.mxu0 0.0
    %3018 = vmatprep.subr.mxu0 0.0
    %3019 = vmatpush2.msra.mxu0 0.0
    %3020 = vmatprep.mubr.f32.mxu0 0.0
    %3021 = vmatmul.mubr.f32.gmra.mxu0 %v2954
    %v3022 = vpop.f32.mrf.mxu0
    %v3023 = vadd.f32 0.0, %v3022
    %v3024 = vpop.f32.mrf.mxu0
    %3025 = vdwg.mxu0
    %3026 = vrot.lane.b32.xlu0 %v2523, 104
    %v3027 = vpop.permute.xlu0 %3026
    %3028 = vrot.lane.b32.xlu0 %v2523, 72
    %v3029 = vpop.permute.xlu0 %3028
    %v3030 = vsel %vm217, %v3027, 0
    %v3032 = vsel %vm217, %v3029, 0
    %3034 = vmatprep.subr.mxu0 0.0
    %3035 = vmatpush1.xpose.msra.mxu0 0.0
    %3036 = vmatprep.subr.mxu0 0.0
    %3037 = vmatpush1.xpose.msra.mxu0 0.0
    %3038 = vmatprep.subr.mxu0 0.0
    %3039 = vmatpush1.xpose.msra.mxu0 0.0
    %3040 = vmatprep.subr.mxu0 0.0
    %3041 = vmatpush1.xpose.msra.mxu0 0.0
    %3042 = vmatprep.subr.mxu0 0.0
    %3043 = vmatpush1.xpose.msra.mxu0 0.0
    %3044 = vmatprep.subr.mxu0 0.0
    %3045 = vmatpush1.xpose.msra.mxu0 0.0
    %3046 = vmatprep.subr.mxu0 0.0
    %3047 = vmatpush1.xpose.msra.mxu0 0.0
    %3048 = vmatprep.subr.mxu0 0.0
    %3049 = vmatpush1.xpose.msra.mxu0 0.0
    %3050 = vmatprep.subr.mxu0 0.0
    %3051 = vmatpush1.xpose.msra.mxu0 0.0
    %3052 = vmatprep.subr.mxu0 0.0
    %3053 = vmatpush1.xpose.msra.mxu0 0.0
    %3054 = vmatprep.subr.mxu0 0.0
    %3055 = vmatpush1.xpose.msra.mxu0 0.0
    %3056 = vmatprep.subr.mxu0 0.0
    %3057 = vmatpush1.xpose.msra.mxu0 0.0
    %3058 = vmatprep.subr.mxu0 0.0
    %3059 = vmatpush1.xpose.msra.mxu0 0.0
    %3060 = vmatprep.subr.mxu0 0.0
    %3061 = vmatpush1.xpose.msra.mxu0 0.0
    %3062 = vmatprep.subr.mxu0 0.0
    %3063 = vmatpush1.xpose.msra.mxu0 0.0
    %3064 = vmatprep.subr.mxu0 0.0
    %3065 = vmatpush1.xpose.msra.mxu0 %v3032
    %3066 = vmatprep.subr.mxu0 0.0
    %3067 = vmatpush2.xpose.msra.mxu0 0.0
    %3068 = vmatprep.subr.mxu0 0.0
    %3069 = vmatpush2.xpose.msra.mxu0 0.0
    %3070 = vmatprep.subr.mxu0 0.0
    %3071 = vmatpush2.xpose.msra.mxu0 0.0
    %3072 = vmatprep.subr.mxu0 0.0
    %3073 = vmatpush2.xpose.msra.mxu0 0.0
    %3074 = vmatprep.subr.mxu0 0.0
    %3075 = vmatpush2.xpose.msra.mxu0 0.0
    %3076 = vmatprep.subr.mxu0 0.0
    %3077 = vmatpush2.xpose.msra.mxu0 0.0
    %3078 = vmatprep.subr.mxu0 0.0
    %3079 = vmatpush2.xpose.msra.mxu0 0.0
    %3080 = vmatprep.subr.mxu0 0.0
    %3081 = vmatpush2.xpose.msra.mxu0 0.0
    %3082 = vmatprep.subr.mxu0 0.0
    %3083 = vmatpush2.xpose.msra.mxu0 0.0
    %3084 = vmatprep.subr.mxu0 0.0
    %3085 = vmatpush2.xpose.msra.mxu0 0.0
    %3086 = vmatprep.subr.mxu0 0.0
    %3087 = vmatpush2.xpose.msra.mxu0 0.0
    %3088 = vmatprep.subr.mxu0 0.0
    %3089 = vmatpush2.xpose.msra.mxu0 0.0
    %3090 = vmatprep.subr.mxu0 0.0
    %3091 = vmatpush2.xpose.msra.mxu0 0.0
    %3092 = vmatprep.subr.mxu0 0.0
    %3093 = vmatpush2.xpose.msra.mxu0 0.0
    %3094 = vmatprep.subr.mxu0 0.0
    %3095 = vmatpush2.xpose.msra.mxu0 0.0
    %3096 = vmatprep.subr.mxu0 0.0
    %3097 = vmatpush2.xpose.msra.mxu0 0.0
    %3098 = vmatprep.mubr.f32.mxu0 0.0
    %3099 = vmatmul.mubr.f32.gmra.mxu0 %v3030
    %v3100 = vpop.f32.mrf.mxu0
    %v3101 = vadd.f32 0.0, %v3100
    %v3102 = vpop.f32.mrf.mxu0
    %3103 = vdwg.mxu0
    %v3104 = vmul.f32 %v3101, 0.35355338
    %v3105 = vadd.f32 %v3104, %v37
    %v3106 = vsel %vm217, %v3105, -inf
    %3107 = vmax.xlane.f32.xlu0 %v3106
    %v3108 = vpop.xlane.xlu0 %3107
    %v3109 = vsub.f32 %v3105, %v3108
    %v3110 = vmul.f32 %v3109, 1.442695
    %v3111 = vpow.pop %v3110
    %v3112 = vsel %vm217, %v3111, 0.0
    %3113 = vadd.xlane.f32.xlu0 %v3112
    %v3114 = vpop.xlane.xlu0 %3113
    %v3115 = vrcp.pop %v3114
    %v3116 = vmul.f32 %v3111, %v3115
    %3117 = vrot.lane.b32.xlu0 %v2523, 40
    %v3118 = vpop.permute.xlu0 %3117
    %v3121 = vsel %vm217, %v3116, 0
    %3123 = vmatprep.subr.mxu0 0.0
    %3124 = vmatpush1.msra.mxu0 0.0
    %3125 = vmatprep.subr.mxu0 0.0
    %3126 = vmatpush1.msra.mxu0 0.0
    %3127 = vmatprep.subr.mxu0 0.0
    %3128 = vmatpush1.msra.mxu0 0.0
    %3129 = vmatprep.subr.mxu0 0.0
    %3130 = vmatpush1.msra.mxu0 0.0
    %3131 = vmatprep.subr.mxu0 0.0
    %3132 = vmatpush1.msra.mxu0 0.0
    %3133 = vmatprep.subr.mxu0 0.0
    %3134 = vmatpush1.msra.mxu0 0.0
    %3135 = vmatprep.subr.mxu0 0.0
    %3136 = vmatpush1.msra.mxu0 0.0
    %3137 = vmatprep.subr.mxu0 0.0
    %3138 = vmatpush1.msra.mxu0 0.0
    %3139 = vmatprep.subr.mxu0 0.0
    %3140 = vmatpush1.msra.mxu0 0.0
    %3141 = vmatprep.subr.mxu0 0.0
    %3142 = vmatpush1.msra.mxu0 0.0
    %3143 = vmatprep.subr.mxu0 0.0
    %3144 = vmatpush1.msra.mxu0 0.0
    %3145 = vmatprep.subr.mxu0 0.0
    %3146 = vmatpush1.msra.mxu0 0.0
    %3147 = vmatprep.subr.mxu0 0.0
    %3148 = vmatpush1.msra.mxu0 0.0
    %3149 = vmatprep.subr.mxu0 0.0
    %3150 = vmatpush1.msra.mxu0 0.0
    %3151 = vmatprep.subr.mxu0 0.0
    %3152 = vmatpush1.msra.mxu0 0.0
    %3153 = vmatprep.subr.mxu0 0.0
    %3154 = vmatpush1.msra.mxu0 %v3118
    %3155 = vmatprep.subr.mxu0 0.0
    %3156 = vmatpush2.msra.mxu0 0.0
    %3157 = vmatprep.subr.mxu0 0.0
    %3158 = vmatpush2.msra.mxu0 0.0
    %3159 = vmatprep.subr.mxu0 0.0
    %3160 = vmatpush2.msra.mxu0 0.0
    %3161 = vmatprep.subr.mxu0 0.0
    %3162 = vmatpush2.msra.mxu0 0.0
    %3163 = vmatprep.subr.mxu0 0.0
    %3164 = vmatpush2.msra.mxu0 0.0
    %3165 = vmatprep.subr.mxu0 0.0
    %3166 = vmatpush2.msra.mxu0 0.0
    %3167 = vmatprep.subr.mxu0 0.0
    %3168 = vmatpush2.msra.mxu0 0.0
    %3169 = vmatprep.subr.mxu0 0.0
    %3170 = vmatpush2.msra.mxu0 0.0
    %3171 = vmatprep.subr.mxu0 0.0
    %3172 = vmatpush2.msra.mxu0 0.0
    %3173 = vmatprep.subr.mxu0 0.0
    %3174 = vmatpush2.msra.mxu0 0.0
    %3175 = vmatprep.subr.mxu0 0.0
    %3176 = vmatpush2.msra.mxu0 0.0
    %3177 = vmatprep.subr.mxu0 0.0
    %3178 = vmatpush2.msra.mxu0 0.0
    %3179 = vmatprep.subr.mxu0 0.0
    %3180 = vmatpush2.msra.mxu0 0.0
    %3181 = vmatprep.subr.mxu0 0.0
    %3182 = vmatpush2.msra.mxu0 0.0
    %3183 = vmatprep.subr.mxu0 0.0
    %3184 = vmatpush2.msra.mxu0 0.0
    %3185 = vmatprep.subr.mxu0 0.0
    %3186 = vmatpush2.msra.mxu0 0.0
    %3187 = vmatprep.mubr.f32.mxu0 0.0
    %3188 = vmatmul.mubr.f32.gmra.mxu0 %v3121
    %v3189 = vpop.f32.mrf.mxu0
    %v3190 = vadd.f32 0.0, %v3189
    %v3191 = vpop.f32.mrf.mxu0
    %3192 = vdwg.mxu0
    %3194 = vrot.lane.b32.xlu0 %v2856, 8
    %v3195 = vpop.permute.xlu0 %3194
    %3198 = vrot.lane.b32.xlu0 %v3023, 16
    %v3199 = vpop.permute.xlu0 %3198
    %3202 = vrot.lane.b32.xlu0 %v3190, 24
    %v3203 = vpop.permute.xlu0 %3202
    %v3205 = vsel %vm217, %v2689, %v3195
    %v3206 = vsel %vm50, %v3205, %v3199
    %v3207 = vsel %vm896, %v3206, %v3203
    %v3208 = vlaneseq
    %v3209 = vshrl.u32 %v3208, 7
    %v3210 = vsub.s32 0, %v3209
    %v3211 = vrot.slane %v2448, %v3210
    %v3213 = vsel %vm140, %v3207, 0
    %3215 = vmatprep.subr.mxu0 0.0
    %3216 = vmatpush1.msra.mxu0 0.0
    %3217 = vmatprep.subr.mxu0 0.0
    %3218 = vmatpush1.msra.mxu0 0.0
    %3219 = vmatprep.subr.mxu0 0.0
    %3220 = vmatpush1.msra.mxu0 0.0
    %3221 = vmatprep.subr.mxu0 0.0
    %3222 = vmatpush1.msra.mxu0 0.0
    %3223 = vmatprep.subr.mxu0 0.0
    %3224 = vmatpush1.msra.mxu0 0.0
    %3225 = vmatprep.subr.mxu0 0.0
    %3226 = vmatpush1.msra.mxu0 0.0
    %3227 = vmatprep.subr.mxu0 0.0
    %3228 = vmatpush1.msra.mxu0 0.0
    %3229 = vmatprep.subr.mxu0 0.0
    %3230 = vmatpush1.msra.mxu0 0.0
    %3231 = vmatprep.subr.mxu0 0.0
    %3232 = vmatpush1.msra.mxu0 0.0
    %3233 = vmatprep.subr.mxu0 0.0
    %3234 = vmatpush1.msra.mxu0 0.0
    %3235 = vmatprep.subr.mxu0 0.0
    %3236 = vmatpush1.msra.mxu0 0.0
    %3237 = vmatprep.subr.mxu0 0.0
    %3238 = vmatpush1.msra.mxu0 0.0
    %3239 = vmatprep.subr.mxu0 0.0
    %3240 = vmatpush1.msra.mxu0 %v2447
    %3241 = vmatprep.subr.mxu0 0.0
    %3242 = vmatpush1.msra.mxu0 %v2446
    %3243 = vmatprep.subr.mxu0 0.0
    %3244 = vmatpush1.msra.mxu0 %v2445
    %3245 = vmatprep.subr.mxu0 0.0
    %3246 = vmatpush1.msra.mxu0 %v2444
    %3247 = vmatprep.subr.mxu0 0.0
    %3248 = vmatpush2.msra.mxu0 0.0
    %3249 = vmatprep.subr.mxu0 0.0
    %3250 = vmatpush2.msra.mxu0 0.0
    %3251 = vmatprep.subr.mxu0 0.0
    %3252 = vmatpush2.msra.mxu0 0.0
    %3253 = vmatprep.subr.mxu0 0.0
    %3254 = vmatpush2.msra.mxu0 0.0
    %3255 = vmatprep.subr.mxu0 0.0
    %3256 = vmatpush2.msra.mxu0 0.0
    %3257 = vmatprep.subr.mxu0 0.0
    %3258 = vmatpush2.msra.mxu0 0.0
    %3259 = vmatprep.subr.mxu0 0.0
    %3260 = vmatpush2.msra.mxu0 0.0
    %3261 = vmatprep.subr.mxu0 0.0
    %3262 = vmatpush2.msra.mxu0 0.0
    %3263 = vmatprep.subr.mxu0 0.0
    %3264 = vmatpush2.msra.mxu0 0.0
    %3265 = vmatprep.subr.mxu0 0.0
    %3266 = vmatpush2.msra.mxu0 0.0
    %3267 = vmatprep.subr.mxu0 0.0
    %3268 = vmatpush2.msra.mxu0 0.0
    %3269 = vmatprep.subr.mxu0 0.0
    %3270 = vmatpush2.msra.mxu0 0.0
    %3271 = vmatprep.subr.mxu0 0.0
    %3272 = vmatpush2.msra.mxu0 0.0
    %3273 = vmatprep.subr.mxu0 0.0
    %3274 = vmatpush2.msra.mxu0 0.0
    %3275 = vmatprep.subr.mxu0 0.0
    %3276 = vmatpush2.msra.mxu0 0.0
    %3277 = vmatprep.subr.mxu0 0.0
    %3278 = vmatpush2.msra.mxu0 0.0
    %3279 = vmatprep.mubr.f32.mxu0 0.0
    %3280 = vmatmul.mubr.f32.gmra.mxu0 %v3213
    %v3281 = vpop.f32.mrf.mxu0
    %v3282 = vadd.f32 %v3211, %v3281
    %v3283 = vpop.f32.mrf.mxu0
    %3284 = vdwg.mxu0
    %v3285 = vadd.f32 %v2438, %v3282
    %v3286 = vld [vmem:[#allocation2 + $0x398] sm:$0x1]
    %v3287 = vld [vmem:[#allocation2 + $0x3a0] sm:$0x1]
    %v3288 = vsel %vm140, %v3285, 0.0
    %3289 = vadd.xlane.f32.xlu0 %v3288
    %v3290 = vpop.xlane.xlu0 %3289
    %v3291 = vmul.f32 %v3290, %v981
    %v3292 = vsub.f32 %v3285, %v3291
    %v3293 = vmul.f32 %v3292, %v3292
    %v3294 = vsel %vm140, %v3293, 0.0
    %3295 = vadd.xlane.f32.xlu0 %v3294
    %v3296 = vpop.xlane.xlu0 %3295
    %v3297 = vmul.f32 %v3296, %v981
    %v3298 = vadd.f32 %v3297, 1e-05
    %v3299 = vrsqrt.pop %v3298
    %v3300 = vmul.f32 %v3292, %v3299
    %v3301 = vlaneseq
    %v3302 = vshrl.u32 %v3301, 7
    %v3303 = vsub.s32 0, %v3302
    %v3304 = vrot.slane %v3286, %v3303
    %v3305 = vmul.f32 %v3300, %v3304
    %v3306 = vlaneseq
    %v3307 = vshrl.u32 %v3306, 7
    %v3308 = vsub.s32 0, %v3307
    %v3309 = vrot.slane %v3287, %v3308
    %v3310 = vadd.f32 %v3305, %v3309
    %v3311 = vld [vmem:[#allocation2 + $0x2e8] sm:$0xff]
    %v3312 = vld [vmem:[#allocation2 + $0x2f0] sm:$0xff]
    %v3313 = vld [vmem:[#allocation2 + $0x2f8] sm:$0xff]
    %v3314 = vld [vmem:[#allocation2 + $0x300] sm:$0xff]
    %v3315 = vld [vmem:[#allocation2 + $0x308] sm:$0x1]
    %v3316 = vlaneseq
    %v3317 = vshrl.u32 %v3316, 7
    %v3318 = vsub.s32 0, %v3317
    %v3319 = vrot.slane %v3315, %v3318
    %v3321 = vsel %vm140, %v3310, 0
    %3323 = vmatprep.subr.mxu0 0.0
    %3324 = vmatpush1.msra.mxu0 0.0
    %3325 = vmatprep.subr.mxu0 0.0
    %3326 = vmatpush1.msra.mxu0 0.0
    %3327 = vmatprep.subr.mxu0 0.0
    %3328 = vmatpush1.msra.mxu0 0.0
    %3329 = vmatprep.subr.mxu0 0.0
    %3330 = vmatpush1.msra.mxu0 0.0
    %3331 = vmatprep.subr.mxu0 0.0
    %3332 = vmatpush1.msra.mxu0 0.0
    %3333 = vmatprep.subr.mxu0 0.0
    %3334 = vmatpush1.msra.mxu0 0.0
    %3335 = vmatprep.subr.mxu0 0.0
    %3336 = vmatpush1.msra.mxu0 0.0
    %3337 = vmatprep.subr.mxu0 0.0
    %3338 = vmatpush1.msra.mxu0 0.0
    %3339 = vmatprep.subr.mxu0 0.0
    %3340 = vmatpush1.msra.mxu0 0.0
    %3341 = vmatprep.subr.mxu0 0.0
    %3342 = vmatpush1.msra.mxu0 0.0
    %3343 = vmatprep.subr.mxu0 0.0
    %3344 = vmatpush1.msra.mxu0 0.0
    %3345 = vmatprep.subr.mxu0 0.0
    %3346 = vmatpush1.msra.mxu0 0.0
    %3347 = vmatprep.subr.mxu0 0.0
    %3348 = vmatpush1.msra.mxu0 %v3314
    %3349 = vmatprep.subr.mxu0 0.0
    %3350 = vmatpush1.msra.mxu0 %v3313
    %3351 = vmatprep.subr.mxu0 0.0
    %3352 = vmatpush1.msra.mxu0 %v3312
    %3353 = vmatprep.subr.mxu0 0.0
    %3354 = vmatpush1.msra.mxu0 %v3311
    %3355 = vmatprep.subr.mxu0 0.0
    %3356 = vmatpush2.msra.mxu0 0.0
    %3357 = vmatprep.subr.mxu0 0.0
    %3358 = vmatpush2.msra.mxu0 0.0
    %3359 = vmatprep.subr.mxu0 0.0
    %3360 = vmatpush2.msra.mxu0 0.0
    %3361 = vmatprep.subr.mxu0 0.0
    %3362 = vmatpush2.msra.mxu0 0.0
    %3363 = vmatprep.subr.mxu0 0.0
    %3364 = vmatpush2.msra.mxu0 0.0
    %3365 = vmatprep.subr.mxu0 0.0
    %3366 = vmatpush2.msra.mxu0 0.0
    %3367 = vmatprep.subr.mxu0 0.0
    %3368 = vmatpush2.msra.mxu0 0.0
    %3369 = vmatprep.subr.mxu0 0.0
    %3370 = vmatpush2.msra.mxu0 0.0
    %3371 = vmatprep.subr.mxu0 0.0
    %3372 = vmatpush2.msra.mxu0 0.0
    %3373 = vmatprep.subr.mxu0 0.0
    %3374 = vmatpush2.msra.mxu0 0.0
    %3375 = vmatprep.subr.mxu0 0.0
    %3376 = vmatpush2.msra.mxu0 0.0
    %3377 = vmatprep.subr.mxu0 0.0
    %3378 = vmatpush2.msra.mxu0 0.0
    %3379 = vmatprep.subr.mxu0 0.0
    %3380 = vmatpush2.msra.mxu0 0.0
    %3381 = vmatprep.subr.mxu0 0.0
    %3382 = vmatpush2.msra.mxu0 0.0
    %3383 = vmatprep.subr.mxu0 0.0
    %3384 = vmatpush2.msra.mxu0 0.0
    %3385 = vmatprep.subr.mxu0 0.0
    %3386 = vmatpush2.msra.mxu0 0.0
    %3387 = vmatprep.mubr.f32.mxu0 0.0
    %3388 = vmatmul.mubr.f32.gmra.mxu0 %v3321
    %v3389 = vpop.f32.mrf.mxu0
    %v3390 = vadd.f32 %v3319, %v3389
    %v3391 = vpop.f32.mrf.mxu0
    %3392 = vdwg.mxu0
    %v3393 = vmax.f32 %v3390, 0.0
    %v3394 = vld [vmem:[#allocation2 + $0x310] sm:$0xff]
    %v3395 = vld [vmem:[#allocation2 + $0x318] sm:$0xff]
    %v3396 = vld [vmem:[#allocation2 + $0x320] sm:$0xff]
    %v3397 = vld [vmem:[#allocation2 + $0x328] sm:$0xff]
    %v3398 = vld [vmem:[#allocation2 + $0x330] sm:$0xff]
    %v3399 = vld [vmem:[#allocation2 + $0x338] sm:$0xff]
    %v3400 = vld [vmem:[#allocation2 + $0x340] sm:$0xff]
    %v3401 = vld [vmem:[#allocation2 + $0x348] sm:$0xff]
    %v3402 = vld [vmem:[#allocation2 + $0x350] sm:$0xff]
    %v3403 = vld [vmem:[#allocation2 + $0x358] sm:$0xff]
    %v3404 = vld [vmem:[#allocation2 + $0x360] sm:$0xff]
    %v3405 = vld [vmem:[#allocation2 + $0x368] sm:$0xff]
    %v3406 = vld [vmem:[#allocation2 + $0x370] sm:$0xff]
    %v3407 = vld [vmem:[#allocation2 + $0x378] sm:$0xff]
    %v3408 = vld [vmem:[#allocation2 + $0x380] sm:$0xff]
    %v3409 = vld [vmem:[#allocation2 + $0x388] sm:$0xff]
    %v3410 = vld [vmem:[#allocation2 + $0x390] sm:$0x1]
    %v3411 = vlaneseq
    %v3412 = vshrl.u32 %v3411, 7
    %v3413 = vsub.s32 0, %v3412
    %v3414 = vrot.slane %v3410, %v3413
    %3415 = vmatprep.subr.mxu0 0.0
    %3416 = vmatpush1.msra.mxu0 %v3409
    %3417 = vmatprep.subr.mxu0 0.0
    %3418 = vmatpush1.msra.mxu0 %v3408
    %3419 = vmatprep.subr.mxu0 0.0
    %3420 = vmatpush1.msra.mxu0 %v3407
    %3421 = vmatprep.subr.mxu0 0.0
    %3422 = vmatpush1.msra.mxu0 %v3406
    %3423 = vmatprep.subr.mxu0 0.0
    %3424 = vmatpush1.msra.mxu0 %v3405
    %3425 = vmatprep.subr.mxu0 0.0
    %3426 = vmatpush1.msra.mxu0 %v3404
    %3427 = vmatprep.subr.mxu0 0.0
    %3428 = vmatpush1.msra.mxu0 %v3403
    %3429 = vmatprep.subr.mxu0 0.0
    %3430 = vmatpush1.msra.mxu0 %v3402
    %3431 = vmatprep.subr.mxu0 0.0
    %3432 = vmatpush1.msra.mxu0 %v3401
    %3433 = vmatprep.subr.mxu0 0.0
    %3434 = vmatpush1.msra.mxu0 %v3400
    %3435 = vmatprep.subr.mxu0 0.0
    %3436 = vmatpush1.msra.mxu0 %v3399
    %3437 = vmatprep.subr.mxu0 0.0
    %3438 = vmatpush1.msra.mxu0 %v3398
    %3439 = vmatprep.subr.mxu0 0.0
    %3440 = vmatpush1.msra.mxu0 %v3397
    %3441 = vmatprep.subr.mxu0 0.0
    %3442 = vmatpush1.msra.mxu0 %v3396
    %3443 = vmatprep.subr.mxu0 0.0
    %3444 = vmatpush1.msra.mxu0 %v3395
    %3445 = vmatprep.subr.mxu0 0.0
    %3446 = vmatpush1.msra.mxu0 %v3394
    %3447 = vmatprep.subr.mxu0 0.0
    %3448 = vmatpush2.msra.mxu0 0.0
    %3449 = vmatprep.subr.mxu0 0.0
    %3450 = vmatpush2.msra.mxu0 0.0
    %3451 = vmatprep.subr.mxu0 0.0
    %3452 = vmatpush2.msra.mxu0 0.0
    %3453 = vmatprep.subr.mxu0 0.0
    %3454 = vmatpush2.msra.mxu0 0.0
    %3455 = vmatprep.subr.mxu0 0.0
    %3456 = vmatpush2.msra.mxu0 0.0
    %3457 = vmatprep.subr.mxu0 0.0
    %3458 = vmatpush2.msra.mxu0 0.0
    %3459 = vmatprep.subr.mxu0 0.0
    %3460 = vmatpush2.msra.mxu0 0.0
    %3461 = vmatprep.subr.mxu0 0.0
    %3462 = vmatpush2.msra.mxu0 0.0
    %3463 = vmatprep.subr.mxu0 0.0
    %3464 = vmatpush2.msra.mxu0 0.0
    %3465 = vmatprep.subr.mxu0 0.0
    %3466 = vmatpush2.msra.mxu0 0.0
    %3467 = vmatprep.subr.mxu0 0.0
    %3468 = vmatpush2.msra.mxu0 0.0
    %3469 = vmatprep.subr.mxu0 0.0
    %3470 = vmatpush2.msra.mxu0 0.0
    %3471 = vmatprep.subr.mxu0 0.0
    %3472 = vmatpush2.msra.mxu0 0.0
    %3473 = vmatprep.subr.mxu0 0.0
    %3474 = vmatpush2.msra.mxu0 0.0
    %3475 = vmatprep.subr.mxu0 0.0
    %3476 = vmatpush2.msra.mxu0 0.0
    %3477 = vmatprep.subr.mxu0 0.0
    %3478 = vmatpush2.msra.mxu0 0.0
    %3479 = vmatprep.mubr.f32.mxu0 0.0
    %3480 = vmatmul.mubr.f32.gmra.mxu0 %v3393
    %v3481 = vpop.f32.mrf.mxu0
    %v3482 = vadd.f32 %v3414, %v3481
    %v3483 = vpop.f32.mrf.mxu0
    %3484 = vdwg.mxu0
    %v3485 = vadd.f32 %v3310, %v3482
    %v3486 = vld [vmem:[#allocation2 + $0x3a8] sm:$0x1]
    %v3487 = vld [vmem:[#allocation2 + $0x3b0] sm:$0x1]
    %v3488 = vsel %vm140, %v3485, 0.0
    %3489 = vadd.xlane.f32.xlu0 %v3488
    %v3490 = vpop.xlane.xlu0 %3489
    %v3491 = vmul.f32 %v3490, %v981
    %v3492 = vsub.f32 %v3485, %v3491
    %v3493 = vmul.f32 %v3492, %v3492
    %v3494 = vsel %vm140, %v3493, 0.0
    %3495 = vadd.xlane.f32.xlu0 %v3494
    %v3496 = vpop.xlane.xlu0 %3495
    %v3497 = vmul.f32 %v3496, %v981
    %v3498 = vadd.f32 %v3497, 1e-05
    %v3499 = vrsqrt.pop %v3498
    %v3500 = vmul.f32 %v3492, %v3499
    %v3501 = vlaneseq
    %v3502 = vshrl.u32 %v3501, 7
    %v3503 = vsub.s32 0, %v3502
    %v3504 = vrot.slane %v3486, %v3503
    %v3505 = vmul.f32 %v3500, %v3504
    %v3506 = vlaneseq
    %v3507 = vshrl.u32 %v3506, 7
    %v3508 = vsub.s32 0, %v3507
    %v3509 = vrot.slane %v3487, %v3508
    %v3510 = vadd.f32 %v3505, %v3509
    %v3511 = vld [vmem:[%s5] sm:$0xff]
    %v3512 = vld [vmem:[%s4] sm:$0xff]
    %v3513 = vld [vmem:[%s4 + $0x8] sm:$0xff]
    %v3514 = vld [vmem:[#allocation2 + $0x3b8] sm:$0xff]
    %v3515 = vld [vmem:[#allocation2 + $0x3c0] sm:$0x1]
    %v3516 = vlaneseq
    %v3517 = vshrl.u32 %v3516, 7
    %v3518 = vsub.s32 0, %v3517
    %v3519 = vrot.slane %v3515, %v3518
    %v3521 = vsel %vm217, %v3512, 0
    %v3524 = vsel %vm217, %v3513, 0
    %3526 = vmatprep.subr.mxu0 0.0
    %3527 = vmatpush1.msra.mxu0 0.0
    %3528 = vmatprep.subr.mxu0 0.0
    %3529 = vmatpush1.msra.mxu0 0.0
    %3530 = vmatprep.subr.mxu0 0.0
    %3531 = vmatpush1.msra.mxu0 0.0
    %3532 = vmatprep.subr.mxu0 0.0
    %3533 = vmatpush1.msra.mxu0 0.0
    %3534 = vmatprep.subr.mxu0 0.0
    %3535 = vmatpush1.msra.mxu0 0.0
    %3536 = vmatprep.subr.mxu0 0.0
    %3537 = vmatpush1.msra.mxu0 0.0
    %3538 = vmatprep.subr.mxu0 0.0
    %3539 = vmatpush1.msra.mxu0 0.0
    %3540 = vmatprep.subr.mxu0 0.0
    %3541 = vmatpush1.msra.mxu0 0.0
    %3542 = vmatprep.subr.mxu0 0.0
    %3543 = vmatpush1.msra.mxu0 0.0
    %3544 = vmatprep.subr.mxu0 0.0
    %3545 = vmatpush1.msra.mxu0 0.0
    %3546 = vmatprep.subr.mxu0 0.0
    %3547 = vmatpush1.msra.mxu0 0.0
    %3548 = vmatprep.subr.mxu0 0.0
    %3549 = vmatpush1.msra.mxu0 0.0
    %3550 = vmatprep.subr.mxu0 0.0
    %3551 = vmatpush1.msra.mxu0 0.0
    %3552 = vmatprep.subr.mxu0 0.0
    %3553 = vmatpush1.msra.mxu0 0.0
    %3554 = vmatprep.subr.mxu0 0.0
    %3555 = vmatpush1.msra.mxu0 0.0
    %3556 = vmatprep.subr.mxu0 0.0
    %3557 = vmatpush1.msra.mxu0 %v3514
    %3558 = vmatprep.subr.mxu0 0.0
    %3559 = vmatpush2.msra.mxu0 0.0
    %3560 = vmatprep.subr.mxu0 0.0
    %3561 = vmatpush2.msra.mxu0 0.0
    %3562 = vmatprep.subr.mxu0 0.0
    %3563 = vmatpush2.msra.mxu0 0.0
    %3564 = vmatprep.subr.mxu0 0.0
    %3565 = vmatpush2.msra.mxu0 0.0
    %3566 = vmatprep.subr.mxu0 0.0
    %3567 = vmatpush2.msra.mxu0 0.0
    %3568 = vmatprep.subr.mxu0 0.0
    %3569 = vmatpush2.msra.mxu0 0.0
    %3570 = vmatprep.subr.mxu0 0.0
    %3571 = vmatpush2.msra.mxu0 0.0
    %3572 = vmatprep.subr.mxu0 0.0
    %3573 = vmatpush2.msra.mxu0 0.0
    %3574 = vmatprep.subr.mxu0 0.0
    %3575 = vmatpush2.msra.mxu0 0.0
    %3576 = vmatprep.subr.mxu0 0.0
    %3577 = vmatpush2.msra.mxu0 0.0
    %3578 = vmatprep.subr.mxu0 0.0
    %3579 = vmatpush2.msra.mxu0 0.0
    %3580 = vmatprep.subr.mxu0 0.0
    %3581 = vmatpush2.msra.mxu0 0.0
    %3582 = vmatprep.subr.mxu0 0.0
    %3583 = vmatpush2.msra.mxu0 0.0
    %3584 = vmatprep.subr.mxu0 0.0
    %3585 = vmatpush2.msra.mxu0 0.0
    %3586 = vmatprep.subr.mxu0 0.0
    %3587 = vmatpush2.msra.mxu0 0.0
    %3588 = vmatprep.subr.mxu0 0.0
    %3589 = vmatpush2.msra.mxu0 0.0
    %3590 = vmatprep.mubr.f32.mxu0 0.0
    %3591 = vmatmul.mubr.f32.gmra.mxu0 %v3521
    %v3592 = vpop.f32.mrf.mxu0
    %v3593 = vadd.f32 %v3519, %v3592
    %v3594 = vpop.f32.mrf.mxu0
    %3595 = vmatprep.mubr.f32.mxu0 0.0
    %3596 = vmatmul.mubr.f32.gmra.mxu0 %v3524
    %v3597 = vpop.f32.mrf.mxu0
    %v3598 = vadd.f32 %v3519, %v3597
    %v3599 = vpop.f32.mrf.mxu0
    %3600 = vdwg.mxu0
    %v3601 = vld [vmem:[#allocation2 + $0x3c8] sm:$0xff]
    %v3602 = vld [vmem:[#allocation2 + $0x3d0] sm:$0xff]
    %v3603 = vadd.f32 %v3593, %v3601
    %v3604 = vadd.f32 %v3598, %v3602
    %v3605 = vld [vmem:[#allocation2 + $0x3d8] sm:$0xff]
    %v3606 = vld [vmem:[#allocation2 + $0x3e0] sm:$0xff]
    %v3607 = vld [vmem:[#allocation2 + $0x3e8] sm:$0xff]
    %v3608 = vld [vmem:[#allocation2 + $0x3f0] sm:$0xff]
    %v3609 = vld [vmem:[#allocation2 + $0x3f8] sm:$0x1]
    %v3610 = vld [vmem:[#allocation2 + $0x400] sm:$0xff]
    %v3611 = vld [vmem:[#allocation2 + $0x408] sm:$0xff]
    %v3612 = vld [vmem:[#allocation2 + $0x410] sm:$0xff]
    %v3613 = vld [vmem:[#allocation2 + $0x418] sm:$0xff]
    %v3614 = vld [vmem:[#allocation2 + $0x420] sm:$0x1]
    %v3615 = vlaneseq
    %v3616 = vshrl.u32 %v3615, 7
    %v3617 = vsub.s32 0, %v3616
    %v3618 = vrot.slane %v3609, %v3617
    %v3620 = vsel %vm140, %v3603, 0
    %v3623 = vsel %vm140, %v3604, 0
    %3625 = vmatprep.subr.mxu0 0.0
    %3626 = vmatpush1.msra.mxu0 0.0
    %3627 = vmatprep.subr.mxu0 0.0
    %3628 = vmatpush1.msra.mxu0 0.0
    %3629 = vmatprep.subr.mxu0 0.0
    %3630 = vmatpush1.msra.mxu0 0.0
    %3631 = vmatprep.subr.mxu0 0.0
    %3632 = vmatpush1.msra.mxu0 0.0
    %3633 = vmatprep.subr.mxu0 0.0
    %3634 = vmatpush1.msra.mxu0 0.0
    %3635 = vmatprep.subr.mxu0 0.0
    %3636 = vmatpush1.msra.mxu0 0.0
    %3637 = vmatprep.subr.mxu0 0.0
    %3638 = vmatpush1.msra.mxu0 0.0
    %3639 = vmatprep.subr.mxu0 0.0
    %3640 = vmatpush1.msra.mxu0 0.0
    %3641 = vmatprep.subr.mxu0 0.0
    %3642 = vmatpush1.msra.mxu0 0.0
    %3643 = vmatprep.subr.mxu0 0.0
    %3644 = vmatpush1.msra.mxu0 0.0
    %3645 = vmatprep.subr.mxu0 0.0
    %3646 = vmatpush1.msra.mxu0 0.0
    %3647 = vmatprep.subr.mxu0 0.0
    %3648 = vmatpush1.msra.mxu0 0.0
    %3649 = vmatprep.subr.mxu0 0.0
    %3650 = vmatpush1.msra.mxu0 %v3608
    %3651 = vmatprep.subr.mxu0 0.0
    %3652 = vmatpush1.msra.mxu0 %v3607
    %3653 = vmatprep.subr.mxu0 0.0
    %3654 = vmatpush1.msra.mxu0 %v3606
    %3655 = vmatprep.subr.mxu0 0.0
    %3656 = vmatpush1.msra.mxu0 %v3605
    %3657 = vmatprep.subr.mxu0 0.0
    %3658 = vmatpush2.msra.mxu0 0.0
    %3659 = vmatprep.subr.mxu0 0.0
    %3660 = vmatpush2.msra.mxu0 0.0
    %3661 = vmatprep.subr.mxu0 0.0
    %3662 = vmatpush2.msra.mxu0 0.0
    %3663 = vmatprep.subr.mxu0 0.0
    %3664 = vmatpush2.msra.mxu0 0.0
    %3665 = vmatprep.subr.mxu0 0.0
    %3666 = vmatpush2.msra.mxu0 0.0
    %3667 = vmatprep.subr.mxu0 0.0
    %3668 = vmatpush2.msra.mxu0 0.0
    %3669 = vmatprep.subr.mxu0 0.0
    %3670 = vmatpush2.msra.mxu0 0.0
    %3671 = vmatprep.subr.mxu0 0.0
    %3672 = vmatpush2.msra.mxu0 0.0
    %3673 = vmatprep.subr.mxu0 0.0
    %3674 = vmatpush2.msra.mxu0 0.0
    %3675 = vmatprep.subr.mxu0 0.0
    %3676 = vmatpush2.msra.mxu0 0.0
    %3677 = vmatprep.subr.mxu0 0.0
    %3678 = vmatpush2.msra.mxu0 0.0
    %3679 = vmatprep.subr.mxu0 0.0
    %3680 = vmatpush2.msra.mxu0 0.0
    %3681 = vmatprep.subr.mxu0 0.0
    %3682 = vmatpush2.msra.mxu0 0.0
    %3683 = vmatprep.subr.mxu0 0.0
    %3684 = vmatpush2.msra.mxu0 0.0
    %3685 = vmatprep.subr.mxu0 0.0
    %3686 = vmatpush2.msra.mxu0 0.0
    %3687 = vmatprep.subr.mxu0 0.0
    %3688 = vmatpush2.msra.mxu0 0.0
    %3689 = vmatprep.mubr.f32.mxu0 0.0
    %3690 = vmatmul.mubr.f32.gmra.mxu0 %v3620
    %v3691 = vpop.f32.mrf.mxu0
    %v3692 = vadd.f32 %v3618, %v3691
    %v3693 = vpop.f32.mrf.mxu0
    %3694 = vmatprep.mubr.f32.mxu0 0.0
    %3695 = vmatmul.mubr.f32.gmra.mxu0 %v3623
    %v3696 = vpop.f32.mrf.mxu0
    %v3697 = vadd.f32 %v3618, %v3696
    %v3698 = vpop.f32.mrf.mxu0
    %3699 = vdwg.mxu0
    %3702 = vrot.lane.b32.xlu0 %v3692, 96
    %v3703 = vpop.permute.xlu0 %3702
    %3704 = vrot.lane.b32.xlu0 %v3697, 96
    %v3705 = vpop.permute.xlu0 %3704
    %v3706 = vsel %vm217, %v3692, 0
    %v3708 = vsel %vm217, %v3697, 0
    %v3710 = vsel %vm217, %v3703, 0
    %v3712 = vsel %vm217, %v3705, 0
    %3714 = vmatprep.subr.mxu0 0.0
    %3715 = vmatpush1.xpose.msra.mxu0 0.0
    %3716 = vmatprep.subr.mxu0 0.0
    %3717 = vmatpush1.xpose.msra.mxu0 0.0
    %3718 = vmatprep.subr.mxu0 0.0
    %3719 = vmatpush1.xpose.msra.mxu0 0.0
    %3720 = vmatprep.subr.mxu0 0.0
    %3721 = vmatpush1.xpose.msra.mxu0 0.0
    %3722 = vmatprep.subr.mxu0 0.0
    %3723 = vmatpush1.xpose.msra.mxu0 0.0
    %3724 = vmatprep.subr.mxu0 0.0
    %3725 = vmatpush1.xpose.msra.mxu0 0.0
    %3726 = vmatprep.subr.mxu0 0.0
    %3727 = vmatpush1.xpose.msra.mxu0 0.0
    %3728 = vmatprep.subr.mxu0 0.0
    %3729 = vmatpush1.xpose.msra.mxu0 0.0
    %3730 = vmatprep.subr.mxu0 0.0
    %3731 = vmatpush1.xpose.msra.mxu0 0.0
    %3732 = vmatprep.subr.mxu0 0.0
    %3733 = vmatpush1.xpose.msra.mxu0 0.0
    %3734 = vmatprep.subr.mxu0 0.0
    %3735 = vmatpush1.xpose.msra.mxu0 0.0
    %3736 = vmatprep.subr.mxu0 0.0
    %3737 = vmatpush1.xpose.msra.mxu0 0.0
    %3738 = vmatprep.subr.mxu0 0.0
    %3739 = vmatpush1.xpose.msra.mxu0 0.0
    %3740 = vmatprep.subr.mxu0 0.0
    %3741 = vmatpush1.xpose.msra.mxu0 0.0
    %3742 = vmatprep.subr.mxu0 0.0
    %3743 = vmatpush1.xpose.msra.mxu0 %v3712
    %3744 = vmatprep.subr.mxu0 0.0
    %3745 = vmatpush1.xpose.msra.mxu0 %v3710
    %3746 = vmatprep.subr.mxu0 0.0
    %3747 = vmatpush2.xpose.msra.mxu0 0.0
    %3748 = vmatprep.subr.mxu0 0.0
    %3749 = vmatpush2.xpose.msra.mxu0 0.0
    %3750 = vmatprep.subr.mxu0 0.0
    %3751 = vmatpush2.xpose.msra.mxu0 0.0
    %3752 = vmatprep.subr.mxu0 0.0
    %3753 = vmatpush2.xpose.msra.mxu0 0.0
    %3754 = vmatprep.subr.mxu0 0.0
    %3755 = vmatpush2.xpose.msra.mxu0 0.0
    %3756 = vmatprep.subr.mxu0 0.0
    %3757 = vmatpush2.xpose.msra.mxu0 0.0
    %3758 = vmatprep.subr.mxu0 0.0
    %3759 = vmatpush2.xpose.msra.mxu0 0.0
    %3760 = vmatprep.subr.mxu0 0.0
    %3761 = vmatpush2.xpose.msra.mxu0 0.0
    %3762 = vmatprep.subr.mxu0 0.0
    %3763 = vmatpush2.xpose.msra.mxu0 0.0
    %3764 = vmatprep.subr.mxu0 0.0
    %3765 = vmatpush2.xpose.msra.mxu0 0.0
    %3766 = vmatprep.subr.mxu0 0.0
    %3767 = vmatpush2.xpose.msra.mxu0 0.0
    %3768 = vmatprep.subr.mxu0 0.0
    %3769 = vmatpush2.xpose.msra.mxu0 0.0
    %3770 = vmatprep.subr.mxu0 0.0
    %3771 = vmatpush2.xpose.msra.mxu0 0.0
    %3772 = vmatprep.subr.mxu0 0.0
    %3773 = vmatpush2.xpose.msra.mxu0 0.0
    %3774 = vmatprep.subr.mxu0 0.0
    %3775 = vmatpush2.xpose.msra.mxu0 0.0
    %3776 = vmatprep.subr.mxu0 0.0
    %3777 = vmatpush2.xpose.msra.mxu0 0.0
    %3778 = vmatprep.mubr.f32.mxu0 0.0
    %3779 = vmatmul.mubr.f32.gmra.mxu0 %v3706
    %v3780 = vpop.f32.mrf.mxu0
    %v3781 = vadd.f32 0.0, %v3780
    %v3782 = vpop.f32.mrf.mxu0
    %3783 = vmatprep.mubr.f32.mxu0 0.0
    %3784 = vmatmul.mubr.f32.gmra.mxu0 %v3708
    %v3785 = vpop.f32.mrf.mxu0
    %v3786 = vadd.f32 0.0, %v3785
    %v3787 = vpop.f32.mrf.mxu0
    %3788 = vdwg.mxu0
    %v3789 = vmul.f32 %v3781, 0.35355338
    %v3790 = vmul.f32 %v3786, 0.35355338
    %v3791 = vadd.f32 %v3789, %v38
    %v3792 = vadd.f32 %v3790, %v39
    %v3793 = vsel %vm50, %v3791, -inf
    %3794 = vmax.xlane.f32.xlu0 %v3793
    %v3795 = vpop.xlane.xlu0 %3794
    %v3796 = vsel %vm50, %v3792, -inf
    %3797 = vmax.xlane.f32.xlu0 %v3796
    %v3798 = vpop.xlane.xlu0 %3797
    %v3799 = vsub.f32 %v3791, %v3795
    %v3800 = vsub.f32 %v3792, %v3798
    %v3801 = vmul.f32 %v3799, 1.442695
    %v3802 = vpow.pop %v3801
    %v3803 = vmul.f32 %v3800, 1.442695
    %v3804 = vpow.pop %v3803
    %v3805 = vsel %vm50, %v3802, 0.0
    %3806 = vadd.xlane.f32.xlu0 %v3805
    %v3807 = vpop.xlane.xlu0 %3806
    %v3808 = vsel %vm50, %v3804, 0.0
    %3809 = vadd.xlane.f32.xlu0 %v3808
    %v3810 = vpop.xlane.xlu0 %3809
    %v3811 = vrcp.pop %v3807
    %v3812 = vrcp.pop %v3810
    %v3813 = vmul.f32 %v3802, %v3811
    %v3814 = vmul.f32 %v3804, %v3812
    %3815 = vrot.lane.b32.xlu0 %v3692, 64
    %v3816 = vpop.permute.xlu0 %3815
    %3817 = vrot.lane.b32.xlu0 %v3697, 64
    %v3818 = vpop.permute.xlu0 %3817
    %v3822 = vsel %vm50, %v3813, 0
    %v3825 = vsel %vm50, %v3814, 0
    %3827 = vmatprep.subr.mxu0 0.0
    %3828 = vmatpush1.msra.mxu0 0.0
    %3829 = vmatprep.subr.mxu0 0.0
    %3830 = vmatpush1.msra.mxu0 0.0
    %3831 = vmatprep.subr.mxu0 0.0
    %3832 = vmatpush1.msra.mxu0 0.0
    %3833 = vmatprep.subr.mxu0 0.0
    %3834 = vmatpush1.msra.mxu0 0.0
    %3835 = vmatprep.subr.mxu0 0.0
    %3836 = vmatpush1.msra.mxu0 0.0
    %3837 = vmatprep.subr.mxu0 0.0
    %3838 = vmatpush1.msra.mxu0 0.0
    %3839 = vmatprep.subr.mxu0 0.0
    %3840 = vmatpush1.msra.mxu0 0.0
    %3841 = vmatprep.subr.mxu0 0.0
    %3842 = vmatpush1.msra.mxu0 0.0
    %3843 = vmatprep.subr.mxu0 0.0
    %3844 = vmatpush1.msra.mxu0 0.0
    %3845 = vmatprep.subr.mxu0 0.0
    %3846 = vmatpush1.msra.mxu0 0.0
    %3847 = vmatprep.subr.mxu0 0.0
    %3848 = vmatpush1.msra.mxu0 0.0
    %3849 = vmatprep.subr.mxu0 0.0
    %3850 = vmatpush1.msra.mxu0 0.0
    %3851 = vmatprep.subr.mxu0 0.0
    %3852 = vmatpush1.msra.mxu0 0.0
    %3853 = vmatprep.subr.mxu0 0.0
    %3854 = vmatpush1.msra.mxu0 0.0
    %3855 = vmatprep.subr.mxu0 0.0
    %3856 = vmatpush1.msra.mxu0 %v3818
    %3857 = vmatprep.subr.mxu0 0.0
    %3858 = vmatpush1.msra.mxu0 %v3816
    %3859 = vmatprep.subr.mxu0 0.0
    %3860 = vmatpush2.msra.mxu0 0.0
    %3861 = vmatprep.subr.mxu0 0.0
    %3862 = vmatpush2.msra.mxu0 0.0
    %3863 = vmatprep.subr.mxu0 0.0
    %3864 = vmatpush2.msra.mxu0 0.0
    %3865 = vmatprep.subr.mxu0 0.0
    %3866 = vmatpush2.msra.mxu0 0.0
    %3867 = vmatprep.subr.mxu0 0.0
    %3868 = vmatpush2.msra.mxu0 0.0
    %3869 = vmatprep.subr.mxu0 0.0
    %3870 = vmatpush2.msra.mxu0 0.0
    %3871 = vmatprep.subr.mxu0 0.0
    %3872 = vmatpush2.msra.mxu0 0.0
    %3873 = vmatprep.subr.mxu0 0.0
    %3874 = vmatpush2.msra.mxu0 0.0
    %3875 = vmatprep.subr.mxu0 0.0
    %3876 = vmatpush2.msra.mxu0 0.0
    %3877 = vmatprep.subr.mxu0 0.0
    %3878 = vmatpush2.msra.mxu0 0.0
    %3879 = vmatprep.subr.mxu0 0.0
    %3880 = vmatpush2.msra.mxu0 0.0
    %3881 = vmatprep.subr.mxu0 0.0
    %3882 = vmatpush2.msra.mxu0 0.0
    %3883 = vmatprep.subr.mxu0 0.0
    %3884 = vmatpush2.msra.mxu0 0.0
    %3885 = vmatprep.subr.mxu0 0.0
    %3886 = vmatpush2.msra.mxu0 0.0
    %3887 = vmatprep.subr.mxu0 0.0
    %3888 = vmatpush2.msra.mxu0 0.0
    %3889 = vmatprep.subr.mxu0 0.0
    %3890 = vmatpush2.msra.mxu0 0.0
    %3891 = vmatprep.mubr.f32.mxu0 0.0
    %3892 = vmatmul.mubr.f32.gmra.mxu0 %v3822
    %v3893 = vpop.f32.mrf.mxu0
    %v3894 = vadd.f32 0.0, %v3893
    %v3895 = vpop.f32.mrf.mxu0
    %3896 = vmatprep.mubr.f32.mxu0 0.0
    %3897 = vmatmul.mubr.f32.gmra.mxu0 %v3825
    %v3898 = vpop.f32.mrf.mxu0
    %v3899 = vadd.f32 0.0, %v3898
    %v3900 = vpop.f32.mrf.mxu0
    %3901 = vdwg.mxu0
    %3902 = vrot.lane.b32.xlu0 %v3692, 120
    %v3903 = vpop.permute.xlu0 %3902
    %3904 = vrot.lane.b32.xlu0 %v3697, 120
    %v3905 = vpop.permute.xlu0 %3904
    %3906 = vrot.lane.b32.xlu0 %v3692, 88
    %v3907 = vpop.permute.xlu0 %3906
    %3908 = vrot.lane.b32.xlu0 %v3697, 88
    %v3909 = vpop.permute.xlu0 %3908
    %v3910 = vsel %vm217, %v3903, 0
    %v3912 = vsel %vm217, %v3905, 0
    %v3914 = vsel %vm217, %v3907, 0
    %v3916 = vsel %vm217, %v3909, 0
    %3918 = vmatprep.subr.mxu0 0.0
    %3919 = vmatpush1.xpose.msra.mxu0 0.0
    %3920 = vmatprep.subr.mxu0 0.0
    %3921 = vmatpush1.xpose.msra.mxu0 0.0
    %3922 = vmatprep.subr.mxu0 0.0
    %3923 = vmatpush1.xpose.msra.mxu0 0.0
    %3924 = vmatprep.subr.mxu0 0.0
    %3925 = vmatpush1.xpose.msra.mxu0 0.0
    %3926 = vmatprep.subr.mxu0 0.0
    %3927 = vmatpush1.xpose.msra.mxu0 0.0
    %3928 = vmatprep.subr.mxu0 0.0
    %3929 = vmatpush1.xpose.msra.mxu0 0.0
    %3930 = vmatprep.subr.mxu0 0.0
    %3931 = vmatpush1.xpose.msra.mxu0 0.0
    %3932 = vmatprep.subr.mxu0 0.0
    %3933 = vmatpush1.xpose.msra.mxu0 0.0
    %3934 = vmatprep.subr.mxu0 0.0
    %3935 = vmatpush1.xpose.msra.mxu0 0.0
    %3936 = vmatprep.subr.mxu0 0.0
    %3937 = vmatpush1.xpose.msra.mxu0 0.0
    %3938 = vmatprep.subr.mxu0 0.0
    %3939 = vmatpush1.xpose.msra.mxu0 0.0
    %3940 = vmatprep.subr.mxu0 0.0
    %3941 = vmatpush1.xpose.msra.mxu0 0.0
    %3942 = vmatprep.subr.mxu0 0.0
    %3943 = vmatpush1.xpose.msra.mxu0 0.0
    %3944 = vmatprep.subr.mxu0 0.0
    %3945 = vmatpush1.xpose.msra.mxu0 0.0
    %3946 = vmatprep.subr.mxu0 0.0
    %3947 = vmatpush1.xpose.msra.mxu0 %v3916
    %3948 = vmatprep.subr.mxu0 0.0
    %3949 = vmatpush1.xpose.msra.mxu0 %v3914
    %3950 = vmatprep.subr.mxu0 0.0
    %3951 = vmatpush2.xpose.msra.mxu0 0.0
    %3952 = vmatprep.subr.mxu0 0.0
    %3953 = vmatpush2.xpose.msra.mxu0 0.0
    %3954 = vmatprep.subr.mxu0 0.0
    %3955 = vmatpush2.xpose.msra.mxu0 0.0
    %3956 = vmatprep.subr.mxu0 0.0
    %3957 = vmatpush2.xpose.msra.mxu0 0.0
    %3958 = vmatprep.subr.mxu0 0.0
    %3959 = vmatpush2.xpose.msra.mxu0 0.0
    %3960 = vmatprep.subr.mxu0 0.0
    %3961 = vmatpush2.xpose.msra.mxu0 0.0
    %3962 = vmatprep.subr.mxu0 0.0
    %3963 = vmatpush2.xpose.msra.mxu0 0.0
    %3964 = vmatprep.subr.mxu0 0.0
    %3965 = vmatpush2.xpose.msra.mxu0 0.0
    %3966 = vmatprep.subr.mxu0 0.0
    %3967 = vmatpush2.xpose.msra.mxu0 0.0
    %3968 = vmatprep.subr.mxu0 0.0
    %3969 = vmatpush2.xpose.msra.mxu0 0.0
    %3970 = vmatprep.subr.mxu0 0.0
    %3971 = vmatpush2.xpose.msra.mxu0 0.0
    %3972 = vmatprep.subr.mxu0 0.0
    %3973 = vmatpush2.xpose.msra.mxu0 0.0
    %3974 = vmatprep.subr.mxu0 0.0
    %3975 = vmatpush2.xpose.msra.mxu0 0.0
    %3976 = vmatprep.subr.mxu0 0.0
    %3977 = vmatpush2.xpose.msra.mxu0 0.0
    %3978 = vmatprep.subr.mxu0 0.0
    %3979 = vmatpush2.xpose.msra.mxu0 0.0
    %3980 = vmatprep.subr.mxu0 0.0
    %3981 = vmatpush2.xpose.msra.mxu0 0.0
    %3982 = vmatprep.mubr.f32.mxu0 0.0
    %3983 = vmatmul.mubr.f32.gmra.mxu0 %v3910
    %v3984 = vpop.f32.mrf.mxu0
    %v3985 = vadd.f32 0.0, %v3984
    %v3986 = vpop.f32.mrf.mxu0
    %3987 = vmatprep.mubr.f32.mxu0 0.0
    %3988 = vmatmul.mubr.f32.gmra.mxu0 %v3912
    %v3989 = vpop.f32.mrf.mxu0
    %v3990 = vadd.f32 0.0, %v3989
    %v3991 = vpop.f32.mrf.mxu0
    %3992 = vdwg.mxu0
    %v3993 = vmul.f32 %v3985, 0.35355338
    %v3994 = vmul.f32 %v3990, 0.35355338
    %v3995 = vadd.f32 %v3993, %v38
    %v3996 = vadd.f32 %v3994, %v39
    %v3997 = vsel %vm50, %v3995, -inf
    %3998 = vmax.xlane.f32.xlu0 %v3997
    %v3999 = vpop.xlane.xlu0 %3998
    %v4000 = vsel %vm50, %v3996, -inf
    %4001 = vmax.xlane.f32.xlu0 %v4000
    %v4002 = vpop.xlane.xlu0 %4001
    %v4003 = vsub.f32 %v3995, %v3999
    %v4004 = vsub.f32 %v3996, %v4002
    %v4005 = vmul.f32 %v4003, 1.442695
    %v4006 = vpow.pop %v4005
    %v4007 = vmul.f32 %v4004, 1.442695
    %v4008 = vpow.pop %v4007
    %v4009 = vsel %vm50, %v4006, 0.0
    %4010 = vadd.xlane.f32.xlu0 %v4009
    %v4011 = vpop.xlane.xlu0 %4010
    %v4012 = vsel %vm50, %v4008, 0.0
    %4013 = vadd.xlane.f32.xlu0 %v4012
    %v4014 = vpop.xlane.xlu0 %4013
    %v4015 = vrcp.pop %v4011
    %v4016 = vrcp.pop %v4014
    %v4017 = vmul.f32 %v4006, %v4015
    %v4018 = vmul.f32 %v4008, %v4016
    %4019 = vrot.lane.b32.xlu0 %v3692, 56
    %v4020 = vpop.permute.xlu0 %4019
    %4021 = vrot.lane.b32.xlu0 %v3697, 56
    %v4022 = vpop.permute.xlu0 %4021
    %v4026 = vsel %vm50, %v4017, 0
    %v4029 = vsel %vm50, %v4018, 0
    %4031 = vmatprep.subr.mxu0 0.0
    %4032 = vmatpush1.msra.mxu0 0.0
    %4033 = vmatprep.subr.mxu0 0.0
    %4034 = vmatpush1.msra.mxu0 0.0
    %4035 = vmatprep.subr.mxu0 0.0
    %4036 = vmatpush1.msra.mxu0 0.0
    %4037 = vmatprep.subr.mxu0 0.0
    %4038 = vmatpush1.msra.mxu0 0.0
    %4039 = vmatprep.subr.mxu0 0.0
    %4040 = vmatpush1.msra.mxu0 0.0
    %4041 = vmatprep.subr.mxu0 0.0
    %4042 = vmatpush1.msra.mxu0 0.0
    %4043 = vmatprep.subr.mxu0 0.0
    %4044 = vmatpush1.msra.mxu0 0.0
    %4045 = vmatprep.subr.mxu0 0.0
    %4046 = vmatpush1.msra.mxu0 0.0
    %4047 = vmatprep.subr.mxu0 0.0
    %4048 = vmatpush1.msra.mxu0 0.0
    %4049 = vmatprep.subr.mxu0 0.0
    %4050 = vmatpush1.msra.mxu0 0.0
    %4051 = vmatprep.subr.mxu0 0.0
    %4052 = vmatpush1.msra.mxu0 0.0
    %4053 = vmatprep.subr.mxu0 0.0
    %4054 = vmatpush1.msra.mxu0 0.0
    %4055 = vmatprep.subr.mxu0 0.0
    %4056 = vmatpush1.msra.mxu0 0.0
    %4057 = vmatprep.subr.mxu0 0.0
    %4058 = vmatpush1.msra.mxu0 0.0
    %4059 = vmatprep.subr.mxu0 0.0
    %4060 = vmatpush1.msra.mxu0 %v4022
    %4061 = vmatprep.subr.mxu0 0.0
    %4062 = vmatpush1.msra.mxu0 %v4020
    %4063 = vmatprep.subr.mxu0 0.0
    %4064 = vmatpush2.msra.mxu0 0.0
    %4065 = vmatprep.subr.mxu0 0.0
    %4066 = vmatpush2.msra.mxu0 0.0
    %4067 = vmatprep.subr.mxu0 0.0
    %4068 = vmatpush2.msra.mxu0 0.0
    %4069 = vmatprep.subr.mxu0 0.0
    %4070 = vmatpush2.msra.mxu0 0.0
    %4071 = vmatprep.subr.mxu0 0.0
    %4072 = vmatpush2.msra.mxu0 0.0
    %4073 = vmatprep.subr.mxu0 0.0
    %4074 = vmatpush2.msra.mxu0 0.0
    %4075 = vmatprep.subr.mxu0 0.0
    %4076 = vmatpush2.msra.mxu0 0.0
    %4077 = vmatprep.subr.mxu0 0.0
    %4078 = vmatpush2.msra.mxu0 0.0
    %4079 = vmatprep.subr.mxu0 0.0
    %4080 = vmatpush2.msra.mxu0 0.0
    %4081 = vmatprep.subr.mxu0 0.0
    %4082 = vmatpush2.msra.mxu0 0.0
    %4083 = vmatprep.subr.mxu0 0.0
    %4084 = vmatpush2.msra.mxu0 0.0
    %4085 = vmatprep.subr.mxu0 0.0
    %4086 = vmatpush2.msra.mxu0 0.0
    %4087 = vmatprep.subr.mxu0 0.0
    %4088 = vmatpush2.msra.mxu0 0.0
    %4089 = vmatprep.subr.mxu0 0.0
    %4090 = vmatpush2.msra.mxu0 0.0
    %4091 = vmatprep.subr.mxu0 0.0
    %4092 = vmatpush2.msra.mxu0 0.0
    %4093 = vmatprep.subr.mxu0 0.0
    %4094 = vmatpush2.msra.mxu0 0.0
    %4095 = vmatprep.mubr.f32.mxu0 0.0
    %4096 = vmatmul.mubr.f32.gmra.mxu0 %v4026
    %v4097 = vpop.f32.mrf.mxu0
    %v4098 = vadd.f32 0.0, %v4097
    %v4099 = vpop.f32.mrf.mxu0
    %4100 = vmatprep.mubr.f32.mxu0 0.0
    %4101 = vmatmul.mubr.f32.gmra.mxu0 %v4029
    %v4102 = vpop.f32.mrf.mxu0
    %v4103 = vadd.f32 0.0, %v4102
    %v4104 = vpop.f32.mrf.mxu0
    %4105 = vdwg.mxu0
    %4106 = vrot.lane.b32.xlu0 %v3692, 112
    %v4107 = vpop.permute.xlu0 %4106
    %4108 = vrot.lane.b32.xlu0 %v3697, 112
    %v4109 = vpop.permute.xlu0 %4108
    %4110 = vrot.lane.b32.xlu0 %v3692, 80
    %v4111 = vpop.permute.xlu0 %4110
    %4112 = vrot.lane.b32.xlu0 %v3697, 80
    %v4113 = vpop.permute.xlu0 %4112
    %v4114 = vsel %vm217, %v4107, 0
    %v4116 = vsel %vm217, %v4109, 0
    %v4118 = vsel %vm217, %v4111, 0
    %v4120 = vsel %vm217, %v4113, 0
    %4122 = vmatprep.subr.mxu0 0.0
    %4123 = vmatpush1.xpose.msra.mxu0 0.0
    %4124 = vmatprep.subr.mxu0 0.0
    %4125 = vmatpush1.xpose.msra.mxu0 0.0
    %4126 = vmatprep.subr.mxu0 0.0
    %4127 = vmatpush1.xpose.msra.mxu0 0.0
    %4128 = vmatprep.subr.mxu0 0.0
    %4129 = vmatpush1.xpose.msra.mxu0 0.0
    %4130 = vmatprep.subr.mxu0 0.0
    %4131 = vmatpush1.xpose.msra.mxu0 0.0
    %4132 = vmatprep.subr.mxu0 0.0
    %4133 = vmatpush1.xpose.msra.mxu0 0.0
    %4134 = vmatprep.subr.mxu0 0.0
    %4135 = vmatpush1.xpose.msra.mxu0 0.0
    %4136 = vmatprep.subr.mxu0 0.0
    %4137 = vmatpush1.xpose.msra.mxu0 0.0
    %4138 = vmatprep.subr.mxu0 0.0
    %4139 = vmatpush1.xpose.msra.mxu0 0.0
    %4140 = vmatprep.subr.mxu0 0.0
    %4141 = vmatpush1.xpose.msra.mxu0 0.0
    %4142 = vmatprep.subr.mxu0 0.0
    %4143 = vmatpush1.xpose.msra.mxu0 0.0
    %4144 = vmatprep.subr.mxu0 0.0
    %4145 = vmatpush1.xpose.msra.mxu0 0.0
    %4146 = vmatprep.subr.mxu0 0.0
    %4147 = vmatpush1.xpose.msra.mxu0 0.0
    %4148 = vmatprep.subr.mxu0 0.0
    %4149 = vmatpush1.xpose.msra.mxu0 0.0
    %4150 = vmatprep.subr.mxu0 0.0
    %4151 = vmatpush1.xpose.msra.mxu0 %v4120
    %4152 = vmatprep.subr.mxu0 0.0
    %4153 = vmatpush1.xpose.msra.mxu0 %v4118
    %4154 = vmatprep.subr.mxu0 0.0
    %4155 = vmatpush2.xpose.msra.mxu0 0.0
    %4156 = vmatprep.subr.mxu0 0.0
    %4157 = vmatpush2.xpose.msra.mxu0 0.0
    %4158 = vmatprep.subr.mxu0 0.0
    %4159 = vmatpush2.xpose.msra.mxu0 0.0
    %4160 = vmatprep.subr.mxu0 0.0
    %4161 = vmatpush2.xpose.msra.mxu0 0.0
    %4162 = vmatprep.subr.mxu0 0.0
    %4163 = vmatpush2.xpose.msra.mxu0 0.0
    %4164 = vmatprep.subr.mxu0 0.0
    %4165 = vmatpush2.xpose.msra.mxu0 0.0
    %4166 = vmatprep.subr.mxu0 0.0
    %4167 = vmatpush2.xpose.msra.mxu0 0.0
    %4168 = vmatprep.subr.mxu0 0.0
    %4169 = vmatpush2.xpose.msra.mxu0 0.0
    %4170 = vmatprep.subr.mxu0 0.0
    %4171 = vmatpush2.xpose.msra.mxu0 0.0
    %4172 = vmatprep.subr.mxu0 0.0
    %4173 = vmatpush2.xpose.msra.mxu0 0.0
    %4174 = vmatprep.subr.mxu0 0.0
    %4175 = vmatpush2.xpose.msra.mxu0 0.0
    %4176 = vmatprep.subr.mxu0 0.0
    %4177 = vmatpush2.xpose.msra.mxu0 0.0
    %4178 = vmatprep.subr.mxu0 0.0
    %4179 = vmatpush2.xpose.msra.mxu0 0.0
    %4180 = vmatprep.subr.mxu0 0.0
    %4181 = vmatpush2.xpose.msra.mxu0 0.0
    %4182 = vmatprep.subr.mxu0 0.0
    %4183 = vmatpush2.xpose.msra.mxu0 0.0
    %4184 = vmatprep.subr.mxu0 0.0
    %4185 = vmatpush2.xpose.msra.mxu0 0.0
    %4186 = vmatprep.mubr.f32.mxu0 0.0
    %4187 = vmatmul.mubr.f32.gmra.mxu0 %v4114
    %v4188 = vpop.f32.mrf.mxu0
    %v4189 = vadd.f32 0.0, %v4188
    %v4190 = vpop.f32.mrf.mxu0
    %4191 = vmatprep.mubr.f32.mxu0 0.0
    %4192 = vmatmul.mubr.f32.gmra.mxu0 %v4116
    %v4193 = vpop.f32.mrf.mxu0
    %v4194 = vadd.f32 0.0, %v4193
    %v4195 = vpop.f32.mrf.mxu0
    %4196 = vdwg.mxu0
    %v4197 = vmul.f32 %v4189, 0.35355338
    %v4198 = vmul.f32 %v4194, 0.35355338
    %v4199 = vadd.f32 %v4197, %v38
    %v4200 = vadd.f32 %v4198, %v39
    %v4201 = vsel %vm50, %v4199, -inf
    %4202 = vmax.xlane.f32.xlu0 %v4201
    %v4203 = vpop.xlane.xlu0 %4202
    %v4204 = vsel %vm50, %v4200, -inf
    %4205 = vmax.xlane.f32.xlu0 %v4204
    %v4206 = vpop.xlane.xlu0 %4205
    %v4207 = vsub.f32 %v4199, %v4203
    %v4208 = vsub.f32 %v4200, %v4206
    %v4209 = vmul.f32 %v4207, 1.442695
    %v4210 = vpow.pop %v4209
    %v4211 = vmul.f32 %v4208, 1.442695
    %v4212 = vpow.pop %v4211
    %v4213 = vsel %vm50, %v4210, 0.0
    %4214 = vadd.xlane.f32.xlu0 %v4213
    %v4215 = vpop.xlane.xlu0 %4214
    %v4216 = vsel %vm50, %v4212, 0.0
    %4217 = vadd.xlane.f32.xlu0 %v4216
    %v4218 = vpop.xlane.xlu0 %4217
    %v4219 = vrcp.pop %v4215
    %v4220 = vrcp.pop %v4218
    %v4221 = vmul.f32 %v4210, %v4219
    %v4222 = vmul.f32 %v4212, %v4220
    %4223 = vrot.lane.b32.xlu0 %v3692, 48
    %v4224 = vpop.permute.xlu0 %4223
    %4225 = vrot.lane.b32.xlu0 %v3697, 48
    %v4226 = vpop.permute.xlu0 %4225
    %v4230 = vsel %vm50, %v4221, 0
    %v4233 = vsel %vm50, %v4222, 0
    %4235 = vmatprep.subr.mxu0 0.0
    %4236 = vmatpush1.msra.mxu0 0.0
    %4237 = vmatprep.subr.mxu0 0.0
    %4238 = vmatpush1.msra.mxu0 0.0
    %4239 = vmatprep.subr.mxu0 0.0
    %4240 = vmatpush1.msra.mxu0 0.0
    %4241 = vmatprep.subr.mxu0 0.0
    %4242 = vmatpush1.msra.mxu0 0.0
    %4243 = vmatprep.subr.mxu0 0.0
    %4244 = vmatpush1.msra.mxu0 0.0
    %4245 = vmatprep.subr.mxu0 0.0
    %4246 = vmatpush1.msra.mxu0 0.0
    %4247 = vmatprep.subr.mxu0 0.0
    %4248 = vmatpush1.msra.mxu0 0.0
    %4249 = vmatprep.subr.mxu0 0.0
    %4250 = vmatpush1.msra.mxu0 0.0
    %4251 = vmatprep.subr.mxu0 0.0
    %4252 = vmatpush1.msra.mxu0 0.0
    %4253 = vmatprep.subr.mxu0 0.0
    %4254 = vmatpush1.msra.mxu0 0.0
    %4255 = vmatprep.subr.mxu0 0.0
    %4256 = vmatpush1.msra.mxu0 0.0
    %4257 = vmatprep.subr.mxu0 0.0
    %4258 = vmatpush1.msra.mxu0 0.0
    %4259 = vmatprep.subr.mxu0 0.0
    %4260 = vmatpush1.msra.mxu0 0.0
    %4261 = vmatprep.subr.mxu0 0.0
    %4262 = vmatpush1.msra.mxu0 0.0
    %4263 = vmatprep.subr.mxu0 0.0
    %4264 = vmatpush1.msra.mxu0 %v4226
    %4265 = vmatprep.subr.mxu0 0.0
    %4266 = vmatpush1.msra.mxu0 %v4224
    %4267 = vmatprep.subr.mxu0 0.0
    %4268 = vmatpush2.msra.mxu0 0.0
    %4269 = vmatprep.subr.mxu0 0.0
    %4270 = vmatpush2.msra.mxu0 0.0
    %4271 = vmatprep.subr.mxu0 0.0
    %4272 = vmatpush2.msra.mxu0 0.0
    %4273 = vmatprep.subr.mxu0 0.0
    %4274 = vmatpush2.msra.mxu0 0.0
    %4275 = vmatprep.subr.mxu0 0.0
    %4276 = vmatpush2.msra.mxu0 0.0
    %4277 = vmatprep.subr.mxu0 0.0
    %4278 = vmatpush2.msra.mxu0 0.0
    %4279 = vmatprep.subr.mxu0 0.0
    %4280 = vmatpush2.msra.mxu0 0.0
    %4281 = vmatprep.subr.mxu0 0.0
    %4282 = vmatpush2.msra.mxu0 0.0
    %4283 = vmatprep.subr.mxu0 0.0
    %4284 = vmatpush2.msra.mxu0 0.0
    %4285 = vmatprep.subr.mxu0 0.0
    %4286 = vmatpush2.msra.mxu0 0.0
    %4287 = vmatprep.subr.mxu0 0.0
    %4288 = vmatpush2.msra.mxu0 0.0
    %4289 = vmatprep.subr.mxu0 0.0
    %4290 = vmatpush2.msra.mxu0 0.0
    %4291 = vmatprep.subr.mxu0 0.0
    %4292 = vmatpush2.msra.mxu0 0.0
    %4293 = vmatprep.subr.mxu0 0.0
    %4294 = vmatpush2.msra.mxu0 0.0
    %4295 = vmatprep.subr.mxu0 0.0
    %4296 = vmatpush2.msra.mxu0 0.0
    %4297 = vmatprep.subr.mxu0 0.0
    %4298 = vmatpush2.msra.mxu0 0.0
    %4299 = vmatprep.mubr.f32.mxu0 0.0
    %4300 = vmatmul.mubr.f32.gmra.mxu0 %v4230
    %v4301 = vpop.f32.mrf.mxu0
    %v4302 = vadd.f32 0.0, %v4301
    %v4303 = vpop.f32.mrf.mxu0
    %4304 = vmatprep.mubr.f32.mxu0 0.0
    %4305 = vmatmul.mubr.f32.gmra.mxu0 %v4233
    %v4306 = vpop.f32.mrf.mxu0
    %v4307 = vadd.f32 0.0, %v4306
    %v4308 = vpop.f32.mrf.mxu0
    %4309 = vdwg.mxu0
    %4310 = vrot.lane.b32.xlu0 %v3692, 104
    %v4311 = vpop.permute.xlu0 %4310
    %4312 = vrot.lane.b32.xlu0 %v3697, 104
    %v4313 = vpop.permute.xlu0 %4312
    %4314 = vrot.lane.b32.xlu0 %v3692, 72
    %v4315 = vpop.permute.xlu0 %4314
    %4316 = vrot.lane.b32.xlu0 %v3697, 72
    %v4317 = vpop.permute.xlu0 %4316
    %v4318 = vsel %vm217, %v4311, 0
    %v4320 = vsel %vm217, %v4313, 0
    %v4322 = vsel %vm217, %v4315, 0
    %v4324 = vsel %vm217, %v4317, 0
    %4326 = vmatprep.subr.mxu0 0.0
    %4327 = vmatpush1.xpose.msra.mxu0 0.0
    %4328 = vmatprep.subr.mxu0 0.0
    %4329 = vmatpush1.xpose.msra.mxu0 0.0
    %4330 = vmatprep.subr.mxu0 0.0
    %4331 = vmatpush1.xpose.msra.mxu0 0.0
    %4332 = vmatprep.subr.mxu0 0.0
    %4333 = vmatpush1.xpose.msra.mxu0 0.0
    %4334 = vmatprep.subr.mxu0 0.0
    %4335 = vmatpush1.xpose.msra.mxu0 0.0
    %4336 = vmatprep.subr.mxu0 0.0
    %4337 = vmatpush1.xpose.msra.mxu0 0.0
    %4338 = vmatprep.subr.mxu0 0.0
    %4339 = vmatpush1.xpose.msra.mxu0 0.0
    %4340 = vmatprep.subr.mxu0 0.0
    %4341 = vmatpush1.xpose.msra.mxu0 0.0
    %4342 = vmatprep.subr.mxu0 0.0
    %4343 = vmatpush1.xpose.msra.mxu0 0.0
    %4344 = vmatprep.subr.mxu0 0.0
    %4345 = vmatpush1.xpose.msra.mxu0 0.0
    %4346 = vmatprep.subr.mxu0 0.0
    %4347 = vmatpush1.xpose.msra.mxu0 0.0
    %4348 = vmatprep.subr.mxu0 0.0
    %4349 = vmatpush1.xpose.msra.mxu0 0.0
    %4350 = vmatprep.subr.mxu0 0.0
    %4351 = vmatpush1.xpose.msra.mxu0 0.0
    %4352 = vmatprep.subr.mxu0 0.0
    %4353 = vmatpush1.xpose.msra.mxu0 0.0
    %4354 = vmatprep.subr.mxu0 0.0
    %4355 = vmatpush1.xpose.msra.mxu0 %v4324
    %4356 = vmatprep.subr.mxu0 0.0
    %4357 = vmatpush1.xpose.msra.mxu0 %v4322
    %4358 = vmatprep.subr.mxu0 0.0
    %4359 = vmatpush2.xpose.msra.mxu0 0.0
    %4360 = vmatprep.subr.mxu0 0.0
    %4361 = vmatpush2.xpose.msra.mxu0 0.0
    %4362 = vmatprep.subr.mxu0 0.0
    %4363 = vmatpush2.xpose.msra.mxu0 0.0
    %4364 = vmatprep.subr.mxu0 0.0
    %4365 = vmatpush2.xpose.msra.mxu0 0.0
    %4366 = vmatprep.subr.mxu0 0.0
    %4367 = vmatpush2.xpose.msra.mxu0 0.0
    %4368 = vmatprep.subr.mxu0 0.0
    %4369 = vmatpush2.xpose.msra.mxu0 0.0
    %4370 = vmatprep.subr.mxu0 0.0
    %4371 = vmatpush2.xpose.msra.mxu0 0.0
    %4372 = vmatprep.subr.mxu0 0.0
    %4373 = vmatpush2.xpose.msra.mxu0 0.0
    %4374 = vmatprep.subr.mxu0 0.0
    %4375 = vmatpush2.xpose.msra.mxu0 0.0
    %4376 = vmatprep.subr.mxu0 0.0
    %4377 = vmatpush2.xpose.msra.mxu0 0.0
    %4378 = vmatprep.subr.mxu0 0.0
    %4379 = vmatpush2.xpose.msra.mxu0 0.0
    %4380 = vmatprep.subr.mxu0 0.0
    %4381 = vmatpush2.xpose.msra.mxu0 0.0
    %4382 = vmatprep.subr.mxu0 0.0
    %4383 = vmatpush2.xpose.msra.mxu0 0.0
    %4384 = vmatprep.subr.mxu0 0.0
    %4385 = vmatpush2.xpose.msra.mxu0 0.0
    %4386 = vmatprep.subr.mxu0 0.0
    %4387 = vmatpush2.xpose.msra.mxu0 0.0
    %4388 = vmatprep.subr.mxu0 0.0
    %4389 = vmatpush2.xpose.msra.mxu0 0.0
    %4390 = vmatprep.mubr.f32.mxu0 0.0
    %4391 = vmatmul.mubr.f32.gmra.mxu0 %v4318
    %v4392 = vpop.f32.mrf.mxu0
    %v4393 = vadd.f32 0.0, %v4392
    %v4394 = vpop.f32.mrf.mxu0
    %4395 = vmatprep.mubr.f32.mxu0 0.0
    %4396 = vmatmul.mubr.f32.gmra.mxu0 %v4320
    %v4397 = vpop.f32.mrf.mxu0
    %v4398 = vadd.f32 0.0, %v4397
    %v4399 = vpop.f32.mrf.mxu0
    %4400 = vdwg.mxu0
    %v4401 = vmul.f32 %v4393, 0.35355338
    %v4402 = vmul.f32 %v4398, 0.35355338
    %v4403 = vadd.f32 %v4401, %v38
    %v4404 = vadd.f32 %v4402, %v39
    %v4405 = vsel %vm50, %v4403, -inf
    %4406 = vmax.xlane.f32.xlu0 %v4405
    %v4407 = vpop.xlane.xlu0 %4406
    %v4408 = vsel %vm50, %v4404, -inf
    %4409 = vmax.xlane.f32.xlu0 %v4408
    %v4410 = vpop.xlane.xlu0 %4409
    %v4411 = vsub.f32 %v4403, %v4407
    %v4412 = vsub.f32 %v4404, %v4410
    %v4413 = vmul.f32 %v4411, 1.442695
    %v4414 = vpow.pop %v4413
    %v4415 = vmul.f32 %v4412, 1.442695
    %v4416 = vpow.pop %v4415
    %v4417 = vsel %vm50, %v4414, 0.0
    %4418 = vadd.xlane.f32.xlu0 %v4417
    %v4419 = vpop.xlane.xlu0 %4418
    %v4420 = vsel %vm50, %v4416, 0.0
    %4421 = vadd.xlane.f32.xlu0 %v4420
    %v4422 = vpop.xlane.xlu0 %4421
    %v4423 = vrcp.pop %v4419
    %v4424 = vrcp.pop %v4422
    %v4425 = vmul.f32 %v4414, %v4423
    %v4426 = vmul.f32 %v4416, %v4424
    %4427 = vrot.lane.b32.xlu0 %v3692, 40
    %v4428 = vpop.permute.xlu0 %4427
    %4429 = vrot.lane.b32.xlu0 %v3697, 40
    %v4430 = vpop.permute.xlu0 %4429
    %v4434 = vsel %vm50, %v4425, 0
    %v4437 = vsel %vm50, %v4426, 0
    %4439 = vmatprep.subr.mxu0 0.0
    %4440 = vmatpush1.msra.mxu0 0.0
    %4441 = vmatprep.subr.mxu0 0.0
    %4442 = vmatpush1.msra.mxu0 0.0
    %4443 = vmatprep.subr.mxu0 0.0
    %4444 = vmatpush1.msra.mxu0 0.0
    %4445 = vmatprep.subr.mxu0 0.0
    %4446 = vmatpush1.msra.mxu0 0.0
    %4447 = vmatprep.subr.mxu0 0.0
    %4448 = vmatpush1.msra.mxu0 0.0
    %4449 = vmatprep.subr.mxu0 0.0
    %4450 = vmatpush1.msra.mxu0 0.0
    %4451 = vmatprep.subr.mxu0 0.0
    %4452 = vmatpush1.msra.mxu0 0.0
    %4453 = vmatprep.subr.mxu0 0.0
    %4454 = vmatpush1.msra.mxu0 0.0
    %4455 = vmatprep.subr.mxu0 0.0
    %4456 = vmatpush1.msra.mxu0 0.0
    %4457 = vmatprep.subr.mxu0 0.0
    %4458 = vmatpush1.msra.mxu0 0.0
    %4459 = vmatprep.subr.mxu0 0.0
    %4460 = vmatpush1.msra.mxu0 0.0
    %4461 = vmatprep.subr.mxu0 0.0
    %4462 = vmatpush1.msra.mxu0 0.0
    %4463 = vmatprep.subr.mxu0 0.0
    %4464 = vmatpush1.msra.mxu0 0.0
    %4465 = vmatprep.subr.mxu0 0.0
    %4466 = vmatpush1.msra.mxu0 0.0
    %4467 = vmatprep.subr.mxu0 0.0
    %4468 = vmatpush1.msra.mxu0 %v4430
    %4469 = vmatprep.subr.mxu0 0.0
    %4470 = vmatpush1.msra.mxu0 %v4428
    %4471 = vmatprep.subr.mxu0 0.0
    %4472 = vmatpush2.msra.mxu0 0.0
    %4473 = vmatprep.subr.mxu0 0.0
    %4474 = vmatpush2.msra.mxu0 0.0
    %4475 = vmatprep.subr.mxu0 0.0
    %4476 = vmatpush2.msra.mxu0 0.0
    %4477 = vmatprep.subr.mxu0 0.0
    %4478 = vmatpush2.msra.mxu0 0.0
    %4479 = vmatprep.subr.mxu0 0.0
    %4480 = vmatpush2.msra.mxu0 0.0
    %4481 = vmatprep.subr.mxu0 0.0
    %4482 = vmatpush2.msra.mxu0 0.0
    %4483 = vmatprep.subr.mxu0 0.0
    %4484 = vmatpush2.msra.mxu0 0.0
    %4485 = vmatprep.subr.mxu0 0.0
    %4486 = vmatpush2.msra.mxu0 0.0
    %4487 = vmatprep.subr.mxu0 0.0
    %4488 = vmatpush2.msra.mxu0 0.0
    %4489 = vmatprep.subr.mxu0 0.0
    %4490 = vmatpush2.msra.mxu0 0.0
    %4491 = vmatprep.subr.mxu0 0.0
    %4492 = vmatpush2.msra.mxu0 0.0
    %4493 = vmatprep.subr.mxu0 0.0
    %4494 = vmatpush2.msra.mxu0 0.0
    %4495 = vmatprep.subr.mxu0 0.0
    %4496 = vmatpush2.msra.mxu0 0.0
    %4497 = vmatprep.subr.mxu0 0.0
    %4498 = vmatpush2.msra.mxu0 0.0
    %4499 = vmatprep.subr.mxu0 0.0
    %4500 = vmatpush2.msra.mxu0 0.0
    %4501 = vmatprep.subr.mxu0 0.0
    %4502 = vmatpush2.msra.mxu0 0.0
    %4503 = vmatprep.mubr.f32.mxu0 0.0
    %4504 = vmatmul.mubr.f32.gmra.mxu0 %v4434
    %v4505 = vpop.f32.mrf.mxu0
    %v4506 = vadd.f32 0.0, %v4505
    %v4507 = vpop.f32.mrf.mxu0
    %4508 = vmatprep.mubr.f32.mxu0 0.0
    %4509 = vmatmul.mubr.f32.gmra.mxu0 %v4437
    %v4510 = vpop.f32.mrf.mxu0
    %v4511 = vadd.f32 0.0, %v4510
    %v4512 = vpop.f32.mrf.mxu0
    %4513 = vdwg.mxu0
    %4516 = vrot.lane.b32.xlu0 %v4098, 8
    %v4517 = vpop.permute.xlu0 %4516
    %4518 = vrot.lane.b32.xlu0 %v4103, 8
    %v4519 = vpop.permute.xlu0 %4518
    %4524 = vrot.lane.b32.xlu0 %v4302, 16
    %v4525 = vpop.permute.xlu0 %4524
    %4526 = vrot.lane.b32.xlu0 %v4307, 16
    %v4527 = vpop.permute.xlu0 %4526
    %4532 = vrot.lane.b32.xlu0 %v4506, 24
    %v4533 = vpop.permute.xlu0 %4532
    %4534 = vrot.lane.b32.xlu0 %v4511, 24
    %v4535 = vpop.permute.xlu0 %4534
    %v4538 = vsel %vm217, %v3894, %v4517
    %v4539 = vsel %vm217, %v3899, %v4519
    %v4540 = vsel %vm50, %v4538, %v4525
    %v4541 = vsel %vm50, %v4539, %v4527
    %v4542 = vsel %vm896, %v4540, %v4533
    %v4543 = vsel %vm896, %v4541, %v4535
    %v4544 = vlaneseq
    %v4545 = vshrl.u32 %v4544, 7
    %v4546 = vsub.s32 0, %v4545
    %v4547 = vrot.slane %v3614, %v4546
    %v4549 = vsel %vm140, %v4542, 0
    %v4552 = vsel %vm140, %v4543, 0
    %4554 = vmatprep.subr.mxu0 0.0
    %4555 = vmatpush1.msra.mxu0 0.0
    %4556 = vmatprep.subr.mxu0 0.0
    %4557 = vmatpush1.msra.mxu0 0.0
    %4558 = vmatprep.subr.mxu0 0.0
    %4559 = vmatpush1.msra.mxu0 0.0
    %4560 = vmatprep.subr.mxu0 0.0
    %4561 = vmatpush1.msra.mxu0 0.0
    %4562 = vmatprep.subr.mxu0 0.0
    %4563 = vmatpush1.msra.mxu0 0.0
    %4564 = vmatprep.subr.mxu0 0.0
    %4565 = vmatpush1.msra.mxu0 0.0
    %4566 = vmatprep.subr.mxu0 0.0
    %4567 = vmatpush1.msra.mxu0 0.0
    %4568 = vmatprep.subr.mxu0 0.0
    %4569 = vmatpush1.msra.mxu0 0.0
    %4570 = vmatprep.subr.mxu0 0.0
    %4571 = vmatpush1.msra.mxu0 0.0
    %4572 = vmatprep.subr.mxu0 0.0
    %4573 = vmatpush1.msra.mxu0 0.0
    %4574 = vmatprep.subr.mxu0 0.0
    %4575 = vmatpush1.msra.mxu0 0.0
    %4576 = vmatprep.subr.mxu0 0.0
    %4577 = vmatpush1.msra.mxu0 0.0
    %4578 = vmatprep.subr.mxu0 0.0
    %4579 = vmatpush1.msra.mxu0 %v3613
    %4580 = vmatprep.subr.mxu0 0.0
    %4581 = vmatpush1.msra.mxu0 %v3612
    %4582 = vmatprep.subr.mxu0 0.0
    %4583 = vmatpush1.msra.mxu0 %v3611
    %4584 = vmatprep.subr.mxu0 0.0
    %4585 = vmatpush1.msra.mxu0 %v3610
    %4586 = vmatprep.subr.mxu0 0.0
    %4587 = vmatpush2.msra.mxu0 0.0
    %4588 = vmatprep.subr.mxu0 0.0
    %4589 = vmatpush2.msra.mxu0 0.0
    %4590 = vmatprep.subr.mxu0 0.0
    %4591 = vmatpush2.msra.mxu0 0.0
    %4592 = vmatprep.subr.mxu0 0.0
    %4593 = vmatpush2.msra.mxu0 0.0
    %4594 = vmatprep.subr.mxu0 0.0
    %4595 = vmatpush2.msra.mxu0 0.0
    %4596 = vmatprep.subr.mxu0 0.0
    %4597 = vmatpush2.msra.mxu0 0.0
    %4598 = vmatprep.subr.mxu0 0.0
    %4599 = vmatpush2.msra.mxu0 0.0
    %4600 = vmatprep.subr.mxu0 0.0
    %4601 = vmatpush2.msra.mxu0 0.0
    %4602 = vmatprep.subr.mxu0 0.0
    %4603 = vmatpush2.msra.mxu0 0.0
    %4604 = vmatprep.subr.mxu0 0.0
    %4605 = vmatpush2.msra.mxu0 0.0
    %4606 = vmatprep.subr.mxu0 0.0
    %4607 = vmatpush2.msra.mxu0 0.0
    %4608 = vmatprep.subr.mxu0 0.0
    %4609 = vmatpush2.msra.mxu0 0.0
    %4610 = vmatprep.subr.mxu0 0.0
    %4611 = vmatpush2.msra.mxu0 0.0
    %4612 = vmatprep.subr.mxu0 0.0
    %4613 = vmatpush2.msra.mxu0 0.0
    %4614 = vmatprep.subr.mxu0 0.0
    %4615 = vmatpush2.msra.mxu0 0.0
    %4616 = vmatprep.subr.mxu0 0.0
    %4617 = vmatpush2.msra.mxu0 0.0
    %4618 = vmatprep.mubr.f32.mxu0 0.0
    %4619 = vmatmul.mubr.f32.gmra.mxu0 %v4549
    %v4620 = vpop.f32.mrf.mxu0
    %v4621 = vadd.f32 %v4547, %v4620
    %v4622 = vpop.f32.mrf.mxu0
    %4623 = vmatprep.mubr.f32.mxu0 0.0
    %4624 = vmatmul.mubr.f32.gmra.mxu0 %v4552
    %v4625 = vpop.f32.mrf.mxu0
    %v4626 = vadd.f32 %v4547, %v4625
    %v4627 = vpop.f32.mrf.mxu0
    %4628 = vdwg.mxu0
    %v4629 = vadd.f32 %v3603, %v4621
    %v4630 = vadd.f32 %v3604, %v4626
    %v4631 = vld [vmem:[#allocation2 + $0x528] sm:$0x1]
    %v4632 = vld [vmem:[#allocation2 + $0x530] sm:$0x1]
    %v4633 = vsel %vm140, %v4629, 0.0
    %4634 = vadd.xlane.f32.xlu0 %v4633
    %v4635 = vpop.xlane.xlu0 %4634
    %v4636 = vsel %vm140, %v4630, 0.0
    %4637 = vadd.xlane.f32.xlu0 %v4636
    %v4638 = vpop.xlane.xlu0 %4637
    %v4639 = vmul.f32 %v4635, %v981
    %v4640 = vmul.f32 %v4638, %v981
    %v4641 = vsub.f32 %v4629, %v4639
    %v4642 = vsub.f32 %v4630, %v4640
    %v4643 = vmul.f32 %v4641, %v4641
    %v4644 = vmul.f32 %v4642, %v4642
    %v4645 = vsel %vm140, %v4643, 0.0
    %4646 = vadd.xlane.f32.xlu0 %v4645
    %v4647 = vpop.xlane.xlu0 %4646
    %v4648 = vsel %vm140, %v4644, 0.0
    %4649 = vadd.xlane.f32.xlu0 %v4648
    %v4650 = vpop.xlane.xlu0 %4649
    %v4651 = vmul.f32 %v4647, %v981
    %v4652 = vmul.f32 %v4650, %v981
    %v4653 = vadd.f32 %v4651, 1e-05
    %v4654 = vadd.f32 %v4652, 1e-05
    %v4655 = vrsqrt.pop %v4653
    %v4656 = vrsqrt.pop %v4654
    %v4657 = vmul.f32 %v4641, %v4655
    %v4658 = vmul.f32 %v4642, %v4656
    %v4659 = vlaneseq
    %v4660 = vshrl.u32 %v4659, 7
    %v4661 = vsub.s32 0, %v4660
    %v4662 = vrot.slane %v4631, %v4661
    %v4663 = vmul.f32 %v4657, %v4662
    %v4664 = vmul.f32 %v4658, %v4662
    %v4665 = vlaneseq
    %v4666 = vshrl.u32 %v4665, 7
    %v4667 = vsub.s32 0, %v4666
    %v4668 = vrot.slane %v4632, %v4667
    %v4669 = vadd.f32 %v4663, %v4668
    %v4670 = vadd.f32 %v4664, %v4668
    %v4671 = vld [vmem:[#allocation2 + $0x428] sm:$0xff]
    %v4672 = vld [vmem:[#allocation2 + $0x430] sm:$0xff]
    %v4673 = vld [vmem:[#allocation2 + $0x438] sm:$0xff]
    %v4674 = vld [vmem:[#allocation2 + $0x440] sm:$0xff]
    %v4675 = vld [vmem:[#allocation2 + $0x448] sm:$0x1]
    %v4676 = vld [vmem:[#allocation2 + $0x450] sm:$0xff]
    %v4677 = vld [vmem:[#allocation2 + $0x458] sm:$0xff]
    %v4678 = vld [vmem:[#allocation2 + $0x460] sm:$0xff]
    %v4679 = vld [vmem:[#allocation2 + $0x468] sm:$0xff]
    %v4680 = vld [vmem:[#allocation2 + $0x470] sm:$0x1]
    %v4681 = vlaneseq
    %v4682 = vshrl.u32 %v4681, 7
    %v4683 = vsub.s32 0, %v4682
    %v4684 = vrot.slane %v4675, %v4683
    %v4686 = vsel %vm140, %v4669, 0
    %v4689 = vsel %vm140, %v4670, 0
    %4691 = vmatprep.subr.mxu0 0.0
    %4692 = vmatpush1.msra.mxu0 0.0
    %4693 = vmatprep.subr.mxu0 0.0
    %4694 = vmatpush1.msra.mxu0 0.0
    %4695 = vmatprep.subr.mxu0 0.0
    %4696 = vmatpush1.msra.mxu0 0.0
    %4697 = vmatprep.subr.mxu0 0.0
    %4698 = vmatpush1.msra.mxu0 0.0
    %4699 = vmatprep.subr.mxu0 0.0
    %4700 = vmatpush1.msra.mxu0 0.0
    %4701 = vmatprep.subr.mxu0 0.0
    %4702 = vmatpush1.msra.mxu0 0.0
    %4703 = vmatprep.subr.mxu0 0.0
    %4704 = vmatpush1.msra.mxu0 0.0
    %4705 = vmatprep.subr.mxu0 0.0
    %4706 = vmatpush1.msra.mxu0 0.0
    %4707 = vmatprep.subr.mxu0 0.0
    %4708 = vmatpush1.msra.mxu0 0.0
    %4709 = vmatprep.subr.mxu0 0.0
    %4710 = vmatpush1.msra.mxu0 0.0
    %4711 = vmatprep.subr.mxu0 0.0
    %4712 = vmatpush1.msra.mxu0 0.0
    %4713 = vmatprep.subr.mxu0 0.0
    %4714 = vmatpush1.msra.mxu0 0.0
    %4715 = vmatprep.subr.mxu0 0.0
    %4716 = vmatpush1.msra.mxu0 %v4674
    %4717 = vmatprep.subr.mxu0 0.0
    %4718 = vmatpush1.msra.mxu0 %v4673
    %4719 = vmatprep.subr.mxu0 0.0
    %4720 = vmatpush1.msra.mxu0 %v4672
    %4721 = vmatprep.subr.mxu0 0.0
    %4722 = vmatpush1.msra.mxu0 %v4671
    %4723 = vmatprep.subr.mxu0 0.0
    %4724 = vmatpush2.msra.mxu0 0.0
    %4725 = vmatprep.subr.mxu0 0.0
    %4726 = vmatpush2.msra.mxu0 0.0
    %4727 = vmatprep.subr.mxu0 0.0
    %4728 = vmatpush2.msra.mxu0 0.0
    %4729 = vmatprep.subr.mxu0 0.0
    %4730 = vmatpush2.msra.mxu0 0.0
    %4731 = vmatprep.subr.mxu0 0.0
    %4732 = vmatpush2.msra.mxu0 0.0
    %4733 = vmatprep.subr.mxu0 0.0
    %4734 = vmatpush2.msra.mxu0 0.0
    %4735 = vmatprep.subr.mxu0 0.0
    %4736 = vmatpush2.msra.mxu0 0.0
    %4737 = vmatprep.subr.mxu0 0.0
    %4738 = vmatpush2.msra.mxu0 0.0
    %4739 = vmatprep.subr.mxu0 0.0
    %4740 = vmatpush2.msra.mxu0 0.0
    %4741 = vmatprep.subr.mxu0 0.0
    %4742 = vmatpush2.msra.mxu0 0.0
    %4743 = vmatprep.subr.mxu0 0.0
    %4744 = vmatpush2.msra.mxu0 0.0
    %4745 = vmatprep.subr.mxu0 0.0
    %4746 = vmatpush2.msra.mxu0 0.0
    %4747 = vmatprep.subr.mxu0 0.0
    %4748 = vmatpush2.msra.mxu0 0.0
    %4749 = vmatprep.subr.mxu0 0.0
    %4750 = vmatpush2.msra.mxu0 0.0
    %4751 = vmatprep.subr.mxu0 0.0
    %4752 = vmatpush2.msra.mxu0 0.0
    %4753 = vmatprep.subr.mxu0 0.0
    %4754 = vmatpush2.msra.mxu0 0.0
    %4755 = vmatprep.mubr.f32.mxu0 0.0
    %4756 = vmatmul.mubr.f32.gmra.mxu0 %v4686
    %v4757 = vpop.f32.mrf.mxu0
    %v4758 = vadd.f32 %v4684, %v4757
    %v4759 = vpop.f32.mrf.mxu0
    %4760 = vmatprep.mubr.f32.mxu0 0.0
    %4761 = vmatmul.mubr.f32.gmra.mxu0 %v4689
    %v4762 = vpop.f32.mrf.mxu0
    %v4763 = vadd.f32 %v4684, %v4762
    %v4764 = vpop.f32.mrf.mxu0
    %4765 = vdwg.mxu0
    %4770 = vrot.lane.b32.xlu0 %v4671, 96
    %v4771 = vpop.permute.xlu0 %4770
    %4772 = vrot.lane.b32.xlu0 %v4672, 96
    %v4773 = vpop.permute.xlu0 %4772
    %4774 = vrot.lane.b32.xlu0 %v4673, 96
    %v4775 = vpop.permute.xlu0 %4774
    %4776 = vrot.lane.b32.xlu0 %v4674, 96
    %v4777 = vpop.permute.xlu0 %4776
    %4783 = vrot.lane.b32.xlu0 %v4684, 96
    %v4784 = vpop.permute.xlu0 %4783
    %v4787 = vsel %vm140, %v1201, 0
    %v4790 = vsel %vm140, %v2355, 0
    %v4793 = vsel %vm140, %v3510, 0
    %v4796 = vsel %vm140, %v3511, 0
    %4798 = vmatprep.subr.mxu0 0.0
    %4799 = vmatpush1.msra.mxu0 0.0
    %4800 = vmatprep.subr.mxu0 0.0
    %4801 = vmatpush1.msra.mxu0 0.0
    %4802 = vmatprep.subr.mxu0 0.0
    %4803 = vmatpush1.msra.mxu0 0.0
    %4804 = vmatprep.subr.mxu0 0.0
    %4805 = vmatpush1.msra.mxu0 0.0
    %4806 = vmatprep.subr.mxu0 0.0
    %4807 = vmatpush1.msra.mxu0 0.0
    %4808 = vmatprep.subr.mxu0 0.0
    %4809 = vmatpush1.msra.mxu0 0.0
    %4810 = vmatprep.subr.mxu0 0.0
    %4811 = vmatpush1.msra.mxu0 0.0
    %4812 = vmatprep.subr.mxu0 0.0
    %4813 = vmatpush1.msra.mxu0 0.0
    %4814 = vmatprep.subr.mxu0 0.0
    %4815 = vmatpush1.msra.mxu0 0.0
    %4816 = vmatprep.subr.mxu0 0.0
    %4817 = vmatpush1.msra.mxu0 0.0
    %4818 = vmatprep.subr.mxu0 0.0
    %4819 = vmatpush1.msra.mxu0 0.0
    %4820 = vmatprep.subr.mxu0 0.0
    %4821 = vmatpush1.msra.mxu0 0.0
    %4822 = vmatprep.subr.mxu0 0.0
    %4823 = vmatpush1.msra.mxu0 %v4777
    %4824 = vmatprep.subr.mxu0 0.0
    %4825 = vmatpush1.msra.mxu0 %v4775
    %4826 = vmatprep.subr.mxu0 0.0
    %4827 = vmatpush1.msra.mxu0 %v4773
    %4828 = vmatprep.subr.mxu0 0.0
    %4829 = vmatpush1.msra.mxu0 %v4771
    %4830 = vmatprep.subr.mxu0 0.0
    %4831 = vmatpush2.msra.mxu0 0.0
    %4832 = vmatprep.subr.mxu0 0.0
    %4833 = vmatpush2.msra.mxu0 0.0
    %4834 = vmatprep.subr.mxu0 0.0
    %4835 = vmatpush2.msra.mxu0 0.0
    %4836 = vmatprep.subr.mxu0 0.0
    %4837 = vmatpush2.msra.mxu0 0.0
    %4838 = vmatprep.subr.mxu0 0.0
    %4839 = vmatpush2.msra.mxu0 0.0
    %4840 = vmatprep.subr.mxu0 0.0
    %4841 = vmatpush2.msra.mxu0 0.0
    %4842 = vmatprep.subr.mxu0 0.0
    %4843 = vmatpush2.msra.mxu0 0.0
    %4844 = vmatprep.subr.mxu0 0.0
    %4845 = vmatpush2.msra.mxu0 0.0
    %4846 = vmatprep.subr.mxu0 0.0
    %4847 = vmatpush2.msra.mxu0 0.0
    %4848 = vmatprep.subr.mxu0 0.0
    %4849 = vmatpush2.msra.mxu0 0.0
    %4850 = vmatprep.subr.mxu0 0.0
    %4851 = vmatpush2.msra.mxu0 0.0
    %4852 = vmatprep.subr.mxu0 0.0
    %4853 = vmatpush2.msra.mxu0 0.0
    %4854 = vmatprep.subr.mxu0 0.0
    %4855 = vmatpush2.msra.mxu0 0.0
    %4856 = vmatprep.subr.mxu0 0.0
    %4857 = vmatpush2.msra.mxu0 0.0
    %4858 = vmatprep.subr.mxu0 0.0
    %4859 = vmatpush2.msra.mxu0 0.0
    %4860 = vmatprep.subr.mxu0 0.0
    %4861 = vmatpush2.msra.mxu0 0.0
    %4862 = vmatprep.mubr.f32.mxu0 0.0
    %4863 = vmatmul.mubr.f32.gmra.mxu0 %v4787
    %v4864 = vpop.f32.mrf.mxu0
    %v4865 = vadd.f32 %v4784, %v4864
    %v4866 = vpop.f32.mrf.mxu0
    %4867 = vmatprep.mubr.f32.mxu0 0.0
    %4868 = vmatmul.mubr.f32.gmra.mxu0 %v4790
    %v4869 = vpop.f32.mrf.mxu0
    %v4870 = vadd.f32 %v4784, %v4869
    %v4871 = vpop.f32.mrf.mxu0
    %4872 = vmatprep.mubr.f32.mxu0 0.0
    %4873 = vmatmul.mubr.f32.gmra.mxu0 %v4793
    %v4874 = vpop.f32.mrf.mxu0
    %v4875 = vadd.f32 %v4784, %v4874
    %v4876 = vpop.f32.mrf.mxu0
    %4877 = vmatprep.mubr.f32.mxu0 0.0
    %4878 = vmatmul.mubr.f32.gmra.mxu0 %v4796
    %v4879 = vpop.f32.mrf.mxu0
    %v4880 = vadd.f32 %v4784, %v4879
    %v4881 = vpop.f32.mrf.mxu0
    %4882 = vdwg.mxu0
    %v4884 = vsel %vm217, %v4758, 0
    %v4887 = vsel %vm217, %v4763, 0
    %v4890 = vsel %vm217, %v4865, 0
    %v4893 = vsel %vm217, %v4870, 0
    %v4896 = vsel %vm217, %v4875, 0
    %v4899 = vsel %vm217, %v4880, 0
    %4901 = vmatprep.subr.mxu0 0.0
    %4902 = vmatpush1.xpose.msra.mxu0 0.0
    %4903 = vmatprep.subr.mxu0 0.0
    %4904 = vmatpush1.xpose.msra.mxu0 0.0
    %4905 = vmatprep.subr.mxu0 0.0
    %4906 = vmatpush1.xpose.msra.mxu0 0.0
    %4907 = vmatprep.subr.mxu0 0.0
    %4908 = vmatpush1.xpose.msra.mxu0 0.0
    %4909 = vmatprep.subr.mxu0 0.0
    %4910 = vmatpush1.xpose.msra.mxu0 0.0
    %4911 = vmatprep.subr.mxu0 0.0
    %4912 = vmatpush1.xpose.msra.mxu0 0.0
    %4913 = vmatprep.subr.mxu0 0.0
    %4914 = vmatpush1.xpose.msra.mxu0 0.0
    %4915 = vmatprep.subr.mxu0 0.0
    %4916 = vmatpush1.xpose.msra.mxu0 0.0
    %4917 = vmatprep.subr.mxu0 0.0
    %4918 = vmatpush1.xpose.msra.mxu0 0.0
    %4919 = vmatprep.subr.mxu0 0.0
    %4920 = vmatpush1.xpose.msra.mxu0 0.0
    %4921 = vmatprep.subr.mxu0 0.0
    %4922 = vmatpush1.xpose.msra.mxu0 0.0
    %4923 = vmatprep.subr.mxu0 0.0
    %4924 = vmatpush1.xpose.msra.mxu0 0.0
    %4925 = vmatprep.subr.mxu0 0.0
    %4926 = vmatpush1.xpose.msra.mxu0 %v4899
    %4927 = vmatprep.subr.mxu0 0.0
    %4928 = vmatpush1.xpose.msra.mxu0 %v4896
    %4929 = vmatprep.subr.mxu0 0.0
    %4930 = vmatpush1.xpose.msra.mxu0 %v4893
    %4931 = vmatprep.subr.mxu0 0.0
    %4932 = vmatpush1.xpose.msra.mxu0 %v4890
    %4933 = vmatprep.subr.mxu0 0.0
    %4934 = vmatpush2.xpose.msra.mxu0 0.0
    %4935 = vmatprep.subr.mxu0 0.0
    %4936 = vmatpush2.xpose.msra.mxu0 0.0
    %4937 = vmatprep.subr.mxu0 0.0
    %4938 = vmatpush2.xpose.msra.mxu0 0.0
    %4939 = vmatprep.subr.mxu0 0.0
    %4940 = vmatpush2.xpose.msra.mxu0 0.0
    %4941 = vmatprep.subr.mxu0 0.0
    %4942 = vmatpush2.xpose.msra.mxu0 0.0
    %4943 = vmatprep.subr.mxu0 0.0
    %4944 = vmatpush2.xpose.msra.mxu0 0.0
    %4945 = vmatprep.subr.mxu0 0.0
    %4946 = vmatpush2.xpose.msra.mxu0 0.0
    %4947 = vmatprep.subr.mxu0 0.0
    %4948 = vmatpush2.xpose.msra.mxu0 0.0
    %4949 = vmatprep.subr.mxu0 0.0
    %4950 = vmatpush2.xpose.msra.mxu0 0.0
    %4951 = vmatprep.subr.mxu0 0.0
    %4952 = vmatpush2.xpose.msra.mxu0 0.0
    %4953 = vmatprep.subr.mxu0 0.0
    %4954 = vmatpush2.xpose.msra.mxu0 0.0
    %4955 = vmatprep.subr.mxu0 0.0
    %4956 = vmatpush2.xpose.msra.mxu0 0.0
    %4957 = vmatprep.subr.mxu0 0.0
    %4958 = vmatpush2.xpose.msra.mxu0 0.0
    %4959 = vmatprep.subr.mxu0 0.0
    %4960 = vmatpush2.xpose.msra.mxu0 0.0
    %4961 = vmatprep.subr.mxu0 0.0
    %4962 = vmatpush2.xpose.msra.mxu0 0.0
    %4963 = vmatprep.subr.mxu0 0.0
    %4964 = vmatpush2.xpose.msra.mxu0 0.0
    %4965 = vmatprep.mubr.f32.mxu0 0.0
    %4966 = vmatmul.mubr.f32.gmra.mxu0 %v4884
    %v4967 = vpop.f32.mrf.mxu0
    %v4968 = vadd.f32 0.0, %v4967
    %v4969 = vpop.f32.mrf.mxu0
    %4970 = vmatprep.mubr.f32.mxu0 0.0
    %4971 = vmatmul.mubr.f32.gmra.mxu0 %v4887
    %v4972 = vpop.f32.mrf.mxu0
    %v4973 = vadd.f32 0.0, %v4972
    %v4974 = vpop.f32.mrf.mxu0
    %4975 = vdwg.mxu0
    %v4976 = vmul.f32 %v4968, 0.35355338
    %v4977 = vmul.f32 %v4973, 0.35355338
    %v4978 = vadd.f32 %v4976, %v40
    %v4979 = vadd.f32 %v4977, %v41
    %v4980 = vsel %vm140, %v4978, -inf
    %4981 = vmax.xlane.f32.xlu0 %v4980
    %v4982 = vpop.xlane.xlu0 %4981
    %v4983 = vsel %vm140, %v4979, -inf
    %4984 = vmax.xlane.f32.xlu0 %v4983
    %v4985 = vpop.xlane.xlu0 %4984
    %v4986 = vsub.f32 %v4978, %v4982
    %v4987 = vsub.f32 %v4979, %v4985
    %v4988 = vmul.f32 %v4986, 1.442695
    %v4989 = vpow.pop %v4988
    %v4990 = vmul.f32 %v4987, 1.442695
    %v4991 = vpow.pop %v4990
    %v4992 = vsel %vm140, %v4989, 0.0
    %4993 = vadd.xlane.f32.xlu0 %v4992
    %v4994 = vpop.xlane.xlu0 %4993
    %v4995 = vsel %vm140, %v4991, 0.0
    %4996 = vadd.xlane.f32.xlu0 %v4995
    %v4997 = vpop.xlane.xlu0 %4996
    %v4998 = vrcp.pop %v4994
    %v4999 = vrcp.pop %v4997
    %v5000 = vmul.f32 %v4989, %v4998
    %v5001 = vmul.f32 %v4991, %v4999
    %5002 = vrot.lane.b32.xlu0 %v4865, 96
    %v5003 = vpop.permute.xlu0 %5002
    %5004 = vrot.lane.b32.xlu0 %v4870, 96
    %v5005 = vpop.permute.xlu0 %5004
    %5006 = vrot.lane.b32.xlu0 %v4875, 96
    %v5007 = vpop.permute.xlu0 %5006
    %5008 = vrot.lane.b32.xlu0 %v4880, 96
    %v5009 = vpop.permute.xlu0 %5008
    %v5015 = vsel %vm140, %v5000, 0
    %v5018 = vsel %vm140, %v5001, 0
    %5020 = vmatprep.subr.mxu0 0.0
    %5021 = vmatpush1.msra.mxu0 0.0
    %5022 = vmatprep.subr.mxu0 0.0
    %5023 = vmatpush1.msra.mxu0 0.0
    %5024 = vmatprep.subr.mxu0 0.0
    %5025 = vmatpush1.msra.mxu0 0.0
    %5026 = vmatprep.subr.mxu0 0.0
    %5027 = vmatpush1.msra.mxu0 0.0
    %5028 = vmatprep.subr.mxu0 0.0
    %5029 = vmatpush1.msra.mxu0 0.0
    %5030 = vmatprep.subr.mxu0 0.0
    %5031 = vmatpush1.msra.mxu0 0.0
    %5032 = vmatprep.subr.mxu0 0.0
    %5033 = vmatpush1.msra.mxu0 0.0
    %5034 = vmatprep.subr.mxu0 0.0
    %5035 = vmatpush1.msra.mxu0 0.0
    %5036 = vmatprep.subr.mxu0 0.0
    %5037 = vmatpush1.msra.mxu0 0.0
    %5038 = vmatprep.subr.mxu0 0.0
    %5039 = vmatpush1.msra.mxu0 0.0
    %5040 = vmatprep.subr.mxu0 0.0
    %5041 = vmatpush1.msra.mxu0 0.0
    %5042 = vmatprep.subr.mxu0 0.0
    %5043 = vmatpush1.msra.mxu0 0.0
    %5044 = vmatprep.subr.mxu0 0.0
    %5045 = vmatpush1.msra.mxu0 %v5009
    %5046 = vmatprep.subr.mxu0 0.0
    %5047 = vmatpush1.msra.mxu0 %v5007
    %5048 = vmatprep.subr.mxu0 0.0
    %5049 = vmatpush1.msra.mxu0 %v5005
    %5050 = vmatprep.subr.mxu0 0.0
    %5051 = vmatpush1.msra.mxu0 %v5003
    %5052 = vmatprep.subr.mxu0 0.0
    %5053 = vmatpush2.msra.mxu0 0.0
    %5054 = vmatprep.subr.mxu0 0.0
    %5055 = vmatpush2.msra.mxu0 0.0
    %5056 = vmatprep.subr.mxu0 0.0
    %5057 = vmatpush2.msra.mxu0 0.0
    %5058 = vmatprep.subr.mxu0 0.0
    %5059 = vmatpush2.msra.mxu0 0.0
    %5060 = vmatprep.subr.mxu0 0.0
    %5061 = vmatpush2.msra.mxu0 0.0
    %5062 = vmatprep.subr.mxu0 0.0
    %5063 = vmatpush2.msra.mxu0 0.0
    %5064 = vmatprep.subr.mxu0 0.0
    %5065 = vmatpush2.msra.mxu0 0.0
    %5066 = vmatprep.subr.mxu0 0.0
    %5067 = vmatpush2.msra.mxu0 0.0
    %5068 = vmatprep.subr.mxu0 0.0
    %5069 = vmatpush2.msra.mxu0 0.0
    %5070 = vmatprep.subr.mxu0 0.0
    %5071 = vmatpush2.msra.mxu0 0.0
    %5072 = vmatprep.subr.mxu0 0.0
    %5073 = vmatpush2.msra.mxu0 0.0
    %5074 = vmatprep.subr.mxu0 0.0
    %5075 = vmatpush2.msra.mxu0 0.0
    %5076 = vmatprep.subr.mxu0 0.0
    %5077 = vmatpush2.msra.mxu0 0.0
    %5078 = vmatprep.subr.mxu0 0.0
    %5079 = vmatpush2.msra.mxu0 0.0
    %5080 = vmatprep.subr.mxu0 0.0
    %5081 = vmatpush2.msra.mxu0 0.0
    %5082 = vmatprep.subr.mxu0 0.0
    %5083 = vmatpush2.msra.mxu0 0.0
    %5084 = vmatprep.mubr.f32.mxu0 0.0
    %5085 = vmatmul.mubr.f32.gmra.mxu0 %v5015
    %v5086 = vpop.f32.mrf.mxu0
    %v5087 = vadd.f32 0.0, %v5086
    %v5088 = vpop.f32.mrf.mxu0
    %5089 = vmatprep.mubr.f32.mxu0 0.0
    %5090 = vmatmul.mubr.f32.gmra.mxu0 %v5018
    %v5091 = vpop.f32.mrf.mxu0
    %v5092 = vadd.f32 0.0, %v5091
    %v5093 = vpop.f32.mrf.mxu0
    %5094 = vdwg.mxu0
    %5095 = vrot.lane.b32.xlu0 %v4758, 120
    %v5096 = vpop.permute.xlu0 %5095
    %5097 = vrot.lane.b32.xlu0 %v4763, 120
    %v5098 = vpop.permute.xlu0 %5097
    %5099 = vrot.lane.b32.xlu0 %v4865, 120
    %v5100 = vpop.permute.xlu0 %5099
    %5101 = vrot.lane.b32.xlu0 %v4870, 120
    %v5102 = vpop.permute.xlu0 %5101
    %5103 = vrot.lane.b32.xlu0 %v4875, 120
    %v5104 = vpop.permute.xlu0 %5103
    %5105 = vrot.lane.b32.xlu0 %v4880, 120
    %v5106 = vpop.permute.xlu0 %5105
    %v5107 = vsel %vm217, %v5096, 0
    %v5109 = vsel %vm217, %v5098, 0
    %v5111 = vsel %vm217, %v5100, 0
    %v5113 = vsel %vm217, %v5102, 0
    %v5115 = vsel %vm217, %v5104, 0
    %v5117 = vsel %vm217, %v5106, 0
    %5119 = vmatprep.subr.mxu0 0.0
    %5120 = vmatpush1.xpose.msra.mxu0 0.0
    %5121 = vmatprep.subr.mxu0 0.0
    %5122 = vmatpush1.xpose.msra.mxu0 0.0
    %5123 = vmatprep.subr.mxu0 0.0
    %5124 = vmatpush1.xpose.msra.mxu0 0.0
    %5125 = vmatprep.subr.mxu0 0.0
    %5126 = vmatpush1.xpose.msra.mxu0 0.0
    %5127 = vmatprep.subr.mxu0 0.0
    %5128 = vmatpush1.xpose.msra.mxu0 0.0
    %5129 = vmatprep.subr.mxu0 0.0
    %5130 = vmatpush1.xpose.msra.mxu0 0.0
    %5131 = vmatprep.subr.mxu0 0.0
    %5132 = vmatpush1.xpose.msra.mxu0 0.0
    %5133 = vmatprep.subr.mxu0 0.0
    %5134 = vmatpush1.xpose.msra.mxu0 0.0
    %5135 = vmatprep.subr.mxu0 0.0
    %5136 = vmatpush1.xpose.msra.mxu0 0.0
    %5137 = vmatprep.subr.mxu0 0.0
    %5138 = vmatpush1.xpose.msra.mxu0 0.0
    %5139 = vmatprep.subr.mxu0 0.0
    %5140 = vmatpush1.xpose.msra.mxu0 0.0
    %5141 = vmatprep.subr.mxu0 0.0
    %5142 = vmatpush1.xpose.msra.mxu0 0.0
    %5143 = vmatprep.subr.mxu0 0.0
    %5144 = vmatpush1.xpose.msra.mxu0 %v5117
    %5145 = vmatprep.subr.mxu0 0.0
    %5146 = vmatpush1.xpose.msra.mxu0 %v5115
    %5147 = vmatprep.subr.mxu0 0.0
    %5148 = vmatpush1.xpose.msra.mxu0 %v5113
    %5149 = vmatprep.subr.mxu0 0.0
    %5150 = vmatpush1.xpose.msra.mxu0 %v5111
    %5151 = vmatprep.subr.mxu0 0.0
    %5152 = vmatpush2.xpose.msra.mxu0 0.0
    %5153 = vmatprep.subr.mxu0 0.0
    %5154 = vmatpush2.xpose.msra.mxu0 0.0
    %5155 = vmatprep.subr.mxu0 0.0
    %5156 = vmatpush2.xpose.msra.mxu0 0.0
    %5157 = vmatprep.subr.mxu0 0.0
    %5158 = vmatpush2.xpose.msra.mxu0 0.0
    %5159 = vmatprep.subr.mxu0 0.0
    %5160 = vmatpush2.xpose.msra.mxu0 0.0
    %5161 = vmatprep.subr.mxu0 0.0
    %5162 = vmatpush2.xpose.msra.mxu0 0.0
    %5163 = vmatprep.subr.mxu0 0.0
    %5164 = vmatpush2.xpose.msra.mxu0 0.0
    %5165 = vmatprep.subr.mxu0 0.0
    %5166 = vmatpush2.xpose.msra.mxu0 0.0
    %5167 = vmatprep.subr.mxu0 0.0
    %5168 = vmatpush2.xpose.msra.mxu0 0.0
    %5169 = vmatprep.subr.mxu0 0.0
    %5170 = vmatpush2.xpose.msra.mxu0 0.0
    %5171 = vmatprep.subr.mxu0 0.0
    %5172 = vmatpush2.xpose.msra.mxu0 0.0
    %5173 = vmatprep.subr.mxu0 0.0
    %5174 = vmatpush2.xpose.msra.mxu0 0.0
    %5175 = vmatprep.subr.mxu0 0.0
    %5176 = vmatpush2.xpose.msra.mxu0 0.0
    %5177 = vmatprep.subr.mxu0 0.0
    %5178 = vmatpush2.xpose.msra.mxu0 0.0
    %5179 = vmatprep.subr.mxu0 0.0
    %5180 = vmatpush2.xpose.msra.mxu0 0.0
    %5181 = vmatprep.subr.mxu0 0.0
    %5182 = vmatpush2.xpose.msra.mxu0 0.0
    %5183 = vmatprep.mubr.f32.mxu0 0.0
    %5184 = vmatmul.mubr.f32.gmra.mxu0 %v5107
    %v5185 = vpop.f32.mrf.mxu0
    %v5186 = vadd.f32 0.0, %v5185
    %v5187 = vpop.f32.mrf.mxu0
    %5188 = vmatprep.mubr.f32.mxu0 0.0
    %5189 = vmatmul.mubr.f32.gmra.mxu0 %v5109
    %v5190 = vpop.f32.mrf.mxu0
    %v5191 = vadd.f32 0.0, %v5190
    %v5192 = vpop.f32.mrf.mxu0
    %5193 = vdwg.mxu0
    %v5194 = vmul.f32 %v5186, 0.35355338
    %v5195 = vmul.f32 %v5191, 0.35355338
    %v5196 = vadd.f32 %v5194, %v40
    %v5197 = vadd.f32 %v5195, %v41
    %v5198 = vsel %vm140, %v5196, -inf
    %5199 = vmax.xlane.f32.xlu0 %v5198
    %v5200 = vpop.xlane.xlu0 %5199
    %v5201 = vsel %vm140, %v5197, -inf
    %5202 = vmax.xlane.f32.xlu0 %v5201
    %v5203 = vpop.xlane.xlu0 %5202
    %v5204 = vsub.f32 %v5196, %v5200
    %v5205 = vsub.f32 %v5197, %v5203
    %v5206 = vmul.f32 %v5204, 1.442695
    %v5207 = vpow.pop %v5206
    %v5208 = vmul.f32 %v5205, 1.442695
    %v5209 = vpow.pop %v5208
    %v5210 = vsel %vm140, %v5207, 0.0
    %5211 = vadd.xlane.f32.xlu0 %v5210
    %v5212 = vpop.xlane.xlu0 %5211
    %v5213 = vsel %vm140, %v5209, 0.0
    %5214 = vadd.xlane.f32.xlu0 %v5213
    %v5215 = vpop.xlane.xlu0 %5214
    %v5216 = vrcp.pop %v5212
    %v5217 = vrcp.pop %v5215
    %v5218 = vmul.f32 %v5207, %v5216
    %v5219 = vmul.f32 %v5209, %v5217
    %5220 = vrot.lane.b32.xlu0 %v4865, 88
    %v5221 = vpop.permute.xlu0 %5220
    %5222 = vrot.lane.b32.xlu0 %v4870, 88
    %v5223 = vpop.permute.xlu0 %5222
    %5224 = vrot.lane.b32.xlu0 %v4875, 88
    %v5225 = vpop.permute.xlu0 %5224
    %5226 = vrot.lane.b32.xlu0 %v4880, 88
    %v5227 = vpop.permute.xlu0 %5226
    %v5233 = vsel %vm140, %v5218, 0
    %v5236 = vsel %vm140, %v5219, 0
    %5238 = vmatprep.subr.mxu0 0.0
    %5239 = vmatpush1.msra.mxu0 0.0
    %5240 = vmatprep.subr.mxu0 0.0
    %5241 = vmatpush1.msra.mxu0 0.0
    %5242 = vmatprep.subr.mxu0 0.0
    %5243 = vmatpush1.msra.mxu0 0.0
    %5244 = vmatprep.subr.mxu0 0.0
    %5245 = vmatpush1.msra.mxu0 0.0
    %5246 = vmatprep.subr.mxu0 0.0
    %5247 = vmatpush1.msra.mxu0 0.0
    %5248 = vmatprep.subr.mxu0 0.0
    %5249 = vmatpush1.msra.mxu0 0.0
    %5250 = vmatprep.subr.mxu0 0.0
    %5251 = vmatpush1.msra.mxu0 0.0
    %5252 = vmatprep.subr.mxu0 0.0
    %5253 = vmatpush1.msra.mxu0 0.0
    %5254 = vmatprep.subr.mxu0 0.0
    %5255 = vmatpush1.msra.mxu0 0.0
    %5256 = vmatprep.subr.mxu0 0.0
    %5257 = vmatpush1.msra.mxu0 0.0
    %5258 = vmatprep.subr.mxu0 0.0
    %5259 = vmatpush1.msra.mxu0 0.0
    %5260 = vmatprep.subr.mxu0 0.0
    %5261 = vmatpush1.msra.mxu0 0.0
    %5262 = vmatprep.subr.mxu0 0.0
    %5263 = vmatpush1.msra.mxu0 %v5227
    %5264 = vmatprep.subr.mxu0 0.0
    %5265 = vmatpush1.msra.mxu0 %v5225
    %5266 = vmatprep.subr.mxu0 0.0
    %5267 = vmatpush1.msra.mxu0 %v5223
    %5268 = vmatprep.subr.mxu0 0.0
    %5269 = vmatpush1.msra.mxu0 %v5221
    %5270 = vmatprep.subr.mxu0 0.0
    %5271 = vmatpush2.msra.mxu0 0.0
    %5272 = vmatprep.subr.mxu0 0.0
    %5273 = vmatpush2.msra.mxu0 0.0
    %5274 = vmatprep.subr.mxu0 0.0
    %5275 = vmatpush2.msra.mxu0 0.0
    %5276 = vmatprep.subr.mxu0 0.0
    %5277 = vmatpush2.msra.mxu0 0.0
    %5278 = vmatprep.subr.mxu0 0.0
    %5279 = vmatpush2.msra.mxu0 0.0
    %5280 = vmatprep.subr.mxu0 0.0
    %5281 = vmatpush2.msra.mxu0 0.0
    %5282 = vmatprep.subr.mxu0 0.0
    %5283 = vmatpush2.msra.mxu0 0.0
    %5284 = vmatprep.subr.mxu0 0.0
    %5285 = vmatpush2.msra.mxu0 0.0
    %5286 = vmatprep.subr.mxu0 0.0
    %5287 = vmatpush2.msra.mxu0 0.0
    %5288 = vmatprep.subr.mxu0 0.0
    %5289 = vmatpush2.msra.mxu0 0.0
    %5290 = vmatprep.subr.mxu0 0.0
    %5291 = vmatpush2.msra.mxu0 0.0
    %5292 = vmatprep.subr.mxu0 0.0
    %5293 = vmatpush2.msra.mxu0 0.0
    %5294 = vmatprep.subr.mxu0 0.0
    %5295 = vmatpush2.msra.mxu0 0.0
    %5296 = vmatprep.subr.mxu0 0.0
    %5297 = vmatpush2.msra.mxu0 0.0
    %5298 = vmatprep.subr.mxu0 0.0
    %5299 = vmatpush2.msra.mxu0 0.0
    %5300 = vmatprep.subr.mxu0 0.0
    %5301 = vmatpush2.msra.mxu0 0.0
    %5302 = vmatprep.mubr.f32.mxu0 0.0
    %5303 = vmatmul.mubr.f32.gmra.mxu0 %v5233
    %v5304 = vpop.f32.mrf.mxu0
    %v5305 = vadd.f32 0.0, %v5304
    %v5306 = vpop.f32.mrf.mxu0
    %5307 = vmatprep.mubr.f32.mxu0 0.0
    %5308 = vmatmul.mubr.f32.gmra.mxu0 %v5236
    %v5309 = vpop.f32.mrf.mxu0
    %v5310 = vadd.f32 0.0, %v5309
    %v5311 = vpop.f32.mrf.mxu0
    %5312 = vdwg.mxu0
    %5313 = vrot.lane.b32.xlu0 %v4758, 112
    %v5314 = vpop.permute.xlu0 %5313
    %5315 = vrot.lane.b32.xlu0 %v4763, 112
    %v5316 = vpop.permute.xlu0 %5315
    %5317 = vrot.lane.b32.xlu0 %v4865, 112
    %v5318 = vpop.permute.xlu0 %5317
    %5319 = vrot.lane.b32.xlu0 %v4870, 112
    %v5320 = vpop.permute.xlu0 %5319
    %5321 = vrot.lane.b32.xlu0 %v4875, 112
    %v5322 = vpop.permute.xlu0 %5321
    %5323 = vrot.lane.b32.xlu0 %v4880, 112
    %v5324 = vpop.permute.xlu0 %5323
    %v5325 = vsel %vm217, %v5314, 0
    %v5327 = vsel %vm217, %v5316, 0
    %v5329 = vsel %vm217, %v5318, 0
    %v5331 = vsel %vm217, %v5320, 0
    %v5333 = vsel %vm217, %v5322, 0
    %v5335 = vsel %vm217, %v5324, 0
    %5337 = vmatprep.subr.mxu0 0.0
    %5338 = vmatpush1.xpose.msra.mxu0 0.0
    %5339 = vmatprep.subr.mxu0 0.0
    %5340 = vmatpush1.xpose.msra.mxu0 0.0
    %5341 = vmatprep.subr.mxu0 0.0
    %5342 = vmatpush1.xpose.msra.mxu0 0.0
    %5343 = vmatprep.subr.mxu0 0.0
    %5344 = vmatpush1.xpose.msra.mxu0 0.0
    %5345 = vmatprep.subr.mxu0 0.0
    %5346 = vmatpush1.xpose.msra.mxu0 0.0
    %5347 = vmatprep.subr.mxu0 0.0
    %5348 = vmatpush1.xpose.msra.mxu0 0.0
    %5349 = vmatprep.subr.mxu0 0.0
    %5350 = vmatpush1.xpose.msra.mxu0 0.0
    %5351 = vmatprep.subr.mxu0 0.0
    %5352 = vmatpush1.xpose.msra.mxu0 0.0
    %5353 = vmatprep.subr.mxu0 0.0
    %5354 = vmatpush1.xpose.msra.mxu0 0.0
    %5355 = vmatprep.subr.mxu0 0.0
    %5356 = vmatpush1.xpose.msra.mxu0 0.0
    %5357 = vmatprep.subr.mxu0 0.0
    %5358 = vmatpush1.xpose.msra.mxu0 0.0
    %5359 = vmatprep.subr.mxu0 0.0
    %5360 = vmatpush1.xpose.msra.mxu0 0.0
    %5361 = vmatprep.subr.mxu0 0.0
    %5362 = vmatpush1.xpose.msra.mxu0 %v5335
    %5363 = vmatprep.subr.mxu0 0.0
    %5364 = vmatpush1.xpose.msra.mxu0 %v5333
    %5365 = vmatprep.subr.mxu0 0.0
    %5366 = vmatpush1.xpose.msra.mxu0 %v5331
    %5367 = vmatprep.subr.mxu0 0.0
    %5368 = vmatpush1.xpose.msra.mxu0 %v5329
    %5369 = vmatprep.subr.mxu0 0.0
    %5370 = vmatpush2.xpose.msra.mxu0 0.0
    %5371 = vmatprep.subr.mxu0 0.0
    %5372 = vmatpush2.xpose.msra.mxu0 0.0
    %5373 = vmatprep.subr.mxu0 0.0
    %5374 = vmatpush2.xpose.msra.mxu0 0.0
    %5375 = vmatprep.subr.mxu0 0.0
    %5376 = vmatpush2.xpose.msra.mxu0 0.0
    %5377 = vmatprep.subr.mxu0 0.0
    %5378 = vmatpush2.xpose.msra.mxu0 0.0
    %5379 = vmatprep.subr.mxu0 0.0
    %5380 = vmatpush2.xpose.msra.mxu0 0.0
    %5381 = vmatprep.subr.mxu0 0.0
    %5382 = vmatpush2.xpose.msra.mxu0 0.0
    %5383 = vmatprep.subr.mxu0 0.0
    %5384 = vmatpush2.xpose.msra.mxu0 0.0
    %5385 = vmatprep.subr.mxu0 0.0
    %5386 = vmatpush2.xpose.msra.mxu0 0.0
    %5387 = vmatprep.subr.mxu0 0.0
    %5388 = vmatpush2.xpose.msra.mxu0 0.0
    %5389 = vmatprep.subr.mxu0 0.0
    %5390 = vmatpush2.xpose.msra.mxu0 0.0
    %5391 = vmatprep.subr.mxu0 0.0
    %5392 = vmatpush2.xpose.msra.mxu0 0.0
    %5393 = vmatprep.subr.mxu0 0.0
    %5394 = vmatpush2.xpose.msra.mxu0 0.0
    %5395 = vmatprep.subr.mxu0 0.0
    %5396 = vmatpush2.xpose.msra.mxu0 0.0
    %5397 = vmatprep.subr.mxu0 0.0
    %5398 = vmatpush2.xpose.msra.mxu0 0.0
    %5399 = vmatprep.subr.mxu0 0.0
    %5400 = vmatpush2.xpose.msra.mxu0 0.0
    %5401 = vmatprep.mubr.f32.mxu0 0.0
    %5402 = vmatmul.mubr.f32.gmra.mxu0 %v5325
    %v5403 = vpop.f32.mrf.mxu0
    %v5404 = vadd.f32 0.0, %v5403
    %v5405 = vpop.f32.mrf.mxu0
    %5406 = vmatprep.mubr.f32.mxu0 0.0
    %5407 = vmatmul.mubr.f32.gmra.mxu0 %v5327
    %v5408 = vpop.f32.mrf.mxu0
    %v5409 = vadd.f32 0.0, %v5408
    %v5410 = vpop.f32.mrf.mxu0
    %5411 = vdwg.mxu0
    %v5412 = vmul.f32 %v5404, 0.35355338
    %v5413 = vmul.f32 %v5409, 0.35355338
    %v5414 = vadd.f32 %v5412, %v40
    %v5415 = vadd.f32 %v5413, %v41
    %v5416 = vsel %vm140, %v5414, -inf
    %5417 = vmax.xlane.f32.xlu0 %v5416
    %v5418 = vpop.xlane.xlu0 %5417
    %v5419 = vsel %vm140, %v5415, -inf
    %5420 = vmax.xlane.f32.xlu0 %v5419
    %v5421 = vpop.xlane.xlu0 %5420
    %v5422 = vsub.f32 %v5414, %v5418
    %v5423 = vsub.f32 %v5415, %v5421
    %v5424 = vmul.f32 %v5422, 1.442695
    %v5425 = vpow.pop %v5424
    %v5426 = vmul.f32 %v5423, 1.442695
    %v5427 = vpow.pop %v5426
    %v5428 = vsel %vm140, %v5425, 0.0
    %5429 = vadd.xlane.f32.xlu0 %v5428
    %v5430 = vpop.xlane.xlu0 %5429
    %v5431 = vsel %vm140, %v5427, 0.0
    %5432 = vadd.xlane.f32.xlu0 %v5431
    %v5433 = vpop.xlane.xlu0 %5432
    %v5434 = vrcp.pop %v5430
    %v5435 = vrcp.pop %v5433
    %v5436 = vmul.f32 %v5425, %v5434
    %v5437 = vmul.f32 %v5427, %v5435
    %5438 = vrot.lane.b32.xlu0 %v4865, 80
    %v5439 = vpop.permute.xlu0 %5438
    %5440 = vrot.lane.b32.xlu0 %v4870, 80
    %v5441 = vpop.permute.xlu0 %5440
    %5442 = vrot.lane.b32.xlu0 %v4875, 80
    %v5443 = vpop.permute.xlu0 %5442
    %5444 = vrot.lane.b32.xlu0 %v4880, 80
    %v5445 = vpop.permute.xlu0 %5444
    %v5451 = vsel %vm140, %v5436, 0
    %v5454 = vsel %vm140, %v5437, 0
    %5456 = vmatprep.subr.mxu0 0.0
    %5457 = vmatpush1.msra.mxu0 0.0
    %5458 = vmatprep.subr.mxu0 0.0
    %5459 = vmatpush1.msra.mxu0 0.0
    %5460 = vmatprep.subr.mxu0 0.0
    %5461 = vmatpush1.msra.mxu0 0.0
    %5462 = vmatprep.subr.mxu0 0.0
    %5463 = vmatpush1.msra.mxu0 0.0
    %5464 = vmatprep.subr.mxu0 0.0
    %5465 = vmatpush1.msra.mxu0 0.0
    %5466 = vmatprep.subr.mxu0 0.0
    %5467 = vmatpush1.msra.mxu0 0.0
    %5468 = vmatprep.subr.mxu0 0.0
    %5469 = vmatpush1.msra.mxu0 0.0
    %5470 = vmatprep.subr.mxu0 0.0
    %5471 = vmatpush1.msra.mxu0 0.0
    %5472 = vmatprep.subr.mxu0 0.0
    %5473 = vmatpush1.msra.mxu0 0.0
    %5474 = vmatprep.subr.mxu0 0.0
    %5475 = vmatpush1.msra.mxu0 0.0
    %5476 = vmatprep.subr.mxu0 0.0
    %5477 = vmatpush1.msra.mxu0 0.0
    %5478 = vmatprep.subr.mxu0 0.0
    %5479 = vmatpush1.msra.mxu0 0.0
    %5480 = vmatprep.subr.mxu0 0.0
    %5481 = vmatpush1.msra.mxu0 %v5445
    %5482 = vmatprep.subr.mxu0 0.0
    %5483 = vmatpush1.msra.mxu0 %v5443
    %5484 = vmatprep.subr.mxu0 0.0
    %5485 = vmatpush1.msra.mxu0 %v5441
    %5486 = vmatprep.subr.mxu0 0.0
    %5487 = vmatpush1.msra.mxu0 %v5439
    %5488 = vmatprep.subr.mxu0 0.0
    %5489 = vmatpush2.msra.mxu0 0.0
    %5490 = vmatprep.subr.mxu0 0.0
    %5491 = vmatpush2.msra.mxu0 0.0
    %5492 = vmatprep.subr.mxu0 0.0
    %5493 = vmatpush2.msra.mxu0 0.0
    %5494 = vmatprep.subr.mxu0 0.0
    %5495 = vmatpush2.msra.mxu0 0.0
    %5496 = vmatprep.subr.mxu0 0.0
    %5497 = vmatpush2.msra.mxu0 0.0
    %5498 = vmatprep.subr.mxu0 0.0
    %5499 = vmatpush2.msra.mxu0 0.0
    %5500 = vmatprep.subr.mxu0 0.0
    %5501 = vmatpush2.msra.mxu0 0.0
    %5502 = vmatprep.subr.mxu0 0.0
    %5503 = vmatpush2.msra.mxu0 0.0
    %5504 = vmatprep.subr.mxu0 0.0
    %5505 = vmatpush2.msra.mxu0 0.0
    %5506 = vmatprep.subr.mxu0 0.0
    %5507 = vmatpush2.msra.mxu0 0.0
    %5508 = vmatprep.subr.mxu0 0.0
    %5509 = vmatpush2.msra.mxu0 0.0
    %5510 = vmatprep.subr.mxu0 0.0
    %5511 = vmatpush2.msra.mxu0 0.0
    %5512 = vmatprep.subr.mxu0 0.0
    %5513 = vmatpush2.msra.mxu0 0.0
    %5514 = vmatprep.subr.mxu0 0.0
    %5515 = vmatpush2.msra.mxu0 0.0
    %5516 = vmatprep.subr.mxu0 0.0
    %5517 = vmatpush2.msra.mxu0 0.0
    %5518 = vmatprep.subr.mxu0 0.0
    %5519 = vmatpush2.msra.mxu0 0.0
    %5520 = vmatprep.mubr.f32.mxu0 0.0
    %5521 = vmatmul.mubr.f32.gmra.mxu0 %v5451
    %v5522 = vpop.f32.mrf.mxu0
    %v5523 = vadd.f32 0.0, %v5522
    %v5524 = vpop.f32.mrf.mxu0
    %5525 = vmatprep.mubr.f32.mxu0 0.0
    %5526 = vmatmul.mubr.f32.gmra.mxu0 %v5454
    %v5527 = vpop.f32.mrf.mxu0
    %v5528 = vadd.f32 0.0, %v5527
    %v5529 = vpop.f32.mrf.mxu0
    %5530 = vdwg.mxu0
    %5531 = vrot.lane.b32.xlu0 %v4758, 104
    %v5532 = vpop.permute.xlu0 %5531
    %5533 = vrot.lane.b32.xlu0 %v4763, 104
    %v5534 = vpop.permute.xlu0 %5533
    %5535 = vrot.lane.b32.xlu0 %v4865, 104
    %v5536 = vpop.permute.xlu0 %5535
    %5537 = vrot.lane.b32.xlu0 %v4870, 104
    %v5538 = vpop.permute.xlu0 %5537
    %5539 = vrot.lane.b32.xlu0 %v4875, 104
    %v5540 = vpop.permute.xlu0 %5539
    %5541 = vrot.lane.b32.xlu0 %v4880, 104
    %v5542 = vpop.permute.xlu0 %5541
    %v5543 = vsel %vm217, %v5532, 0
    %v5545 = vsel %vm217, %v5534, 0
    %v5547 = vsel %vm217, %v5536, 0
    %v5549 = vsel %vm217, %v5538, 0
    %v5551 = vsel %vm217, %v5540, 0
    %v5553 = vsel %vm217, %v5542, 0
    %5555 = vmatprep.subr.mxu0 0.0
    %5556 = vmatpush1.xpose.msra.mxu0 0.0
    %5557 = vmatprep.subr.mxu0 0.0
    %5558 = vmatpush1.xpose.msra.mxu0 0.0
    %5559 = vmatprep.subr.mxu0 0.0
    %5560 = vmatpush1.xpose.msra.mxu0 0.0
    %5561 = vmatprep.subr.mxu0 0.0
    %5562 = vmatpush1.xpose.msra.mxu0 0.0
    %5563 = vmatprep.subr.mxu0 0.0
    %5564 = vmatpush1.xpose.msra.mxu0 0.0
    %5565 = vmatprep.subr.mxu0 0.0
    %5566 = vmatpush1.xpose.msra.mxu0 0.0
    %5567 = vmatprep.subr.mxu0 0.0
    %5568 = vmatpush1.xpose.msra.mxu0 0.0
    %5569 = vmatprep.subr.mxu0 0.0
    %5570 = vmatpush1.xpose.msra.mxu0 0.0
    %5571 = vmatprep.subr.mxu0 0.0
    %5572 = vmatpush1.xpose.msra.mxu0 0.0
    %5573 = vmatprep.subr.mxu0 0.0
    %5574 = vmatpush1.xpose.msra.mxu0 0.0
    %5575 = vmatprep.subr.mxu0 0.0
    %5576 = vmatpush1.xpose.msra.mxu0 0.0
    %5577 = vmatprep.subr.mxu0 0.0
    %5578 = vmatpush1.xpose.msra.mxu0 0.0
    %5579 = vmatprep.subr.mxu0 0.0
    %5580 = vmatpush1.xpose.msra.mxu0 %v5553
    %5581 = vmatprep.subr.mxu0 0.0
    %5582 = vmatpush1.xpose.msra.mxu0 %v5551
    %5583 = vmatprep.subr.mxu0 0.0
    %5584 = vmatpush1.xpose.msra.mxu0 %v5549
    %5585 = vmatprep.subr.mxu0 0.0
    %5586 = vmatpush1.xpose.msra.mxu0 %v5547
    %5587 = vmatprep.subr.mxu0 0.0
    %5588 = vmatpush2.xpose.msra.mxu0 0.0
    %5589 = vmatprep.subr.mxu0 0.0
    %5590 = vmatpush2.xpose.msra.mxu0 0.0
    %5591 = vmatprep.subr.mxu0 0.0
    %5592 = vmatpush2.xpose.msra.mxu0 0.0
    %5593 = vmatprep.subr.mxu0 0.0
    %5594 = vmatpush2.xpose.msra.mxu0 0.0
    %5595 = vmatprep.subr.mxu0 0.0
    %5596 = vmatpush2.xpose.msra.mxu0 0.0
    %5597 = vmatprep.subr.mxu0 0.0
    %5598 = vmatpush2.xpose.msra.mxu0 0.0
    %5599 = vmatprep.subr.mxu0 0.0
    %5600 = vmatpush2.xpose.msra.mxu0 0.0
    %5601 = vmatprep.subr.mxu0 0.0
    %5602 = vmatpush2.xpose.msra.mxu0 0.0
    %5603 = vmatprep.subr.mxu0 0.0
    %5604 = vmatpush2.xpose.msra.mxu0 0.0
    %5605 = vmatprep.subr.mxu0 0.0
    %5606 = vmatpush2.xpose.msra.mxu0 0.0
    %5607 = vmatprep.subr.mxu0 0.0
    %5608 = vmatpush2.xpose.msra.mxu0 0.0
    %5609 = vmatprep.subr.mxu0 0.0
    %5610 = vmatpush2.xpose.msra.mxu0 0.0
    %5611 = vmatprep.subr.mxu0 0.0
    %5612 = vmatpush2.xpose.msra.mxu0 0.0
    %5613 = vmatprep.subr.mxu0 0.0
    %5614 = vmatpush2.xpose.msra.mxu0 0.0
    %5615 = vmatprep.subr.mxu0 0.0
    %5616 = vmatpush2.xpose.msra.mxu0 0.0
    %5617 = vmatprep.subr.mxu0 0.0
    %5618 = vmatpush2.xpose.msra.mxu0 0.0
    %5619 = vmatprep.mubr.f32.mxu0 0.0
    %5620 = vmatmul.mubr.f32.gmra.mxu0 %v5543
    %v5621 = vpop.f32.mrf.mxu0
    %v5622 = vadd.f32 0.0, %v5621
    %v5623 = vpop.f32.mrf.mxu0
    %5624 = vmatprep.mubr.f32.mxu0 0.0
    %5625 = vmatmul.mubr.f32.gmra.mxu0 %v5545
    %v5626 = vpop.f32.mrf.mxu0
    %v5627 = vadd.f32 0.0, %v5626
    %v5628 = vpop.f32.mrf.mxu0
    %5629 = vdwg.mxu0
    %v5630 = vmul.f32 %v5622, 0.35355338
    %v5631 = vmul.f32 %v5627, 0.35355338
    %v5632 = vadd.f32 %v5630, %v40
    %v5633 = vadd.f32 %v5631, %v41
    %v5634 = vsel %vm140, %v5632, -inf
    %5635 = vmax.xlane.f32.xlu0 %v5634
    %v5636 = vpop.xlane.xlu0 %5635
    %v5637 = vsel %vm140, %v5633, -inf
    %5638 = vmax.xlane.f32.xlu0 %v5637
    %v5639 = vpop.xlane.xlu0 %5638
    %v5640 = vsub.f32 %v5632, %v5636
    %v5641 = vsub.f32 %v5633, %v5639
    %v5642 = vmul.f32 %v5640, 1.442695
    %v5643 = vpow.pop %v5642
    %v5644 = vmul.f32 %v5641, 1.442695
    %v5645 = vpow.pop %v5644
    %v5646 = vsel %vm140, %v5643, 0.0
    %5647 = vadd.xlane.f32.xlu0 %v5646
    %v5648 = vpop.xlane.xlu0 %5647
    %v5649 = vsel %vm140, %v5645, 0.0
    %5650 = vadd.xlane.f32.xlu0 %v5649
    %v5651 = vpop.xlane.xlu0 %5650
    %v5652 = vrcp.pop %v5648
    %v5653 = vrcp.pop %v5651
    %v5654 = vmul.f32 %v5643, %v5652
    %v5655 = vmul.f32 %v5645, %v5653
    %5656 = vrot.lane.b32.xlu0 %v4865, 72
    %v5657 = vpop.permute.xlu0 %5656
    %5658 = vrot.lane.b32.xlu0 %v4870, 72
    %v5659 = vpop.permute.xlu0 %5658
    %5660 = vrot.lane.b32.xlu0 %v4875, 72
    %v5661 = vpop.permute.xlu0 %5660
    %5662 = vrot.lane.b32.xlu0 %v4880, 72
    %v5663 = vpop.permute.xlu0 %5662
    %v5669 = vsel %vm140, %v5654, 0
    %v5672 = vsel %vm140, %v5655, 0
    %5674 = vmatprep.subr.mxu0 0.0
    %5675 = vmatpush1.msra.mxu0 0.0
    %5676 = vmatprep.subr.mxu0 0.0
    %5677 = vmatpush1.msra.mxu0 0.0
    %5678 = vmatprep.subr.mxu0 0.0
    %5679 = vmatpush1.msra.mxu0 0.0
    %5680 = vmatprep.subr.mxu0 0.0
    %5681 = vmatpush1.msra.mxu0 0.0
    %5682 = vmatprep.subr.mxu0 0.0
    %5683 = vmatpush1.msra.mxu0 0.0
    %5684 = vmatprep.subr.mxu0 0.0
    %5685 = vmatpush1.msra.mxu0 0.0
    %5686 = vmatprep.subr.mxu0 0.0
    %5687 = vmatpush1.msra.mxu0 0.0
    %5688 = vmatprep.subr.mxu0 0.0
    %5689 = vmatpush1.msra.mxu0 0.0
    %5690 = vmatprep.subr.mxu0 0.0
    %5691 = vmatpush1.msra.mxu0 0.0
    %5692 = vmatprep.subr.mxu0 0.0
    %5693 = vmatpush1.msra.mxu0 0.0
    %5694 = vmatprep.subr.mxu0 0.0
    %5695 = vmatpush1.msra.mxu0 0.0
    %5696 = vmatprep.subr.mxu0 0.0
    %5697 = vmatpush1.msra.mxu0 0.0
    %5698 = vmatprep.subr.mxu0 0.0
    %5699 = vmatpush1.msra.mxu0 %v5663
    %5700 = vmatprep.subr.mxu0 0.0
    %5701 = vmatpush1.msra.mxu0 %v5661
    %5702 = vmatprep.subr.mxu0 0.0
    %5703 = vmatpush1.msra.mxu0 %v5659
    %5704 = vmatprep.subr.mxu0 0.0
    %5705 = vmatpush1.msra.mxu0 %v5657
    %5706 = vmatprep.subr.mxu0 0.0
    %5707 = vmatpush2.msra.mxu0 0.0
    %5708 = vmatprep.subr.mxu0 0.0
    %5709 = vmatpush2.msra.mxu0 0.0
    %5710 = vmatprep.subr.mxu0 0.0
    %5711 = vmatpush2.msra.mxu0 0.0
    %5712 = vmatprep.subr.mxu0 0.0
    %5713 = vmatpush2.msra.mxu0 0.0
    %5714 = vmatprep.subr.mxu0 0.0
    %5715 = vmatpush2.msra.mxu0 0.0
    %5716 = vmatprep.subr.mxu0 0.0
    %5717 = vmatpush2.msra.mxu0 0.0
    %5718 = vmatprep.subr.mxu0 0.0
    %5719 = vmatpush2.msra.mxu0 0.0
    %5720 = vmatprep.subr.mxu0 0.0
    %5721 = vmatpush2.msra.mxu0 0.0
    %5722 = vmatprep.subr.mxu0 0.0
    %5723 = vmatpush2.msra.mxu0 0.0
    %5724 = vmatprep.subr.mxu0 0.0
    %5725 = vmatpush2.msra.mxu0 0.0
    %5726 = vmatprep.subr.mxu0 0.0
    %5727 = vmatpush2.msra.mxu0 0.0
    %5728 = vmatprep.subr.mxu0 0.0
    %5729 = vmatpush2.msra.mxu0 0.0
    %5730 = vmatprep.subr.mxu0 0.0
    %5731 = vmatpush2.msra.mxu0 0.0
    %5732 = vmatprep.subr.mxu0 0.0
    %5733 = vmatpush2.msra.mxu0 0.0
    %5734 = vmatprep.subr.mxu0 0.0
    %5735 = vmatpush2.msra.mxu0 0.0
    %5736 = vmatprep.subr.mxu0 0.0
    %5737 = vmatpush2.msra.mxu0 0.0
    %5738 = vmatprep.mubr.f32.mxu0 0.0
    %5739 = vmatmul.mubr.f32.gmra.mxu0 %v5669
    %v5740 = vpop.f32.mrf.mxu0
    %v5741 = vadd.f32 0.0, %v5740
    %v5742 = vpop.f32.mrf.mxu0
    %5743 = vmatprep.mubr.f32.mxu0 0.0
    %5744 = vmatmul.mubr.f32.gmra.mxu0 %v5672
    %v5745 = vpop.f32.mrf.mxu0
    %v5746 = vadd.f32 0.0, %v5745
    %v5747 = vpop.f32.mrf.mxu0
    %5748 = vdwg.mxu0
    %5751 = vrot.lane.b32.xlu0 %v5305, 8
    %v5752 = vpop.permute.xlu0 %5751
    %5753 = vrot.lane.b32.xlu0 %v5310, 8
    %v5754 = vpop.permute.xlu0 %5753
    %5759 = vrot.lane.b32.xlu0 %v5523, 16
    %v5760 = vpop.permute.xlu0 %5759
    %5761 = vrot.lane.b32.xlu0 %v5528, 16
    %v5762 = vpop.permute.xlu0 %5761
    %5767 = vrot.lane.b32.xlu0 %v5741, 24
    %v5768 = vpop.permute.xlu0 %5767
    %5769 = vrot.lane.b32.xlu0 %v5746, 24
    %v5770 = vpop.permute.xlu0 %5769
    %v5773 = vsel %vm217, %v5087, %v5752
    %v5774 = vsel %vm217, %v5092, %v5754
    %v5775 = vsel %vm50, %v5773, %v5760
    %v5776 = vsel %vm50, %v5774, %v5762
    %v5777 = vsel %vm896, %v5775, %v5768
    %v5778 = vsel %vm896, %v5776, %v5770
    %v5779 = vlaneseq
    %v5780 = vshrl.u32 %v5779, 7
    %v5781 = vsub.s32 0, %v5780
    %v5782 = vrot.slane %v4680, %v5781
    %v5784 = vsel %vm140, %v5777, 0
    %v5787 = vsel %vm140, %v5778, 0
    %5789 = vmatprep.subr.mxu0 0.0
    %5790 = vmatpush1.msra.mxu0 0.0
    %5791 = vmatprep.subr.mxu0 0.0
    %5792 = vmatpush1.msra.mxu0 0.0
    %5793 = vmatprep.subr.mxu0 0.0
    %5794 = vmatpush1.msra.mxu0 0.0
    %5795 = vmatprep.subr.mxu0 0.0
    %5796 = vmatpush1.msra.mxu0 0.0
    %5797 = vmatprep.subr.mxu0 0.0
    %5798 = vmatpush1.msra.mxu0 0.0
    %5799 = vmatprep.subr.mxu0 0.0
    %5800 = vmatpush1.msra.mxu0 0.0
    %5801 = vmatprep.subr.mxu0 0.0
    %5802 = vmatpush1.msra.mxu0 0.0
    %5803 = vmatprep.subr.mxu0 0.0
    %5804 = vmatpush1.msra.mxu0 0.0
    %5805 = vmatprep.subr.mxu0 0.0
    %5806 = vmatpush1.msra.mxu0 0.0
    %5807 = vmatprep.subr.mxu0 0.0
    %5808 = vmatpush1.msra.mxu0 0.0
    %5809 = vmatprep.subr.mxu0 0.0
    %5810 = vmatpush1.msra.mxu0 0.0
    %5811 = vmatprep.subr.mxu0 0.0
    %5812 = vmatpush1.msra.mxu0 0.0
    %5813 = vmatprep.subr.mxu0 0.0
    %5814 = vmatpush1.msra.mxu0 %v4679
    %5815 = vmatprep.subr.mxu0 0.0
    %5816 = vmatpush1.msra.mxu0 %v4678
    %5817 = vmatprep.subr.mxu0 0.0
    %5818 = vmatpush1.msra.mxu0 %v4677
    %5819 = vmatprep.subr.mxu0 0.0
    %5820 = vmatpush1.msra.mxu0 %v4676
    %5821 = vmatprep.subr.mxu0 0.0
    %5822 = vmatpush2.msra.mxu0 0.0
    %5823 = vmatprep.subr.mxu0 0.0
    %5824 = vmatpush2.msra.mxu0 0.0
    %5825 = vmatprep.subr.mxu0 0.0
    %5826 = vmatpush2.msra.mxu0 0.0
    %5827 = vmatprep.subr.mxu0 0.0
    %5828 = vmatpush2.msra.mxu0 0.0
    %5829 = vmatprep.subr.mxu0 0.0
    %5830 = vmatpush2.msra.mxu0 0.0
    %5831 = vmatprep.subr.mxu0 0.0
    %5832 = vmatpush2.msra.mxu0 0.0
    %5833 = vmatprep.subr.mxu0 0.0
    %5834 = vmatpush2.msra.mxu0 0.0
    %5835 = vmatprep.subr.mxu0 0.0
    %5836 = vmatpush2.msra.mxu0 0.0
    %5837 = vmatprep.subr.mxu0 0.0
    %5838 = vmatpush2.msra.mxu0 0.0
    %5839 = vmatprep.subr.mxu0 0.0
    %5840 = vmatpush2.msra.mxu0 0.0
    %5841 = vmatprep.subr.mxu0 0.0
    %5842 = vmatpush2.msra.mxu0 0.0
    %5843 = vmatprep.subr.mxu0 0.0
    %5844 = vmatpush2.msra.mxu0 0.0
    %5845 = vmatprep.subr.mxu0 0.0
    %5846 = vmatpush2.msra.mxu0 0.0
    %5847 = vmatprep.subr.mxu0 0.0
    %5848 = vmatpush2.msra.mxu0 0.0
    %5849 = vmatprep.subr.mxu0 0.0
    %5850 = vmatpush2.msra.mxu0 0.0
    %5851 = vmatprep.subr.mxu0 0.0
    %5852 = vmatpush2.msra.mxu0 0.0
    %5853 = vmatprep.mubr.f32.mxu0 0.0
    %5854 = vmatmul.mubr.f32.gmra.mxu0 %v5784
    %v5855 = vpop.f32.mrf.mxu0
    %v5856 = vadd.f32 %v5782, %v5855
    %v5857 = vpop.f32.mrf.mxu0
    %5858 = vmatprep.mubr.f32.mxu0 0.0
    %5859 = vmatmul.mubr.f32.gmra.mxu0 %v5787
    %v5860 = vpop.f32.mrf.mxu0
    %v5861 = vadd.f32 %v5782, %v5860
    %v5862 = vpop.f32.mrf.mxu0
    %5863 = vdwg.mxu0
    %v5864 = vadd.f32 %v4669, %v5856
    %v5865 = vadd.f32 %v4670, %v5861
    %v5866 = vld [vmem:[#allocation2 + $0x538] sm:$0x1]
    %v5867 = vld [vmem:[#allocation2 + $0x540] sm:$0x1]
    %v5868 = vsel %vm140, %v5864, 0.0
    %5869 = vadd.xlane.f32.xlu0 %v5868
    %v5870 = vpop.xlane.xlu0 %5869
    %v5871 = vsel %vm140, %v5865, 0.0
    %5872 = vadd.xlane.f32.xlu0 %v5871
    %v5873 = vpop.xlane.xlu0 %5872
    %v5874 = vmul.f32 %v5870, %v981
    %v5875 = vmul.f32 %v5873, %v981
    %v5876 = vsub.f32 %v5864, %v5874
    %v5877 = vsub.f32 %v5865, %v5875
    %v5878 = vmul.f32 %v5876, %v5876
    %v5879 = vmul.f32 %v5877, %v5877
    %v5880 = vsel %vm140, %v5878, 0.0
    %5881 = vadd.xlane.f32.xlu0 %v5880
    %v5882 = vpop.xlane.xlu0 %5881
    %v5883 = vsel %vm140, %v5879, 0.0
    %5884 = vadd.xlane.f32.xlu0 %v5883
    %v5885 = vpop.xlane.xlu0 %5884
    %v5886 = vmul.f32 %v5882, %v981
    %v5887 = vmul.f32 %v5885, %v981
    %v5888 = vadd.f32 %v5886, 1e-05
    %v5889 = vadd.f32 %v5887, 1e-05
    %v5890 = vrsqrt.pop %v5888
    %v5891 = vrsqrt.pop %v5889
    %v5892 = vmul.f32 %v5876, %v5890
    %v5893 = vmul.f32 %v5877, %v5891
    %v5894 = vlaneseq
    %v5895 = vshrl.u32 %v5894, 7
    %v5896 = vsub.s32 0, %v5895
    %v5897 = vrot.slane %v5866, %v5896
    %v5898 = vmul.f32 %v5892, %v5897
    %v5899 = vmul.f32 %v5893, %v5897
    %v5900 = vlaneseq
    %v5901 = vshrl.u32 %v5900, 7
    %v5902 = vsub.s32 0, %v5901
    %v5903 = vrot.slane %v5867, %v5902
    %v5904 = vadd.f32 %v5898, %v5903
    %v5905 = vadd.f32 %v5899, %v5903
    %v5906 = vld [vmem:[#allocation2 + $0x478] sm:$0xff]
    %v5907 = vld [vmem:[#allocation2 + $0x480] sm:$0xff]
    %v5908 = vld [vmem:[#allocation2 + $0x488] sm:$0xff]
    %v5909 = vld [vmem:[#allocation2 + $0x490] sm:$0xff]
    %v5910 = vld [vmem:[#allocation2 + $0x498] sm:$0x1]
    %v5911 = vlaneseq
    %v5912 = vshrl.u32 %v5911, 7
    %v5913 = vsub.s32 0, %v5912
    %v5914 = vrot.slane %v5910, %v5913
    %v5916 = vsel %vm140, %v5904, 0
    %v5919 = vsel %vm140, %v5905, 0
    %5921 = vmatprep.subr.mxu0 0.0
    %5922 = vmatpush1.msra.mxu0 0.0
    %5923 = vmatprep.subr.mxu0 0.0
    %5924 = vmatpush1.msra.mxu0 0.0
    %5925 = vmatprep.subr.mxu0 0.0
    %5926 = vmatpush1.msra.mxu0 0.0
    %5927 = vmatprep.subr.mxu0 0.0
    %5928 = vmatpush1.msra.mxu0 0.0
    %5929 = vmatprep.subr.mxu0 0.0
    %5930 = vmatpush1.msra.mxu0 0.0
    %5931 = vmatprep.subr.mxu0 0.0
    %5932 = vmatpush1.msra.mxu0 0.0
    %5933 = vmatprep.subr.mxu0 0.0
    %5934 = vmatpush1.msra.mxu0 0.0
    %5935 = vmatprep.subr.mxu0 0.0
    %5936 = vmatpush1.msra.mxu0 0.0
    %5937 = vmatprep.subr.mxu0 0.0
    %5938 = vmatpush1.msra.mxu0 0.0
    %5939 = vmatprep.subr.mxu0 0.0
    %5940 = vmatpush1.msra.mxu0 0.0
    %5941 = vmatprep.subr.mxu0 0.0
    %5942 = vmatpush1.msra.mxu0 0.0
    %5943 = vmatprep.subr.mxu0 0.0
    %5944 = vmatpush1.msra.mxu0 0.0
    %5945 = vmatprep.subr.mxu0 0.0
    %5946 = vmatpush1.msra.mxu0 %v5909
    %5947 = vmatprep.subr.mxu0 0.0
    %5948 = vmatpush1.msra.mxu0 %v5908
    %5949 = vmatprep.subr.mxu0 0.0
    %5950 = vmatpush1.msra.mxu0 %v5907
    %5951 = vmatprep.subr.mxu0 0.0
    %5952 = vmatpush1.msra.mxu0 %v5906
    %5953 = vmatprep.subr.mxu0 0.0
    %5954 = vmatpush2.msra.mxu0 0.0
    %5955 = vmatprep.subr.mxu0 0.0
    %5956 = vmatpush2.msra.mxu0 0.0
    %5957 = vmatprep.subr.mxu0 0.0
    %5958 = vmatpush2.msra.mxu0 0.0
    %5959 = vmatprep.subr.mxu0 0.0
    %5960 = vmatpush2.msra.mxu0 0.0
    %5961 = vmatprep.subr.mxu0 0.0
    %5962 = vmatpush2.msra.mxu0 0.0
    %5963 = vmatprep.subr.mxu0 0.0
    %5964 = vmatpush2.msra.mxu0 0.0
    %5965 = vmatprep.subr.mxu0 0.0
    %5966 = vmatpush2.msra.mxu0 0.0
    %5967 = vmatprep.subr.mxu0 0.0
    %5968 = vmatpush2.msra.mxu0 0.0
    %5969 = vmatprep.subr.mxu0 0.0
    %5970 = vmatpush2.msra.mxu0 0.0
    %5971 = vmatprep.subr.mxu0 0.0
    %5972 = vmatpush2.msra.mxu0 0.0
    %5973 = vmatprep.subr.mxu0 0.0
    %5974 = vmatpush2.msra.mxu0 0.0
    %5975 = vmatprep.subr.mxu0 0.0
    %5976 = vmatpush2.msra.mxu0 0.0
    %5977 = vmatprep.subr.mxu0 0.0
    %5978 = vmatpush2.msra.mxu0 0.0
    %5979 = vmatprep.subr.mxu0 0.0
    %5980 = vmatpush2.msra.mxu0 0.0
    %5981 = vmatprep.subr.mxu0 0.0
    %5982 = vmatpush2.msra.mxu0 0.0
    %5983 = vmatprep.subr.mxu0 0.0
    %5984 = vmatpush2.msra.mxu0 0.0
    %5985 = vmatprep.mubr.f32.mxu0 0.0
    %5986 = vmatmul.mubr.f32.gmra.mxu0 %v5916
    %v5987 = vpop.f32.mrf.mxu0
    %v5988 = vadd.f32 %v5914, %v5987
    %v5989 = vpop.f32.mrf.mxu0
    %5990 = vmatprep.mubr.f32.mxu0 0.0
    %5991 = vmatmul.mubr.f32.gmra.mxu0 %v5919
    %v5992 = vpop.f32.mrf.mxu0
    %v5993 = vadd.f32 %v5914, %v5992
    %v5994 = vpop.f32.mrf.mxu0
    %5995 = vdwg.mxu0
    %v5996 = vmax.f32 %v5988, 0.0
    %v5997 = vmax.f32 %v5993, 0.0
    %v5998 = vld [vmem:[#allocation2 + $0x4a0] sm:$0xff]
    %v5999 = vld [vmem:[#allocation2 + $0x4a8] sm:$0xff]
    %v6000 = vld [vmem:[#allocation2 + $0x4b0] sm:$0xff]
    %v6001 = vld [vmem:[#allocation2 + $0x4b8] sm:$0xff]
    %v6002 = vld [vmem:[#allocation2 + $0x4c0] sm:$0xff]
    %v6003 = vld [vmem:[#allocation2 + $0x4c8] sm:$0xff]
    %v6004 = vld [vmem:[#allocation2 + $0x4d0] sm:$0xff]
    %v6005 = vld [vmem:[#allocation2 + $0x4d8] sm:$0xff]
    %v6006 = vld [vmem:[#allocation2 + $0x4e0] sm:$0xff]
    %v6007 = vld [vmem:[#allocation2 + $0x4e8] sm:$0xff]
    %v6008 = vld [vmem:[#allocation2 + $0x4f0] sm:$0xff]
    %v6009 = vld [vmem:[#allocation2 + $0x4f8] sm:$0xff]
    %v6010 = vld [vmem:[#allocation2 + $0x500] sm:$0xff]
    %v6011 = vld [vmem:[#allocation2 + $0x508] sm:$0xff]
    %v6012 = vld [vmem:[#allocation2 + $0x510] sm:$0xff]
    %v6013 = vld [vmem:[#allocation2 + $0x518] sm:$0xff]
    %v6014 = vld [vmem:[#allocation2 + $0x520] sm:$0x1]
    %v6015 = vlaneseq
    %v6016 = vshrl.u32 %v6015, 7
    %v6017 = vsub.s32 0, %v6016
    %v6018 = vrot.slane %v6014, %v6017
    %6019 = vmatprep.subr.mxu0 0.0
    %6020 = vmatpush1.msra.mxu0 %v6013
    %6021 = vmatprep.subr.mxu0 0.0
    %6022 = vmatpush1.msra.mxu0 %v6012
    %6023 = vmatprep.subr.mxu0 0.0
    %6024 = vmatpush1.msra.mxu0 %v6011
    %6025 = vmatprep.subr.mxu0 0.0
    %6026 = vmatpush1.msra.mxu0 %v6010
    %6027 = vmatprep.subr.mxu0 0.0
    %6028 = vmatpush1.msra.mxu0 %v6009
    %6029 = vmatprep.subr.mxu0 0.0
    %6030 = vmatpush1.msra.mxu0 %v6008
    %6031 = vmatprep.subr.mxu0 0.0
    %6032 = vmatpush1.msra.mxu0 %v6007
    %6033 = vmatprep.subr.mxu0 0.0
    %6034 = vmatpush1.msra.mxu0 %v6006
    %6035 = vmatprep.subr.mxu0 0.0
    %6036 = vmatpush1.msra.mxu0 %v6005
    %6037 = vmatprep.subr.mxu0 0.0
    %6038 = vmatpush1.msra.mxu0 %v6004
    %6039 = vmatprep.subr.mxu0 0.0
    %6040 = vmatpush1.msra.mxu0 %v6003
    %6041 = vmatprep.subr.mxu0 0.0
    %6042 = vmatpush1.msra.mxu0 %v6002
    %6043 = vmatprep.subr.mxu0 0.0
    %6044 = vmatpush1.msra.mxu0 %v6001
    %6045 = vmatprep.subr.mxu0 0.0
    %6046 = vmatpush1.msra.mxu0 %v6000
    %6047 = vmatprep.subr.mxu0 0.0
    %6048 = vmatpush1.msra.mxu0 %v5999
    %6049 = vmatprep.subr.mxu0 0.0
    %6050 = vmatpush1.msra.mxu0 %v5998
    %6051 = vmatprep.subr.mxu0 0.0
    %6052 = vmatpush2.msra.mxu0 0.0
    %6053 = vmatprep.subr.mxu0 0.0
    %6054 = vmatpush2.msra.mxu0 0.0
    %6055 = vmatprep.subr.mxu0 0.0
    %6056 = vmatpush2.msra.mxu0 0.0
    %6057 = vmatprep.subr.mxu0 0.0
    %6058 = vmatpush2.msra.mxu0 0.0
    %6059 = vmatprep.subr.mxu0 0.0
    %6060 = vmatpush2.msra.mxu0 0.0
    %6061 = vmatprep.subr.mxu0 0.0
    %6062 = vmatpush2.msra.mxu0 0.0
    %6063 = vmatprep.subr.mxu0 0.0
    %6064 = vmatpush2.msra.mxu0 0.0
    %6065 = vmatprep.subr.mxu0 0.0
    %6066 = vmatpush2.msra.mxu0 0.0
    %6067 = vmatprep.subr.mxu0 0.0
    %6068 = vmatpush2.msra.mxu0 0.0
    %6069 = vmatprep.subr.mxu0 0.0
    %6070 = vmatpush2.msra.mxu0 0.0
    %6071 = vmatprep.subr.mxu0 0.0
    %6072 = vmatpush2.msra.mxu0 0.0
    %6073 = vmatprep.subr.mxu0 0.0
    %6074 = vmatpush2.msra.mxu0 0.0
    %6075 = vmatprep.subr.mxu0 0.0
    %6076 = vmatpush2.msra.mxu0 0.0
    %6077 = vmatprep.subr.mxu0 0.0
    %6078 = vmatpush2.msra.mxu0 0.0
    %6079 = vmatprep.subr.mxu0 0.0
    %6080 = vmatpush2.msra.mxu0 0.0
    %6081 = vmatprep.subr.mxu0 0.0
    %6082 = vmatpush2.msra.mxu0 0.0
    %6083 = vmatprep.mubr.f32.mxu0 0.0
    %6084 = vmatmul.mubr.f32.gmra.mxu0 %v5996
    %v6085 = vpop.f32.mrf.mxu0
    %v6086 = vadd.f32 %v6018, %v6085
    %v6087 = vpop.f32.mrf.mxu0
    %6088 = vmatprep.mubr.f32.mxu0 0.0
    %6089 = vmatmul.mubr.f32.gmra.mxu0 %v5997
    %v6090 = vpop.f32.mrf.mxu0
    %v6091 = vadd.f32 %v6018, %v6090
    %v6092 = vpop.f32.mrf.mxu0
    %6093 = vdwg.mxu0
    %v6094 = vadd.f32 %v5904, %v6086
    %v6095 = vadd.f32 %v5905, %v6091
    %v6096 = vld [vmem:[#allocation2 + $0x548] sm:$0x1]
    %v6097 = vld [vmem:[#allocation2 + $0x550] sm:$0x1]
    %v6098 = vsel %vm140, %v6094, 0.0
    %6099 = vadd.xlane.f32.xlu0 %v6098
    %v6100 = vpop.xlane.xlu0 %6099
    %v6101 = vsel %vm140, %v6095, 0.0
    %6102 = vadd.xlane.f32.xlu0 %v6101
    %v6103 = vpop.xlane.xlu0 %6102
    %v6104 = vmul.f32 %v6100, %v981
    %v6105 = vmul.f32 %v6103, %v981
    %v6106 = vsub.f32 %v6094, %v6104
    %v6107 = vsub.f32 %v6095, %v6105
    %v6108 = vmul.f32 %v6106, %v6106
    %v6109 = vmul.f32 %v6107, %v6107
    %v6110 = vsel %vm140, %v6108, 0.0
    %6111 = vadd.xlane.f32.xlu0 %v6110
    %v6112 = vpop.xlane.xlu0 %6111
    %v6113 = vsel %vm140, %v6109, 0.0
    %6114 = vadd.xlane.f32.xlu0 %v6113
    %v6115 = vpop.xlane.xlu0 %6114
    %v6116 = vmul.f32 %v6112, %v981
    %v6117 = vmul.f32 %v6115, %v981
    %v6118 = vadd.f32 %v6116, 1e-05
    %v6119 = vadd.f32 %v6117, 1e-05
    %v6120 = vrsqrt.pop %v6118
    %v6121 = vrsqrt.pop %v6119
    %v6122 = vmul.f32 %v6106, %v6120
    %v6123 = vmul.f32 %v6107, %v6121
    %v6124 = vlaneseq
    %v6125 = vshrl.u32 %v6124, 7
    %v6126 = vsub.s32 0, %v6125
    %v6127 = vrot.slane %v6096, %v6126
    %v6128 = vmul.f32 %v6122, %v6127
    %v6129 = vmul.f32 %v6123, %v6127
    %v6130 = vlaneseq
    %v6131 = vshrl.u32 %v6130, 7
    %v6132 = vsub.s32 0, %v6131
    %v6133 = vrot.slane %v6097, %v6132
    %v6134 = vadd.f32 %v6128, %v6133
    %v6135 = vadd.f32 %v6129, %v6133
    %v6136 = vld [vmem:[#allocation2 + $0x558] sm:$0xff]
    %v6137 = vld [vmem:[#allocation2 + $0x560] sm:$0xff]
    %v6138 = vld [vmem:[#allocation2 + $0x568] sm:$0xff]
    %v6139 = vld [vmem:[#allocation2 + $0x570] sm:$0xff]
    %v6140 = vld [vmem:[#allocation2 + $0x578] sm:$0x1]
    %v6141 = vlaneseq
    %v6142 = vshrl.u32 %v6141, 7
    %v6143 = vsub.s32 0, %v6142
    %v6144 = vrot.slane %v6140, %v6143
    %v6146 = vsel %vm140, %v6134, 0
    %v6149 = vsel %vm140, %v6135, 0
    %6151 = vmatprep.subr.mxu0 0.0
    %6152 = vmatpush1.msra.mxu0 0.0
    %6153 = vmatprep.subr.mxu0 0.0
    %6154 = vmatpush1.msra.mxu0 0.0
    %6155 = vmatprep.subr.mxu0 0.0
    %6156 = vmatpush1.msra.mxu0 0.0
    %6157 = vmatprep.subr.mxu0 0.0
    %6158 = vmatpush1.msra.mxu0 0.0
    %6159 = vmatprep.subr.mxu0 0.0
    %6160 = vmatpush1.msra.mxu0 0.0
    %6161 = vmatprep.subr.mxu0 0.0
    %6162 = vmatpush1.msra.mxu0 0.0
    %6163 = vmatprep.subr.mxu0 0.0
    %6164 = vmatpush1.msra.mxu0 0.0
    %6165 = vmatprep.subr.mxu0 0.0
    %6166 = vmatpush1.msra.mxu0 0.0
    %6167 = vmatprep.subr.mxu0 0.0
    %6168 = vmatpush1.msra.mxu0 0.0
    %6169 = vmatprep.subr.mxu0 0.0
    %6170 = vmatpush1.msra.mxu0 0.0
    %6171 = vmatprep.subr.mxu0 0.0
    %6172 = vmatpush1.msra.mxu0 0.0
    %6173 = vmatprep.subr.mxu0 0.0
    %6174 = vmatpush1.msra.mxu0 0.0
    %6175 = vmatprep.subr.mxu0 0.0
    %6176 = vmatpush1.msra.mxu0 %v6139
    %6177 = vmatprep.subr.mxu0 0.0
    %6178 = vmatpush1.msra.mxu0 %v6138
    %6179 = vmatprep.subr.mxu0 0.0
    %6180 = vmatpush1.msra.mxu0 %v6137
    %6181 = vmatprep.subr.mxu0 0.0
    %6182 = vmatpush1.msra.mxu0 %v6136
    %6183 = vmatprep.subr.mxu0 0.0
    %6184 = vmatpush2.msra.mxu0 0.0
    %6185 = vmatprep.subr.mxu0 0.0
    %6186 = vmatpush2.msra.mxu0 0.0
    %6187 = vmatprep.subr.mxu0 0.0
    %6188 = vmatpush2.msra.mxu0 0.0
    %6189 = vmatprep.subr.mxu0 0.0
    %6190 = vmatpush2.msra.mxu0 0.0
    %6191 = vmatprep.subr.mxu0 0.0
    %6192 = vmatpush2.msra.mxu0 0.0
    %6193 = vmatprep.subr.mxu0 0.0
    %6194 = vmatpush2.msra.mxu0 0.0
    %6195 = vmatprep.subr.mxu0 0.0
    %6196 = vmatpush2.msra.mxu0 0.0
    %6197 = vmatprep.subr.mxu0 0.0
    %6198 = vmatpush2.msra.mxu0 0.0
    %6199 = vmatprep.subr.mxu0 0.0
    %6200 = vmatpush2.msra.mxu0 0.0
    %6201 = vmatprep.subr.mxu0 0.0
    %6202 = vmatpush2.msra.mxu0 0.0
    %6203 = vmatprep.subr.mxu0 0.0
    %6204 = vmatpush2.msra.mxu0 0.0
    %6205 = vmatprep.subr.mxu0 0.0
    %6206 = vmatpush2.msra.mxu0 0.0
    %6207 = vmatprep.subr.mxu0 0.0
    %6208 = vmatpush2.msra.mxu0 0.0
    %6209 = vmatprep.subr.mxu0 0.0
    %6210 = vmatpush2.msra.mxu0 0.0
    %6211 = vmatprep.subr.mxu0 0.0
    %6212 = vmatpush2.msra.mxu0 0.0
    %6213 = vmatprep.subr.mxu0 0.0
    %6214 = vmatpush2.msra.mxu0 0.0
    %6215 = vmatprep.mubr.f32.mxu0 0.0
    %6216 = vmatmul.mubr.f32.gmra.mxu0 %v6146
    %v6217 = vpop.f32.mrf.mxu0
    %v6218 = vadd.f32 %v6144, %v6217
    %v6219 = vpop.f32.mrf.mxu0
    %6220 = vmatprep.mubr.f32.mxu0 0.0
    %6221 = vmatmul.mubr.f32.gmra.mxu0 %v6149
    %v6222 = vpop.f32.mrf.mxu0
    %v6223 = vadd.f32 %v6144, %v6222
    %v6224 = vpop.f32.mrf.mxu0
    %6225 = vdwg.mxu0
    %6226 = vst [vmem:[%s6] sm:$0xff] %v6218
    %6227 = vst [vmem:[%s6 + $0x8] sm:$0xff] %v6223
    // Predicated region
    $region30: #{forward.1} parent=1 // pred_check
      _
    $region31: #{forward.1} parent=1 // pred_check_branch
      %6229 = sbr.rel (0) target = $region33
    $region32: #{forward.1} parent=1 // pred_region
      _
    $region33: #{forward.1} parent=1 // pred_fallthru
      _
    // Predicated region
    $region34: #{forward.1} parent=1 // pred_check
      _
    $region35: #{forward.1} parent=1 // pred_check_branch
      %6231 = sbr.rel (0) target = $region37
    $region36: #{forward.1} parent=1 // pred_region
      _
    $region37: #{forward.1} parent=1 // pred_fallthru
      _
    %6232 = vsyncpa [#allocation3], 1

</llo_original>
